<compile_context>
chip_gen: v6e
topology: v6e:2x2x1
jax: 0.10.0
libtpu: 0.0.40
codegen_flags: <defaults>
</compile_context>

<pallas_src>
import functools

import numpy as np

import jax
import jax.numpy as jnp
from jax import lax
from jax.experimental import pallas as pl
from jax.experimental.pallas import tpu as pltpu


_BN_EPS = 1e-5


# ----------------------------------------------------------------------------
# Fused kernel
# ----------------------------------------------------------------------------
def _make_decoder_kernel(layer_meta):
    """Builds the fused decoder kernel.

    layer_meta: tuple of dicts with static keys:
        bn  : bool   - apply BatchNorm (batch statistics) before the activation
        act : str    - 'relu' or 'tanh'
        cnt : float  - N * OH * OW (BatchNorm reduction count)

    Ref layout (all VMEM, whole-array blocks):
        [ z(N,Cz),
          per layer: T(Fin,Fout) bf16, and if bn: S(Fout,C), ST(C,Fout), gamma(1,C), beta(1,C),
          ...,
          out(N,Fout_last) ]
    """

    def kernel(*refs):
        o_ref = refs[-1]
        it = iter(refs[:-1])

        x = next(it)[...].astype(jnp.float32)                     # (N, Cz)

        for meta in layer_meta:
            t_ref = next(it)
            # One full-depth MXU matmul per layer (bf16 operands, f32 accumulation).
            y = jnp.dot(x.astype(jnp.bfloat16), t_ref[...],
                        preferred_element_type=jnp.float32)       # (N, Fout) f32

            if meta['bn']:
                s_ref = next(it)        # (Fout, C)  0/1 pooling matrix
                st_ref = next(it)       # (C, Fout)  its transpose (broadcast matrix)
                g_ref = next(it)        # (1, C)
                b_ref = next(it)        # (1, C)
                inv_cnt = 1.0 / meta['cnt']

                # Single reduction pass: sum and sum-of-squares.
                colsum = jnp.sum(y, axis=0, keepdims=True)        # (1, Fout)
                colsumsq = jnp.sum(y * y, axis=0, keepdims=True)  # (1, Fout)
                ch_sum = jnp.dot(colsum, s_ref[...],
                                 preferred_element_type=jnp.float32)    # (1, C)
                ch_sumsq = jnp.dot(colsumsq, s_ref[...],
                                   preferred_element_type=jnp.float32)  # (1, C)

                mean = ch_sum * inv_cnt
                var = jnp.maximum(ch_sumsq * inv_cnt - mean * mean, 0.0)  # biased var
                inv = lax.rsqrt(var + _BN_EPS)
                scale = inv * g_ref[...]                          # (1, C)
                bias = b_ref[...] - mean * scale                  # (1, C)

                # Broadcast per-channel scale/bias onto the flattened (h, w, c) axis.
                scale_f = jnp.dot(scale, st_ref[...],
                                  preferred_element_type=jnp.float32)   # (1, Fout)
                bias_f = jnp.dot(bias, st_ref[...],
                                 preferred_element_type=jnp.float32)    # (1, Fout)
                y = y * scale_f + bias_f

            if meta['act'] == 'relu':
                y = jnp.maximum(y, 0.0)
            elif meta['act'] == 'tanh':
                y = jnp.tanh(y)

            x = y

        o_ref[...] = x.astype(o_ref.dtype)

    return kernel


# ----------------------------------------------------------------------------
# Host-side (build-once) weight preprocessing
# ----------------------------------------------------------------------------
def _dense_convT_matrix(w_pt, H, W, stride, padding):
    """Dense matrix of ConvTranspose2d (no bias).

    w_pt: (Cin, Cout, K, K) PyTorch-layout weight.
    Returns T with shape (H*W*Cin, OH*OW*Cout), row index (ih, iw, ci),
    column index (oh, ow, co), plus (OH, OW).
    """
    w = np.asarray(w_pt, dtype=np.float32)
    Cin, Cout, K, _ = w.shape
    OH = (H - 1) * stride - 2 * padding + K
    OW = (W - 1) * stride - 2 * padding + K
    T = np.zeros((H, W, Cin, OH, OW, Cout), np.float32)
    for ih in range(H):
        for kh in range(K):
            oh = ih * stride - padding + kh
            if oh < 0 or oh >= OH:
                continue
            for iw in range(W):
                for kw in range(K):
                    ow = iw * stride - padding + kw
                    if ow < 0 or ow >= OW:
                        continue
                    T[ih, iw, :, oh, ow, :] += w[:, :, kh, kw]
    return T.reshape(H * W * Cin, OH * OW * Cout), OH, OW


def build_decoder_params(key, image_size, n_chan, n_hidden, n_z):
    assert image_size % 16 == 0, 'Image size should be a multiple of 16'
    # (cin, cout, k, s, p, batch_norm, activation) — mirrors make_conv_layer loop.
    cfgs = [(n_z, n_hidden, 4, 1, 0, True, 'relu')]
    cur, h = 4, n_hidden
    while cur < image_size // 2:
        cfgs.append((h, h // 2, 4, 2, 1, True, 'relu'))
        h //= 2
        cur *= 2
    cfgs.append((h, n_chan, 4, 2, 1, False, 'tanh'))

    layers = []
    H = W = 1
    for (cin, cout, k, s, p, bn, act) in cfgs:
        key, wk = jax.random.split(key)
        w = 0.02 * jax.random.normal(wk, (cin, cout, k, k), jnp.float32)
        t_np, OH, OW = _dense_convT_matrix(w, H, W, s, p)
        layer = dict(
            t=jnp.asarray(t_np, jnp.bfloat16),     # bf16 MXU operand
            bn=bn, act=act, oh=OH, ow=OW, cout=cout)
        if bn:
            pool = np.tile(np.eye(cout, dtype=np.float32), (OH * OW, 1))
            layer['S'] = jnp.asarray(pool)                     # (OH*OW*cout, cout)
            layer['ST'] = jnp.asarray(np.ascontiguousarray(pool.T))  # (cout, OH*OW*cout)
            layer['gamma'] = jnp.ones((1, cout), jnp.float32)  # PyTorch BN default init
            layer['beta'] = jnp.zeros((1, cout), jnp.float32)
        layers.append(layer)
        H, W = OH, OW

    return dict(layers=layers, image_size=image_size, n_chan=n_chan)


# ----------------------------------------------------------------------------
# Forward pass (single fused pallas_call)
# ----------------------------------------------------------------------------
def decoder_forward(params, z_nchw):
    layers = params['layers']
    N = z_nchw.shape[0]
    z2d = z_nchw.reshape(N, -1)             # latent is (N, n_z, 1, 1) -> (N, n_z)

    inputs = [z2d]
    meta = []
    for layer in layers:
        inputs.append(layer['t'])
        if layer['bn']:
            inputs.extend([layer['S'], layer['ST'], layer['gamma'], layer['beta']])
        meta.append(dict(bn=layer['bn'], act=layer['act'],
                         cnt=float(N * layer['oh'] * layer['ow'])))

    last = layers[-1]
    OH, OW, Cout = last['oh'], last['ow'], last['cout']

    vmem = pl.BlockSpec(memory_space=pltpu.MemorySpace.VMEM)
    out_flat = pl.pallas_call(
        _make_decoder_kernel(tuple(meta)),
        out_shape=jax.ShapeDtypeStruct((N, OH * OW * Cout), jnp.float32),
        in_specs=[vmem] * len(inputs),
        out_specs=vmem,
    )(*inputs)

    # Layout glue only (outside the kernel): flattened NHWC -> NCHW.
    return jnp.transpose(out_flat.reshape(N, OH, OW, Cout), (0, 3, 1, 2))


if __name__ == "__main__":
    image_size, n_chan, n_hidden, n_z, batch = 16, 3, 32, 8, 2

    key = jax.random.PRNGKey(0)
    pkey, zkey = jax.random.split(key)
    params = build_decoder_params(pkey, image_size, n_chan, n_hidden, n_z)

    z = jax.random.normal(zkey, (batch, n_z, 1, 1), jnp.float32)   # NCHW latent

    out = decoder_forward(params, z)
    out = jax.block_until_ready(out)

    assert out.shape == (batch, n_chan, image_size, image_size), out.shape
    assert bool(jnp.all(jnp.isfinite(out)))
    assert bool(jnp.all(jnp.abs(out) <= 1.0 + 1e-6))   # Tanh output range
    print("KERNEL_OK")
</pallas_src>

<mosaic_0001>
module attributes {stable_mosaic.version = 11 : i64} {
  func.func @kernel(%arg0: memref<2x8xf32, #tpu.memory_space<vmem>>, %arg1: memref<8x512xbf16, #tpu.memory_space<vmem>>, %arg2: memref<512x32xf32, #tpu.memory_space<vmem>>, %arg3: memref<32x512xf32, #tpu.memory_space<vmem>>, %arg4: memref<1x32xf32, #tpu.memory_space<vmem>>, %arg5: memref<1x32xf32, #tpu.memory_space<vmem>>, %arg6: memref<512x1024xbf16, #tpu.memory_space<vmem>>, %arg7: memref<1024x16xf32, #tpu.memory_space<vmem>>, %arg8: memref<16x1024xf32, #tpu.memory_space<vmem>>, %arg9: memref<1x16xf32, #tpu.memory_space<vmem>>, %arg10: memref<1x16xf32, #tpu.memory_space<vmem>>, %arg11: memref<1024x768xbf16, #tpu.memory_space<vmem>>, %arg12: memref<2x768xf32, #tpu.memory_space<vmem>>) attributes {dimension_semantics = [], scalar_prefetch = 0 : i64, scratch_operands = 0 : i64, tpu.core_type = #tpu.core_type<tc>} {
    %c0 = arith.constant 0 : index
    %c0_0 = arith.constant 0 : index
    %0 = vector.load %arg0[%c0, %c0_0] : memref<2x8xf32, #tpu.memory_space<vmem>>, vector<2x8xf32>
    %1 = arith.truncf %0 : vector<2x8xf32> to vector<2x8xbf16>
    %c0_1 = arith.constant 0 : index
    %c0_2 = arith.constant 0 : index
    %2 = vector.load %arg1[%c0_1, %c0_2] : memref<8x512xbf16, #tpu.memory_space<vmem>>, vector<8x512xbf16>
    %cst = arith.constant dense<0.000000e+00> : vector<2x512xf32>
    %3 = tpu.matmul %1, %2, %cst {dimension_numbers = #tpu.dot_dimension_numbers<[1], [0], [0], [1], [0, 0, 1, 1], [], []>} : vector<2x8xbf16>, vector<8x512xbf16>, vector<2x512xf32> -> vector<2x512xf32>
    %cst_3 = arith.constant dense<0.000000e+00> : vector<512xf32>
    %4 = vector.multi_reduction <add>, %3, %cst_3 [0] : vector<2x512xf32> to vector<512xf32>
    %5 = vector.shape_cast %4 : vector<512xf32> to vector<1x512xf32>
    %6 = arith.mulf %3, %3 : vector<2x512xf32>
    %cst_4 = arith.constant dense<0.000000e+00> : vector<512xf32>
    %7 = vector.multi_reduction <add>, %6, %cst_4 [0] : vector<2x512xf32> to vector<512xf32>
    %8 = vector.shape_cast %7 : vector<512xf32> to vector<1x512xf32>
    %c0_5 = arith.constant 0 : index
    %c0_6 = arith.constant 0 : index
    %9 = vector.load %arg2[%c0_5, %c0_6] : memref<512x32xf32, #tpu.memory_space<vmem>>, vector<512x32xf32>
    %cst_7 = arith.constant dense<0.000000e+00> : vector<1x32xf32>
    %10 = tpu.matmul %5, %9, %cst_7 {dimension_numbers = #tpu.dot_dimension_numbers<[1], [0], [0], [1], [0, 0, 1, 1], [], []>} : vector<1x512xf32>, vector<512x32xf32>, vector<1x32xf32> -> vector<1x32xf32>
    %c0_8 = arith.constant 0 : index
    %c0_9 = arith.constant 0 : index
    %11 = vector.load %arg2[%c0_8, %c0_9] : memref<512x32xf32, #tpu.memory_space<vmem>>, vector<512x32xf32>
    %cst_10 = arith.constant dense<0.000000e+00> : vector<1x32xf32>
    %12 = tpu.matmul %8, %11, %cst_10 {dimension_numbers = #tpu.dot_dimension_numbers<[1], [0], [0], [1], [0, 0, 1, 1], [], []>} : vector<1x512xf32>, vector<512x32xf32>, vector<1x32xf32> -> vector<1x32xf32>
    %cst_11 = arith.constant 3.125000e-02 : f32
    %13 = vector.broadcast %cst_11 : f32 to vector<1x32xf32>
    %14 = arith.mulf %10, %13 : vector<1x32xf32>
    %cst_12 = arith.constant 3.125000e-02 : f32
    %15 = vector.broadcast %cst_12 : f32 to vector<1x32xf32>
    %16 = arith.mulf %12, %15 : vector<1x32xf32>
    %17 = arith.mulf %14, %14 : vector<1x32xf32>
    %18 = arith.subf %16, %17 : vector<1x32xf32>
    %cst_13 = arith.constant 0.000000e+00 : f32
    %19 = vector.broadcast %cst_13 : f32 to vector<1x32xf32>
    %20 = arith.maximumf %18, %19 : vector<1x32xf32>
    %cst_14 = arith.constant 9.99999974E-6 : f32
    %21 = vector.broadcast %cst_14 : f32 to vector<1x32xf32>
    %22 = arith.addf %20, %21 : vector<1x32xf32>
    %23 = math.rsqrt %22 : vector<1x32xf32>
    %c0_15 = arith.constant 0 : index
    %c0_16 = arith.constant 0 : index
    %24 = vector.load %arg4[%c0_15, %c0_16] : memref<1x32xf32, #tpu.memory_space<vmem>>, vector<1x32xf32>
    %25 = arith.mulf %23, %24 : vector<1x32xf32>
    %c0_17 = arith.constant 0 : index
    %c0_18 = arith.constant 0 : index
    %26 = vector.load %arg5[%c0_17, %c0_18] : memref<1x32xf32, #tpu.memory_space<vmem>>, vector<1x32xf32>
    %27 = arith.mulf %14, %25 : vector<1x32xf32>
    %28 = arith.subf %26, %27 : vector<1x32xf32>
    %c0_19 = arith.constant 0 : index
    %c0_20 = arith.constant 0 : index
    %29 = vector.load %arg3[%c0_19, %c0_20] : memref<32x512xf32, #tpu.memory_space<vmem>>, vector<32x512xf32>
    %cst_21 = arith.constant dense<0.000000e+00> : vector<1x512xf32>
    %30 = tpu.matmul %25, %29, %cst_21 {dimension_numbers = #tpu.dot_dimension_numbers<[1], [0], [0], [1], [0, 0, 1, 1], [], []>} : vector<1x32xf32>, vector<32x512xf32>, vector<1x512xf32> -> vector<1x512xf32>
    %c0_22 = arith.constant 0 : index
    %c0_23 = arith.constant 0 : index
    %31 = vector.load %arg3[%c0_22, %c0_23] : memref<32x512xf32, #tpu.memory_space<vmem>>, vector<32x512xf32>
    %cst_24 = arith.constant dense<0.000000e+00> : vector<1x512xf32>
    %32 = tpu.matmul %28, %31, %cst_24 {dimension_numbers = #tpu.dot_dimension_numbers<[1], [0], [0], [1], [0, 0, 1, 1], [], []>} : vector<1x32xf32>, vector<32x512xf32>, vector<1x512xf32> -> vector<1x512xf32>
    %33 = vector.broadcast %30 : vector<1x512xf32> to vector<2x512xf32>
    %34 = arith.mulf %3, %33 : vector<2x512xf32>
    %35 = vector.broadcast %32 : vector<1x512xf32> to vector<2x512xf32>
    %36 = arith.addf %34, %35 : vector<2x512xf32>
    %cst_25 = arith.constant 0.000000e+00 : f32
    %37 = vector.broadcast %cst_25 : f32 to vector<2x512xf32>
    %38 = arith.maximumf %36, %37 : vector<2x512xf32>
    %39 = arith.truncf %38 : vector<2x512xf32> to vector<2x512xbf16>
    %c0_26 = arith.constant 0 : index
    %c0_27 = arith.constant 0 : index
    %40 = vector.load %arg6[%c0_26, %c0_27] : memref<512x1024xbf16, #tpu.memory_space<vmem>>, vector<512x1024xbf16>
    %cst_28 = arith.constant dense<0.000000e+00> : vector<2x1024xf32>
    %41 = tpu.matmul %39, %40, %cst_28 {dimension_numbers = #tpu.dot_dimension_numbers<[1], [0], [0], [1], [0, 0, 1, 1], [], []>} : vector<2x512xbf16>, vector<512x1024xbf16>, vector<2x1024xf32> -> vector<2x1024xf32>
    %cst_29 = arith.constant dense<0.000000e+00> : vector<1024xf32>
    %42 = vector.multi_reduction <add>, %41, %cst_29 [0] : vector<2x1024xf32> to vector<1024xf32>
    %43 = vector.shape_cast %42 : vector<1024xf32> to vector<1x1024xf32>
    %44 = arith.mulf %41, %41 : vector<2x1024xf32>
    %cst_30 = arith.constant dense<0.000000e+00> : vector<1024xf32>
    %45 = vector.multi_reduction <add>, %44, %cst_30 [0] : vector<2x1024xf32> to vector<1024xf32>
    %46 = vector.shape_cast %45 : vector<1024xf32> to vector<1x1024xf32>
    %c0_31 = arith.constant 0 : index
    %c0_32 = arith.constant 0 : index
    %47 = vector.load %arg7[%c0_31, %c0_32] : memref<1024x16xf32, #tpu.memory_space<vmem>>, vector<1024x16xf32>
    %cst_33 = arith.constant dense<0.000000e+00> : vector<1x16xf32>
    %48 = tpu.matmul %43, %47, %cst_33 {dimension_numbers = #tpu.dot_dimension_numbers<[1], [0], [0], [1], [0, 0, 1, 1], [], []>} : vector<1x1024xf32>, vector<1024x16xf32>, vector<1x16xf32> -> vector<1x16xf32>
    %c0_34 = arith.constant 0 : index
    %c0_35 = arith.constant 0 : index
    %49 = vector.load %arg7[%c0_34, %c0_35] : memref<1024x16xf32, #tpu.memory_space<vmem>>, vector<1024x16xf32>
    %cst_36 = arith.constant dense<0.000000e+00> : vector<1x16xf32>
    %50 = tpu.matmul %46, %49, %cst_36 {dimension_numbers = #tpu.dot_dimension_numbers<[1], [0], [0], [1], [0, 0, 1, 1], [], []>} : vector<1x1024xf32>, vector<1024x16xf32>, vector<1x16xf32> -> vector<1x16xf32>
    %cst_37 = arith.constant 7.812500e-03 : f32
    %51 = vector.broadcast %cst_37 : f32 to vector<1x16xf32>
    %52 = arith.mulf %48, %51 : vector<1x16xf32>
    %cst_38 = arith.constant 7.812500e-03 : f32
    %53 = vector.broadcast %cst_38 : f32 to vector<1x16xf32>
    %54 = arith.mulf %50, %53 : vector<1x16xf32>
    %55 = arith.mulf %52, %52 : vector<1x16xf32>
    %56 = arith.subf %54, %55 : vector<1x16xf32>
    %cst_39 = arith.constant 0.000000e+00 : f32
    %57 = vector.broadcast %cst_39 : f32 to vector<1x16xf32>
    %58 = arith.maximumf %56, %57 : vector<1x16xf32>
    %cst_40 = arith.constant 9.99999974E-6 : f32
    %59 = vector.broadcast %cst_40 : f32 to vector<1x16xf32>
    %60 = arith.addf %58, %59 : vector<1x16xf32>
    %61 = math.rsqrt %60 : vector<1x16xf32>
    %c0_41 = arith.constant 0 : index
    %c0_42 = arith.constant 0 : index
    %62 = vector.load %arg9[%c0_41, %c0_42] : memref<1x16xf32, #tpu.memory_space<vmem>>, vector<1x16xf32>
    %63 = arith.mulf %61, %62 : vector<1x16xf32>
    %c0_43 = arith.constant 0 : index
    %c0_44 = arith.constant 0 : index
    %64 = vector.load %arg10[%c0_43, %c0_44] : memref<1x16xf32, #tpu.memory_space<vmem>>, vector<1x16xf32>
    %65 = arith.mulf %52, %63 : vector<1x16xf32>
    %66 = arith.subf %64, %65 : vector<1x16xf32>
    %c0_45 = arith.constant 0 : index
    %c0_46 = arith.constant 0 : index
    %67 = vector.load %arg8[%c0_45, %c0_46] : memref<16x1024xf32, #tpu.memory_space<vmem>>, vector<16x1024xf32>
    %cst_47 = arith.constant dense<0.000000e+00> : vector<1x1024xf32>
    %68 = tpu.matmul %63, %67, %cst_47 {dimension_numbers = #tpu.dot_dimension_numbers<[1], [0], [0], [1], [0, 0, 1, 1], [], []>} : vector<1x16xf32>, vector<16x1024xf32>, vector<1x1024xf32> -> vector<1x1024xf32>
    %c0_48 = arith.constant 0 : index
    %c0_49 = arith.constant 0 : index
    %69 = vector.load %arg8[%c0_48, %c0_49] : memref<16x1024xf32, #tpu.memory_space<vmem>>, vector<16x1024xf32>
    %cst_50 = arith.constant dense<0.000000e+00> : vector<1x1024xf32>
    %70 = tpu.matmul %66, %69, %cst_50 {dimension_numbers = #tpu.dot_dimension_numbers<[1], [0], [0], [1], [0, 0, 1, 1], [], []>} : vector<1x16xf32>, vector<16x1024xf32>, vector<1x1024xf32> -> vector<1x1024xf32>
    %71 = vector.broadcast %68 : vector<1x1024xf32> to vector<2x1024xf32>
    %72 = arith.mulf %41, %71 : vector<2x1024xf32>
    %73 = vector.broadcast %70 : vector<1x1024xf32> to vector<2x1024xf32>
    %74 = arith.addf %72, %73 : vector<2x1024xf32>
    %cst_51 = arith.constant 0.000000e+00 : f32
    %75 = vector.broadcast %cst_51 : f32 to vector<2x1024xf32>
    %76 = arith.maximumf %74, %75 : vector<2x1024xf32>
    %77 = arith.truncf %76 : vector<2x1024xf32> to vector<2x1024xbf16>
    %c0_52 = arith.constant 0 : index
    %c0_53 = arith.constant 0 : index
    %78 = vector.load %arg11[%c0_52, %c0_53] : memref<1024x768xbf16, #tpu.memory_space<vmem>>, vector<1024x768xbf16>
    %cst_54 = arith.constant dense<0.000000e+00> : vector<2x768xf32>
    %79 = tpu.matmul %77, %78, %cst_54 {dimension_numbers = #tpu.dot_dimension_numbers<[1], [0], [0], [1], [0, 0, 1, 1], [], []>} : vector<2x1024xbf16>, vector<1024x768xbf16>, vector<2x768xf32> -> vector<2x768xf32>
    %80 = math.tanh %79 : vector<2x768xf32>
    %c0_55 = arith.constant 0 : index
    %c0_56 = arith.constant 0 : index
    %81 = vector.load %arg12[%c0_55, %c0_56] : memref<2x768xf32, #tpu.memory_space<vmem>>, vector<2x768xf32>
    tpu.vector_store %arg12[%c0_55, %c0_56], %80 {strides = array<i32>} : memref<2x768xf32, #tpu.memory_space<vmem>>, vector<2x768xf32>,
    return
  }
}

</mosaic_0001>

<llo_original>
// kernel: tpu_custom_call.1
$region0: #{tpu_custom_call.1}
  #allocation0 [shape = 'u32[]', space=smem, size = 0x4, offset = 0x4, fixed_abs, tag = 'smem constant byte address 0x4 - core index']
  #allocation1 [shape = 'u32[144,128]{1,0:T(1,128)}', space=vmem, size = 0x12000, scoped, tag = 'internal scratch']
  %s0 = inlined_call_operand.hbm [shape: f32[2,8], index: 0, kind: input, shape index: {}]
  %s1 = inlined_call_operand.hbm [shape: bf16[8,512], index: 1, kind: input, shape index: {}]
  %s2 = inlined_call_operand.vmem [shape: f32[512,32], index: 2, kind: input, shape index: {}]
  %s3 = inlined_call_operand.hbm [shape: f32[32,512], index: 3, kind: input, shape index: {}]
  %s4 = inlined_call_operand.hbm [shape: f32[1,32], index: 4, kind: input, shape index: {}]
  %s5 = inlined_call_operand.hbm [shape: f32[1,32], index: 5, kind: input, shape index: {}]
  %s6 = inlined_call_operand.hbm [shape: bf16[512,1024], index: 6, kind: input, shape index: {}]
  %s7 = inlined_call_operand.vmem [shape: f32[1024,16], index: 7, kind: input, shape index: {}]
  %s8 = inlined_call_operand.hbm [shape: f32[16,1024], index: 8, kind: input, shape index: {}]
  %s9 = inlined_call_operand.hbm [shape: f32[1,16], index: 9, kind: input, shape index: {}]
  %s10 = inlined_call_operand.hbm [shape: f32[1,16], index: 10, kind: input, shape index: {}]
  %s11 = inlined_call_operand.hbm [shape: bf16[1024,768], index: 11, kind: input, shape index: {}]
  %s12 = inlined_call_operand.hbm [shape: f32[2,768], index: 12, kind: output, shape index: {}]
  %s13 = sld [smem:[#allocation0]]
  $region98: #{tpu_custom_call.1} parent=0
    _
  %s15 = ssub.s32 1, %s13
  %s16 = scalar_select 0, %s15, %s13
  $region1: #{tpu_custom_call.1} parent=0
    #allocation2 [shape = 'u8[1024]{0}', space=vmem, size = 0x400, scoped, tag = 'input window, operand 0, single buffered']
    #allocation3 [shape = 's32[1]{0}', space=sflag, size = 0x4, scoped, tag = 'scoped memory for tpu_custom_call.1']
    #allocation4 [shape = 's32[1]{0}', space=sflag, size = 0x4, scoped, tag = 'scoped memory for tpu_custom_call.1']
    #allocation5 [shape = 'u8[8192]{0}', space=vmem, size = 0x2000, scoped, tag = 'input window, operand 1, single buffered']
    #allocation6 [shape = 's32[1]{0}', space=sflag, size = 0x4, scoped, tag = 'scoped memory for tpu_custom_call.1']
    #allocation7 [shape = 'u8[65536]{0}', space=vmem, size = 0x10000, scoped, tag = 'input window, operand 3, single buffered']
    #allocation8 [shape = 'u8[512]{0}', space=vmem, size = 0x400, scoped, tag = 'input window, operand 4, single buffered']
    #allocation9 [shape = 's32[1]{0}', space=sflag, size = 0x4, scoped, tag = 'scoped memory for tpu_custom_call.1']
    #allocation10 [shape = 'u8[512]{0}', space=vmem, size = 0x400, scoped, tag = 'input window, operand 5, single buffered']
    #allocation11 [shape = 'u8[1048576]{0}', space=vmem, size = 0x100000, scoped, tag = 'input window, operand 6, single buffered']
    #allocation12 [shape = 's32[1]{0}', space=sflag, size = 0x4, scoped, tag = 'scoped memory for tpu_custom_call.1']
    #allocation13 [shape = 'u8[65536]{0}', space=vmem, size = 0x10000, scoped, tag = 'input window, operand 8, single buffered']
    #allocation14 [shape = 'u8[512]{0}', space=vmem, size = 0x400, scoped, tag = 'input window, operand 9, single buffered']
    #allocation15 [shape = 's32[1]{0}', space=sflag, size = 0x4, scoped, tag = 'scoped memory for tpu_custom_call.1']
    #allocation16 [shape = 'u8[512]{0}', space=vmem, size = 0x400, scoped, tag = 'input window, operand 10, single buffered']
    #allocation17 [shape = 'u8[1572864]{0}', space=vmem, size = 0x180000, scoped, tag = 'input window, operand 11, single buffered']
    #allocation18 [shape = 's32[1]{0}', space=sflag, size = 0x4, scoped, tag = 'scoped memory for tpu_custom_call.1']
    #allocation19 [shape = 'u8[6144]{0}', space=vmem, size = 0x1800, scoped, tag = 'output window, operand 0, single buffered']
    %17 = vsyncpa [#allocation3], 0
    %18 = vsyncpa [#allocation6], 0
    %19 = vsyncpa [#allocation9], 0
    %20 = vsyncpa [#allocation12], 0
    %21 = vsyncpa [#allocation15], 0
    %22 = vsyncpa [#allocation18], 0
    %23 = vsyncpa [#allocation4], 0
    // Predicated region
    $region2: #{tpu_custom_call.1} parent=1 // pred_check
      _
    $region3: #{tpu_custom_call.1} parent=1 // pred_check_branch
      %25 = sbr.rel (0) target = $region5
    $region4: #{tpu_custom_call.1} parent=1 // pred_region
      %s27 = ssub.s32 32, 32
      %28 = vsyncadd [#allocation3], %s27
      %s30 = sshll.u32 [#allocation2], 4
      %s31 = int_to_ptr.vmem [resolvable:$true] %s30
      %33 = dma.hbm_to_vmem [thread:$0]  %s0, 32, %s31, [#allocation3]
    $region5: #{tpu_custom_call.1} parent=1 // pred_fallthru
      _
    // Predicated region
    $region6: #{tpu_custom_call.1} parent=1 // pred_check
      _
    $region7: #{tpu_custom_call.1} parent=1 // pred_check_branch
      %35 = sbr.rel (0) target = $region9
    $region8: #{tpu_custom_call.1} parent=1 // pred_region
      %s37 = ssub.s32 256, 256
      %38 = vsyncadd [#allocation6], %s37
      %s40 = sshll.u32 [#allocation5], 4
      %s41 = int_to_ptr.vmem [resolvable:$true] %s40
      %43 = dma.hbm_to_vmem [thread:$0]  %s1, 256, %s41, [#allocation6]
    $region9: #{tpu_custom_call.1} parent=1 // pred_fallthru
      _
    // Predicated region
    $region10: #{tpu_custom_call.1} parent=1 // pred_check
      _
    $region11: #{tpu_custom_call.1} parent=1 // pred_check_branch
      %45 = sbr.rel (0) target = $region13
    $region12: #{tpu_custom_call.1} parent=1 // pred_region
      _
    $region13: #{tpu_custom_call.1} parent=1 // pred_fallthru
      _
    // Predicated region
    $region14: #{tpu_custom_call.1} parent=1 // pred_check
      _
    $region15: #{tpu_custom_call.1} parent=1 // pred_check_branch
      %47 = sbr.rel (0) target = $region17
    $region16: #{tpu_custom_call.1} parent=1 // pred_region
      %s49 = ssub.s32 2048, 2048
      %50 = vsyncadd [#allocation6], %s49
      %s51 = sshll.u32 [#allocation7], 4
      %s52 = int_to_ptr.vmem [resolvable:$true] %s51
      %57 = dma.hbm_to_vmem [thread:$0]  %s3, 2048, %s52, [#allocation6], 512, 512, 32
    $region17: #{tpu_custom_call.1} parent=1 // pred_fallthru
      _
    // Predicated region
    $region18: #{tpu_custom_call.1} parent=1 // pred_check
      _
    $region19: #{tpu_custom_call.1} parent=1 // pred_check_branch
      %59 = sbr.rel (0) target = $region21
    $region20: #{tpu_custom_call.1} parent=1 // pred_region
      %s61 = ssub.s32 16, 16
      %62 = vsyncadd [#allocation9], %s61
      %s64 = sshll.u32 [#allocation8], 4
      %s65 = int_to_ptr.vmem [resolvable:$true] %s64
      %67 = dma.hbm_to_vmem [thread:$0]  %s4, 16, %s65, [#allocation9]
    $region21: #{tpu_custom_call.1} parent=1 // pred_fallthru
      _
    // Predicated region
    $region22: #{tpu_custom_call.1} parent=1 // pred_check
      _
    $region23: #{tpu_custom_call.1} parent=1 // pred_check_branch
      %69 = sbr.rel (0) target = $region25
    $region24: #{tpu_custom_call.1} parent=1 // pred_region
      %s71 = ssub.s32 16, 16
      %72 = vsyncadd [#allocation9], %s71
      %s74 = sshll.u32 [#allocation10], 4
      %s75 = int_to_ptr.vmem [resolvable:$true] %s74
      %77 = dma.hbm_to_vmem [thread:$0]  %s5, 16, %s75, [#allocation9]
    $region25: #{tpu_custom_call.1} parent=1 // pred_fallthru
      _
    // Predicated region
    $region26: #{tpu_custom_call.1} parent=1 // pred_check
      _
    $region27: #{tpu_custom_call.1} parent=1 // pred_check_branch
      %79 = sbr.rel (0) target = $region29
    $region28: #{tpu_custom_call.1} parent=1 // pred_region
      %s81 = ssub.s32 32768, 32768
      %82 = vsyncadd [#allocation12], %s81
      %s83 = sshll.u32 [#allocation11], 4
      %s84 = int_to_ptr.vmem [resolvable:$true] %s83
      %89 = dma.hbm_to_vmem [thread:$0]  %s6, 32768, %s84, [#allocation12], 512, 512, 32
    $region29: #{tpu_custom_call.1} parent=1 // pred_fallthru
      _
    // Predicated region
    $region30: #{tpu_custom_call.1} parent=1 // pred_check
      _
    $region31: #{tpu_custom_call.1} parent=1 // pred_check_branch
      %91 = sbr.rel (0) target = $region33
    $region32: #{tpu_custom_call.1} parent=1 // pred_region
      _
    $region33: #{tpu_custom_call.1} parent=1 // pred_fallthru
      _
    // Predicated region
    $region34: #{tpu_custom_call.1} parent=1 // pred_check
      _
    $region35: #{tpu_custom_call.1} parent=1 // pred_check_branch
      %93 = sbr.rel (0) target = $region37
    $region36: #{tpu_custom_call.1} parent=1 // pred_region
      %s95 = ssub.s32 2048, 2048
      %96 = vsyncadd [#allocation12], %s95
      %s97 = sshll.u32 [#allocation13], 4
      %s98 = int_to_ptr.vmem [resolvable:$true] %s97
      %103 = dma.hbm_to_vmem [thread:$0]  %s8, 2048, %s98, [#allocation12], 1024, 1024, 64
    $region37: #{tpu_custom_call.1} parent=1 // pred_fallthru
      _
    // Predicated region
    $region38: #{tpu_custom_call.1} parent=1 // pred_check
      _
    $region39: #{tpu_custom_call.1} parent=1 // pred_check_branch
      %105 = sbr.rel (0) target = $region41
    $region40: #{tpu_custom_call.1} parent=1 // pred_region
      %s107 = ssub.s32 16, 16
      %108 = vsyncadd [#allocation15], %s107
      %s110 = sshll.u32 [#allocation14], 4
      %s111 = int_to_ptr.vmem [resolvable:$true] %s110
      %113 = dma.hbm_to_vmem [thread:$0]  %s9, 16, %s111, [#allocation15]
    $region41: #{tpu_custom_call.1} parent=1 // pred_fallthru
      _
    // Predicated region
    $region42: #{tpu_custom_call.1} parent=1 // pred_check
      _
    $region43: #{tpu_custom_call.1} parent=1 // pred_check_branch
      %115 = sbr.rel (0) target = $region45
    $region44: #{tpu_custom_call.1} parent=1 // pred_region
      %s117 = ssub.s32 16, 16
      %118 = vsyncadd [#allocation15], %s117
      %s120 = sshll.u32 [#allocation16], 4
      %s121 = int_to_ptr.vmem [resolvable:$true] %s120
      %123 = dma.hbm_to_vmem [thread:$0]  %s10, 16, %s121, [#allocation15]
    $region45: #{tpu_custom_call.1} parent=1 // pred_fallthru
      _
    // Predicated region
    $region46: #{tpu_custom_call.1} parent=1 // pred_check
      _
    $region47: #{tpu_custom_call.1} parent=1 // pred_check_branch
      %125 = sbr.rel (0) target = $region49
    $region48: #{tpu_custom_call.1} parent=1 // pred_region
      %s127 = ssub.s32 49152, 49152
      %128 = vsyncadd [#allocation18], %s127
      %s129 = sshll.u32 [#allocation17], 4
      %s130 = int_to_ptr.vmem [resolvable:$true] %s129
      %135 = dma.hbm_to_vmem [thread:$0]  %s11, 49152, %s130, [#allocation18], 384, 384, 24
    $region49: #{tpu_custom_call.1} parent=1 // pred_fallthru
      _
    // Predicated region
    $region50: #{tpu_custom_call.1} parent=1 // pred_check
      _
    $region51: #{tpu_custom_call.1} parent=1 // pred_check_branch
      %137 = sbr.rel (0) target = $region53
    $region52: #{tpu_custom_call.1} parent=1 // pred_region
      %138 = dma.done [#allocation3], 32
    $region53: #{tpu_custom_call.1} parent=1 // pred_fallthru
      _
    // Predicated region
    $region54: #{tpu_custom_call.1} parent=1 // pred_check
      _
    $region55: #{tpu_custom_call.1} parent=1 // pred_check_branch
      %140 = sbr.rel (0) target = $region57
    $region56: #{tpu_custom_call.1} parent=1 // pred_region
      %141 = dma.done [#allocation6], 256
    $region57: #{tpu_custom_call.1} parent=1 // pred_fallthru
      _
    // Predicated region
    $region58: #{tpu_custom_call.1} parent=1 // pred_check
      _
    $region59: #{tpu_custom_call.1} parent=1 // pred_check_branch
      %143 = sbr.rel (0) target = $region61
    $region60: #{tpu_custom_call.1} parent=1 // pred_region
      %144 = dma.done [#allocation6], 2048
    $region61: #{tpu_custom_call.1} parent=1 // pred_fallthru
      _
    // Predicated region
    $region62: #{tpu_custom_call.1} parent=1 // pred_check
      _
    $region63: #{tpu_custom_call.1} parent=1 // pred_check_branch
      %146 = sbr.rel (0) target = $region65
    $region64: #{tpu_custom_call.1} parent=1 // pred_region
      %147 = dma.done [#allocation9], 16
    $region65: #{tpu_custom_call.1} parent=1 // pred_fallthru
      _
    // Predicated region
    $region66: #{tpu_custom_call.1} parent=1 // pred_check
      _
    $region67: #{tpu_custom_call.1} parent=1 // pred_check_branch
      %149 = sbr.rel (0) target = $region69
    $region68: #{tpu_custom_call.1} parent=1 // pred_region
      %150 = dma.done [#allocation9], 16
    $region69: #{tpu_custom_call.1} parent=1 // pred_fallthru
      _
    // Predicated region
    $region70: #{tpu_custom_call.1} parent=1 // pred_check
      _
    $region71: #{tpu_custom_call.1} parent=1 // pred_check_branch
      %152 = sbr.rel (0) target = $region73
    $region72: #{tpu_custom_call.1} parent=1 // pred_region
      %153 = dma.done [#allocation12], 32768
    $region73: #{tpu_custom_call.1} parent=1 // pred_fallthru
      _
    // Predicated region
    $region74: #{tpu_custom_call.1} parent=1 // pred_check
      _
    $region75: #{tpu_custom_call.1} parent=1 // pred_check_branch
      %155 = sbr.rel (0) target = $region77
    $region76: #{tpu_custom_call.1} parent=1 // pred_region
      %156 = dma.done [#allocation12], 2048
    $region77: #{tpu_custom_call.1} parent=1 // pred_fallthru
      _
    // Predicated region
    $region78: #{tpu_custom_call.1} parent=1 // pred_check
      _
    $region79: #{tpu_custom_call.1} parent=1 // pred_check_branch
      %158 = sbr.rel (0) target = $region81
    $region80: #{tpu_custom_call.1} parent=1 // pred_region
      %159 = dma.done [#allocation15], 16
    $region81: #{tpu_custom_call.1} parent=1 // pred_fallthru
      _
    // Predicated region
    $region82: #{tpu_custom_call.1} parent=1 // pred_check
      _
    $region83: #{tpu_custom_call.1} parent=1 // pred_check_branch
      %161 = sbr.rel (0) target = $region85
    $region84: #{tpu_custom_call.1} parent=1 // pred_region
      %162 = dma.done [#allocation15], 16
    $region85: #{tpu_custom_call.1} parent=1 // pred_fallthru
      _
    // Predicated region
    $region86: #{tpu_custom_call.1} parent=1 // pred_check
      _
    $region87: #{tpu_custom_call.1} parent=1 // pred_check_branch
      %164 = sbr.rel (0) target = $region89
    $region88: #{tpu_custom_call.1} parent=1 // pred_region
      %165 = dma.done [#allocation18], 49152
    $region89: #{tpu_custom_call.1} parent=1 // pred_fallthru
      _
    %v167 = vld [vmem:[#allocation2] sm:$0x3]
    %v168 = vpack.c.bf16 %v167, %v167
    %v169 = vld [vmem:[#allocation5] sm:$0xff]
    %v170 = vld [vmem:[#allocation5 + $0x8] sm:$0xff]
    %v173 = vunpack.c.l.b16 %v169
    %v174 = vunpack.c.h.b16 %v169
    %v175 = vunpack.c.l.b16 %v170
    %v176 = vunpack.c.h.b16 %v170
    %v177 = vpack.c.b16 %v173, %v173
    %v178 = vpack.c.b16 %v174, %v174
    %v179 = vpack.c.b16 %v175, %v175
    %v180 = vpack.c.b16 %v176, %v176
    %vm181 = vcmask 64512
    %v183 = vsel %vm181, %v168, 0
    %vm185 = vcmask 1043456
    %v187 = vsel %vm185, %v177, 0
    %v190 = vsel %vm185, %v178, 0
    %v193 = vsel %vm185, %v179, 0
    %v196 = vsel %vm185, %v180, 0
    %198 = vmatprep.subr.bf16.mxu0 0
    %199 = vmatpush1.bf16.msra.mxu0 0
    %200 = vmatprep.subr.bf16.mxu0 0
    %201 = vmatpush1.bf16.msra.mxu0 0
    %202 = vmatprep.subr.bf16.mxu0 0
    %203 = vmatpush1.bf16.msra.mxu0 0
    %204 = vmatprep.subr.bf16.mxu0 0
    %205 = vmatpush1.bf16.msra.mxu0 0
    %206 = vmatprep.subr.bf16.mxu0 0
    %207 = vmatpush1.bf16.msra.mxu0 0
    %208 = vmatprep.subr.bf16.mxu0 0
    %209 = vmatpush1.bf16.msra.mxu0 0
    %210 = vmatprep.subr.bf16.mxu0 0
    %211 = vmatpush1.bf16.msra.mxu0 0
    %212 = vmatprep.subr.bf16.mxu0 %v190
    %213 = vmatpush1.bf16.msra.mxu0 %v187
    %214 = vmatprep.subr.bf16.mxu0 0
    %215 = vmatpush2.bf16.msra.mxu0 0
    %216 = vmatprep.subr.bf16.mxu0 0
    %217 = vmatpush2.bf16.msra.mxu0 0
    %218 = vmatprep.subr.bf16.mxu0 0
    %219 = vmatpush2.bf16.msra.mxu0 0
    %220 = vmatprep.subr.bf16.mxu0 0
    %221 = vmatpush2.bf16.msra.mxu0 0
    %222 = vmatprep.subr.bf16.mxu0 0
    %223 = vmatpush2.bf16.msra.mxu0 0
    %224 = vmatprep.subr.bf16.mxu0 0
    %225 = vmatpush2.bf16.msra.mxu0 0
    %226 = vmatprep.subr.bf16.mxu0 0
    %227 = vmatpush2.bf16.msra.mxu0 0
    %228 = vmatprep.subr.bf16.mxu0 0
    %229 = vmatpush2.bf16.msra.mxu0 0
    %230 = vmatprep.mubr.bf16.mxu0 0
    %231 = vmatmul.mubr.bf16.gmra.mxu0 %v183
    %v232 = vpop.f32.mrf.mxu0
    %v233 = vadd.f32 0.0, %v232
    %v234 = vpop.f32.mrf.mxu0
    %v235 = vadd.f32 0.0, %v234
    %v236 = vpop.f32.mrf.mxu0
    %v237 = vpop.f32.mrf.mxu0
    %238 = vdwg.mxu0
    %239 = vmatprep.subr.bf16.mxu0 0
    %240 = vmatpush1.bf16.msra.mxu0 0
    %241 = vmatprep.subr.bf16.mxu0 0
    %242 = vmatpush1.bf16.msra.mxu0 0
    %243 = vmatprep.subr.bf16.mxu0 0
    %244 = vmatpush1.bf16.msra.mxu0 0
    %245 = vmatprep.subr.bf16.mxu0 0
    %246 = vmatpush1.bf16.msra.mxu0 0
    %247 = vmatprep.subr.bf16.mxu0 0
    %248 = vmatpush1.bf16.msra.mxu0 0
    %249 = vmatprep.subr.bf16.mxu0 0
    %250 = vmatpush1.bf16.msra.mxu0 0
    %251 = vmatprep.subr.bf16.mxu0 0
    %252 = vmatpush1.bf16.msra.mxu0 0
    %253 = vmatprep.subr.bf16.mxu0 %v196
    %254 = vmatpush1.bf16.msra.mxu0 %v193
    %255 = vmatprep.subr.bf16.mxu0 0
    %256 = vmatpush2.bf16.msra.mxu0 0
    %257 = vmatprep.subr.bf16.mxu0 0
    %258 = vmatpush2.bf16.msra.mxu0 0
    %259 = vmatprep.subr.bf16.mxu0 0
    %260 = vmatpush2.bf16.msra.mxu0 0
    %261 = vmatprep.subr.bf16.mxu0 0
    %262 = vmatpush2.bf16.msra.mxu0 0
    %263 = vmatprep.subr.bf16.mxu0 0
    %264 = vmatpush2.bf16.msra.mxu0 0
    %265 = vmatprep.subr.bf16.mxu0 0
    %266 = vmatpush2.bf16.msra.mxu0 0
    %267 = vmatprep.subr.bf16.mxu0 0
    %268 = vmatpush2.bf16.msra.mxu0 0
    %269 = vmatprep.subr.bf16.mxu0 0
    %270 = vmatpush2.bf16.msra.mxu0 0
    %271 = vmatprep.mubr.bf16.mxu0 0
    %272 = vmatmul.mubr.bf16.gmra.mxu0 %v183
    %v273 = vpop.f32.mrf.mxu0
    %v274 = vadd.f32 0.0, %v273
    %v275 = vpop.f32.mrf.mxu0
    %v276 = vadd.f32 0.0, %v275
    %v277 = vpop.f32.mrf.mxu0
    %v278 = vpop.f32.mrf.mxu0
    %279 = vdwg.mxu0
    %vm280 = vcmask 1041408
    %v281 = vsel %vm280, %v233, 0.0
    %v282 = vrot.slane %v281, 4
    %v283 = vadd.f32 %v281, %v282
    %v284 = vrot.slane %v283, 2
    %v285 = vadd.f32 %v283, %v284
    %v286 = vrot.slane %v285, 1
    %v287 = vadd.f32 %v285, %v286
    %v288 = vsel %vm280, %v235, 0.0
    %v289 = vrot.slane %v288, 4
    %v290 = vadd.f32 %v288, %v289
    %v291 = vrot.slane %v290, 2
    %v292 = vadd.f32 %v290, %v291
    %v293 = vrot.slane %v292, 1
    %v294 = vadd.f32 %v292, %v293
    %v295 = vsel %vm280, %v274, 0.0
    %v296 = vrot.slane %v295, 4
    %v297 = vadd.f32 %v295, %v296
    %v298 = vrot.slane %v297, 2
    %v299 = vadd.f32 %v297, %v298
    %v300 = vrot.slane %v299, 1
    %v301 = vadd.f32 %v299, %v300
    %v302 = vsel %vm280, %v276, 0.0
    %v303 = vrot.slane %v302, 4
    %v304 = vadd.f32 %v302, %v303
    %v305 = vrot.slane %v304, 2
    %v306 = vadd.f32 %v304, %v305
    %v307 = vrot.slane %v306, 1
    %v308 = vadd.f32 %v306, %v307
    %v309 = vmul.f32 %v233, %v233
    %v310 = vmul.f32 %v235, %v235
    %v311 = vmul.f32 %v274, %v274
    %v312 = vmul.f32 %v276, %v276
    %v313 = vsel %vm280, %v309, 0.0
    %v314 = vrot.slane %v313, 4
    %v315 = vadd.f32 %v313, %v314
    %v316 = vrot.slane %v315, 2
    %v317 = vadd.f32 %v315, %v316
    %v318 = vrot.slane %v317, 1
    %v319 = vadd.f32 %v317, %v318
    %v320 = vsel %vm280, %v310, 0.0
    %v321 = vrot.slane %v320, 4
    %v322 = vadd.f32 %v320, %v321
    %v323 = vrot.slane %v322, 2
    %v324 = vadd.f32 %v322, %v323
    %v325 = vrot.slane %v324, 1
    %v326 = vadd.f32 %v324, %v325
    %v327 = vsel %vm280, %v311, 0.0
    %v328 = vrot.slane %v327, 4
    %v329 = vadd.f32 %v327, %v328
    %v330 = vrot.slane %v329, 2
    %v331 = vadd.f32 %v329, %v330
    %v332 = vrot.slane %v331, 1
    %v333 = vadd.f32 %v331, %v332
    %v334 = vsel %vm280, %v312, 0.0
    %v335 = vrot.slane %v334, 4
    %v336 = vadd.f32 %v334, %v335
    %v337 = vrot.slane %v336, 2
    %v338 = vadd.f32 %v336, %v337
    %v339 = vrot.slane %v338, 1
    %v340 = vadd.f32 %v338, %v339
    %v341 = vld [vmem:[%s2] sm:$0xff]
    %v342 = vld [vmem:[%s2 + $0x8] sm:$0xff]
    %v343 = vld [vmem:[%s2 + $0x10] sm:$0xff]
    %v344 = vld [vmem:[%s2 + $0x18] sm:$0xff]
    %v345 = vld [vmem:[%s2 + $0x20] sm:$0xff]
    %v346 = vld [vmem:[%s2 + $0x28] sm:$0xff]
    %v347 = vld [vmem:[%s2 + $0x30] sm:$0xff]
    %v348 = vld [vmem:[%s2 + $0x38] sm:$0xff]
    %v349 = vld [vmem:[%s2 + $0x40] sm:$0xff]
    %v350 = vld [vmem:[%s2 + $0x48] sm:$0xff]
    %v351 = vld [vmem:[%s2 + $0x50] sm:$0xff]
    %v352 = vld [vmem:[%s2 + $0x58] sm:$0xff]
    %v353 = vld [vmem:[%s2 + $0x60] sm:$0xff]
    %v354 = vld [vmem:[%s2 + $0x68] sm:$0xff]
    %v355 = vld [vmem:[%s2 + $0x70] sm:$0xff]
    %v356 = vld [vmem:[%s2 + $0x78] sm:$0xff]
    %v357 = vld [vmem:[%s2 + $0x80] sm:$0xff]
    %v358 = vld [vmem:[%s2 + $0x88] sm:$0xff]
    %v359 = vld [vmem:[%s2 + $0x90] sm:$0xff]
    %v360 = vld [vmem:[%s2 + $0x98] sm:$0xff]
    %v361 = vld [vmem:[%s2 + $0xa0] sm:$0xff]
    %v362 = vld [vmem:[%s2 + $0xa8] sm:$0xff]
    %v363 = vld [vmem:[%s2 + $0xb0] sm:$0xff]
    %v364 = vld [vmem:[%s2 + $0xb8] sm:$0xff]
    %v365 = vld [vmem:[%s2 + $0xc0] sm:$0xff]
    %v366 = vld [vmem:[%s2 + $0xc8] sm:$0xff]
    %v367 = vld [vmem:[%s2 + $0xd0] sm:$0xff]
    %v368 = vld [vmem:[%s2 + $0xd8] sm:$0xff]
    %v369 = vld [vmem:[%s2 + $0xe0] sm:$0xff]
    %v370 = vld [vmem:[%s2 + $0xe8] sm:$0xff]
    %v371 = vld [vmem:[%s2 + $0xf0] sm:$0xff]
    %v372 = vld [vmem:[%s2 + $0xf8] sm:$0xff]
    %v373 = vld [vmem:[%s2 + $0x100] sm:$0xff]
    %v374 = vld [vmem:[%s2 + $0x108] sm:$0xff]
    %v375 = vld [vmem:[%s2 + $0x110] sm:$0xff]
    %v376 = vld [vmem:[%s2 + $0x118] sm:$0xff]
    %v377 = vld [vmem:[%s2 + $0x120] sm:$0xff]
    %v378 = vld [vmem:[%s2 + $0x128] sm:$0xff]
    %v379 = vld [vmem:[%s2 + $0x130] sm:$0xff]
    %v380 = vld [vmem:[%s2 + $0x138] sm:$0xff]
    %v381 = vld [vmem:[%s2 + $0x140] sm:$0xff]
    %v382 = vld [vmem:[%s2 + $0x148] sm:$0xff]
    %v383 = vld [vmem:[%s2 + $0x150] sm:$0xff]
    %v384 = vld [vmem:[%s2 + $0x158] sm:$0xff]
    %v385 = vld [vmem:[%s2 + $0x160] sm:$0xff]
    %v386 = vld [vmem:[%s2 + $0x168] sm:$0xff]
    %v387 = vld [vmem:[%s2 + $0x170] sm:$0xff]
    %v388 = vld [vmem:[%s2 + $0x178] sm:$0xff]
    %v389 = vld [vmem:[%s2 + $0x180] sm:$0xff]
    %v390 = vld [vmem:[%s2 + $0x188] sm:$0xff]
    %v391 = vld [vmem:[%s2 + $0x190] sm:$0xff]
    %v392 = vld [vmem:[%s2 + $0x198] sm:$0xff]
    %v393 = vld [vmem:[%s2 + $0x1a0] sm:$0xff]
    %v394 = vld [vmem:[%s2 + $0x1a8] sm:$0xff]
    %v395 = vld [vmem:[%s2 + $0x1b0] sm:$0xff]
    %v396 = vld [vmem:[%s2 + $0x1b8] sm:$0xff]
    %v397 = vld [vmem:[%s2 + $0x1c0] sm:$0xff]
    %v398 = vld [vmem:[%s2 + $0x1c8] sm:$0xff]
    %v399 = vld [vmem:[%s2 + $0x1d0] sm:$0xff]
    %v400 = vld [vmem:[%s2 + $0x1d8] sm:$0xff]
    %v401 = vld [vmem:[%s2 + $0x1e0] sm:$0xff]
    %v402 = vld [vmem:[%s2 + $0x1e8] sm:$0xff]
    %v403 = vld [vmem:[%s2 + $0x1f0] sm:$0xff]
    %v404 = vld [vmem:[%s2 + $0x1f8] sm:$0xff]
    %405 = vmatprep.subr.mxu0 0.0
    %406 = vmatpush1.msra.mxu0 %v356
    %407 = vmatprep.subr.mxu0 0.0
    %408 = vmatpush1.msra.mxu0 %v355
    %409 = vmatprep.subr.mxu0 0.0
    %410 = vmatpush1.msra.mxu0 %v354
    %411 = vmatprep.subr.mxu0 0.0
    %412 = vmatpush1.msra.mxu0 %v353
    %413 = vmatprep.subr.mxu0 0.0
    %414 = vmatpush1.msra.mxu0 %v352
    %415 = vmatprep.subr.mxu0 0.0
    %416 = vmatpush1.msra.mxu0 %v351
    %417 = vmatprep.subr.mxu0 0.0
    %418 = vmatpush1.msra.mxu0 %v350
    %419 = vmatprep.subr.mxu0 0.0
    %420 = vmatpush1.msra.mxu0 %v349
    %421 = vmatprep.subr.mxu0 0.0
    %422 = vmatpush1.msra.mxu0 %v348
    %423 = vmatprep.subr.mxu0 0.0
    %424 = vmatpush1.msra.mxu0 %v347
    %425 = vmatprep.subr.mxu0 0.0
    %426 = vmatpush1.msra.mxu0 %v346
    %427 = vmatprep.subr.mxu0 0.0
    %428 = vmatpush1.msra.mxu0 %v345
    %429 = vmatprep.subr.mxu0 0.0
    %430 = vmatpush1.msra.mxu0 %v344
    %431 = vmatprep.subr.mxu0 0.0
    %432 = vmatpush1.msra.mxu0 %v343
    %433 = vmatprep.subr.mxu0 0.0
    %434 = vmatpush1.msra.mxu0 %v342
    %435 = vmatprep.subr.mxu0 0.0
    %436 = vmatpush1.msra.mxu0 %v341
    %437 = vmatprep.subr.mxu0 0.0
    %438 = vmatpush2.msra.mxu0 %v372
    %439 = vmatprep.subr.mxu0 0.0
    %440 = vmatpush2.msra.mxu0 %v371
    %441 = vmatprep.subr.mxu0 0.0
    %442 = vmatpush2.msra.mxu0 %v370
    %443 = vmatprep.subr.mxu0 0.0
    %444 = vmatpush2.msra.mxu0 %v369
    %445 = vmatprep.subr.mxu0 0.0
    %446 = vmatpush2.msra.mxu0 %v368
    %447 = vmatprep.subr.mxu0 0.0
    %448 = vmatpush2.msra.mxu0 %v367
    %449 = vmatprep.subr.mxu0 0.0
    %450 = vmatpush2.msra.mxu0 %v366
    %451 = vmatprep.subr.mxu0 0.0
    %452 = vmatpush2.msra.mxu0 %v365
    %453 = vmatprep.subr.mxu0 0.0
    %454 = vmatpush2.msra.mxu0 %v364
    %455 = vmatprep.subr.mxu0 0.0
    %456 = vmatpush2.msra.mxu0 %v363
    %457 = vmatprep.subr.mxu0 0.0
    %458 = vmatpush2.msra.mxu0 %v362
    %459 = vmatprep.subr.mxu0 0.0
    %460 = vmatpush2.msra.mxu0 %v361
    %461 = vmatprep.subr.mxu0 0.0
    %462 = vmatpush2.msra.mxu0 %v360
    %463 = vmatprep.subr.mxu0 0.0
    %464 = vmatpush2.msra.mxu0 %v359
    %465 = vmatprep.subr.mxu0 0.0
    %466 = vmatpush2.msra.mxu0 %v358
    %467 = vmatprep.subr.mxu0 0.0
    %468 = vmatpush2.msra.mxu0 %v357
    %469 = vmatprep.mubr.f32.mxu0 %v294
    %470 = vmatmul.mubr.f32.gmra.mxu0 %v287
    %v471 = vpop.f32.mrf.mxu0
    %v472 = vadd.f32 0.0, %v471
    %v473 = vpop.f32.mrf.mxu0
    %474 = vdwg.mxu0
    %475 = vmatprep.subr.mxu0 0.0
    %476 = vmatpush1.msra.mxu0 %v388
    %477 = vmatprep.subr.mxu0 0.0
    %478 = vmatpush1.msra.mxu0 %v387
    %479 = vmatprep.subr.mxu0 0.0
    %480 = vmatpush1.msra.mxu0 %v386
    %481 = vmatprep.subr.mxu0 0.0
    %482 = vmatpush1.msra.mxu0 %v385
    %483 = vmatprep.subr.mxu0 0.0
    %484 = vmatpush1.msra.mxu0 %v384
    %485 = vmatprep.subr.mxu0 0.0
    %486 = vmatpush1.msra.mxu0 %v383
    %487 = vmatprep.subr.mxu0 0.0
    %488 = vmatpush1.msra.mxu0 %v382
    %489 = vmatprep.subr.mxu0 0.0
    %490 = vmatpush1.msra.mxu0 %v381
    %491 = vmatprep.subr.mxu0 0.0
    %492 = vmatpush1.msra.mxu0 %v380
    %493 = vmatprep.subr.mxu0 0.0
    %494 = vmatpush1.msra.mxu0 %v379
    %495 = vmatprep.subr.mxu0 0.0
    %496 = vmatpush1.msra.mxu0 %v378
    %497 = vmatprep.subr.mxu0 0.0
    %498 = vmatpush1.msra.mxu0 %v377
    %499 = vmatprep.subr.mxu0 0.0
    %500 = vmatpush1.msra.mxu0 %v376
    %501 = vmatprep.subr.mxu0 0.0
    %502 = vmatpush1.msra.mxu0 %v375
    %503 = vmatprep.subr.mxu0 0.0
    %504 = vmatpush1.msra.mxu0 %v374
    %505 = vmatprep.subr.mxu0 0.0
    %506 = vmatpush1.msra.mxu0 %v373
    %507 = vmatprep.subr.mxu0 0.0
    %508 = vmatpush2.msra.mxu0 %v404
    %509 = vmatprep.subr.mxu0 0.0
    %510 = vmatpush2.msra.mxu0 %v403
    %511 = vmatprep.subr.mxu0 0.0
    %512 = vmatpush2.msra.mxu0 %v402
    %513 = vmatprep.subr.mxu0 0.0
    %514 = vmatpush2.msra.mxu0 %v401
    %515 = vmatprep.subr.mxu0 0.0
    %516 = vmatpush2.msra.mxu0 %v400
    %517 = vmatprep.subr.mxu0 0.0
    %518 = vmatpush2.msra.mxu0 %v399
    %519 = vmatprep.subr.mxu0 0.0
    %520 = vmatpush2.msra.mxu0 %v398
    %521 = vmatprep.subr.mxu0 0.0
    %522 = vmatpush2.msra.mxu0 %v397
    %523 = vmatprep.subr.mxu0 0.0
    %524 = vmatpush2.msra.mxu0 %v396
    %525 = vmatprep.subr.mxu0 0.0
    %526 = vmatpush2.msra.mxu0 %v395
    %527 = vmatprep.subr.mxu0 0.0
    %528 = vmatpush2.msra.mxu0 %v394
    %529 = vmatprep.subr.mxu0 0.0
    %530 = vmatpush2.msra.mxu0 %v393
    %531 = vmatprep.subr.mxu0 0.0
    %532 = vmatpush2.msra.mxu0 %v392
    %533 = vmatprep.subr.mxu0 0.0
    %534 = vmatpush2.msra.mxu0 %v391
    %535 = vmatprep.subr.mxu0 0.0
    %536 = vmatpush2.msra.mxu0 %v390
    %537 = vmatprep.subr.mxu0 0.0
    %538 = vmatpush2.msra.mxu0 %v389
    %539 = vmatprep.mubr.f32.mxu0 %v308
    %540 = vmatmul.mubr.f32.gmra.mxu0 %v301
    %v541 = vpop.f32.mrf.mxu0
    %v542 = vadd.f32 %v472, %v541
    %v543 = vpop.f32.mrf.mxu0
    %544 = vdwg.mxu0
    %545 = vmatprep.subr.mxu0 0.0
    %546 = vmatpush1.msra.mxu0 %v356
    %547 = vmatprep.subr.mxu0 0.0
    %548 = vmatpush1.msra.mxu0 %v355
    %549 = vmatprep.subr.mxu0 0.0
    %550 = vmatpush1.msra.mxu0 %v354
    %551 = vmatprep.subr.mxu0 0.0
    %552 = vmatpush1.msra.mxu0 %v353
    %553 = vmatprep.subr.mxu0 0.0
    %554 = vmatpush1.msra.mxu0 %v352
    %555 = vmatprep.subr.mxu0 0.0
    %556 = vmatpush1.msra.mxu0 %v351
    %557 = vmatprep.subr.mxu0 0.0
    %558 = vmatpush1.msra.mxu0 %v350
    %559 = vmatprep.subr.mxu0 0.0
    %560 = vmatpush1.msra.mxu0 %v349
    %561 = vmatprep.subr.mxu0 0.0
    %562 = vmatpush1.msra.mxu0 %v348
    %563 = vmatprep.subr.mxu0 0.0
    %564 = vmatpush1.msra.mxu0 %v347
    %565 = vmatprep.subr.mxu0 0.0
    %566 = vmatpush1.msra.mxu0 %v346
    %567 = vmatprep.subr.mxu0 0.0
    %568 = vmatpush1.msra.mxu0 %v345
    %569 = vmatprep.subr.mxu0 0.0
    %570 = vmatpush1.msra.mxu0 %v344
    %571 = vmatprep.subr.mxu0 0.0
    %572 = vmatpush1.msra.mxu0 %v343
    %573 = vmatprep.subr.mxu0 0.0
    %574 = vmatpush1.msra.mxu0 %v342
    %575 = vmatprep.subr.mxu0 0.0
    %576 = vmatpush1.msra.mxu0 %v341
    %577 = vmatprep.subr.mxu0 0.0
    %578 = vmatpush2.msra.mxu0 %v372
    %579 = vmatprep.subr.mxu0 0.0
    %580 = vmatpush2.msra.mxu0 %v371
    %581 = vmatprep.subr.mxu0 0.0
    %582 = vmatpush2.msra.mxu0 %v370
    %583 = vmatprep.subr.mxu0 0.0
    %584 = vmatpush2.msra.mxu0 %v369
    %585 = vmatprep.subr.mxu0 0.0
    %586 = vmatpush2.msra.mxu0 %v368
    %587 = vmatprep.subr.mxu0 0.0
    %588 = vmatpush2.msra.mxu0 %v367
    %589 = vmatprep.subr.mxu0 0.0
    %590 = vmatpush2.msra.mxu0 %v366
    %591 = vmatprep.subr.mxu0 0.0
    %592 = vmatpush2.msra.mxu0 %v365
    %593 = vmatprep.subr.mxu0 0.0
    %594 = vmatpush2.msra.mxu0 %v364
    %595 = vmatprep.subr.mxu0 0.0
    %596 = vmatpush2.msra.mxu0 %v363
    %597 = vmatprep.subr.mxu0 0.0
    %598 = vmatpush2.msra.mxu0 %v362
    %599 = vmatprep.subr.mxu0 0.0
    %600 = vmatpush2.msra.mxu0 %v361
    %601 = vmatprep.subr.mxu0 0.0
    %602 = vmatpush2.msra.mxu0 %v360
    %603 = vmatprep.subr.mxu0 0.0
    %604 = vmatpush2.msra.mxu0 %v359
    %605 = vmatprep.subr.mxu0 0.0
    %606 = vmatpush2.msra.mxu0 %v358
    %607 = vmatprep.subr.mxu0 0.0
    %608 = vmatpush2.msra.mxu0 %v357
    %609 = vmatprep.mubr.f32.mxu0 %v326
    %610 = vmatmul.mubr.f32.gmra.mxu0 %v319
    %v611 = vpop.f32.mrf.mxu0
    %v612 = vadd.f32 0.0, %v611
    %v613 = vpop.f32.mrf.mxu0
    %614 = vdwg.mxu0
    %615 = vmatprep.subr.mxu0 0.0
    %616 = vmatpush1.msra.mxu0 %v388
    %617 = vmatprep.subr.mxu0 0.0
    %618 = vmatpush1.msra.mxu0 %v387
    %619 = vmatprep.subr.mxu0 0.0
    %620 = vmatpush1.msra.mxu0 %v386
    %621 = vmatprep.subr.mxu0 0.0
    %622 = vmatpush1.msra.mxu0 %v385
    %623 = vmatprep.subr.mxu0 0.0
    %624 = vmatpush1.msra.mxu0 %v384
    %625 = vmatprep.subr.mxu0 0.0
    %626 = vmatpush1.msra.mxu0 %v383
    %627 = vmatprep.subr.mxu0 0.0
    %628 = vmatpush1.msra.mxu0 %v382
    %629 = vmatprep.subr.mxu0 0.0
    %630 = vmatpush1.msra.mxu0 %v381
    %631 = vmatprep.subr.mxu0 0.0
    %632 = vmatpush1.msra.mxu0 %v380
    %633 = vmatprep.subr.mxu0 0.0
    %634 = vmatpush1.msra.mxu0 %v379
    %635 = vmatprep.subr.mxu0 0.0
    %636 = vmatpush1.msra.mxu0 %v378
    %637 = vmatprep.subr.mxu0 0.0
    %638 = vmatpush1.msra.mxu0 %v377
    %639 = vmatprep.subr.mxu0 0.0
    %640 = vmatpush1.msra.mxu0 %v376
    %641 = vmatprep.subr.mxu0 0.0
    %642 = vmatpush1.msra.mxu0 %v375
    %643 = vmatprep.subr.mxu0 0.0
    %644 = vmatpush1.msra.mxu0 %v374
    %645 = vmatprep.subr.mxu0 0.0
    %646 = vmatpush1.msra.mxu0 %v373
    %647 = vmatprep.subr.mxu0 0.0
    %648 = vmatpush2.msra.mxu0 %v404
    %649 = vmatprep.subr.mxu0 0.0
    %650 = vmatpush2.msra.mxu0 %v403
    %651 = vmatprep.subr.mxu0 0.0
    %652 = vmatpush2.msra.mxu0 %v402
    %653 = vmatprep.subr.mxu0 0.0
    %654 = vmatpush2.msra.mxu0 %v401
    %655 = vmatprep.subr.mxu0 0.0
    %656 = vmatpush2.msra.mxu0 %v400
    %657 = vmatprep.subr.mxu0 0.0
    %658 = vmatpush2.msra.mxu0 %v399
    %659 = vmatprep.subr.mxu0 0.0
    %660 = vmatpush2.msra.mxu0 %v398
    %661 = vmatprep.subr.mxu0 0.0
    %662 = vmatpush2.msra.mxu0 %v397
    %663 = vmatprep.subr.mxu0 0.0
    %664 = vmatpush2.msra.mxu0 %v396
    %665 = vmatprep.subr.mxu0 0.0
    %666 = vmatpush2.msra.mxu0 %v395
    %667 = vmatprep.subr.mxu0 0.0
    %668 = vmatpush2.msra.mxu0 %v394
    %669 = vmatprep.subr.mxu0 0.0
    %670 = vmatpush2.msra.mxu0 %v393
    %671 = vmatprep.subr.mxu0 0.0
    %672 = vmatpush2.msra.mxu0 %v392
    %673 = vmatprep.subr.mxu0 0.0
    %674 = vmatpush2.msra.mxu0 %v391
    %675 = vmatprep.subr.mxu0 0.0
    %676 = vmatpush2.msra.mxu0 %v390
    %677 = vmatprep.subr.mxu0 0.0
    %678 = vmatpush2.msra.mxu0 %v389
    %679 = vmatprep.mubr.f32.mxu0 %v340
    %680 = vmatmul.mubr.f32.gmra.mxu0 %v333
    %v681 = vpop.f32.mrf.mxu0
    %v682 = vadd.f32 %v612, %v681
    %v683 = vpop.f32.mrf.mxu0
    %684 = vdwg.mxu0
    %v685 = vmul.f32 %v542, 0.03125
    %v686 = vmul.f32 %v682, 0.03125
    %v687 = vmul.f32 %v685, %v685
    %v688 = vsub.f32 %v686, %v687
    %v689 = vmax.f32 %v688, 0.0
    %v690 = vadd.f32 %v689, 1e-05
    %v691 = vrsqrt.pop %v690
    %v692 = vld [vmem:[#allocation8] sm:$0x1]
    %v693 = vmul.f32 %v691, %v692
    %v694 = vld [vmem:[#allocation10] sm:$0x1]
    %v695 = vmul.f32 %v685, %v693
    %v696 = vsub.f32 %v694, %v695
    %v697 = vld [vmem:[#allocation7] sm:$0xff]
    %v698 = vld [vmem:[#allocation7 + $0x8] sm:$0xff]
    %v699 = vld [vmem:[#allocation7 + $0x10] sm:$0xff]
    %v700 = vld [vmem:[#allocation7 + $0x18] sm:$0xff]
    %v701 = vld [vmem:[#allocation7 + $0x20] sm:$0xff]
    %v702 = vld [vmem:[#allocation7 + $0x28] sm:$0xff]
    %v703 = vld [vmem:[#allocation7 + $0x30] sm:$0xff]
    %v704 = vld [vmem:[#allocation7 + $0x38] sm:$0xff]
    %v705 = vld [vmem:[#allocation7 + $0x40] sm:$0xff]
    %v706 = vld [vmem:[#allocation7 + $0x48] sm:$0xff]
    %v707 = vld [vmem:[#allocation7 + $0x50] sm:$0xff]
    %v708 = vld [vmem:[#allocation7 + $0x58] sm:$0xff]
    %v709 = vld [vmem:[#allocation7 + $0x60] sm:$0xff]
    %v710 = vld [vmem:[#allocation7 + $0x68] sm:$0xff]
    %v711 = vld [vmem:[#allocation7 + $0x70] sm:$0xff]
    %v712 = vld [vmem:[#allocation7 + $0x78] sm:$0xff]
    %vm713 = vcmask 261120
    %v715 = vsel %vm713, %v693, 0
    %717 = vmatprep.subr.mxu0 0.0
    %718 = vmatpush1.msra.mxu0 0.0
    %719 = vmatprep.subr.mxu0 0.0
    %720 = vmatpush1.msra.mxu0 0.0
    %721 = vmatprep.subr.mxu0 0.0
    %722 = vmatpush1.msra.mxu0 0.0
    %723 = vmatprep.subr.mxu0 0.0
    %724 = vmatpush1.msra.mxu0 0.0
    %725 = vmatprep.subr.mxu0 0.0
    %726 = vmatpush1.msra.mxu0 0.0
    %727 = vmatprep.subr.mxu0 0.0
    %728 = vmatpush1.msra.mxu0 0.0
    %729 = vmatprep.subr.mxu0 0.0
    %730 = vmatpush1.msra.mxu0 0.0
    %731 = vmatprep.subr.mxu0 0.0
    %732 = vmatpush1.msra.mxu0 0.0
    %733 = vmatprep.subr.mxu0 0.0
    %734 = vmatpush1.msra.mxu0 0.0
    %735 = vmatprep.subr.mxu0 0.0
    %736 = vmatpush1.msra.mxu0 0.0
    %737 = vmatprep.subr.mxu0 0.0
    %738 = vmatpush1.msra.mxu0 0.0
    %739 = vmatprep.subr.mxu0 0.0
    %740 = vmatpush1.msra.mxu0 0.0
    %741 = vmatprep.subr.mxu0 %v710
    %742 = vmatpush1.msra.mxu0 %v709
    %743 = vmatprep.subr.mxu0 %v706
    %744 = vmatpush1.msra.mxu0 %v705
    %745 = vmatprep.subr.mxu0 %v702
    %746 = vmatpush1.msra.mxu0 %v701
    %747 = vmatprep.subr.mxu0 %v698
    %748 = vmatpush1.msra.mxu0 %v697
    %749 = vmatprep.subr.mxu0 0.0
    %750 = vmatpush2.msra.mxu0 0.0
    %751 = vmatprep.subr.mxu0 0.0
    %752 = vmatpush2.msra.mxu0 0.0
    %753 = vmatprep.subr.mxu0 0.0
    %754 = vmatpush2.msra.mxu0 0.0
    %755 = vmatprep.subr.mxu0 0.0
    %756 = vmatpush2.msra.mxu0 0.0
    %757 = vmatprep.subr.mxu0 0.0
    %758 = vmatpush2.msra.mxu0 0.0
    %759 = vmatprep.subr.mxu0 0.0
    %760 = vmatpush2.msra.mxu0 0.0
    %761 = vmatprep.subr.mxu0 0.0
    %762 = vmatpush2.msra.mxu0 0.0
    %763 = vmatprep.subr.mxu0 0.0
    %764 = vmatpush2.msra.mxu0 0.0
    %765 = vmatprep.subr.mxu0 0.0
    %766 = vmatpush2.msra.mxu0 0.0
    %767 = vmatprep.subr.mxu0 0.0
    %768 = vmatpush2.msra.mxu0 0.0
    %769 = vmatprep.subr.mxu0 0.0
    %770 = vmatpush2.msra.mxu0 0.0
    %771 = vmatprep.subr.mxu0 0.0
    %772 = vmatpush2.msra.mxu0 0.0
    %773 = vmatprep.subr.mxu0 0.0
    %774 = vmatpush2.msra.mxu0 0.0
    %775 = vmatprep.subr.mxu0 0.0
    %776 = vmatpush2.msra.mxu0 0.0
    %777 = vmatprep.subr.mxu0 0.0
    %778 = vmatpush2.msra.mxu0 0.0
    %779 = vmatprep.subr.mxu0 0.0
    %780 = vmatpush2.msra.mxu0 0.0
    %781 = vmatprep.mubr.f32.mxu0 0.0
    %782 = vmatmul.mubr.f32.gmra.mxu0 %v715
    %v783 = vpop.f32.mrf.mxu0
    %v784 = vadd.f32 0.0, %v783
    %v785 = vpop.f32.mrf.mxu0
    %v786 = vadd.f32 0.0, %v785
    %787 = vdwg.mxu0
    %788 = vmatprep.subr.mxu0 0.0
    %789 = vmatpush1.msra.mxu0 0.0
    %790 = vmatprep.subr.mxu0 0.0
    %791 = vmatpush1.msra.mxu0 0.0
    %792 = vmatprep.subr.mxu0 0.0
    %793 = vmatpush1.msra.mxu0 0.0
    %794 = vmatprep.subr.mxu0 0.0
    %795 = vmatpush1.msra.mxu0 0.0
    %796 = vmatprep.subr.mxu0 0.0
    %797 = vmatpush1.msra.mxu0 0.0
    %798 = vmatprep.subr.mxu0 0.0
    %799 = vmatpush1.msra.mxu0 0.0
    %800 = vmatprep.subr.mxu0 0.0
    %801 = vmatpush1.msra.mxu0 0.0
    %802 = vmatprep.subr.mxu0 0.0
    %803 = vmatpush1.msra.mxu0 0.0
    %804 = vmatprep.subr.mxu0 0.0
    %805 = vmatpush1.msra.mxu0 0.0
    %806 = vmatprep.subr.mxu0 0.0
    %807 = vmatpush1.msra.mxu0 0.0
    %808 = vmatprep.subr.mxu0 0.0
    %809 = vmatpush1.msra.mxu0 0.0
    %810 = vmatprep.subr.mxu0 0.0
    %811 = vmatpush1.msra.mxu0 0.0
    %812 = vmatprep.subr.mxu0 %v712
    %813 = vmatpush1.msra.mxu0 %v711
    %814 = vmatprep.subr.mxu0 %v708
    %815 = vmatpush1.msra.mxu0 %v707
    %816 = vmatprep.subr.mxu0 %v704
    %817 = vmatpush1.msra.mxu0 %v703
    %818 = vmatprep.subr.mxu0 %v700
    %819 = vmatpush1.msra.mxu0 %v699
    %820 = vmatprep.subr.mxu0 0.0
    %821 = vmatpush2.msra.mxu0 0.0
    %822 = vmatprep.subr.mxu0 0.0
    %823 = vmatpush2.msra.mxu0 0.0
    %824 = vmatprep.subr.mxu0 0.0
    %825 = vmatpush2.msra.mxu0 0.0
    %826 = vmatprep.subr.mxu0 0.0
    %827 = vmatpush2.msra.mxu0 0.0
    %828 = vmatprep.subr.mxu0 0.0
    %829 = vmatpush2.msra.mxu0 0.0
    %830 = vmatprep.subr.mxu0 0.0
    %831 = vmatpush2.msra.mxu0 0.0
    %832 = vmatprep.subr.mxu0 0.0
    %833 = vmatpush2.msra.mxu0 0.0
    %834 = vmatprep.subr.mxu0 0.0
    %835 = vmatpush2.msra.mxu0 0.0
    %836 = vmatprep.subr.mxu0 0.0
    %837 = vmatpush2.msra.mxu0 0.0
    %838 = vmatprep.subr.mxu0 0.0
    %839 = vmatpush2.msra.mxu0 0.0
    %840 = vmatprep.subr.mxu0 0.0
    %841 = vmatpush2.msra.mxu0 0.0
    %842 = vmatprep.subr.mxu0 0.0
    %843 = vmatpush2.msra.mxu0 0.0
    %844 = vmatprep.subr.mxu0 0.0
    %845 = vmatpush2.msra.mxu0 0.0
    %846 = vmatprep.subr.mxu0 0.0
    %847 = vmatpush2.msra.mxu0 0.0
    %848 = vmatprep.subr.mxu0 0.0
    %849 = vmatpush2.msra.mxu0 0.0
    %850 = vmatprep.subr.mxu0 0.0
    %851 = vmatpush2.msra.mxu0 0.0
    %852 = vmatprep.mubr.f32.mxu0 0.0
    %853 = vmatmul.mubr.f32.gmra.mxu0 %v715
    %v854 = vpop.f32.mrf.mxu0
    %v855 = vadd.f32 0.0, %v854
    %v856 = vpop.f32.mrf.mxu0
    %v857 = vadd.f32 0.0, %v856
    %858 = vdwg.mxu0
    %v860 = vsel %vm713, %v696, 0
    %862 = vmatprep.subr.mxu0 0.0
    %863 = vmatpush1.msra.mxu0 0.0
    %864 = vmatprep.subr.mxu0 0.0
    %865 = vmatpush1.msra.mxu0 0.0
    %866 = vmatprep.subr.mxu0 0.0
    %867 = vmatpush1.msra.mxu0 0.0
    %868 = vmatprep.subr.mxu0 0.0
    %869 = vmatpush1.msra.mxu0 0.0
    %870 = vmatprep.subr.mxu0 0.0
    %871 = vmatpush1.msra.mxu0 0.0
    %872 = vmatprep.subr.mxu0 0.0
    %873 = vmatpush1.msra.mxu0 0.0
    %874 = vmatprep.subr.mxu0 0.0
    %875 = vmatpush1.msra.mxu0 0.0
    %876 = vmatprep.subr.mxu0 0.0
    %877 = vmatpush1.msra.mxu0 0.0
    %878 = vmatprep.subr.mxu0 0.0
    %879 = vmatpush1.msra.mxu0 0.0
    %880 = vmatprep.subr.mxu0 0.0
    %881 = vmatpush1.msra.mxu0 0.0
    %882 = vmatprep.subr.mxu0 0.0
    %883 = vmatpush1.msra.mxu0 0.0
    %884 = vmatprep.subr.mxu0 0.0
    %885 = vmatpush1.msra.mxu0 0.0
    %886 = vmatprep.subr.mxu0 %v710
    %887 = vmatpush1.msra.mxu0 %v709
    %888 = vmatprep.subr.mxu0 %v706
    %889 = vmatpush1.msra.mxu0 %v705
    %890 = vmatprep.subr.mxu0 %v702
    %891 = vmatpush1.msra.mxu0 %v701
    %892 = vmatprep.subr.mxu0 %v698
    %893 = vmatpush1.msra.mxu0 %v697
    %894 = vmatprep.subr.mxu0 0.0
    %895 = vmatpush2.msra.mxu0 0.0
    %896 = vmatprep.subr.mxu0 0.0
    %897 = vmatpush2.msra.mxu0 0.0
    %898 = vmatprep.subr.mxu0 0.0
    %899 = vmatpush2.msra.mxu0 0.0
    %900 = vmatprep.subr.mxu0 0.0
    %901 = vmatpush2.msra.mxu0 0.0
    %902 = vmatprep.subr.mxu0 0.0
    %903 = vmatpush2.msra.mxu0 0.0
    %904 = vmatprep.subr.mxu0 0.0
    %905 = vmatpush2.msra.mxu0 0.0
    %906 = vmatprep.subr.mxu0 0.0
    %907 = vmatpush2.msra.mxu0 0.0
    %908 = vmatprep.subr.mxu0 0.0
    %909 = vmatpush2.msra.mxu0 0.0
    %910 = vmatprep.subr.mxu0 0.0
    %911 = vmatpush2.msra.mxu0 0.0
    %912 = vmatprep.subr.mxu0 0.0
    %913 = vmatpush2.msra.mxu0 0.0
    %914 = vmatprep.subr.mxu0 0.0
    %915 = vmatpush2.msra.mxu0 0.0
    %916 = vmatprep.subr.mxu0 0.0
    %917 = vmatpush2.msra.mxu0 0.0
    %918 = vmatprep.subr.mxu0 0.0
    %919 = vmatpush2.msra.mxu0 0.0
    %920 = vmatprep.subr.mxu0 0.0
    %921 = vmatpush2.msra.mxu0 0.0
    %922 = vmatprep.subr.mxu0 0.0
    %923 = vmatpush2.msra.mxu0 0.0
    %924 = vmatprep.subr.mxu0 0.0
    %925 = vmatpush2.msra.mxu0 0.0
    %926 = vmatprep.mubr.f32.mxu0 0.0
    %927 = vmatmul.mubr.f32.gmra.mxu0 %v860
    %v928 = vpop.f32.mrf.mxu0
    %v929 = vadd.f32 0.0, %v928
    %v930 = vpop.f32.mrf.mxu0
    %v931 = vadd.f32 0.0, %v930
    %932 = vdwg.mxu0
    %933 = vmatprep.subr.mxu0 0.0
    %934 = vmatpush1.msra.mxu0 0.0
    %935 = vmatprep.subr.mxu0 0.0
    %936 = vmatpush1.msra.mxu0 0.0
    %937 = vmatprep.subr.mxu0 0.0
    %938 = vmatpush1.msra.mxu0 0.0
    %939 = vmatprep.subr.mxu0 0.0
    %940 = vmatpush1.msra.mxu0 0.0
    %941 = vmatprep.subr.mxu0 0.0
    %942 = vmatpush1.msra.mxu0 0.0
    %943 = vmatprep.subr.mxu0 0.0
    %944 = vmatpush1.msra.mxu0 0.0
    %945 = vmatprep.subr.mxu0 0.0
    %946 = vmatpush1.msra.mxu0 0.0
    %947 = vmatprep.subr.mxu0 0.0
    %948 = vmatpush1.msra.mxu0 0.0
    %949 = vmatprep.subr.mxu0 0.0
    %950 = vmatpush1.msra.mxu0 0.0
    %951 = vmatprep.subr.mxu0 0.0
    %952 = vmatpush1.msra.mxu0 0.0
    %953 = vmatprep.subr.mxu0 0.0
    %954 = vmatpush1.msra.mxu0 0.0
    %955 = vmatprep.subr.mxu0 0.0
    %956 = vmatpush1.msra.mxu0 0.0
    %957 = vmatprep.subr.mxu0 %v712
    %958 = vmatpush1.msra.mxu0 %v711
    %959 = vmatprep.subr.mxu0 %v708
    %960 = vmatpush1.msra.mxu0 %v707
    %961 = vmatprep.subr.mxu0 %v704
    %962 = vmatpush1.msra.mxu0 %v703
    %963 = vmatprep.subr.mxu0 %v700
    %964 = vmatpush1.msra.mxu0 %v699
    %965 = vmatprep.subr.mxu0 0.0
    %966 = vmatpush2.msra.mxu0 0.0
    %967 = vmatprep.subr.mxu0 0.0
    %968 = vmatpush2.msra.mxu0 0.0
    %969 = vmatprep.subr.mxu0 0.0
    %970 = vmatpush2.msra.mxu0 0.0
    %971 = vmatprep.subr.mxu0 0.0
    %972 = vmatpush2.msra.mxu0 0.0
    %973 = vmatprep.subr.mxu0 0.0
    %974 = vmatpush2.msra.mxu0 0.0
    %975 = vmatprep.subr.mxu0 0.0
    %976 = vmatpush2.msra.mxu0 0.0
    %977 = vmatprep.subr.mxu0 0.0
    %978 = vmatpush2.msra.mxu0 0.0
    %979 = vmatprep.subr.mxu0 0.0
    %980 = vmatpush2.msra.mxu0 0.0
    %981 = vmatprep.subr.mxu0 0.0
    %982 = vmatpush2.msra.mxu0 0.0
    %983 = vmatprep.subr.mxu0 0.0
    %984 = vmatpush2.msra.mxu0 0.0
    %985 = vmatprep.subr.mxu0 0.0
    %986 = vmatpush2.msra.mxu0 0.0
    %987 = vmatprep.subr.mxu0 0.0
    %988 = vmatpush2.msra.mxu0 0.0
    %989 = vmatprep.subr.mxu0 0.0
    %990 = vmatpush2.msra.mxu0 0.0
    %991 = vmatprep.subr.mxu0 0.0
    %992 = vmatpush2.msra.mxu0 0.0
    %993 = vmatprep.subr.mxu0 0.0
    %994 = vmatpush2.msra.mxu0 0.0
    %995 = vmatprep.subr.mxu0 0.0
    %996 = vmatpush2.msra.mxu0 0.0
    %997 = vmatprep.mubr.f32.mxu0 0.0
    %998 = vmatmul.mubr.f32.gmra.mxu0 %v860
    %v999 = vpop.f32.mrf.mxu0
    %v1000 = vadd.f32 0.0, %v999
    %v1001 = vpop.f32.mrf.mxu0
    %v1002 = vadd.f32 0.0, %v1001
    %1003 = vdwg.mxu0
    %v1004 = vlaneseq
    %v1005 = vshrl.u32 %v1004, 7
    %v1006 = vsub.s32 0, %v1005
    %v1007 = vrot.slane %v784, %v1006
    %v1008 = vlaneseq
    %v1009 = vshrl.u32 %v1008, 7
    %v1010 = vsub.s32 0, %v1009
    %v1011 = vrot.slane %v786, %v1010
    %v1012 = vlaneseq
    %v1013 = vshrl.u32 %v1012, 7
    %v1014 = vsub.s32 0, %v1013
    %v1015 = vrot.slane %v855, %v1014
    %v1016 = vlaneseq
    %v1017 = vshrl.u32 %v1016, 7
    %v1018 = vsub.s32 0, %v1017
    %v1019 = vrot.slane %v857, %v1018
    %v1020 = vmul.f32 %v233, %v1007
    %v1021 = vmul.f32 %v235, %v1011
    %v1022 = vmul.f32 %v274, %v1015
    %v1023 = vmul.f32 %v276, %v1019
    %v1024 = vlaneseq
    %v1025 = vshrl.u32 %v1024, 7
    %v1026 = vsub.s32 0, %v1025
    %v1027 = vrot.slane %v929, %v1026
    %v1028 = vlaneseq
    %v1029 = vshrl.u32 %v1028, 7
    %v1030 = vsub.s32 0, %v1029
    %v1031 = vrot.slane %v931, %v1030
    %v1032 = vlaneseq
    %v1033 = vshrl.u32 %v1032, 7
    %v1034 = vsub.s32 0, %v1033
    %v1035 = vrot.slane %v1000, %v1034
    %v1036 = vlaneseq
    %v1037 = vshrl.u32 %v1036, 7
    %v1038 = vsub.s32 0, %v1037
    %v1039 = vrot.slane %v1002, %v1038
    %v1040 = vadd.f32 %v1020, %v1027
    %v1041 = vadd.f32 %v1021, %v1031
    %v1042 = vadd.f32 %v1022, %v1035
    %v1043 = vadd.f32 %v1023, %v1039
    %v1044 = vmax.f32 %v1040, 0.0
    %v1045 = vmax.f32 %v1041, 0.0
    %v1046 = vmax.f32 %v1042, 0.0
    %v1047 = vmax.f32 %v1043, 0.0
    %v1048 = vpack.c.bf16 %v1044, %v1044
    %v1049 = vpack.c.bf16 %v1045, %v1045
    %v1050 = vpack.c.bf16 %v1046, %v1046
    %v1051 = vpack.c.bf16 %v1047, %v1047
    %v1052 = vld [vmem:[#allocation11] sm:$0xff]
    %v1053 = vld [vmem:[#allocation11 + $0x8] sm:$0xff]
    %v1054 = vld [vmem:[#allocation11 + $0x10] sm:$0xff]
    %v1055 = vld [vmem:[#allocation11 + $0x18] sm:$0xff]
    %v1056 = vld [vmem:[#allocation11 + $0x20] sm:$0xff]
    %v1057 = vld [vmem:[#allocation11 + $0x28] sm:$0xff]
    %v1058 = vld [vmem:[#allocation11 + $0x30] sm:$0xff]
    %v1059 = vld [vmem:[#allocation11 + $0x38] sm:$0xff]
    %v1060 = vld [vmem:[#allocation11 + $0x40] sm:$0xff]
    %v1061 = vld [vmem:[#allocation11 + $0x48] sm:$0xff]
    %v1062 = vld [vmem:[#allocation11 + $0x50] sm:$0xff]
    %v1063 = vld [vmem:[#allocation11 + $0x58] sm:$0xff]
    %v1064 = vld [vmem:[#allocation11 + $0x60] sm:$0xff]
    %v1065 = vld [vmem:[#allocation11 + $0x68] sm:$0xff]
    %v1066 = vld [vmem:[#allocation11 + $0x70] sm:$0xff]
    %v1067 = vld [vmem:[#allocation11 + $0x78] sm:$0xff]
    %v1068 = vld [vmem:[#allocation11 + $0x80] sm:$0xff]
    %v1069 = vld [vmem:[#allocation11 + $0x88] sm:$0xff]
    %v1070 = vld [vmem:[#allocation11 + $0x90] sm:$0xff]
    %v1071 = vld [vmem:[#allocation11 + $0x98] sm:$0xff]
    %v1072 = vld [vmem:[#allocation11 + $0xa0] sm:$0xff]
    %v1073 = vld [vmem:[#allocation11 + $0xa8] sm:$0xff]
    %v1074 = vld [vmem:[#allocation11 + $0xb0] sm:$0xff]
    %v1075 = vld [vmem:[#allocation11 + $0xb8] sm:$0xff]
    %v1076 = vld [vmem:[#allocation11 + $0xc0] sm:$0xff]
    %v1077 = vld [vmem:[#allocation11 + $0xc8] sm:$0xff]
    %v1078 = vld [vmem:[#allocation11 + $0xd0] sm:$0xff]
    %v1079 = vld [vmem:[#allocation11 + $0xd8] sm:$0xff]
    %v1080 = vld [vmem:[#allocation11 + $0xe0] sm:$0xff]
    %v1081 = vld [vmem:[#allocation11 + $0xe8] sm:$0xff]
    %v1082 = vld [vmem:[#allocation11 + $0xf0] sm:$0xff]
    %v1083 = vld [vmem:[#allocation11 + $0xf8] sm:$0xff]
    %v1084 = vld [vmem:[#allocation11 + $0x100] sm:$0xff]
    %v1085 = vld [vmem:[#allocation11 + $0x108] sm:$0xff]
    %v1086 = vld [vmem:[#allocation11 + $0x110] sm:$0xff]
    %v1087 = vld [vmem:[#allocation11 + $0x118] sm:$0xff]
    %v1088 = vld [vmem:[#allocation11 + $0x120] sm:$0xff]
    %v1089 = vld [vmem:[#allocation11 + $0x128] sm:$0xff]
    %v1090 = vld [vmem:[#allocation11 + $0x130] sm:$0xff]
    %v1091 = vld [vmem:[#allocation11 + $0x138] sm:$0xff]
    %v1092 = vld [vmem:[#allocation11 + $0x140] sm:$0xff]
    %v1093 = vld [vmem:[#allocation11 + $0x148] sm:$0xff]
    %v1094 = vld [vmem:[#allocation11 + $0x150] sm:$0xff]
    %v1095 = vld [vmem:[#allocation11 + $0x158] sm:$0xff]
    %v1096 = vld [vmem:[#allocation11 + $0x160] sm:$0xff]
    %v1097 = vld [vmem:[#allocation11 + $0x168] sm:$0xff]
    %v1098 = vld [vmem:[#allocation11 + $0x170] sm:$0xff]
    %v1099 = vld [vmem:[#allocation11 + $0x178] sm:$0xff]
    %v1100 = vld [vmem:[#allocation11 + $0x180] sm:$0xff]
    %v1101 = vld [vmem:[#allocation11 + $0x188] sm:$0xff]
    %v1102 = vld [vmem:[#allocation11 + $0x190] sm:$0xff]
    %v1103 = vld [vmem:[#allocation11 + $0x198] sm:$0xff]
    %v1104 = vld [vmem:[#allocation11 + $0x1a0] sm:$0xff]
    %v1105 = vld [vmem:[#allocation11 + $0x1a8] sm:$0xff]
    %v1106 = vld [vmem:[#allocation11 + $0x1b0] sm:$0xff]
    %v1107 = vld [vmem:[#allocation11 + $0x1b8] sm:$0xff]
    %v1108 = vld [vmem:[#allocation11 + $0x1c0] sm:$0xff]
    %v1109 = vld [vmem:[#allocation11 + $0x1c8] sm:$0xff]
    %v1110 = vld [vmem:[#allocation11 + $0x1d0] sm:$0xff]
    %v1111 = vld [vmem:[#allocation11 + $0x1d8] sm:$0xff]
    %v1112 = vld [vmem:[#allocation11 + $0x1e0] sm:$0xff]
    %v1113 = vld [vmem:[#allocation11 + $0x1e8] sm:$0xff]
    %v1114 = vld [vmem:[#allocation11 + $0x1f0] sm:$0xff]
    %v1115 = vld [vmem:[#allocation11 + $0x1f8] sm:$0xff]
    %v1116 = vld [vmem:[#allocation11 + $0x200] sm:$0xff]
    %v1117 = vld [vmem:[#allocation11 + $0x208] sm:$0xff]
    %v1118 = vld [vmem:[#allocation11 + $0x210] sm:$0xff]
    %v1119 = vld [vmem:[#allocation11 + $0x218] sm:$0xff]
    %v1120 = vld [vmem:[#allocation11 + $0x220] sm:$0xff]
    %v1121 = vld [vmem:[#allocation11 + $0x228] sm:$0xff]
    %v1122 = vld [vmem:[#allocation11 + $0x230] sm:$0xff]
    %v1123 = vld [vmem:[#allocation11 + $0x238] sm:$0xff]
    %v1124 = vld [vmem:[#allocation11 + $0x240] sm:$0xff]
    %v1125 = vld [vmem:[#allocation11 + $0x248] sm:$0xff]
    %v1126 = vld [vmem:[#allocation11 + $0x250] sm:$0xff]
    %v1127 = vld [vmem:[#allocation11 + $0x258] sm:$0xff]
    %v1128 = vld [vmem:[#allocation11 + $0x260] sm:$0xff]
    %v1129 = vld [vmem:[#allocation11 + $0x268] sm:$0xff]
    %v1130 = vld [vmem:[#allocation11 + $0x270] sm:$0xff]
    %v1131 = vld [vmem:[#allocation11 + $0x278] sm:$0xff]
    %v1132 = vld [vmem:[#allocation11 + $0x280] sm:$0xff]
    %v1133 = vld [vmem:[#allocation11 + $0x288] sm:$0xff]
    %v1134 = vld [vmem:[#allocation11 + $0x290] sm:$0xff]
    %v1135 = vld [vmem:[#allocation11 + $0x298] sm:$0xff]
    %v1136 = vld [vmem:[#allocation11 + $0x2a0] sm:$0xff]
    %v1137 = vld [vmem:[#allocation11 + $0x2a8] sm:$0xff]
    %v1138 = vld [vmem:[#allocation11 + $0x2b0] sm:$0xff]
    %v1139 = vld [vmem:[#allocation11 + $0x2b8] sm:$0xff]
    %v1140 = vld [vmem:[#allocation11 + $0x2c0] sm:$0xff]
    %v1141 = vld [vmem:[#allocation11 + $0x2c8] sm:$0xff]
    %v1142 = vld [vmem:[#allocation11 + $0x2d0] sm:$0xff]
    %v1143 = vld [vmem:[#allocation11 + $0x2d8] sm:$0xff]
    %v1144 = vld [vmem:[#allocation11 + $0x2e0] sm:$0xff]
    %v1145 = vld [vmem:[#allocation11 + $0x2e8] sm:$0xff]
    %v1146 = vld [vmem:[#allocation11 + $0x2f0] sm:$0xff]
    %v1147 = vld [vmem:[#allocation11 + $0x2f8] sm:$0xff]
    %v1148 = vld [vmem:[#allocation11 + $0x300] sm:$0xff]
    %v1149 = vld [vmem:[#allocation11 + $0x308] sm:$0xff]
    %v1150 = vld [vmem:[#allocation11 + $0x310] sm:$0xff]
    %v1151 = vld [vmem:[#allocation11 + $0x318] sm:$0xff]
    %v1152 = vld [vmem:[#allocation11 + $0x320] sm:$0xff]
    %v1153 = vld [vmem:[#allocation11 + $0x328] sm:$0xff]
    %v1154 = vld [vmem:[#allocation11 + $0x330] sm:$0xff]
    %v1155 = vld [vmem:[#allocation11 + $0x338] sm:$0xff]
    %v1156 = vld [vmem:[#allocation11 + $0x340] sm:$0xff]
    %v1157 = vld [vmem:[#allocation11 + $0x348] sm:$0xff]
    %v1158 = vld [vmem:[#allocation11 + $0x350] sm:$0xff]
    %v1159 = vld [vmem:[#allocation11 + $0x358] sm:$0xff]
    %v1160 = vld [vmem:[#allocation11 + $0x360] sm:$0xff]
    %v1161 = vld [vmem:[#allocation11 + $0x368] sm:$0xff]
    %v1162 = vld [vmem:[#allocation11 + $0x370] sm:$0xff]
    %v1163 = vld [vmem:[#allocation11 + $0x378] sm:$0xff]
    %v1164 = vld [vmem:[#allocation11 + $0x380] sm:$0xff]
    %v1165 = vld [vmem:[#allocation11 + $0x388] sm:$0xff]
    %v1166 = vld [vmem:[#allocation11 + $0x390] sm:$0xff]
    %v1167 = vld [vmem:[#allocation11 + $0x398] sm:$0xff]
    %v1168 = vld [vmem:[#allocation11 + $0x3a0] sm:$0xff]
    %v1169 = vld [vmem:[#allocation11 + $0x3a8] sm:$0xff]
    %v1170 = vld [vmem:[#allocation11 + $0x3b0] sm:$0xff]
    %v1171 = vld [vmem:[#allocation11 + $0x3b8] sm:$0xff]
    %v1172 = vld [vmem:[#allocation11 + $0x3c0] sm:$0xff]
    %v1173 = vld [vmem:[#allocation11 + $0x3c8] sm:$0xff]
    %v1174 = vld [vmem:[#allocation11 + $0x3d0] sm:$0xff]
    %v1175 = vld [vmem:[#allocation11 + $0x3d8] sm:$0xff]
    %v1176 = vld [vmem:[#allocation11 + $0x3e0] sm:$0xff]
    %v1177 = vld [vmem:[#allocation11 + $0x3e8] sm:$0xff]
    %v1178 = vld [vmem:[#allocation11 + $0x3f0] sm:$0xff]
    %v1179 = vld [vmem:[#allocation11 + $0x3f8] sm:$0xff]
    %v1180 = vld [vmem:[#allocation11 + $0x400] sm:$0xff]
    %v1181 = vld [vmem:[#allocation11 + $0x408] sm:$0xff]
    %v1182 = vld [vmem:[#allocation11 + $0x410] sm:$0xff]
    %v1183 = vld [vmem:[#allocation11 + $0x418] sm:$0xff]
    %v1184 = vld [vmem:[#allocation11 + $0x420] sm:$0xff]
    %v1185 = vld [vmem:[#allocation11 + $0x428] sm:$0xff]
    %v1186 = vld [vmem:[#allocation11 + $0x430] sm:$0xff]
    %v1187 = vld [vmem:[#allocation11 + $0x438] sm:$0xff]
    %v1188 = vld [vmem:[#allocation11 + $0x440] sm:$0xff]
    %v1189 = vld [vmem:[#allocation11 + $0x448] sm:$0xff]
    %v1190 = vld [vmem:[#allocation11 + $0x450] sm:$0xff]
    %v1191 = vld [vmem:[#allocation11 + $0x458] sm:$0xff]
    %v1192 = vld [vmem:[#allocation11 + $0x460] sm:$0xff]
    %v1193 = vld [vmem:[#allocation11 + $0x468] sm:$0xff]
    %v1194 = vld [vmem:[#allocation11 + $0x470] sm:$0xff]
    %v1195 = vld [vmem:[#allocation11 + $0x478] sm:$0xff]
    %v1196 = vld [vmem:[#allocation11 + $0x480] sm:$0xff]
    %v1197 = vld [vmem:[#allocation11 + $0x488] sm:$0xff]
    %v1198 = vld [vmem:[#allocation11 + $0x490] sm:$0xff]
    %v1199 = vld [vmem:[#allocation11 + $0x498] sm:$0xff]
    %v1200 = vld [vmem:[#allocation11 + $0x4a0] sm:$0xff]
    %v1201 = vld [vmem:[#allocation11 + $0x4a8] sm:$0xff]
    %v1202 = vld [vmem:[#allocation11 + $0x4b0] sm:$0xff]
    %v1203 = vld [vmem:[#allocation11 + $0x4b8] sm:$0xff]
    %v1204 = vld [vmem:[#allocation11 + $0x4c0] sm:$0xff]
    %v1205 = vld [vmem:[#allocation11 + $0x4c8] sm:$0xff]
    %v1206 = vld [vmem:[#allocation11 + $0x4d0] sm:$0xff]
    %v1207 = vld [vmem:[#allocation11 + $0x4d8] sm:$0xff]
    %v1208 = vld [vmem:[#allocation11 + $0x4e0] sm:$0xff]
    %v1209 = vld [vmem:[#allocation11 + $0x4e8] sm:$0xff]
    %v1210 = vld [vmem:[#allocation11 + $0x4f0] sm:$0xff]
    %v1211 = vld [vmem:[#allocation11 + $0x4f8] sm:$0xff]
    %v1212 = vld [vmem:[#allocation11 + $0x500] sm:$0xff]
    %v1213 = vld [vmem:[#allocation11 + $0x508] sm:$0xff]
    %v1214 = vld [vmem:[#allocation11 + $0x510] sm:$0xff]
    %v1215 = vld [vmem:[#allocation11 + $0x518] sm:$0xff]
    %v1216 = vld [vmem:[#allocation11 + $0x520] sm:$0xff]
    %v1217 = vld [vmem:[#allocation11 + $0x528] sm:$0xff]
    %v1218 = vld [vmem:[#allocation11 + $0x530] sm:$0xff]
    %v1219 = vld [vmem:[#allocation11 + $0x538] sm:$0xff]
    %v1220 = vld [vmem:[#allocation11 + $0x540] sm:$0xff]
    %v1221 = vld [vmem:[#allocation11 + $0x548] sm:$0xff]
    %v1222 = vld [vmem:[#allocation11 + $0x550] sm:$0xff]
    %v1223 = vld [vmem:[#allocation11 + $0x558] sm:$0xff]
    %v1224 = vld [vmem:[#allocation11 + $0x560] sm:$0xff]
    %v1225 = vld [vmem:[#allocation11 + $0x568] sm:$0xff]
    %v1226 = vld [vmem:[#allocation11 + $0x570] sm:$0xff]
    %v1227 = vld [vmem:[#allocation11 + $0x578] sm:$0xff]
    %v1228 = vld [vmem:[#allocation11 + $0x580] sm:$0xff]
    %v1229 = vld [vmem:[#allocation11 + $0x588] sm:$0xff]
    %v1230 = vld [vmem:[#allocation11 + $0x590] sm:$0xff]
    %v1231 = vld [vmem:[#allocation11 + $0x598] sm:$0xff]
    %v1232 = vld [vmem:[#allocation11 + $0x5a0] sm:$0xff]
    %v1233 = vld [vmem:[#allocation11 + $0x5a8] sm:$0xff]
    %v1234 = vld [vmem:[#allocation11 + $0x5b0] sm:$0xff]
    %v1235 = vld [vmem:[#allocation11 + $0x5b8] sm:$0xff]
    %v1236 = vld [vmem:[#allocation11 + $0x5c0] sm:$0xff]
    %v1237 = vld [vmem:[#allocation11 + $0x5c8] sm:$0xff]
    %v1238 = vld [vmem:[#allocation11 + $0x5d0] sm:$0xff]
    %v1239 = vld [vmem:[#allocation11 + $0x5d8] sm:$0xff]
    %v1240 = vld [vmem:[#allocation11 + $0x5e0] sm:$0xff]
    %v1241 = vld [vmem:[#allocation11 + $0x5e8] sm:$0xff]
    %v1242 = vld [vmem:[#allocation11 + $0x5f0] sm:$0xff]
    %v1243 = vld [vmem:[#allocation11 + $0x5f8] sm:$0xff]
    %v1244 = vld [vmem:[#allocation11 + $0x600] sm:$0xff]
    %v1245 = vld [vmem:[#allocation11 + $0x608] sm:$0xff]
    %v1246 = vld [vmem:[#allocation11 + $0x610] sm:$0xff]
    %v1247 = vld [vmem:[#allocation11 + $0x618] sm:$0xff]
    %v1248 = vld [vmem:[#allocation11 + $0x620] sm:$0xff]
    %v1249 = vld [vmem:[#allocation11 + $0x628] sm:$0xff]
    %v1250 = vld [vmem:[#allocation11 + $0x630] sm:$0xff]
    %v1251 = vld [vmem:[#allocation11 + $0x638] sm:$0xff]
    %v1252 = vld [vmem:[#allocation11 + $0x640] sm:$0xff]
    %v1253 = vld [vmem:[#allocation11 + $0x648] sm:$0xff]
    %v1254 = vld [vmem:[#allocation11 + $0x650] sm:$0xff]
    %v1255 = vld [vmem:[#allocation11 + $0x658] sm:$0xff]
    %v1256 = vld [vmem:[#allocation11 + $0x660] sm:$0xff]
    %v1257 = vld [vmem:[#allocation11 + $0x668] sm:$0xff]
    %v1258 = vld [vmem:[#allocation11 + $0x670] sm:$0xff]
    %v1259 = vld [vmem:[#allocation11 + $0x678] sm:$0xff]
    %v1260 = vld [vmem:[#allocation11 + $0x680] sm:$0xff]
    %v1261 = vld [vmem:[#allocation11 + $0x688] sm:$0xff]
    %v1262 = vld [vmem:[#allocation11 + $0x690] sm:$0xff]
    %v1263 = vld [vmem:[#allocation11 + $0x698] sm:$0xff]
    %v1264 = vld [vmem:[#allocation11 + $0x6a0] sm:$0xff]
    %v1265 = vld [vmem:[#allocation11 + $0x6a8] sm:$0xff]
    %v1266 = vld [vmem:[#allocation11 + $0x6b0] sm:$0xff]
    %v1267 = vld [vmem:[#allocation11 + $0x6b8] sm:$0xff]
    %v1268 = vld [vmem:[#allocation11 + $0x6c0] sm:$0xff]
    %v1269 = vld [vmem:[#allocation11 + $0x6c8] sm:$0xff]
    %v1270 = vld [vmem:[#allocation11 + $0x6d0] sm:$0xff]
    %v1271 = vld [vmem:[#allocation11 + $0x6d8] sm:$0xff]
    %v1272 = vld [vmem:[#allocation11 + $0x6e0] sm:$0xff]
    %v1273 = vld [vmem:[#allocation11 + $0x6e8] sm:$0xff]
    %v1274 = vld [vmem:[#allocation11 + $0x6f0] sm:$0xff]
    %v1275 = vld [vmem:[#allocation11 + $0x6f8] sm:$0xff]
    %v1276 = vld [vmem:[#allocation11 + $0x700] sm:$0xff]
    %v1277 = vld [vmem:[#allocation11 + $0x708] sm:$0xff]
    %v1278 = vld [vmem:[#allocation11 + $0x710] sm:$0xff]
    %v1279 = vld [vmem:[#allocation11 + $0x718] sm:$0xff]
    %v1280 = vld [vmem:[#allocation11 + $0x720] sm:$0xff]
    %v1281 = vld [vmem:[#allocation11 + $0x728] sm:$0xff]
    %v1282 = vld [vmem:[#allocation11 + $0x730] sm:$0xff]
    %v1283 = vld [vmem:[#allocation11 + $0x738] sm:$0xff]
    %v1284 = vld [vmem:[#allocation11 + $0x740] sm:$0xff]
    %v1285 = vld [vmem:[#allocation11 + $0x748] sm:$0xff]
    %v1286 = vld [vmem:[#allocation11 + $0x750] sm:$0xff]
    %v1287 = vld [vmem:[#allocation11 + $0x758] sm:$0xff]
    %v1288 = vld [vmem:[#allocation11 + $0x760] sm:$0xff]
    %v1289 = vld [vmem:[#allocation11 + $0x768] sm:$0xff]
    %v1290 = vld [vmem:[#allocation11 + $0x770] sm:$0xff]
    %v1291 = vld [vmem:[#allocation11 + $0x778] sm:$0xff]
    %v1292 = vld [vmem:[#allocation11 + $0x780] sm:$0xff]
    %v1293 = vld [vmem:[#allocation11 + $0x788] sm:$0xff]
    %v1294 = vld [vmem:[#allocation11 + $0x790] sm:$0xff]
    %v1295 = vld [vmem:[#allocation11 + $0x798] sm:$0xff]
    %v1296 = vld [vmem:[#allocation11 + $0x7a0] sm:$0xff]
    %v1297 = vld [vmem:[#allocation11 + $0x7a8] sm:$0xff]
    %v1298 = vld [vmem:[#allocation11 + $0x7b0] sm:$0xff]
    %v1299 = vld [vmem:[#allocation11 + $0x7b8] sm:$0xff]
    %v1300 = vld [vmem:[#allocation11 + $0x7c0] sm:$0xff]
    %v1301 = vld [vmem:[#allocation11 + $0x7c8] sm:$0xff]
    %v1302 = vld [vmem:[#allocation11 + $0x7d0] sm:$0xff]
    %v1303 = vld [vmem:[#allocation11 + $0x7d8] sm:$0xff]
    %v1304 = vld [vmem:[#allocation11 + $0x7e0] sm:$0xff]
    %v1305 = vld [vmem:[#allocation11 + $0x7e8] sm:$0xff]
    %v1306 = vld [vmem:[#allocation11 + $0x7f0] sm:$0xff]
    %v1307 = vld [vmem:[#allocation11 + $0x7f8] sm:$0xff]
    %v1564 = vunpack.c.l.b16 %v1052
    %v1565 = vunpack.c.h.b16 %v1052
    %v1566 = vunpack.c.l.b16 %v1053
    %v1567 = vunpack.c.h.b16 %v1053
    %v1568 = vunpack.c.l.b16 %v1054
    %v1569 = vunpack.c.h.b16 %v1054
    %v1570 = vunpack.c.l.b16 %v1055
    %v1571 = vunpack.c.h.b16 %v1055
    %v1572 = vunpack.c.l.b16 %v1056
    %v1573 = vunpack.c.h.b16 %v1056
    %v1574 = vunpack.c.l.b16 %v1057
    %v1575 = vunpack.c.h.b16 %v1057
    %v1576 = vunpack.c.l.b16 %v1058
    %v1577 = vunpack.c.h.b16 %v1058
    %v1578 = vunpack.c.l.b16 %v1059
    %v1579 = vunpack.c.h.b16 %v1059
    %v1580 = vunpack.c.l.b16 %v1060
    %v1581 = vunpack.c.h.b16 %v1060
    %v1582 = vunpack.c.l.b16 %v1061
    %v1583 = vunpack.c.h.b16 %v1061
    %v1584 = vunpack.c.l.b16 %v1062
    %v1585 = vunpack.c.h.b16 %v1062
    %v1586 = vunpack.c.l.b16 %v1063
    %v1587 = vunpack.c.h.b16 %v1063
    %v1588 = vunpack.c.l.b16 %v1064
    %v1589 = vunpack.c.h.b16 %v1064
    %v1590 = vunpack.c.l.b16 %v1065
    %v1591 = vunpack.c.h.b16 %v1065
    %v1592 = vunpack.c.l.b16 %v1066
    %v1593 = vunpack.c.h.b16 %v1066
    %v1594 = vunpack.c.l.b16 %v1067
    %v1595 = vunpack.c.h.b16 %v1067
    %v1596 = vunpack.c.l.b16 %v1068
    %v1597 = vunpack.c.h.b16 %v1068
    %v1598 = vunpack.c.l.b16 %v1069
    %v1599 = vunpack.c.h.b16 %v1069
    %v1600 = vunpack.c.l.b16 %v1070
    %v1601 = vunpack.c.h.b16 %v1070
    %v1602 = vunpack.c.l.b16 %v1071
    %v1603 = vunpack.c.h.b16 %v1071
    %v1604 = vunpack.c.l.b16 %v1072
    %v1605 = vunpack.c.h.b16 %v1072
    %v1606 = vunpack.c.l.b16 %v1073
    %v1607 = vunpack.c.h.b16 %v1073
    %v1608 = vunpack.c.l.b16 %v1074
    %v1609 = vunpack.c.h.b16 %v1074
    %v1610 = vunpack.c.l.b16 %v1075
    %v1611 = vunpack.c.h.b16 %v1075
    %v1612 = vunpack.c.l.b16 %v1076
    %v1613 = vunpack.c.h.b16 %v1076
    %v1614 = vunpack.c.l.b16 %v1077
    %v1615 = vunpack.c.h.b16 %v1077
    %v1616 = vunpack.c.l.b16 %v1078
    %v1617 = vunpack.c.h.b16 %v1078
    %v1618 = vunpack.c.l.b16 %v1079
    %v1619 = vunpack.c.h.b16 %v1079
    %v1620 = vunpack.c.l.b16 %v1080
    %v1621 = vunpack.c.h.b16 %v1080
    %v1622 = vunpack.c.l.b16 %v1081
    %v1623 = vunpack.c.h.b16 %v1081
    %v1624 = vunpack.c.l.b16 %v1082
    %v1625 = vunpack.c.h.b16 %v1082
    %v1626 = vunpack.c.l.b16 %v1083
    %v1627 = vunpack.c.h.b16 %v1083
    %v1628 = vunpack.c.l.b16 %v1084
    %v1629 = vunpack.c.h.b16 %v1084
    %v1630 = vunpack.c.l.b16 %v1085
    %v1631 = vunpack.c.h.b16 %v1085
    %v1632 = vunpack.c.l.b16 %v1086
    %v1633 = vunpack.c.h.b16 %v1086
    %v1634 = vunpack.c.l.b16 %v1087
    %v1635 = vunpack.c.h.b16 %v1087
    %v1636 = vunpack.c.l.b16 %v1088
    %v1637 = vunpack.c.h.b16 %v1088
    %v1638 = vunpack.c.l.b16 %v1089
    %v1639 = vunpack.c.h.b16 %v1089
    %v1640 = vunpack.c.l.b16 %v1090
    %v1641 = vunpack.c.h.b16 %v1090
    %v1642 = vunpack.c.l.b16 %v1091
    %v1643 = vunpack.c.h.b16 %v1091
    %v1644 = vunpack.c.l.b16 %v1092
    %v1645 = vunpack.c.h.b16 %v1092
    %v1646 = vunpack.c.l.b16 %v1093
    %v1647 = vunpack.c.h.b16 %v1093
    %v1648 = vunpack.c.l.b16 %v1094
    %v1649 = vunpack.c.h.b16 %v1094
    %v1650 = vunpack.c.l.b16 %v1095
    %v1651 = vunpack.c.h.b16 %v1095
    %v1652 = vunpack.c.l.b16 %v1096
    %v1653 = vunpack.c.h.b16 %v1096
    %v1654 = vunpack.c.l.b16 %v1097
    %v1655 = vunpack.c.h.b16 %v1097
    %v1656 = vunpack.c.l.b16 %v1098
    %v1657 = vunpack.c.h.b16 %v1098
    %v1658 = vunpack.c.l.b16 %v1099
    %v1659 = vunpack.c.h.b16 %v1099
    %v1660 = vunpack.c.l.b16 %v1100
    %v1661 = vunpack.c.h.b16 %v1100
    %v1662 = vunpack.c.l.b16 %v1101
    %v1663 = vunpack.c.h.b16 %v1101
    %v1664 = vunpack.c.l.b16 %v1102
    %v1665 = vunpack.c.h.b16 %v1102
    %v1666 = vunpack.c.l.b16 %v1103
    %v1667 = vunpack.c.h.b16 %v1103
    %v1668 = vunpack.c.l.b16 %v1104
    %v1669 = vunpack.c.h.b16 %v1104
    %v1670 = vunpack.c.l.b16 %v1105
    %v1671 = vunpack.c.h.b16 %v1105
    %v1672 = vunpack.c.l.b16 %v1106
    %v1673 = vunpack.c.h.b16 %v1106
    %v1674 = vunpack.c.l.b16 %v1107
    %v1675 = vunpack.c.h.b16 %v1107
    %v1676 = vunpack.c.l.b16 %v1108
    %v1677 = vunpack.c.h.b16 %v1108
    %v1678 = vunpack.c.l.b16 %v1109
    %v1679 = vunpack.c.h.b16 %v1109
    %v1680 = vunpack.c.l.b16 %v1110
    %v1681 = vunpack.c.h.b16 %v1110
    %v1682 = vunpack.c.l.b16 %v1111
    %v1683 = vunpack.c.h.b16 %v1111
    %v1684 = vunpack.c.l.b16 %v1112
    %v1685 = vunpack.c.h.b16 %v1112
    %v1686 = vunpack.c.l.b16 %v1113
    %v1687 = vunpack.c.h.b16 %v1113
    %v1688 = vunpack.c.l.b16 %v1114
    %v1689 = vunpack.c.h.b16 %v1114
    %v1690 = vunpack.c.l.b16 %v1115
    %v1691 = vunpack.c.h.b16 %v1115
    %v1692 = vunpack.c.l.b16 %v1116
    %v1693 = vunpack.c.h.b16 %v1116
    %v1694 = vunpack.c.l.b16 %v1117
    %v1695 = vunpack.c.h.b16 %v1117
    %v1696 = vunpack.c.l.b16 %v1118
    %v1697 = vunpack.c.h.b16 %v1118
    %v1698 = vunpack.c.l.b16 %v1119
    %v1699 = vunpack.c.h.b16 %v1119
    %v1700 = vunpack.c.l.b16 %v1120
    %v1701 = vunpack.c.h.b16 %v1120
    %v1702 = vunpack.c.l.b16 %v1121
    %v1703 = vunpack.c.h.b16 %v1121
    %v1704 = vunpack.c.l.b16 %v1122
    %v1705 = vunpack.c.h.b16 %v1122
    %v1706 = vunpack.c.l.b16 %v1123
    %v1707 = vunpack.c.h.b16 %v1123
    %v1708 = vunpack.c.l.b16 %v1124
    %v1709 = vunpack.c.h.b16 %v1124
    %v1710 = vunpack.c.l.b16 %v1125
    %v1711 = vunpack.c.h.b16 %v1125
    %v1712 = vunpack.c.l.b16 %v1126
    %v1713 = vunpack.c.h.b16 %v1126
    %v1714 = vunpack.c.l.b16 %v1127
    %v1715 = vunpack.c.h.b16 %v1127
    %v1716 = vunpack.c.l.b16 %v1128
    %v1717 = vunpack.c.h.b16 %v1128
    %v1718 = vunpack.c.l.b16 %v1129
    %v1719 = vunpack.c.h.b16 %v1129
    %v1720 = vunpack.c.l.b16 %v1130
    %v1721 = vunpack.c.h.b16 %v1130
    %v1722 = vunpack.c.l.b16 %v1131
    %v1723 = vunpack.c.h.b16 %v1131
    %v1724 = vunpack.c.l.b16 %v1132
    %v1725 = vunpack.c.h.b16 %v1132
    %v1726 = vunpack.c.l.b16 %v1133
    %v1727 = vunpack.c.h.b16 %v1133
    %v1728 = vunpack.c.l.b16 %v1134
    %v1729 = vunpack.c.h.b16 %v1134
    %v1730 = vunpack.c.l.b16 %v1135
    %v1731 = vunpack.c.h.b16 %v1135
    %v1732 = vunpack.c.l.b16 %v1136
    %v1733 = vunpack.c.h.b16 %v1136
    %v1734 = vunpack.c.l.b16 %v1137
    %v1735 = vunpack.c.h.b16 %v1137
    %v1736 = vunpack.c.l.b16 %v1138
    %v1737 = vunpack.c.h.b16 %v1138
    %v1738 = vunpack.c.l.b16 %v1139
    %v1739 = vunpack.c.h.b16 %v1139
    %v1740 = vunpack.c.l.b16 %v1140
    %v1741 = vunpack.c.h.b16 %v1140
    %v1742 = vunpack.c.l.b16 %v1141
    %v1743 = vunpack.c.h.b16 %v1141
    %v1744 = vunpack.c.l.b16 %v1142
    %v1745 = vunpack.c.h.b16 %v1142
    %v1746 = vunpack.c.l.b16 %v1143
    %v1747 = vunpack.c.h.b16 %v1143
    %v1748 = vunpack.c.l.b16 %v1144
    %v1749 = vunpack.c.h.b16 %v1144
    %v1750 = vunpack.c.l.b16 %v1145
    %v1751 = vunpack.c.h.b16 %v1145
    %v1752 = vunpack.c.l.b16 %v1146
    %v1753 = vunpack.c.h.b16 %v1146
    %v1754 = vunpack.c.l.b16 %v1147
    %v1755 = vunpack.c.h.b16 %v1147
    %v1756 = vunpack.c.l.b16 %v1148
    %v1757 = vunpack.c.h.b16 %v1148
    %v1758 = vunpack.c.l.b16 %v1149
    %v1759 = vunpack.c.h.b16 %v1149
    %v1760 = vunpack.c.l.b16 %v1150
    %v1761 = vunpack.c.h.b16 %v1150
    %v1762 = vunpack.c.l.b16 %v1151
    %v1763 = vunpack.c.h.b16 %v1151
    %v1764 = vunpack.c.l.b16 %v1152
    %v1765 = vunpack.c.h.b16 %v1152
    %v1766 = vunpack.c.l.b16 %v1153
    %v1767 = vunpack.c.h.b16 %v1153
    %v1768 = vunpack.c.l.b16 %v1154
    %v1769 = vunpack.c.h.b16 %v1154
    %v1770 = vunpack.c.l.b16 %v1155
    %v1771 = vunpack.c.h.b16 %v1155
    %v1772 = vunpack.c.l.b16 %v1156
    %v1773 = vunpack.c.h.b16 %v1156
    %v1774 = vunpack.c.l.b16 %v1157
    %v1775 = vunpack.c.h.b16 %v1157
    %v1776 = vunpack.c.l.b16 %v1158
    %v1777 = vunpack.c.h.b16 %v1158
    %v1778 = vunpack.c.l.b16 %v1159
    %v1779 = vunpack.c.h.b16 %v1159
    %v1780 = vunpack.c.l.b16 %v1160
    %v1781 = vunpack.c.h.b16 %v1160
    %v1782 = vunpack.c.l.b16 %v1161
    %v1783 = vunpack.c.h.b16 %v1161
    %v1784 = vunpack.c.l.b16 %v1162
    %v1785 = vunpack.c.h.b16 %v1162
    %v1786 = vunpack.c.l.b16 %v1163
    %v1787 = vunpack.c.h.b16 %v1163
    %v1788 = vunpack.c.l.b16 %v1164
    %v1789 = vunpack.c.h.b16 %v1164
    %v1790 = vunpack.c.l.b16 %v1165
    %v1791 = vunpack.c.h.b16 %v1165
    %v1792 = vunpack.c.l.b16 %v1166
    %v1793 = vunpack.c.h.b16 %v1166
    %v1794 = vunpack.c.l.b16 %v1167
    %v1795 = vunpack.c.h.b16 %v1167
    %v1796 = vunpack.c.l.b16 %v1168
    %v1797 = vunpack.c.h.b16 %v1168
    %v1798 = vunpack.c.l.b16 %v1169
    %v1799 = vunpack.c.h.b16 %v1169
    %v1800 = vunpack.c.l.b16 %v1170
    %v1801 = vunpack.c.h.b16 %v1170
    %v1802 = vunpack.c.l.b16 %v1171
    %v1803 = vunpack.c.h.b16 %v1171
    %v1804 = vunpack.c.l.b16 %v1172
    %v1805 = vunpack.c.h.b16 %v1172
    %v1806 = vunpack.c.l.b16 %v1173
    %v1807 = vunpack.c.h.b16 %v1173
    %v1808 = vunpack.c.l.b16 %v1174
    %v1809 = vunpack.c.h.b16 %v1174
    %v1810 = vunpack.c.l.b16 %v1175
    %v1811 = vunpack.c.h.b16 %v1175
    %v1812 = vunpack.c.l.b16 %v1176
    %v1813 = vunpack.c.h.b16 %v1176
    %v1814 = vunpack.c.l.b16 %v1177
    %v1815 = vunpack.c.h.b16 %v1177
    %v1816 = vunpack.c.l.b16 %v1178
    %v1817 = vunpack.c.h.b16 %v1178
    %v1818 = vunpack.c.l.b16 %v1179
    %v1819 = vunpack.c.h.b16 %v1179
    %v1820 = vunpack.c.l.b16 %v1180
    %v1821 = vunpack.c.h.b16 %v1180
    %v1822 = vunpack.c.l.b16 %v1181
    %v1823 = vunpack.c.h.b16 %v1181
    %v1824 = vunpack.c.l.b16 %v1182
    %v1825 = vunpack.c.h.b16 %v1182
    %v1826 = vunpack.c.l.b16 %v1183
    %v1827 = vunpack.c.h.b16 %v1183
    %v1828 = vunpack.c.l.b16 %v1184
    %v1829 = vunpack.c.h.b16 %v1184
    %v1830 = vunpack.c.l.b16 %v1185
    %v1831 = vunpack.c.h.b16 %v1185
    %v1832 = vunpack.c.l.b16 %v1186
    %v1833 = vunpack.c.h.b16 %v1186
    %v1834 = vunpack.c.l.b16 %v1187
    %v1835 = vunpack.c.h.b16 %v1187
    %v1836 = vunpack.c.l.b16 %v1188
    %v1837 = vunpack.c.h.b16 %v1188
    %v1838 = vunpack.c.l.b16 %v1189
    %v1839 = vunpack.c.h.b16 %v1189
    %v1840 = vunpack.c.l.b16 %v1190
    %v1841 = vunpack.c.h.b16 %v1190
    %v1842 = vunpack.c.l.b16 %v1191
    %v1843 = vunpack.c.h.b16 %v1191
    %v1844 = vunpack.c.l.b16 %v1192
    %v1845 = vunpack.c.h.b16 %v1192
    %v1846 = vunpack.c.l.b16 %v1193
    %v1847 = vunpack.c.h.b16 %v1193
    %v1848 = vunpack.c.l.b16 %v1194
    %v1849 = vunpack.c.h.b16 %v1194
    %v1850 = vunpack.c.l.b16 %v1195
    %v1851 = vunpack.c.h.b16 %v1195
    %v1852 = vunpack.c.l.b16 %v1196
    %v1853 = vunpack.c.h.b16 %v1196
    %v1854 = vunpack.c.l.b16 %v1197
    %v1855 = vunpack.c.h.b16 %v1197
    %v1856 = vunpack.c.l.b16 %v1198
    %v1857 = vunpack.c.h.b16 %v1198
    %v1858 = vunpack.c.l.b16 %v1199
    %v1859 = vunpack.c.h.b16 %v1199
    %v1860 = vunpack.c.l.b16 %v1200
    %v1861 = vunpack.c.h.b16 %v1200
    %v1862 = vunpack.c.l.b16 %v1201
    %v1863 = vunpack.c.h.b16 %v1201
    %v1864 = vunpack.c.l.b16 %v1202
    %v1865 = vunpack.c.h.b16 %v1202
    %v1866 = vunpack.c.l.b16 %v1203
    %v1867 = vunpack.c.h.b16 %v1203
    %v1868 = vunpack.c.l.b16 %v1204
    %v1869 = vunpack.c.h.b16 %v1204
    %v1870 = vunpack.c.l.b16 %v1205
    %v1871 = vunpack.c.h.b16 %v1205
    %v1872 = vunpack.c.l.b16 %v1206
    %v1873 = vunpack.c.h.b16 %v1206
    %v1874 = vunpack.c.l.b16 %v1207
    %v1875 = vunpack.c.h.b16 %v1207
    %v1876 = vunpack.c.l.b16 %v1208
    %v1877 = vunpack.c.h.b16 %v1208
    %v1878 = vunpack.c.l.b16 %v1209
    %v1879 = vunpack.c.h.b16 %v1209
    %v1880 = vunpack.c.l.b16 %v1210
    %v1881 = vunpack.c.h.b16 %v1210
    %v1882 = vunpack.c.l.b16 %v1211
    %v1883 = vunpack.c.h.b16 %v1211
    %v1884 = vunpack.c.l.b16 %v1212
    %v1885 = vunpack.c.h.b16 %v1212
    %v1886 = vunpack.c.l.b16 %v1213
    %v1887 = vunpack.c.h.b16 %v1213
    %v1888 = vunpack.c.l.b16 %v1214
    %v1889 = vunpack.c.h.b16 %v1214
    %v1890 = vunpack.c.l.b16 %v1215
    %v1891 = vunpack.c.h.b16 %v1215
    %v1892 = vunpack.c.l.b16 %v1216
    %v1893 = vunpack.c.h.b16 %v1216
    %v1894 = vunpack.c.l.b16 %v1217
    %v1895 = vunpack.c.h.b16 %v1217
    %v1896 = vunpack.c.l.b16 %v1218
    %v1897 = vunpack.c.h.b16 %v1218
    %v1898 = vunpack.c.l.b16 %v1219
    %v1899 = vunpack.c.h.b16 %v1219
    %v1900 = vunpack.c.l.b16 %v1220
    %v1901 = vunpack.c.h.b16 %v1220
    %v1902 = vunpack.c.l.b16 %v1221
    %v1903 = vunpack.c.h.b16 %v1221
    %v1904 = vunpack.c.l.b16 %v1222
    %v1905 = vunpack.c.h.b16 %v1222
    %v1906 = vunpack.c.l.b16 %v1223
    %v1907 = vunpack.c.h.b16 %v1223
    %v1908 = vunpack.c.l.b16 %v1224
    %v1909 = vunpack.c.h.b16 %v1224
    %v1910 = vunpack.c.l.b16 %v1225
    %v1911 = vunpack.c.h.b16 %v1225
    %v1912 = vunpack.c.l.b16 %v1226
    %v1913 = vunpack.c.h.b16 %v1226
    %v1914 = vunpack.c.l.b16 %v1227
    %v1915 = vunpack.c.h.b16 %v1227
    %v1916 = vunpack.c.l.b16 %v1228
    %v1917 = vunpack.c.h.b16 %v1228
    %v1918 = vunpack.c.l.b16 %v1229
    %v1919 = vunpack.c.h.b16 %v1229
    %v1920 = vunpack.c.l.b16 %v1230
    %v1921 = vunpack.c.h.b16 %v1230
    %v1922 = vunpack.c.l.b16 %v1231
    %v1923 = vunpack.c.h.b16 %v1231
    %v1924 = vunpack.c.l.b16 %v1232
    %v1925 = vunpack.c.h.b16 %v1232
    %v1926 = vunpack.c.l.b16 %v1233
    %v1927 = vunpack.c.h.b16 %v1233
    %v1928 = vunpack.c.l.b16 %v1234
    %v1929 = vunpack.c.h.b16 %v1234
    %v1930 = vunpack.c.l.b16 %v1235
    %v1931 = vunpack.c.h.b16 %v1235
    %v1932 = vunpack.c.l.b16 %v1236
    %v1933 = vunpack.c.h.b16 %v1236
    %v1934 = vunpack.c.l.b16 %v1237
    %v1935 = vunpack.c.h.b16 %v1237
    %v1936 = vunpack.c.l.b16 %v1238
    %v1937 = vunpack.c.h.b16 %v1238
    %v1938 = vunpack.c.l.b16 %v1239
    %v1939 = vunpack.c.h.b16 %v1239
    %v1940 = vunpack.c.l.b16 %v1240
    %v1941 = vunpack.c.h.b16 %v1240
    %v1942 = vunpack.c.l.b16 %v1241
    %v1943 = vunpack.c.h.b16 %v1241
    %v1944 = vunpack.c.l.b16 %v1242
    %v1945 = vunpack.c.h.b16 %v1242
    %v1946 = vunpack.c.l.b16 %v1243
    %v1947 = vunpack.c.h.b16 %v1243
    %v1948 = vunpack.c.l.b16 %v1244
    %v1949 = vunpack.c.h.b16 %v1244
    %v1950 = vunpack.c.l.b16 %v1245
    %v1951 = vunpack.c.h.b16 %v1245
    %v1952 = vunpack.c.l.b16 %v1246
    %v1953 = vunpack.c.h.b16 %v1246
    %v1954 = vunpack.c.l.b16 %v1247
    %v1955 = vunpack.c.h.b16 %v1247
    %v1956 = vunpack.c.l.b16 %v1248
    %v1957 = vunpack.c.h.b16 %v1248
    %v1958 = vunpack.c.l.b16 %v1249
    %v1959 = vunpack.c.h.b16 %v1249
    %v1960 = vunpack.c.l.b16 %v1250
    %v1961 = vunpack.c.h.b16 %v1250
    %v1962 = vunpack.c.l.b16 %v1251
    %v1963 = vunpack.c.h.b16 %v1251
    %v1964 = vunpack.c.l.b16 %v1252
    %v1965 = vunpack.c.h.b16 %v1252
    %v1966 = vunpack.c.l.b16 %v1253
    %v1967 = vunpack.c.h.b16 %v1253
    %v1968 = vunpack.c.l.b16 %v1254
    %v1969 = vunpack.c.h.b16 %v1254
    %v1970 = vunpack.c.l.b16 %v1255
    %v1971 = vunpack.c.h.b16 %v1255
    %v1972 = vunpack.c.l.b16 %v1256
    %v1973 = vunpack.c.h.b16 %v1256
    %v1974 = vunpack.c.l.b16 %v1257
    %v1975 = vunpack.c.h.b16 %v1257
    %v1976 = vunpack.c.l.b16 %v1258
    %v1977 = vunpack.c.h.b16 %v1258
    %v1978 = vunpack.c.l.b16 %v1259
    %v1979 = vunpack.c.h.b16 %v1259
    %v1980 = vunpack.c.l.b16 %v1260
    %v1981 = vunpack.c.h.b16 %v1260
    %v1982 = vunpack.c.l.b16 %v1261
    %v1983 = vunpack.c.h.b16 %v1261
    %v1984 = vunpack.c.l.b16 %v1262
    %v1985 = vunpack.c.h.b16 %v1262
    %v1986 = vunpack.c.l.b16 %v1263
    %v1987 = vunpack.c.h.b16 %v1263
    %v1988 = vunpack.c.l.b16 %v1264
    %v1989 = vunpack.c.h.b16 %v1264
    %v1990 = vunpack.c.l.b16 %v1265
    %v1991 = vunpack.c.h.b16 %v1265
    %v1992 = vunpack.c.l.b16 %v1266
    %v1993 = vunpack.c.h.b16 %v1266
    %v1994 = vunpack.c.l.b16 %v1267
    %v1995 = vunpack.c.h.b16 %v1267
    %v1996 = vunpack.c.l.b16 %v1268
    %v1997 = vunpack.c.h.b16 %v1268
    %v1998 = vunpack.c.l.b16 %v1269
    %v1999 = vunpack.c.h.b16 %v1269
    %v2000 = vunpack.c.l.b16 %v1270
    %v2001 = vunpack.c.h.b16 %v1270
    %v2002 = vunpack.c.l.b16 %v1271
    %v2003 = vunpack.c.h.b16 %v1271
    %v2004 = vunpack.c.l.b16 %v1272
    %v2005 = vunpack.c.h.b16 %v1272
    %v2006 = vunpack.c.l.b16 %v1273
    %v2007 = vunpack.c.h.b16 %v1273
    %v2008 = vunpack.c.l.b16 %v1274
    %v2009 = vunpack.c.h.b16 %v1274
    %v2010 = vunpack.c.l.b16 %v1275
    %v2011 = vunpack.c.h.b16 %v1275
    %v2012 = vunpack.c.l.b16 %v1276
    %v2013 = vunpack.c.h.b16 %v1276
    %v2014 = vunpack.c.l.b16 %v1277
    %v2015 = vunpack.c.h.b16 %v1277
    %v2016 = vunpack.c.l.b16 %v1278
    %v2017 = vunpack.c.h.b16 %v1278
    %v2018 = vunpack.c.l.b16 %v1279
    %v2019 = vunpack.c.h.b16 %v1279
    %v2020 = vunpack.c.l.b16 %v1280
    %v2021 = vunpack.c.h.b16 %v1280
    %v2022 = vunpack.c.l.b16 %v1281
    %v2023 = vunpack.c.h.b16 %v1281
    %v2024 = vunpack.c.l.b16 %v1282
    %v2025 = vunpack.c.h.b16 %v1282
    %v2026 = vunpack.c.l.b16 %v1283
    %v2027 = vunpack.c.h.b16 %v1283
    %v2028 = vunpack.c.l.b16 %v1284
    %v2029 = vunpack.c.h.b16 %v1284
    %v2030 = vunpack.c.l.b16 %v1285
    %v2031 = vunpack.c.h.b16 %v1285
    %v2032 = vunpack.c.l.b16 %v1286
    %v2033 = vunpack.c.h.b16 %v1286
    %v2034 = vunpack.c.l.b16 %v1287
    %v2035 = vunpack.c.h.b16 %v1287
    %v2036 = vunpack.c.l.b16 %v1288
    %v2037 = vunpack.c.h.b16 %v1288
    %v2038 = vunpack.c.l.b16 %v1289
    %v2039 = vunpack.c.h.b16 %v1289
    %v2040 = vunpack.c.l.b16 %v1290
    %v2041 = vunpack.c.h.b16 %v1290
    %v2042 = vunpack.c.l.b16 %v1291
    %v2043 = vunpack.c.h.b16 %v1291
    %v2044 = vunpack.c.l.b16 %v1292
    %v2045 = vunpack.c.h.b16 %v1292
    %v2046 = vunpack.c.l.b16 %v1293
    %v2047 = vunpack.c.h.b16 %v1293
    %v2048 = vunpack.c.l.b16 %v1294
    %v2049 = vunpack.c.h.b16 %v1294
    %v2050 = vunpack.c.l.b16 %v1295
    %v2051 = vunpack.c.h.b16 %v1295
    %v2052 = vunpack.c.l.b16 %v1296
    %v2053 = vunpack.c.h.b16 %v1296
    %v2054 = vunpack.c.l.b16 %v1297
    %v2055 = vunpack.c.h.b16 %v1297
    %v2056 = vunpack.c.l.b16 %v1298
    %v2057 = vunpack.c.h.b16 %v1298
    %v2058 = vunpack.c.l.b16 %v1299
    %v2059 = vunpack.c.h.b16 %v1299
    %v2060 = vunpack.c.l.b16 %v1300
    %v2061 = vunpack.c.h.b16 %v1300
    %v2062 = vunpack.c.l.b16 %v1301
    %v2063 = vunpack.c.h.b16 %v1301
    %v2064 = vunpack.c.l.b16 %v1302
    %v2065 = vunpack.c.h.b16 %v1302
    %v2066 = vunpack.c.l.b16 %v1303
    %v2067 = vunpack.c.h.b16 %v1303
    %v2068 = vunpack.c.l.b16 %v1304
    %v2069 = vunpack.c.h.b16 %v1304
    %v2070 = vunpack.c.l.b16 %v1305
    %v2071 = vunpack.c.h.b16 %v1305
    %v2072 = vunpack.c.l.b16 %v1306
    %v2073 = vunpack.c.h.b16 %v1306
    %v2074 = vunpack.c.l.b16 %v1307
    %v2075 = vunpack.c.h.b16 %v1307
    %v2076 = vpack.c.b16 %v1572, %v1564
    %v2077 = vpack.c.b16 %v1573, %v1565
    %v2078 = vpack.c.b16 %v1574, %v1566
    %v2079 = vpack.c.b16 %v1575, %v1567
    %v2080 = vpack.c.b16 %v1576, %v1568
    %v2081 = vpack.c.b16 %v1577, %v1569
    %v2082 = vpack.c.b16 %v1578, %v1570
    %v2083 = vpack.c.b16 %v1579, %v1571
    %v2084 = vpack.c.b16 %v1588, %v1580
    %v2085 = vpack.c.b16 %v1589, %v1581
    %v2086 = vpack.c.b16 %v1590, %v1582
    %v2087 = vpack.c.b16 %v1591, %v1583
    %v2088 = vpack.c.b16 %v1592, %v1584
    %v2089 = vpack.c.b16 %v1593, %v1585
    %v2090 = vpack.c.b16 %v1594, %v1586
    %v2091 = vpack.c.b16 %v1595, %v1587
    %v2092 = vpack.c.b16 %v1604, %v1596
    %v2093 = vpack.c.b16 %v1605, %v1597
    %v2094 = vpack.c.b16 %v1606, %v1598
    %v2095 = vpack.c.b16 %v1607, %v1599
    %v2096 = vpack.c.b16 %v1608, %v1600
    %v2097 = vpack.c.b16 %v1609, %v1601
    %v2098 = vpack.c.b16 %v1610, %v1602
    %v2099 = vpack.c.b16 %v1611, %v1603
    %v2100 = vpack.c.b16 %v1620, %v1612
    %v2101 = vpack.c.b16 %v1621, %v1613
    %v2102 = vpack.c.b16 %v1622, %v1614
    %v2103 = vpack.c.b16 %v1623, %v1615
    %v2104 = vpack.c.b16 %v1624, %v1616
    %v2105 = vpack.c.b16 %v1625, %v1617
    %v2106 = vpack.c.b16 %v1626, %v1618
    %v2107 = vpack.c.b16 %v1627, %v1619
    %v2108 = vpack.c.b16 %v1636, %v1628
    %v2109 = vpack.c.b16 %v1637, %v1629
    %v2110 = vpack.c.b16 %v1638, %v1630
    %v2111 = vpack.c.b16 %v1639, %v1631
    %v2112 = vpack.c.b16 %v1640, %v1632
    %v2113 = vpack.c.b16 %v1641, %v1633
    %v2114 = vpack.c.b16 %v1642, %v1634
    %v2115 = vpack.c.b16 %v1643, %v1635
    %v2116 = vpack.c.b16 %v1652, %v1644
    %v2117 = vpack.c.b16 %v1653, %v1645
    %v2118 = vpack.c.b16 %v1654, %v1646
    %v2119 = vpack.c.b16 %v1655, %v1647
    %v2120 = vpack.c.b16 %v1656, %v1648
    %v2121 = vpack.c.b16 %v1657, %v1649
    %v2122 = vpack.c.b16 %v1658, %v1650
    %v2123 = vpack.c.b16 %v1659, %v1651
    %v2124 = vpack.c.b16 %v1668, %v1660
    %v2125 = vpack.c.b16 %v1669, %v1661
    %v2126 = vpack.c.b16 %v1670, %v1662
    %v2127 = vpack.c.b16 %v1671, %v1663
    %v2128 = vpack.c.b16 %v1672, %v1664
    %v2129 = vpack.c.b16 %v1673, %v1665
    %v2130 = vpack.c.b16 %v1674, %v1666
    %v2131 = vpack.c.b16 %v1675, %v1667
    %v2132 = vpack.c.b16 %v1684, %v1676
    %v2133 = vpack.c.b16 %v1685, %v1677
    %v2134 = vpack.c.b16 %v1686, %v1678
    %v2135 = vpack.c.b16 %v1687, %v1679
    %v2136 = vpack.c.b16 %v1688, %v1680
    %v2137 = vpack.c.b16 %v1689, %v1681
    %v2138 = vpack.c.b16 %v1690, %v1682
    %v2139 = vpack.c.b16 %v1691, %v1683
    %v2140 = vpack.c.b16 %v1700, %v1692
    %v2141 = vpack.c.b16 %v1701, %v1693
    %v2142 = vpack.c.b16 %v1702, %v1694
    %v2143 = vpack.c.b16 %v1703, %v1695
    %v2144 = vpack.c.b16 %v1704, %v1696
    %v2145 = vpack.c.b16 %v1705, %v1697
    %v2146 = vpack.c.b16 %v1706, %v1698
    %v2147 = vpack.c.b16 %v1707, %v1699
    %v2148 = vpack.c.b16 %v1716, %v1708
    %v2149 = vpack.c.b16 %v1717, %v1709
    %v2150 = vpack.c.b16 %v1718, %v1710
    %v2151 = vpack.c.b16 %v1719, %v1711
    %v2152 = vpack.c.b16 %v1720, %v1712
    %v2153 = vpack.c.b16 %v1721, %v1713
    %v2154 = vpack.c.b16 %v1722, %v1714
    %v2155 = vpack.c.b16 %v1723, %v1715
    %v2156 = vpack.c.b16 %v1732, %v1724
    %v2157 = vpack.c.b16 %v1733, %v1725
    %v2158 = vpack.c.b16 %v1734, %v1726
    %v2159 = vpack.c.b16 %v1735, %v1727
    %v2160 = vpack.c.b16 %v1736, %v1728
    %v2161 = vpack.c.b16 %v1737, %v1729
    %v2162 = vpack.c.b16 %v1738, %v1730
    %v2163 = vpack.c.b16 %v1739, %v1731
    %v2164 = vpack.c.b16 %v1748, %v1740
    %v2165 = vpack.c.b16 %v1749, %v1741
    %v2166 = vpack.c.b16 %v1750, %v1742
    %v2167 = vpack.c.b16 %v1751, %v1743
    %v2168 = vpack.c.b16 %v1752, %v1744
    %v2169 = vpack.c.b16 %v1753, %v1745
    %v2170 = vpack.c.b16 %v1754, %v1746
    %v2171 = vpack.c.b16 %v1755, %v1747
    %v2172 = vpack.c.b16 %v1764, %v1756
    %v2173 = vpack.c.b16 %v1765, %v1757
    %v2174 = vpack.c.b16 %v1766, %v1758
    %v2175 = vpack.c.b16 %v1767, %v1759
    %v2176 = vpack.c.b16 %v1768, %v1760
    %v2177 = vpack.c.b16 %v1769, %v1761
    %v2178 = vpack.c.b16 %v1770, %v1762
    %v2179 = vpack.c.b16 %v1771, %v1763
    %v2180 = vpack.c.b16 %v1780, %v1772
    %v2181 = vpack.c.b16 %v1781, %v1773
    %v2182 = vpack.c.b16 %v1782, %v1774
    %v2183 = vpack.c.b16 %v1783, %v1775
    %v2184 = vpack.c.b16 %v1784, %v1776
    %v2185 = vpack.c.b16 %v1785, %v1777
    %v2186 = vpack.c.b16 %v1786, %v1778
    %v2187 = vpack.c.b16 %v1787, %v1779
    %v2188 = vpack.c.b16 %v1796, %v1788
    %v2189 = vpack.c.b16 %v1797, %v1789
    %v2190 = vpack.c.b16 %v1798, %v1790
    %v2191 = vpack.c.b16 %v1799, %v1791
    %v2192 = vpack.c.b16 %v1800, %v1792
    %v2193 = vpack.c.b16 %v1801, %v1793
    %v2194 = vpack.c.b16 %v1802, %v1794
    %v2195 = vpack.c.b16 %v1803, %v1795
    %v2196 = vpack.c.b16 %v1812, %v1804
    %v2197 = vpack.c.b16 %v1813, %v1805
    %v2198 = vpack.c.b16 %v1814, %v1806
    %v2199 = vpack.c.b16 %v1815, %v1807
    %v2200 = vpack.c.b16 %v1816, %v1808
    %v2201 = vpack.c.b16 %v1817, %v1809
    %v2202 = vpack.c.b16 %v1818, %v1810
    %v2203 = vpack.c.b16 %v1819, %v1811
    %v2204 = vpack.c.b16 %v1828, %v1820
    %v2205 = vpack.c.b16 %v1829, %v1821
    %v2206 = vpack.c.b16 %v1830, %v1822
    %v2207 = vpack.c.b16 %v1831, %v1823
    %v2208 = vpack.c.b16 %v1832, %v1824
    %v2209 = vpack.c.b16 %v1833, %v1825
    %v2210 = vpack.c.b16 %v1834, %v1826
    %v2211 = vpack.c.b16 %v1835, %v1827
    %v2212 = vpack.c.b16 %v1844, %v1836
    %v2213 = vpack.c.b16 %v1845, %v1837
    %v2214 = vpack.c.b16 %v1846, %v1838
    %v2215 = vpack.c.b16 %v1847, %v1839
    %v2216 = vpack.c.b16 %v1848, %v1840
    %v2217 = vpack.c.b16 %v1849, %v1841
    %v2218 = vpack.c.b16 %v1850, %v1842
    %v2219 = vpack.c.b16 %v1851, %v1843
    %v2220 = vpack.c.b16 %v1860, %v1852
    %v2221 = vpack.c.b16 %v1861, %v1853
    %v2222 = vpack.c.b16 %v1862, %v1854
    %v2223 = vpack.c.b16 %v1863, %v1855
    %v2224 = vpack.c.b16 %v1864, %v1856
    %v2225 = vpack.c.b16 %v1865, %v1857
    %v2226 = vpack.c.b16 %v1866, %v1858
    %v2227 = vpack.c.b16 %v1867, %v1859
    %v2228 = vpack.c.b16 %v1876, %v1868
    %v2229 = vpack.c.b16 %v1877, %v1869
    %v2230 = vpack.c.b16 %v1878, %v1870
    %v2231 = vpack.c.b16 %v1879, %v1871
    %v2232 = vpack.c.b16 %v1880, %v1872
    %v2233 = vpack.c.b16 %v1881, %v1873
    %v2234 = vpack.c.b16 %v1882, %v1874
    %v2235 = vpack.c.b16 %v1883, %v1875
    %v2236 = vpack.c.b16 %v1892, %v1884
    %v2237 = vpack.c.b16 %v1893, %v1885
    %v2238 = vpack.c.b16 %v1894, %v1886
    %v2239 = vpack.c.b16 %v1895, %v1887
    %v2240 = vpack.c.b16 %v1896, %v1888
    %v2241 = vpack.c.b16 %v1897, %v1889
    %v2242 = vpack.c.b16 %v1898, %v1890
    %v2243 = vpack.c.b16 %v1899, %v1891
    %v2244 = vpack.c.b16 %v1908, %v1900
    %v2245 = vpack.c.b16 %v1909, %v1901
    %v2246 = vpack.c.b16 %v1910, %v1902
    %v2247 = vpack.c.b16 %v1911, %v1903
    %v2248 = vpack.c.b16 %v1912, %v1904
    %v2249 = vpack.c.b16 %v1913, %v1905
    %v2250 = vpack.c.b16 %v1914, %v1906
    %v2251 = vpack.c.b16 %v1915, %v1907
    %v2252 = vpack.c.b16 %v1924, %v1916
    %v2253 = vpack.c.b16 %v1925, %v1917
    %v2254 = vpack.c.b16 %v1926, %v1918
    %v2255 = vpack.c.b16 %v1927, %v1919
    %v2256 = vpack.c.b16 %v1928, %v1920
    %v2257 = vpack.c.b16 %v1929, %v1921
    %v2258 = vpack.c.b16 %v1930, %v1922
    %v2259 = vpack.c.b16 %v1931, %v1923
    %v2260 = vpack.c.b16 %v1940, %v1932
    %v2261 = vpack.c.b16 %v1941, %v1933
    %v2262 = vpack.c.b16 %v1942, %v1934
    %v2263 = vpack.c.b16 %v1943, %v1935
    %v2264 = vpack.c.b16 %v1944, %v1936
    %v2265 = vpack.c.b16 %v1945, %v1937
    %v2266 = vpack.c.b16 %v1946, %v1938
    %v2267 = vpack.c.b16 %v1947, %v1939
    %v2268 = vpack.c.b16 %v1956, %v1948
    %v2269 = vpack.c.b16 %v1957, %v1949
    %v2270 = vpack.c.b16 %v1958, %v1950
    %v2271 = vpack.c.b16 %v1959, %v1951
    %v2272 = vpack.c.b16 %v1960, %v1952
    %v2273 = vpack.c.b16 %v1961, %v1953
    %v2274 = vpack.c.b16 %v1962, %v1954
    %v2275 = vpack.c.b16 %v1963, %v1955
    %v2276 = vpack.c.b16 %v1972, %v1964
    %v2277 = vpack.c.b16 %v1973, %v1965
    %v2278 = vpack.c.b16 %v1974, %v1966
    %v2279 = vpack.c.b16 %v1975, %v1967
    %v2280 = vpack.c.b16 %v1976, %v1968
    %v2281 = vpack.c.b16 %v1977, %v1969
    %v2282 = vpack.c.b16 %v1978, %v1970
    %v2283 = vpack.c.b16 %v1979, %v1971
    %v2284 = vpack.c.b16 %v1988, %v1980
    %v2285 = vpack.c.b16 %v1989, %v1981
    %v2286 = vpack.c.b16 %v1990, %v1982
    %v2287 = vpack.c.b16 %v1991, %v1983
    %v2288 = vpack.c.b16 %v1992, %v1984
    %v2289 = vpack.c.b16 %v1993, %v1985
    %v2290 = vpack.c.b16 %v1994, %v1986
    %v2291 = vpack.c.b16 %v1995, %v1987
    %v2292 = vpack.c.b16 %v2004, %v1996
    %v2293 = vpack.c.b16 %v2005, %v1997
    %v2294 = vpack.c.b16 %v2006, %v1998
    %v2295 = vpack.c.b16 %v2007, %v1999
    %v2296 = vpack.c.b16 %v2008, %v2000
    %v2297 = vpack.c.b16 %v2009, %v2001
    %v2298 = vpack.c.b16 %v2010, %v2002
    %v2299 = vpack.c.b16 %v2011, %v2003
    %v2300 = vpack.c.b16 %v2020, %v2012
    %v2301 = vpack.c.b16 %v2021, %v2013
    %v2302 = vpack.c.b16 %v2022, %v2014
    %v2303 = vpack.c.b16 %v2023, %v2015
    %v2304 = vpack.c.b16 %v2024, %v2016
    %v2305 = vpack.c.b16 %v2025, %v2017
    %v2306 = vpack.c.b16 %v2026, %v2018
    %v2307 = vpack.c.b16 %v2027, %v2019
    %v2308 = vpack.c.b16 %v2036, %v2028
    %v2309 = vpack.c.b16 %v2037, %v2029
    %v2310 = vpack.c.b16 %v2038, %v2030
    %v2311 = vpack.c.b16 %v2039, %v2031
    %v2312 = vpack.c.b16 %v2040, %v2032
    %v2313 = vpack.c.b16 %v2041, %v2033
    %v2314 = vpack.c.b16 %v2042, %v2034
    %v2315 = vpack.c.b16 %v2043, %v2035
    %v2316 = vpack.c.b16 %v2052, %v2044
    %v2317 = vpack.c.b16 %v2053, %v2045
    %v2318 = vpack.c.b16 %v2054, %v2046
    %v2319 = vpack.c.b16 %v2055, %v2047
    %v2320 = vpack.c.b16 %v2056, %v2048
    %v2321 = vpack.c.b16 %v2057, %v2049
    %v2322 = vpack.c.b16 %v2058, %v2050
    %v2323 = vpack.c.b16 %v2059, %v2051
    %v2324 = vpack.c.b16 %v2068, %v2060
    %v2325 = vpack.c.b16 %v2069, %v2061
    %v2326 = vpack.c.b16 %v2070, %v2062
    %v2327 = vpack.c.b16 %v2071, %v2063
    %v2328 = vpack.c.b16 %v2072, %v2064
    %v2329 = vpack.c.b16 %v2073, %v2065
    %v2330 = vpack.c.b16 %v2074, %v2066
    %v2331 = vpack.c.b16 %v2075, %v2067
    %2588 = vmatprep.subr.bf16.mxu0 %v2133
    %2589 = vmatpush1.bf16.msra.mxu0 %v2132
    %2590 = vmatprep.subr.bf16.mxu0 %v2125
    %2591 = vmatpush1.bf16.msra.mxu0 %v2124
    %2592 = vmatprep.subr.bf16.mxu0 %v2117
    %2593 = vmatpush1.bf16.msra.mxu0 %v2116
    %2594 = vmatprep.subr.bf16.mxu0 %v2109
    %2595 = vmatpush1.bf16.msra.mxu0 %v2108
    %2596 = vmatprep.subr.bf16.mxu0 %v2101
    %2597 = vmatpush1.bf16.msra.mxu0 %v2100
    %2598 = vmatprep.subr.bf16.mxu0 %v2093
    %2599 = vmatpush1.bf16.msra.mxu0 %v2092
    %2600 = vmatprep.subr.bf16.mxu0 %v2085
    %2601 = vmatpush1.bf16.msra.mxu0 %v2084
    %2602 = vmatprep.subr.bf16.mxu0 %v2077
    %2603 = vmatpush1.bf16.msra.mxu0 %v2076
    %2604 = vmatprep.subr.bf16.mxu0 %v2197
    %2605 = vmatpush2.bf16.msra.mxu0 %v2196
    %2606 = vmatprep.subr.bf16.mxu0 %v2189
    %2607 = vmatpush2.bf16.msra.mxu0 %v2188
    %2608 = vmatprep.subr.bf16.mxu0 %v2181
    %2609 = vmatpush2.bf16.msra.mxu0 %v2180
    %2610 = vmatprep.subr.bf16.mxu0 %v2173
    %2611 = vmatpush2.bf16.msra.mxu0 %v2172
    %2612 = vmatprep.subr.bf16.mxu0 %v2165
    %2613 = vmatpush2.bf16.msra.mxu0 %v2164
    %2614 = vmatprep.subr.bf16.mxu0 %v2157
    %2615 = vmatpush2.bf16.msra.mxu0 %v2156
    %2616 = vmatprep.subr.bf16.mxu0 %v2149
    %2617 = vmatpush2.bf16.msra.mxu0 %v2148
    %2618 = vmatprep.subr.bf16.mxu0 %v2141
    %2619 = vmatpush2.bf16.msra.mxu0 %v2140
    %2620 = vmatprep.mubr.bf16.mxu0 %v1049
    %2621 = vmatmul.mubr.bf16.gmra.mxu0 %v1048
    %v2622 = vpop.f32.mrf.mxu0
    %v2623 = vadd.f32 0.0, %v2622
    %v2624 = vpop.f32.mrf.mxu0
    %v2625 = vadd.f32 0.0, %v2624
    %v2626 = vpop.f32.mrf.mxu0
    %v2627 = vpop.f32.mrf.mxu0
    %2628 = vdwg.mxu0
    %2629 = vmatprep.subr.bf16.mxu0 %v2261
    %2630 = vmatpush1.bf16.msra.mxu0 %v2260
    %2631 = vmatprep.subr.bf16.mxu0 %v2253
    %2632 = vmatpush1.bf16.msra.mxu0 %v2252
    %2633 = vmatprep.subr.bf16.mxu0 %v2245
    %2634 = vmatpush1.bf16.msra.mxu0 %v2244
    %2635 = vmatprep.subr.bf16.mxu0 %v2237
    %2636 = vmatpush1.bf16.msra.mxu0 %v2236
    %2637 = vmatprep.subr.bf16.mxu0 %v2229
    %2638 = vmatpush1.bf16.msra.mxu0 %v2228
    %2639 = vmatprep.subr.bf16.mxu0 %v2221
    %2640 = vmatpush1.bf16.msra.mxu0 %v2220
    %2641 = vmatprep.subr.bf16.mxu0 %v2213
    %2642 = vmatpush1.bf16.msra.mxu0 %v2212
    %2643 = vmatprep.subr.bf16.mxu0 %v2205
    %2644 = vmatpush1.bf16.msra.mxu0 %v2204
    %2645 = vmatprep.subr.bf16.mxu0 %v2325
    %2646 = vmatpush2.bf16.msra.mxu0 %v2324
    %2647 = vmatprep.subr.bf16.mxu0 %v2317
    %2648 = vmatpush2.bf16.msra.mxu0 %v2316
    %2649 = vmatprep.subr.bf16.mxu0 %v2309
    %2650 = vmatpush2.bf16.msra.mxu0 %v2308
    %2651 = vmatprep.subr.bf16.mxu0 %v2301
    %2652 = vmatpush2.bf16.msra.mxu0 %v2300
    %2653 = vmatprep.subr.bf16.mxu0 %v2293
    %2654 = vmatpush2.bf16.msra.mxu0 %v2292
    %2655 = vmatprep.subr.bf16.mxu0 %v2285
    %2656 = vmatpush2.bf16.msra.mxu0 %v2284
    %2657 = vmatprep.subr.bf16.mxu0 %v2277
    %2658 = vmatpush2.bf16.msra.mxu0 %v2276
    %2659 = vmatprep.subr.bf16.mxu0 %v2269
    %2660 = vmatpush2.bf16.msra.mxu0 %v2268
    %2661 = vmatprep.mubr.bf16.mxu0 %v1051
    %2662 = vmatmul.mubr.bf16.gmra.mxu0 %v1050
    %v2663 = vpop.f32.mrf.mxu0
    %v2664 = vadd.f32 %v2623, %v2663
    %v2665 = vpop.f32.mrf.mxu0
    %v2666 = vadd.f32 %v2625, %v2665
    %v2667 = vpop.f32.mrf.mxu0
    %v2668 = vpop.f32.mrf.mxu0
    %2669 = vdwg.mxu0
    %2670 = vmatprep.subr.bf16.mxu0 %v2135
    %2671 = vmatpush1.bf16.msra.mxu0 %v2134
    %2672 = vmatprep.subr.bf16.mxu0 %v2127
    %2673 = vmatpush1.bf16.msra.mxu0 %v2126
    %2674 = vmatprep.subr.bf16.mxu0 %v2119
    %2675 = vmatpush1.bf16.msra.mxu0 %v2118
    %2676 = vmatprep.subr.bf16.mxu0 %v2111
    %2677 = vmatpush1.bf16.msra.mxu0 %v2110
    %2678 = vmatprep.subr.bf16.mxu0 %v2103
    %2679 = vmatpush1.bf16.msra.mxu0 %v2102
    %2680 = vmatprep.subr.bf16.mxu0 %v2095
    %2681 = vmatpush1.bf16.msra.mxu0 %v2094
    %2682 = vmatprep.subr.bf16.mxu0 %v2087
    %2683 = vmatpush1.bf16.msra.mxu0 %v2086
    %2684 = vmatprep.subr.bf16.mxu0 %v2079
    %2685 = vmatpush1.bf16.msra.mxu0 %v2078
    %2686 = vmatprep.subr.bf16.mxu0 %v2199
    %2687 = vmatpush2.bf16.msra.mxu0 %v2198
    %2688 = vmatprep.subr.bf16.mxu0 %v2191
    %2689 = vmatpush2.bf16.msra.mxu0 %v2190
    %2690 = vmatprep.subr.bf16.mxu0 %v2183
    %2691 = vmatpush2.bf16.msra.mxu0 %v2182
    %2692 = vmatprep.subr.bf16.mxu0 %v2175
    %2693 = vmatpush2.bf16.msra.mxu0 %v2174
    %2694 = vmatprep.subr.bf16.mxu0 %v2167
    %2695 = vmatpush2.bf16.msra.mxu0 %v2166
    %2696 = vmatprep.subr.bf16.mxu0 %v2159
    %2697 = vmatpush2.bf16.msra.mxu0 %v2158
    %2698 = vmatprep.subr.bf16.mxu0 %v2151
    %2699 = vmatpush2.bf16.msra.mxu0 %v2150
    %2700 = vmatprep.subr.bf16.mxu0 %v2143
    %2701 = vmatpush2.bf16.msra.mxu0 %v2142
    %2702 = vmatprep.mubr.bf16.mxu0 %v1049
    %2703 = vmatmul.mubr.bf16.gmra.mxu0 %v1048
    %v2704 = vpop.f32.mrf.mxu0
    %v2705 = vadd.f32 0.0, %v2704
    %v2706 = vpop.f32.mrf.mxu0
    %v2707 = vadd.f32 0.0, %v2706
    %v2708 = vpop.f32.mrf.mxu0
    %v2709 = vpop.f32.mrf.mxu0
    %2710 = vdwg.mxu0
    %2711 = vmatprep.subr.bf16.mxu0 %v2263
    %2712 = vmatpush1.bf16.msra.mxu0 %v2262
    %2713 = vmatprep.subr.bf16.mxu0 %v2255
    %2714 = vmatpush1.bf16.msra.mxu0 %v2254
    %2715 = vmatprep.subr.bf16.mxu0 %v2247
    %2716 = vmatpush1.bf16.msra.mxu0 %v2246
    %2717 = vmatprep.subr.bf16.mxu0 %v2239
    %2718 = vmatpush1.bf16.msra.mxu0 %v2238
    %2719 = vmatprep.subr.bf16.mxu0 %v2231
    %2720 = vmatpush1.bf16.msra.mxu0 %v2230
    %2721 = vmatprep.subr.bf16.mxu0 %v2223
    %2722 = vmatpush1.bf16.msra.mxu0 %v2222
    %2723 = vmatprep.subr.bf16.mxu0 %v2215
    %2724 = vmatpush1.bf16.msra.mxu0 %v2214
    %2725 = vmatprep.subr.bf16.mxu0 %v2207
    %2726 = vmatpush1.bf16.msra.mxu0 %v2206
    %2727 = vmatprep.subr.bf16.mxu0 %v2327
    %2728 = vmatpush2.bf16.msra.mxu0 %v2326
    %2729 = vmatprep.subr.bf16.mxu0 %v2319
    %2730 = vmatpush2.bf16.msra.mxu0 %v2318
    %2731 = vmatprep.subr.bf16.mxu0 %v2311
    %2732 = vmatpush2.bf16.msra.mxu0 %v2310
    %2733 = vmatprep.subr.bf16.mxu0 %v2303
    %2734 = vmatpush2.bf16.msra.mxu0 %v2302
    %2735 = vmatprep.subr.bf16.mxu0 %v2295
    %2736 = vmatpush2.bf16.msra.mxu0 %v2294
    %2737 = vmatprep.subr.bf16.mxu0 %v2287
    %2738 = vmatpush2.bf16.msra.mxu0 %v2286
    %2739 = vmatprep.subr.bf16.mxu0 %v2279
    %2740 = vmatpush2.bf16.msra.mxu0 %v2278
    %2741 = vmatprep.subr.bf16.mxu0 %v2271
    %2742 = vmatpush2.bf16.msra.mxu0 %v2270
    %2743 = vmatprep.mubr.bf16.mxu0 %v1051
    %2744 = vmatmul.mubr.bf16.gmra.mxu0 %v1050
    %v2745 = vpop.f32.mrf.mxu0
    %v2746 = vadd.f32 %v2705, %v2745
    %v2747 = vpop.f32.mrf.mxu0
    %v2748 = vadd.f32 %v2707, %v2747
    %v2749 = vpop.f32.mrf.mxu0
    %v2750 = vpop.f32.mrf.mxu0
    %2751 = vdwg.mxu0
    %2752 = vmatprep.subr.bf16.mxu0 %v2137
    %2753 = vmatpush1.bf16.msra.mxu0 %v2136
    %2754 = vmatprep.subr.bf16.mxu0 %v2129
    %2755 = vmatpush1.bf16.msra.mxu0 %v2128
    %2756 = vmatprep.subr.bf16.mxu0 %v2121
    %2757 = vmatpush1.bf16.msra.mxu0 %v2120
    %2758 = vmatprep.subr.bf16.mxu0 %v2113
    %2759 = vmatpush1.bf16.msra.mxu0 %v2112
    %2760 = vmatprep.subr.bf16.mxu0 %v2105
    %2761 = vmatpush1.bf16.msra.mxu0 %v2104
    %2762 = vmatprep.subr.bf16.mxu0 %v2097
    %2763 = vmatpush1.bf16.msra.mxu0 %v2096
    %2764 = vmatprep.subr.bf16.mxu0 %v2089
    %2765 = vmatpush1.bf16.msra.mxu0 %v2088
    %2766 = vmatprep.subr.bf16.mxu0 %v2081
    %2767 = vmatpush1.bf16.msra.mxu0 %v2080
    %2768 = vmatprep.subr.bf16.mxu0 %v2201
    %2769 = vmatpush2.bf16.msra.mxu0 %v2200
    %2770 = vmatprep.subr.bf16.mxu0 %v2193
    %2771 = vmatpush2.bf16.msra.mxu0 %v2192
    %2772 = vmatprep.subr.bf16.mxu0 %v2185
    %2773 = vmatpush2.bf16.msra.mxu0 %v2184
    %2774 = vmatprep.subr.bf16.mxu0 %v2177
    %2775 = vmatpush2.bf16.msra.mxu0 %v2176
    %2776 = vmatprep.subr.bf16.mxu0 %v2169
    %2777 = vmatpush2.bf16.msra.mxu0 %v2168
    %2778 = vmatprep.subr.bf16.mxu0 %v2161
    %2779 = vmatpush2.bf16.msra.mxu0 %v2160
    %2780 = vmatprep.subr.bf16.mxu0 %v2153
    %2781 = vmatpush2.bf16.msra.mxu0 %v2152
    %2782 = vmatprep.subr.bf16.mxu0 %v2145
    %2783 = vmatpush2.bf16.msra.mxu0 %v2144
    %2784 = vmatprep.mubr.bf16.mxu0 %v1049
    %2785 = vmatmul.mubr.bf16.gmra.mxu0 %v1048
    %v2786 = vpop.f32.mrf.mxu0
    %v2787 = vadd.f32 0.0, %v2786
    %v2788 = vpop.f32.mrf.mxu0
    %v2789 = vadd.f32 0.0, %v2788
    %v2790 = vpop.f32.mrf.mxu0
    %v2791 = vpop.f32.mrf.mxu0
    %2792 = vdwg.mxu0
    %2793 = vmatprep.subr.bf16.mxu0 %v2265
    %2794 = vmatpush1.bf16.msra.mxu0 %v2264
    %2795 = vmatprep.subr.bf16.mxu0 %v2257
    %2796 = vmatpush1.bf16.msra.mxu0 %v2256
    %2797 = vmatprep.subr.bf16.mxu0 %v2249
    %2798 = vmatpush1.bf16.msra.mxu0 %v2248
    %2799 = vmatprep.subr.bf16.mxu0 %v2241
    %2800 = vmatpush1.bf16.msra.mxu0 %v2240
    %2801 = vmatprep.subr.bf16.mxu0 %v2233
    %2802 = vmatpush1.bf16.msra.mxu0 %v2232
    %2803 = vmatprep.subr.bf16.mxu0 %v2225
    %2804 = vmatpush1.bf16.msra.mxu0 %v2224
    %2805 = vmatprep.subr.bf16.mxu0 %v2217
    %2806 = vmatpush1.bf16.msra.mxu0 %v2216
    %2807 = vmatprep.subr.bf16.mxu0 %v2209
    %2808 = vmatpush1.bf16.msra.mxu0 %v2208
    %2809 = vmatprep.subr.bf16.mxu0 %v2329
    %2810 = vmatpush2.bf16.msra.mxu0 %v2328
    %2811 = vmatprep.subr.bf16.mxu0 %v2321
    %2812 = vmatpush2.bf16.msra.mxu0 %v2320
    %2813 = vmatprep.subr.bf16.mxu0 %v2313
    %2814 = vmatpush2.bf16.msra.mxu0 %v2312
    %2815 = vmatprep.subr.bf16.mxu0 %v2305
    %2816 = vmatpush2.bf16.msra.mxu0 %v2304
    %2817 = vmatprep.subr.bf16.mxu0 %v2297
    %2818 = vmatpush2.bf16.msra.mxu0 %v2296
    %2819 = vmatprep.subr.bf16.mxu0 %v2289
    %2820 = vmatpush2.bf16.msra.mxu0 %v2288
    %2821 = vmatprep.subr.bf16.mxu0 %v2281
    %2822 = vmatpush2.bf16.msra.mxu0 %v2280
    %2823 = vmatprep.subr.bf16.mxu0 %v2273
    %2824 = vmatpush2.bf16.msra.mxu0 %v2272
    %2825 = vmatprep.mubr.bf16.mxu0 %v1051
    %2826 = vmatmul.mubr.bf16.gmra.mxu0 %v1050
    %v2827 = vpop.f32.mrf.mxu0
    %v2828 = vadd.f32 %v2787, %v2827
    %v2829 = vpop.f32.mrf.mxu0
    %v2830 = vadd.f32 %v2789, %v2829
    %v2831 = vpop.f32.mrf.mxu0
    %v2832 = vpop.f32.mrf.mxu0
    %2833 = vdwg.mxu0
    %2834 = vmatprep.subr.bf16.mxu0 %v2139
    %2835 = vmatpush1.bf16.msra.mxu0 %v2138
    %2836 = vmatprep.subr.bf16.mxu0 %v2131
    %2837 = vmatpush1.bf16.msra.mxu0 %v2130
    %2838 = vmatprep.subr.bf16.mxu0 %v2123
    %2839 = vmatpush1.bf16.msra.mxu0 %v2122
    %2840 = vmatprep.subr.bf16.mxu0 %v2115
    %2841 = vmatpush1.bf16.msra.mxu0 %v2114
    %2842 = vmatprep.subr.bf16.mxu0 %v2107
    %2843 = vmatpush1.bf16.msra.mxu0 %v2106
    %2844 = vmatprep.subr.bf16.mxu0 %v2099
    %2845 = vmatpush1.bf16.msra.mxu0 %v2098
    %2846 = vmatprep.subr.bf16.mxu0 %v2091
    %2847 = vmatpush1.bf16.msra.mxu0 %v2090
    %2848 = vmatprep.subr.bf16.mxu0 %v2083
    %2849 = vmatpush1.bf16.msra.mxu0 %v2082
    %2850 = vmatprep.subr.bf16.mxu0 %v2203
    %2851 = vmatpush2.bf16.msra.mxu0 %v2202
    %2852 = vmatprep.subr.bf16.mxu0 %v2195
    %2853 = vmatpush2.bf16.msra.mxu0 %v2194
    %2854 = vmatprep.subr.bf16.mxu0 %v2187
    %2855 = vmatpush2.bf16.msra.mxu0 %v2186
    %2856 = vmatprep.subr.bf16.mxu0 %v2179
    %2857 = vmatpush2.bf16.msra.mxu0 %v2178
    %2858 = vmatprep.subr.bf16.mxu0 %v2171
    %2859 = vmatpush2.bf16.msra.mxu0 %v2170
    %2860 = vmatprep.subr.bf16.mxu0 %v2163
    %2861 = vmatpush2.bf16.msra.mxu0 %v2162
    %2862 = vmatprep.subr.bf16.mxu0 %v2155
    %2863 = vmatpush2.bf16.msra.mxu0 %v2154
    %2864 = vmatprep.subr.bf16.mxu0 %v2147
    %2865 = vmatpush2.bf16.msra.mxu0 %v2146
    %2866 = vmatprep.mubr.bf16.mxu0 %v1049
    %2867 = vmatmul.mubr.bf16.gmra.mxu0 %v1048
    %v2868 = vpop.f32.mrf.mxu0
    %v2869 = vadd.f32 0.0, %v2868
    %v2870 = vpop.f32.mrf.mxu0
    %v2871 = vadd.f32 0.0, %v2870
    %v2872 = vpop.f32.mrf.mxu0
    %v2873 = vpop.f32.mrf.mxu0
    %2874 = vdwg.mxu0
    %2875 = vmatprep.subr.bf16.mxu0 %v2267
    %2876 = vmatpush1.bf16.msra.mxu0 %v2266
    %2877 = vmatprep.subr.bf16.mxu0 %v2259
    %2878 = vmatpush1.bf16.msra.mxu0 %v2258
    %2879 = vmatprep.subr.bf16.mxu0 %v2251
    %2880 = vmatpush1.bf16.msra.mxu0 %v2250
    %2881 = vmatprep.subr.bf16.mxu0 %v2243
    %2882 = vmatpush1.bf16.msra.mxu0 %v2242
    %2883 = vmatprep.subr.bf16.mxu0 %v2235
    %2884 = vmatpush1.bf16.msra.mxu0 %v2234
    %2885 = vmatprep.subr.bf16.mxu0 %v2227
    %2886 = vmatpush1.bf16.msra.mxu0 %v2226
    %2887 = vmatprep.subr.bf16.mxu0 %v2219
    %2888 = vmatpush1.bf16.msra.mxu0 %v2218
    %2889 = vmatprep.subr.bf16.mxu0 %v2211
    %2890 = vmatpush1.bf16.msra.mxu0 %v2210
    %2891 = vmatprep.subr.bf16.mxu0 %v2331
    %2892 = vmatpush2.bf16.msra.mxu0 %v2330
    %2893 = vmatprep.subr.bf16.mxu0 %v2323
    %2894 = vmatpush2.bf16.msra.mxu0 %v2322
    %2895 = vmatprep.subr.bf16.mxu0 %v2315
    %2896 = vmatpush2.bf16.msra.mxu0 %v2314
    %2897 = vmatprep.subr.bf16.mxu0 %v2307
    %2898 = vmatpush2.bf16.msra.mxu0 %v2306
    %2899 = vmatprep.subr.bf16.mxu0 %v2299
    %2900 = vmatpush2.bf16.msra.mxu0 %v2298
    %2901 = vmatprep.subr.bf16.mxu0 %v2291
    %2902 = vmatpush2.bf16.msra.mxu0 %v2290
    %2903 = vmatprep.subr.bf16.mxu0 %v2283
    %2904 = vmatpush2.bf16.msra.mxu0 %v2282
    %2905 = vmatprep.subr.bf16.mxu0 %v2275
    %2906 = vmatpush2.bf16.msra.mxu0 %v2274
    %2907 = vmatprep.mubr.bf16.mxu0 %v1051
    %2908 = vmatmul.mubr.bf16.gmra.mxu0 %v1050
    %v2909 = vpop.f32.mrf.mxu0
    %v2910 = vadd.f32 %v2869, %v2909
    %v2911 = vpop.f32.mrf.mxu0
    %v2912 = vadd.f32 %v2871, %v2911
    %v2913 = vpop.f32.mrf.mxu0
    %v2914 = vpop.f32.mrf.mxu0
    %2915 = vdwg.mxu0
    %v2916 = vsel %vm280, %v2664, 0.0
    %v2917 = vrot.slane %v2916, 4
    %v2918 = vadd.f32 %v2916, %v2917
    %v2919 = vrot.slane %v2918, 2
    %v2920 = vadd.f32 %v2918, %v2919
    %v2921 = vrot.slane %v2920, 1
    %v2922 = vadd.f32 %v2920, %v2921
    %v2923 = vsel %vm280, %v2666, 0.0
    %v2924 = vrot.slane %v2923, 4
    %v2925 = vadd.f32 %v2923, %v2924
    %v2926 = vrot.slane %v2925, 2
    %v2927 = vadd.f32 %v2925, %v2926
    %v2928 = vrot.slane %v2927, 1
    %v2929 = vadd.f32 %v2927, %v2928
    %v2930 = vsel %vm280, %v2746, 0.0
    %v2931 = vrot.slane %v2930, 4
    %v2932 = vadd.f32 %v2930, %v2931
    %v2933 = vrot.slane %v2932, 2
    %v2934 = vadd.f32 %v2932, %v2933
    %v2935 = vrot.slane %v2934, 1
    %v2936 = vadd.f32 %v2934, %v2935
    %v2937 = vsel %vm280, %v2748, 0.0
    %v2938 = vrot.slane %v2937, 4
    %v2939 = vadd.f32 %v2937, %v2938
    %v2940 = vrot.slane %v2939, 2
    %v2941 = vadd.f32 %v2939, %v2940
    %v2942 = vrot.slane %v2941, 1
    %v2943 = vadd.f32 %v2941, %v2942
    %v2944 = vsel %vm280, %v2828, 0.0
    %v2945 = vrot.slane %v2944, 4
    %v2946 = vadd.f32 %v2944, %v2945
    %v2947 = vrot.slane %v2946, 2
    %v2948 = vadd.f32 %v2946, %v2947
    %v2949 = vrot.slane %v2948, 1
    %v2950 = vadd.f32 %v2948, %v2949
    %v2951 = vsel %vm280, %v2830, 0.0
    %v2952 = vrot.slane %v2951, 4
    %v2953 = vadd.f32 %v2951, %v2952
    %v2954 = vrot.slane %v2953, 2
    %v2955 = vadd.f32 %v2953, %v2954
    %v2956 = vrot.slane %v2955, 1
    %v2957 = vadd.f32 %v2955, %v2956
    %v2958 = vsel %vm280, %v2910, 0.0
    %v2959 = vrot.slane %v2958, 4
    %v2960 = vadd.f32 %v2958, %v2959
    %v2961 = vrot.slane %v2960, 2
    %v2962 = vadd.f32 %v2960, %v2961
    %v2963 = vrot.slane %v2962, 1
    %v2964 = vadd.f32 %v2962, %v2963
    %v2965 = vsel %vm280, %v2912, 0.0
    %v2966 = vrot.slane %v2965, 4
    %v2967 = vadd.f32 %v2965, %v2966
    %v2968 = vrot.slane %v2967, 2
    %v2969 = vadd.f32 %v2967, %v2968
    %v2970 = vrot.slane %v2969, 1
    %v2971 = vadd.f32 %v2969, %v2970
    %v2972 = vmul.f32 %v2664, %v2664
    %v2973 = vmul.f32 %v2666, %v2666
    %v2974 = vmul.f32 %v2746, %v2746
    %v2975 = vmul.f32 %v2748, %v2748
    %v2976 = vmul.f32 %v2828, %v2828
    %v2977 = vmul.f32 %v2830, %v2830
    %v2978 = vmul.f32 %v2910, %v2910
    %v2979 = vmul.f32 %v2912, %v2912
    %v2980 = vsel %vm280, %v2972, 0.0
    %v2981 = vrot.slane %v2980, 4
    %v2982 = vadd.f32 %v2980, %v2981
    %v2983 = vrot.slane %v2982, 2
    %v2984 = vadd.f32 %v2982, %v2983
    %v2985 = vrot.slane %v2984, 1
    %v2986 = vadd.f32 %v2984, %v2985
    %v2987 = vsel %vm280, %v2973, 0.0
    %v2988 = vrot.slane %v2987, 4
    %v2989 = vadd.f32 %v2987, %v2988
    %v2990 = vrot.slane %v2989, 2
    %v2991 = vadd.f32 %v2989, %v2990
    %v2992 = vrot.slane %v2991, 1
    %v2993 = vadd.f32 %v2991, %v2992
    %v2994 = vsel %vm280, %v2974, 0.0
    %v2995 = vrot.slane %v2994, 4
    %v2996 = vadd.f32 %v2994, %v2995
    %v2997 = vrot.slane %v2996, 2
    %v2998 = vadd.f32 %v2996, %v2997
    %v2999 = vrot.slane %v2998, 1
    %v3000 = vadd.f32 %v2998, %v2999
    %v3001 = vsel %vm280, %v2975, 0.0
    %v3002 = vrot.slane %v3001, 4
    %v3003 = vadd.f32 %v3001, %v3002
    %v3004 = vrot.slane %v3003, 2
    %v3005 = vadd.f32 %v3003, %v3004
    %v3006 = vrot.slane %v3005, 1
    %v3007 = vadd.f32 %v3005, %v3006
    %v3008 = vsel %vm280, %v2976, 0.0
    %v3009 = vrot.slane %v3008, 4
    %v3010 = vadd.f32 %v3008, %v3009
    %v3011 = vrot.slane %v3010, 2
    %v3012 = vadd.f32 %v3010, %v3011
    %v3013 = vrot.slane %v3012, 1
    %v3014 = vadd.f32 %v3012, %v3013
    %v3015 = vsel %vm280, %v2977, 0.0
    %v3016 = vrot.slane %v3015, 4
    %v3017 = vadd.f32 %v3015, %v3016
    %v3018 = vrot.slane %v3017, 2
    %v3019 = vadd.f32 %v3017, %v3018
    %v3020 = vrot.slane %v3019, 1
    %v3021 = vadd.f32 %v3019, %v3020
    %v3022 = vsel %vm280, %v2978, 0.0
    %v3023 = vrot.slane %v3022, 4
    %v3024 = vadd.f32 %v3022, %v3023
    %v3025 = vrot.slane %v3024, 2
    %v3026 = vadd.f32 %v3024, %v3025
    %v3027 = vrot.slane %v3026, 1
    %v3028 = vadd.f32 %v3026, %v3027
    %v3029 = vsel %vm280, %v2979, 0.0
    %v3030 = vrot.slane %v3029, 4
    %v3031 = vadd.f32 %v3029, %v3030
    %v3032 = vrot.slane %v3031, 2
    %v3033 = vadd.f32 %v3031, %v3032
    %v3034 = vrot.slane %v3033, 1
    %v3035 = vadd.f32 %v3033, %v3034
    %v3036 = vld [vmem:[%s7] sm:$0xff]
    %v3037 = vld [vmem:[%s7 + $0x8] sm:$0xff]
    %v3038 = vld [vmem:[%s7 + $0x10] sm:$0xff]
    %v3039 = vld [vmem:[%s7 + $0x18] sm:$0xff]
    %v3040 = vld [vmem:[%s7 + $0x20] sm:$0xff]
    %v3041 = vld [vmem:[%s7 + $0x28] sm:$0xff]
    %v3042 = vld [vmem:[%s7 + $0x30] sm:$0xff]
    %v3043 = vld [vmem:[%s7 + $0x38] sm:$0xff]
    %v3044 = vld [vmem:[%s7 + $0x40] sm:$0xff]
    %v3045 = vld [vmem:[%s7 + $0x48] sm:$0xff]
    %v3046 = vld [vmem:[%s7 + $0x50] sm:$0xff]
    %v3047 = vld [vmem:[%s7 + $0x58] sm:$0xff]
    %v3048 = vld [vmem:[%s7 + $0x60] sm:$0xff]
    %v3049 = vld [vmem:[%s7 + $0x68] sm:$0xff]
    %v3050 = vld [vmem:[%s7 + $0x70] sm:$0xff]
    %v3051 = vld [vmem:[%s7 + $0x78] sm:$0xff]
    %v3052 = vld [vmem:[%s7 + $0x80] sm:$0xff]
    %v3053 = vld [vmem:[%s7 + $0x88] sm:$0xff]
    %v3054 = vld [vmem:[%s7 + $0x90] sm:$0xff]
    %v3055 = vld [vmem:[%s7 + $0x98] sm:$0xff]
    %v3056 = vld [vmem:[%s7 + $0xa0] sm:$0xff]
    %v3057 = vld [vmem:[%s7 + $0xa8] sm:$0xff]
    %v3058 = vld [vmem:[%s7 + $0xb0] sm:$0xff]
    %v3059 = vld [vmem:[%s7 + $0xb8] sm:$0xff]
    %v3060 = vld [vmem:[%s7 + $0xc0] sm:$0xff]
    %v3061 = vld [vmem:[%s7 + $0xc8] sm:$0xff]
    %v3062 = vld [vmem:[%s7 + $0xd0] sm:$0xff]
    %v3063 = vld [vmem:[%s7 + $0xd8] sm:$0xff]
    %v3064 = vld [vmem:[%s7 + $0xe0] sm:$0xff]
    %v3065 = vld [vmem:[%s7 + $0xe8] sm:$0xff]
    %v3066 = vld [vmem:[%s7 + $0xf0] sm:$0xff]
    %v3067 = vld [vmem:[%s7 + $0xf8] sm:$0xff]
    %v3068 = vld [vmem:[%s7 + $0x100] sm:$0xff]
    %v3069 = vld [vmem:[%s7 + $0x108] sm:$0xff]
    %v3070 = vld [vmem:[%s7 + $0x110] sm:$0xff]
    %v3071 = vld [vmem:[%s7 + $0x118] sm:$0xff]
    %v3072 = vld [vmem:[%s7 + $0x120] sm:$0xff]
    %v3073 = vld [vmem:[%s7 + $0x128] sm:$0xff]
    %v3074 = vld [vmem:[%s7 + $0x130] sm:$0xff]
    %v3075 = vld [vmem:[%s7 + $0x138] sm:$0xff]
    %v3076 = vld [vmem:[%s7 + $0x140] sm:$0xff]
    %v3077 = vld [vmem:[%s7 + $0x148] sm:$0xff]
    %v3078 = vld [vmem:[%s7 + $0x150] sm:$0xff]
    %v3079 = vld [vmem:[%s7 + $0x158] sm:$0xff]
    %v3080 = vld [vmem:[%s7 + $0x160] sm:$0xff]
    %v3081 = vld [vmem:[%s7 + $0x168] sm:$0xff]
    %v3082 = vld [vmem:[%s7 + $0x170] sm:$0xff]
    %v3083 = vld [vmem:[%s7 + $0x178] sm:$0xff]
    %v3084 = vld [vmem:[%s7 + $0x180] sm:$0xff]
    %v3085 = vld [vmem:[%s7 + $0x188] sm:$0xff]
    %v3086 = vld [vmem:[%s7 + $0x190] sm:$0xff]
    %v3087 = vld [vmem:[%s7 + $0x198] sm:$0xff]
    %v3088 = vld [vmem:[%s7 + $0x1a0] sm:$0xff]
    %v3089 = vld [vmem:[%s7 + $0x1a8] sm:$0xff]
    %v3090 = vld [vmem:[%s7 + $0x1b0] sm:$0xff]
    %v3091 = vld [vmem:[%s7 + $0x1b8] sm:$0xff]
    %v3092 = vld [vmem:[%s7 + $0x1c0] sm:$0xff]
    %v3093 = vld [vmem:[%s7 + $0x1c8] sm:$0xff]
    %v3094 = vld [vmem:[%s7 + $0x1d0] sm:$0xff]
    %v3095 = vld [vmem:[%s7 + $0x1d8] sm:$0xff]
    %v3096 = vld [vmem:[%s7 + $0x1e0] sm:$0xff]
    %v3097 = vld [vmem:[%s7 + $0x1e8] sm:$0xff]
    %v3098 = vld [vmem:[%s7 + $0x1f0] sm:$0xff]
    %v3099 = vld [vmem:[%s7 + $0x1f8] sm:$0xff]
    %v3100 = vld [vmem:[%s7 + $0x200] sm:$0xff]
    %v3101 = vld [vmem:[%s7 + $0x208] sm:$0xff]
    %v3102 = vld [vmem:[%s7 + $0x210] sm:$0xff]
    %v3103 = vld [vmem:[%s7 + $0x218] sm:$0xff]
    %v3104 = vld [vmem:[%s7 + $0x220] sm:$0xff]
    %v3105 = vld [vmem:[%s7 + $0x228] sm:$0xff]
    %v3106 = vld [vmem:[%s7 + $0x230] sm:$0xff]
    %v3107 = vld [vmem:[%s7 + $0x238] sm:$0xff]
    %v3108 = vld [vmem:[%s7 + $0x240] sm:$0xff]
    %v3109 = vld [vmem:[%s7 + $0x248] sm:$0xff]
    %v3110 = vld [vmem:[%s7 + $0x250] sm:$0xff]
    %v3111 = vld [vmem:[%s7 + $0x258] sm:$0xff]
    %v3112 = vld [vmem:[%s7 + $0x260] sm:$0xff]
    %v3113 = vld [vmem:[%s7 + $0x268] sm:$0xff]
    %v3114 = vld [vmem:[%s7 + $0x270] sm:$0xff]
    %v3115 = vld [vmem:[%s7 + $0x278] sm:$0xff]
    %v3116 = vld [vmem:[%s7 + $0x280] sm:$0xff]
    %v3117 = vld [vmem:[%s7 + $0x288] sm:$0xff]
    %v3118 = vld [vmem:[%s7 + $0x290] sm:$0xff]
    %v3119 = vld [vmem:[%s7 + $0x298] sm:$0xff]
    %v3120 = vld [vmem:[%s7 + $0x2a0] sm:$0xff]
    %v3121 = vld [vmem:[%s7 + $0x2a8] sm:$0xff]
    %v3122 = vld [vmem:[%s7 + $0x2b0] sm:$0xff]
    %v3123 = vld [vmem:[%s7 + $0x2b8] sm:$0xff]
    %v3124 = vld [vmem:[%s7 + $0x2c0] sm:$0xff]
    %v3125 = vld [vmem:[%s7 + $0x2c8] sm:$0xff]
    %v3126 = vld [vmem:[%s7 + $0x2d0] sm:$0xff]
    %v3127 = vld [vmem:[%s7 + $0x2d8] sm:$0xff]
    %v3128 = vld [vmem:[%s7 + $0x2e0] sm:$0xff]
    %v3129 = vld [vmem:[%s7 + $0x2e8] sm:$0xff]
    %v3130 = vld [vmem:[%s7 + $0x2f0] sm:$0xff]
    %v3131 = vld [vmem:[%s7 + $0x2f8] sm:$0xff]
    %v3132 = vld [vmem:[%s7 + $0x300] sm:$0xff]
    %v3133 = vld [vmem:[%s7 + $0x308] sm:$0xff]
    %v3134 = vld [vmem:[%s7 + $0x310] sm:$0xff]
    %v3135 = vld [vmem:[%s7 + $0x318] sm:$0xff]
    %v3136 = vld [vmem:[%s7 + $0x320] sm:$0xff]
    %v3137 = vld [vmem:[%s7 + $0x328] sm:$0xff]
    %v3138 = vld [vmem:[%s7 + $0x330] sm:$0xff]
    %v3139 = vld [vmem:[%s7 + $0x338] sm:$0xff]
    %v3140 = vld [vmem:[%s7 + $0x340] sm:$0xff]
    %v3141 = vld [vmem:[%s7 + $0x348] sm:$0xff]
    %v3142 = vld [vmem:[%s7 + $0x350] sm:$0xff]
    %v3143 = vld [vmem:[%s7 + $0x358] sm:$0xff]
    %v3144 = vld [vmem:[%s7 + $0x360] sm:$0xff]
    %v3145 = vld [vmem:[%s7 + $0x368] sm:$0xff]
    %v3146 = vld [vmem:[%s7 + $0x370] sm:$0xff]
    %v3147 = vld [vmem:[%s7 + $0x378] sm:$0xff]
    %v3148 = vld [vmem:[%s7 + $0x380] sm:$0xff]
    %v3149 = vld [vmem:[%s7 + $0x388] sm:$0xff]
    %v3150 = vld [vmem:[%s7 + $0x390] sm:$0xff]
    %v3151 = vld [vmem:[%s7 + $0x398] sm:$0xff]
    %v3152 = vld [vmem:[%s7 + $0x3a0] sm:$0xff]
    %v3153 = vld [vmem:[%s7 + $0x3a8] sm:$0xff]
    %v3154 = vld [vmem:[%s7 + $0x3b0] sm:$0xff]
    %v3155 = vld [vmem:[%s7 + $0x3b8] sm:$0xff]
    %v3156 = vld [vmem:[%s7 + $0x3c0] sm:$0xff]
    %v3157 = vld [vmem:[%s7 + $0x3c8] sm:$0xff]
    %v3158 = vld [vmem:[%s7 + $0x3d0] sm:$0xff]
    %v3159 = vld [vmem:[%s7 + $0x3d8] sm:$0xff]
    %v3160 = vld [vmem:[%s7 + $0x3e0] sm:$0xff]
    %v3161 = vld [vmem:[%s7 + $0x3e8] sm:$0xff]
    %v3162 = vld [vmem:[%s7 + $0x3f0] sm:$0xff]
    %v3163 = vld [vmem:[%s7 + $0x3f8] sm:$0xff]
    %3164 = vmatprep.subr.mxu0 0.0
    %3165 = vmatpush1.msra.mxu0 %v3051
    %3166 = vmatprep.subr.mxu0 0.0
    %3167 = vmatpush1.msra.mxu0 %v3050
    %3168 = vmatprep.subr.mxu0 0.0
    %3169 = vmatpush1.msra.mxu0 %v3049
    %3170 = vmatprep.subr.mxu0 0.0
    %3171 = vmatpush1.msra.mxu0 %v3048
    %3172 = vmatprep.subr.mxu0 0.0
    %3173 = vmatpush1.msra.mxu0 %v3047
    %3174 = vmatprep.subr.mxu0 0.0
    %3175 = vmatpush1.msra.mxu0 %v3046
    %3176 = vmatprep.subr.mxu0 0.0
    %3177 = vmatpush1.msra.mxu0 %v3045
    %3178 = vmatprep.subr.mxu0 0.0
    %3179 = vmatpush1.msra.mxu0 %v3044
    %3180 = vmatprep.subr.mxu0 0.0
    %3181 = vmatpush1.msra.mxu0 %v3043
    %3182 = vmatprep.subr.mxu0 0.0
    %3183 = vmatpush1.msra.mxu0 %v3042
    %3184 = vmatprep.subr.mxu0 0.0
    %3185 = vmatpush1.msra.mxu0 %v3041
    %3186 = vmatprep.subr.mxu0 0.0
    %3187 = vmatpush1.msra.mxu0 %v3040
    %3188 = vmatprep.subr.mxu0 0.0
    %3189 = vmatpush1.msra.mxu0 %v3039
    %3190 = vmatprep.subr.mxu0 0.0
    %3191 = vmatpush1.msra.mxu0 %v3038
    %3192 = vmatprep.subr.mxu0 0.0
    %3193 = vmatpush1.msra.mxu0 %v3037
    %3194 = vmatprep.subr.mxu0 0.0
    %3195 = vmatpush1.msra.mxu0 %v3036
    %3196 = vmatprep.subr.mxu0 0.0
    %3197 = vmatpush2.msra.mxu0 %v3067
    %3198 = vmatprep.subr.mxu0 0.0
    %3199 = vmatpush2.msra.mxu0 %v3066
    %3200 = vmatprep.subr.mxu0 0.0
    %3201 = vmatpush2.msra.mxu0 %v3065
    %3202 = vmatprep.subr.mxu0 0.0
    %3203 = vmatpush2.msra.mxu0 %v3064
    %3204 = vmatprep.subr.mxu0 0.0
    %3205 = vmatpush2.msra.mxu0 %v3063
    %3206 = vmatprep.subr.mxu0 0.0
    %3207 = vmatpush2.msra.mxu0 %v3062
    %3208 = vmatprep.subr.mxu0 0.0
    %3209 = vmatpush2.msra.mxu0 %v3061
    %3210 = vmatprep.subr.mxu0 0.0
    %3211 = vmatpush2.msra.mxu0 %v3060
    %3212 = vmatprep.subr.mxu0 0.0
    %3213 = vmatpush2.msra.mxu0 %v3059
    %3214 = vmatprep.subr.mxu0 0.0
    %3215 = vmatpush2.msra.mxu0 %v3058
    %3216 = vmatprep.subr.mxu0 0.0
    %3217 = vmatpush2.msra.mxu0 %v3057
    %3218 = vmatprep.subr.mxu0 0.0
    %3219 = vmatpush2.msra.mxu0 %v3056
    %3220 = vmatprep.subr.mxu0 0.0
    %3221 = vmatpush2.msra.mxu0 %v3055
    %3222 = vmatprep.subr.mxu0 0.0
    %3223 = vmatpush2.msra.mxu0 %v3054
    %3224 = vmatprep.subr.mxu0 0.0
    %3225 = vmatpush2.msra.mxu0 %v3053
    %3226 = vmatprep.subr.mxu0 0.0
    %3227 = vmatpush2.msra.mxu0 %v3052
    %3228 = vmatprep.mubr.f32.mxu0 %v2929
    %3229 = vmatmul.mubr.f32.gmra.mxu0 %v2922
    %v3230 = vpop.f32.mrf.mxu0
    %v3231 = vadd.f32 0.0, %v3230
    %v3232 = vpop.f32.mrf.mxu0
    %3233 = vdwg.mxu0
    %3234 = vmatprep.subr.mxu0 0.0
    %3235 = vmatpush1.msra.mxu0 %v3083
    %3236 = vmatprep.subr.mxu0 0.0
    %3237 = vmatpush1.msra.mxu0 %v3082
    %3238 = vmatprep.subr.mxu0 0.0
    %3239 = vmatpush1.msra.mxu0 %v3081
    %3240 = vmatprep.subr.mxu0 0.0
    %3241 = vmatpush1.msra.mxu0 %v3080
    %3242 = vmatprep.subr.mxu0 0.0
    %3243 = vmatpush1.msra.mxu0 %v3079
    %3244 = vmatprep.subr.mxu0 0.0
    %3245 = vmatpush1.msra.mxu0 %v3078
    %3246 = vmatprep.subr.mxu0 0.0
    %3247 = vmatpush1.msra.mxu0 %v3077
    %3248 = vmatprep.subr.mxu0 0.0
    %3249 = vmatpush1.msra.mxu0 %v3076
    %3250 = vmatprep.subr.mxu0 0.0
    %3251 = vmatpush1.msra.mxu0 %v3075
    %3252 = vmatprep.subr.mxu0 0.0
    %3253 = vmatpush1.msra.mxu0 %v3074
    %3254 = vmatprep.subr.mxu0 0.0
    %3255 = vmatpush1.msra.mxu0 %v3073
    %3256 = vmatprep.subr.mxu0 0.0
    %3257 = vmatpush1.msra.mxu0 %v3072
    %3258 = vmatprep.subr.mxu0 0.0
    %3259 = vmatpush1.msra.mxu0 %v3071
    %3260 = vmatprep.subr.mxu0 0.0
    %3261 = vmatpush1.msra.mxu0 %v3070
    %3262 = vmatprep.subr.mxu0 0.0
    %3263 = vmatpush1.msra.mxu0 %v3069
    %3264 = vmatprep.subr.mxu0 0.0
    %3265 = vmatpush1.msra.mxu0 %v3068
    %3266 = vmatprep.subr.mxu0 0.0
    %3267 = vmatpush2.msra.mxu0 %v3099
    %3268 = vmatprep.subr.mxu0 0.0
    %3269 = vmatpush2.msra.mxu0 %v3098
    %3270 = vmatprep.subr.mxu0 0.0
    %3271 = vmatpush2.msra.mxu0 %v3097
    %3272 = vmatprep.subr.mxu0 0.0
    %3273 = vmatpush2.msra.mxu0 %v3096
    %3274 = vmatprep.subr.mxu0 0.0
    %3275 = vmatpush2.msra.mxu0 %v3095
    %3276 = vmatprep.subr.mxu0 0.0
    %3277 = vmatpush2.msra.mxu0 %v3094
    %3278 = vmatprep.subr.mxu0 0.0
    %3279 = vmatpush2.msra.mxu0 %v3093
    %3280 = vmatprep.subr.mxu0 0.0
    %3281 = vmatpush2.msra.mxu0 %v3092
    %3282 = vmatprep.subr.mxu0 0.0
    %3283 = vmatpush2.msra.mxu0 %v3091
    %3284 = vmatprep.subr.mxu0 0.0
    %3285 = vmatpush2.msra.mxu0 %v3090
    %3286 = vmatprep.subr.mxu0 0.0
    %3287 = vmatpush2.msra.mxu0 %v3089
    %3288 = vmatprep.subr.mxu0 0.0
    %3289 = vmatpush2.msra.mxu0 %v3088
    %3290 = vmatprep.subr.mxu0 0.0
    %3291 = vmatpush2.msra.mxu0 %v3087
    %3292 = vmatprep.subr.mxu0 0.0
    %3293 = vmatpush2.msra.mxu0 %v3086
    %3294 = vmatprep.subr.mxu0 0.0
    %3295 = vmatpush2.msra.mxu0 %v3085
    %3296 = vmatprep.subr.mxu0 0.0
    %3297 = vmatpush2.msra.mxu0 %v3084
    %3298 = vmatprep.mubr.f32.mxu0 %v2943
    %3299 = vmatmul.mubr.f32.gmra.mxu0 %v2936
    %v3300 = vpop.f32.mrf.mxu0
    %v3301 = vadd.f32 %v3231, %v3300
    %v3302 = vpop.f32.mrf.mxu0
    %3303 = vdwg.mxu0
    %3304 = vmatprep.subr.mxu0 0.0
    %3305 = vmatpush1.msra.mxu0 %v3115
    %3306 = vmatprep.subr.mxu0 0.0
    %3307 = vmatpush1.msra.mxu0 %v3114
    %3308 = vmatprep.subr.mxu0 0.0
    %3309 = vmatpush1.msra.mxu0 %v3113
    %3310 = vmatprep.subr.mxu0 0.0
    %3311 = vmatpush1.msra.mxu0 %v3112
    %3312 = vmatprep.subr.mxu0 0.0
    %3313 = vmatpush1.msra.mxu0 %v3111
    %3314 = vmatprep.subr.mxu0 0.0
    %3315 = vmatpush1.msra.mxu0 %v3110
    %3316 = vmatprep.subr.mxu0 0.0
    %3317 = vmatpush1.msra.mxu0 %v3109
    %3318 = vmatprep.subr.mxu0 0.0
    %3319 = vmatpush1.msra.mxu0 %v3108
    %3320 = vmatprep.subr.mxu0 0.0
    %3321 = vmatpush1.msra.mxu0 %v3107
    %3322 = vmatprep.subr.mxu0 0.0
    %3323 = vmatpush1.msra.mxu0 %v3106
    %3324 = vmatprep.subr.mxu0 0.0
    %3325 = vmatpush1.msra.mxu0 %v3105
    %3326 = vmatprep.subr.mxu0 0.0
    %3327 = vmatpush1.msra.mxu0 %v3104
    %3328 = vmatprep.subr.mxu0 0.0
    %3329 = vmatpush1.msra.mxu0 %v3103
    %3330 = vmatprep.subr.mxu0 0.0
    %3331 = vmatpush1.msra.mxu0 %v3102
    %3332 = vmatprep.subr.mxu0 0.0
    %3333 = vmatpush1.msra.mxu0 %v3101
    %3334 = vmatprep.subr.mxu0 0.0
    %3335 = vmatpush1.msra.mxu0 %v3100
    %3336 = vmatprep.subr.mxu0 0.0
    %3337 = vmatpush2.msra.mxu0 %v3131
    %3338 = vmatprep.subr.mxu0 0.0
    %3339 = vmatpush2.msra.mxu0 %v3130
    %3340 = vmatprep.subr.mxu0 0.0
    %3341 = vmatpush2.msra.mxu0 %v3129
    %3342 = vmatprep.subr.mxu0 0.0
    %3343 = vmatpush2.msra.mxu0 %v3128
    %3344 = vmatprep.subr.mxu0 0.0
    %3345 = vmatpush2.msra.mxu0 %v3127
    %3346 = vmatprep.subr.mxu0 0.0
    %3347 = vmatpush2.msra.mxu0 %v3126
    %3348 = vmatprep.subr.mxu0 0.0
    %3349 = vmatpush2.msra.mxu0 %v3125
    %3350 = vmatprep.subr.mxu0 0.0
    %3351 = vmatpush2.msra.mxu0 %v3124
    %3352 = vmatprep.subr.mxu0 0.0
    %3353 = vmatpush2.msra.mxu0 %v3123
    %3354 = vmatprep.subr.mxu0 0.0
    %3355 = vmatpush2.msra.mxu0 %v3122
    %3356 = vmatprep.subr.mxu0 0.0
    %3357 = vmatpush2.msra.mxu0 %v3121
    %3358 = vmatprep.subr.mxu0 0.0
    %3359 = vmatpush2.msra.mxu0 %v3120
    %3360 = vmatprep.subr.mxu0 0.0
    %3361 = vmatpush2.msra.mxu0 %v3119
    %3362 = vmatprep.subr.mxu0 0.0
    %3363 = vmatpush2.msra.mxu0 %v3118
    %3364 = vmatprep.subr.mxu0 0.0
    %3365 = vmatpush2.msra.mxu0 %v3117
    %3366 = vmatprep.subr.mxu0 0.0
    %3367 = vmatpush2.msra.mxu0 %v3116
    %3368 = vmatprep.mubr.f32.mxu0 %v2957
    %3369 = vmatmul.mubr.f32.gmra.mxu0 %v2950
    %v3370 = vpop.f32.mrf.mxu0
    %v3371 = vadd.f32 %v3301, %v3370
    %v3372 = vpop.f32.mrf.mxu0
    %3373 = vdwg.mxu0
    %3374 = vmatprep.subr.mxu0 0.0
    %3375 = vmatpush1.msra.mxu0 %v3147
    %3376 = vmatprep.subr.mxu0 0.0
    %3377 = vmatpush1.msra.mxu0 %v3146
    %3378 = vmatprep.subr.mxu0 0.0
    %3379 = vmatpush1.msra.mxu0 %v3145
    %3380 = vmatprep.subr.mxu0 0.0
    %3381 = vmatpush1.msra.mxu0 %v3144
    %3382 = vmatprep.subr.mxu0 0.0
    %3383 = vmatpush1.msra.mxu0 %v3143
    %3384 = vmatprep.subr.mxu0 0.0
    %3385 = vmatpush1.msra.mxu0 %v3142
    %3386 = vmatprep.subr.mxu0 0.0
    %3387 = vmatpush1.msra.mxu0 %v3141
    %3388 = vmatprep.subr.mxu0 0.0
    %3389 = vmatpush1.msra.mxu0 %v3140
    %3390 = vmatprep.subr.mxu0 0.0
    %3391 = vmatpush1.msra.mxu0 %v3139
    %3392 = vmatprep.subr.mxu0 0.0
    %3393 = vmatpush1.msra.mxu0 %v3138
    %3394 = vmatprep.subr.mxu0 0.0
    %3395 = vmatpush1.msra.mxu0 %v3137
    %3396 = vmatprep.subr.mxu0 0.0
    %3397 = vmatpush1.msra.mxu0 %v3136
    %3398 = vmatprep.subr.mxu0 0.0
    %3399 = vmatpush1.msra.mxu0 %v3135
    %3400 = vmatprep.subr.mxu0 0.0
    %3401 = vmatpush1.msra.mxu0 %v3134
    %3402 = vmatprep.subr.mxu0 0.0
    %3403 = vmatpush1.msra.mxu0 %v3133
    %3404 = vmatprep.subr.mxu0 0.0
    %3405 = vmatpush1.msra.mxu0 %v3132
    %3406 = vmatprep.subr.mxu0 0.0
    %3407 = vmatpush2.msra.mxu0 %v3163
    %3408 = vmatprep.subr.mxu0 0.0
    %3409 = vmatpush2.msra.mxu0 %v3162
    %3410 = vmatprep.subr.mxu0 0.0
    %3411 = vmatpush2.msra.mxu0 %v3161
    %3412 = vmatprep.subr.mxu0 0.0
    %3413 = vmatpush2.msra.mxu0 %v3160
    %3414 = vmatprep.subr.mxu0 0.0
    %3415 = vmatpush2.msra.mxu0 %v3159
    %3416 = vmatprep.subr.mxu0 0.0
    %3417 = vmatpush2.msra.mxu0 %v3158
    %3418 = vmatprep.subr.mxu0 0.0
    %3419 = vmatpush2.msra.mxu0 %v3157
    %3420 = vmatprep.subr.mxu0 0.0
    %3421 = vmatpush2.msra.mxu0 %v3156
    %3422 = vmatprep.subr.mxu0 0.0
    %3423 = vmatpush2.msra.mxu0 %v3155
    %3424 = vmatprep.subr.mxu0 0.0
    %3425 = vmatpush2.msra.mxu0 %v3154
    %3426 = vmatprep.subr.mxu0 0.0
    %3427 = vmatpush2.msra.mxu0 %v3153
    %3428 = vmatprep.subr.mxu0 0.0
    %3429 = vmatpush2.msra.mxu0 %v3152
    %3430 = vmatprep.subr.mxu0 0.0
    %3431 = vmatpush2.msra.mxu0 %v3151
    %3432 = vmatprep.subr.mxu0 0.0
    %3433 = vmatpush2.msra.mxu0 %v3150
    %3434 = vmatprep.subr.mxu0 0.0
    %3435 = vmatpush2.msra.mxu0 %v3149
    %3436 = vmatprep.subr.mxu0 0.0
    %3437 = vmatpush2.msra.mxu0 %v3148
    %3438 = vmatprep.mubr.f32.mxu0 %v2971
    %3439 = vmatmul.mubr.f32.gmra.mxu0 %v2964
    %v3440 = vpop.f32.mrf.mxu0
    %v3441 = vadd.f32 %v3371, %v3440
    %v3442 = vpop.f32.mrf.mxu0
    %3443 = vdwg.mxu0
    %3444 = vmatprep.subr.mxu0 0.0
    %3445 = vmatpush1.msra.mxu0 %v3051
    %3446 = vmatprep.subr.mxu0 0.0
    %3447 = vmatpush1.msra.mxu0 %v3050
    %3448 = vmatprep.subr.mxu0 0.0
    %3449 = vmatpush1.msra.mxu0 %v3049
    %3450 = vmatprep.subr.mxu0 0.0
    %3451 = vmatpush1.msra.mxu0 %v3048
    %3452 = vmatprep.subr.mxu0 0.0
    %3453 = vmatpush1.msra.mxu0 %v3047
    %3454 = vmatprep.subr.mxu0 0.0
    %3455 = vmatpush1.msra.mxu0 %v3046
    %3456 = vmatprep.subr.mxu0 0.0
    %3457 = vmatpush1.msra.mxu0 %v3045
    %3458 = vmatprep.subr.mxu0 0.0
    %3459 = vmatpush1.msra.mxu0 %v3044
    %3460 = vmatprep.subr.mxu0 0.0
    %3461 = vmatpush1.msra.mxu0 %v3043
    %3462 = vmatprep.subr.mxu0 0.0
    %3463 = vmatpush1.msra.mxu0 %v3042
    %3464 = vmatprep.subr.mxu0 0.0
    %3465 = vmatpush1.msra.mxu0 %v3041
    %3466 = vmatprep.subr.mxu0 0.0
    %3467 = vmatpush1.msra.mxu0 %v3040
    %3468 = vmatprep.subr.mxu0 0.0
    %3469 = vmatpush1.msra.mxu0 %v3039
    %3470 = vmatprep.subr.mxu0 0.0
    %3471 = vmatpush1.msra.mxu0 %v3038
    %3472 = vmatprep.subr.mxu0 0.0
    %3473 = vmatpush1.msra.mxu0 %v3037
    %3474 = vmatprep.subr.mxu0 0.0
    %3475 = vmatpush1.msra.mxu0 %v3036
    %3476 = vmatprep.subr.mxu0 0.0
    %3477 = vmatpush2.msra.mxu0 %v3067
    %3478 = vmatprep.subr.mxu0 0.0
    %3479 = vmatpush2.msra.mxu0 %v3066
    %3480 = vmatprep.subr.mxu0 0.0
    %3481 = vmatpush2.msra.mxu0 %v3065
    %3482 = vmatprep.subr.mxu0 0.0
    %3483 = vmatpush2.msra.mxu0 %v3064
    %3484 = vmatprep.subr.mxu0 0.0
    %3485 = vmatpush2.msra.mxu0 %v3063
    %3486 = vmatprep.subr.mxu0 0.0
    %3487 = vmatpush2.msra.mxu0 %v3062
    %3488 = vmatprep.subr.mxu0 0.0
    %3489 = vmatpush2.msra.mxu0 %v3061
    %3490 = vmatprep.subr.mxu0 0.0
    %3491 = vmatpush2.msra.mxu0 %v3060
    %3492 = vmatprep.subr.mxu0 0.0
    %3493 = vmatpush2.msra.mxu0 %v3059
    %3494 = vmatprep.subr.mxu0 0.0
    %3495 = vmatpush2.msra.mxu0 %v3058
    %3496 = vmatprep.subr.mxu0 0.0
    %3497 = vmatpush2.msra.mxu0 %v3057
    %3498 = vmatprep.subr.mxu0 0.0
    %3499 = vmatpush2.msra.mxu0 %v3056
    %3500 = vmatprep.subr.mxu0 0.0
    %3501 = vmatpush2.msra.mxu0 %v3055
    %3502 = vmatprep.subr.mxu0 0.0
    %3503 = vmatpush2.msra.mxu0 %v3054
    %3504 = vmatprep.subr.mxu0 0.0
    %3505 = vmatpush2.msra.mxu0 %v3053
    %3506 = vmatprep.subr.mxu0 0.0
    %3507 = vmatpush2.msra.mxu0 %v3052
    %3508 = vmatprep.mubr.f32.mxu0 %v2993
    %3509 = vmatmul.mubr.f32.gmra.mxu0 %v2986
    %v3510 = vpop.f32.mrf.mxu0
    %v3511 = vadd.f32 0.0, %v3510
    %v3512 = vpop.f32.mrf.mxu0
    %3513 = vdwg.mxu0
    %3514 = vmatprep.subr.mxu0 0.0
    %3515 = vmatpush1.msra.mxu0 %v3083
    %3516 = vmatprep.subr.mxu0 0.0
    %3517 = vmatpush1.msra.mxu0 %v3082
    %3518 = vmatprep.subr.mxu0 0.0
    %3519 = vmatpush1.msra.mxu0 %v3081
    %3520 = vmatprep.subr.mxu0 0.0
    %3521 = vmatpush1.msra.mxu0 %v3080
    %3522 = vmatprep.subr.mxu0 0.0
    %3523 = vmatpush1.msra.mxu0 %v3079
    %3524 = vmatprep.subr.mxu0 0.0
    %3525 = vmatpush1.msra.mxu0 %v3078
    %3526 = vmatprep.subr.mxu0 0.0
    %3527 = vmatpush1.msra.mxu0 %v3077
    %3528 = vmatprep.subr.mxu0 0.0
    %3529 = vmatpush1.msra.mxu0 %v3076
    %3530 = vmatprep.subr.mxu0 0.0
    %3531 = vmatpush1.msra.mxu0 %v3075
    %3532 = vmatprep.subr.mxu0 0.0
    %3533 = vmatpush1.msra.mxu0 %v3074
    %3534 = vmatprep.subr.mxu0 0.0
    %3535 = vmatpush1.msra.mxu0 %v3073
    %3536 = vmatprep.subr.mxu0 0.0
    %3537 = vmatpush1.msra.mxu0 %v3072
    %3538 = vmatprep.subr.mxu0 0.0
    %3539 = vmatpush1.msra.mxu0 %v3071
    %3540 = vmatprep.subr.mxu0 0.0
    %3541 = vmatpush1.msra.mxu0 %v3070
    %3542 = vmatprep.subr.mxu0 0.0
    %3543 = vmatpush1.msra.mxu0 %v3069
    %3544 = vmatprep.subr.mxu0 0.0
    %3545 = vmatpush1.msra.mxu0 %v3068
    %3546 = vmatprep.subr.mxu0 0.0
    %3547 = vmatpush2.msra.mxu0 %v3099
    %3548 = vmatprep.subr.mxu0 0.0
    %3549 = vmatpush2.msra.mxu0 %v3098
    %3550 = vmatprep.subr.mxu0 0.0
    %3551 = vmatpush2.msra.mxu0 %v3097
    %3552 = vmatprep.subr.mxu0 0.0
    %3553 = vmatpush2.msra.mxu0 %v3096
    %3554 = vmatprep.subr.mxu0 0.0
    %3555 = vmatpush2.msra.mxu0 %v3095
    %3556 = vmatprep.subr.mxu0 0.0
    %3557 = vmatpush2.msra.mxu0 %v3094
    %3558 = vmatprep.subr.mxu0 0.0
    %3559 = vmatpush2.msra.mxu0 %v3093
    %3560 = vmatprep.subr.mxu0 0.0
    %3561 = vmatpush2.msra.mxu0 %v3092
    %3562 = vmatprep.subr.mxu0 0.0
    %3563 = vmatpush2.msra.mxu0 %v3091
    %3564 = vmatprep.subr.mxu0 0.0
    %3565 = vmatpush2.msra.mxu0 %v3090
    %3566 = vmatprep.subr.mxu0 0.0
    %3567 = vmatpush2.msra.mxu0 %v3089
    %3568 = vmatprep.subr.mxu0 0.0
    %3569 = vmatpush2.msra.mxu0 %v3088
    %3570 = vmatprep.subr.mxu0 0.0
    %3571 = vmatpush2.msra.mxu0 %v3087
    %3572 = vmatprep.subr.mxu0 0.0
    %3573 = vmatpush2.msra.mxu0 %v3086
    %3574 = vmatprep.subr.mxu0 0.0
    %3575 = vmatpush2.msra.mxu0 %v3085
    %3576 = vmatprep.subr.mxu0 0.0
    %3577 = vmatpush2.msra.mxu0 %v3084
    %3578 = vmatprep.mubr.f32.mxu0 %v3007
    %3579 = vmatmul.mubr.f32.gmra.mxu0 %v3000
    %v3580 = vpop.f32.mrf.mxu0
    %v3581 = vadd.f32 %v3511, %v3580
    %v3582 = vpop.f32.mrf.mxu0
    %3583 = vdwg.mxu0
    %3584 = vmatprep.subr.mxu0 0.0
    %3585 = vmatpush1.msra.mxu0 %v3115
    %3586 = vmatprep.subr.mxu0 0.0
    %3587 = vmatpush1.msra.mxu0 %v3114
    %3588 = vmatprep.subr.mxu0 0.0
    %3589 = vmatpush1.msra.mxu0 %v3113
    %3590 = vmatprep.subr.mxu0 0.0
    %3591 = vmatpush1.msra.mxu0 %v3112
    %3592 = vmatprep.subr.mxu0 0.0
    %3593 = vmatpush1.msra.mxu0 %v3111
    %3594 = vmatprep.subr.mxu0 0.0
    %3595 = vmatpush1.msra.mxu0 %v3110
    %3596 = vmatprep.subr.mxu0 0.0
    %3597 = vmatpush1.msra.mxu0 %v3109
    %3598 = vmatprep.subr.mxu0 0.0
    %3599 = vmatpush1.msra.mxu0 %v3108
    %3600 = vmatprep.subr.mxu0 0.0
    %3601 = vmatpush1.msra.mxu0 %v3107
    %3602 = vmatprep.subr.mxu0 0.0
    %3603 = vmatpush1.msra.mxu0 %v3106
    %3604 = vmatprep.subr.mxu0 0.0
    %3605 = vmatpush1.msra.mxu0 %v3105
    %3606 = vmatprep.subr.mxu0 0.0
    %3607 = vmatpush1.msra.mxu0 %v3104
    %3608 = vmatprep.subr.mxu0 0.0
    %3609 = vmatpush1.msra.mxu0 %v3103
    %3610 = vmatprep.subr.mxu0 0.0
    %3611 = vmatpush1.msra.mxu0 %v3102
    %3612 = vmatprep.subr.mxu0 0.0
    %3613 = vmatpush1.msra.mxu0 %v3101
    %3614 = vmatprep.subr.mxu0 0.0
    %3615 = vmatpush1.msra.mxu0 %v3100
    %3616 = vmatprep.subr.mxu0 0.0
    %3617 = vmatpush2.msra.mxu0 %v3131
    %3618 = vmatprep.subr.mxu0 0.0
    %3619 = vmatpush2.msra.mxu0 %v3130
    %3620 = vmatprep.subr.mxu0 0.0
    %3621 = vmatpush2.msra.mxu0 %v3129
    %3622 = vmatprep.subr.mxu0 0.0
    %3623 = vmatpush2.msra.mxu0 %v3128
    %3624 = vmatprep.subr.mxu0 0.0
    %3625 = vmatpush2.msra.mxu0 %v3127
    %3626 = vmatprep.subr.mxu0 0.0
    %3627 = vmatpush2.msra.mxu0 %v3126
    %3628 = vmatprep.subr.mxu0 0.0
    %3629 = vmatpush2.msra.mxu0 %v3125
    %3630 = vmatprep.subr.mxu0 0.0
    %3631 = vmatpush2.msra.mxu0 %v3124
    %3632 = vmatprep.subr.mxu0 0.0
    %3633 = vmatpush2.msra.mxu0 %v3123
    %3634 = vmatprep.subr.mxu0 0.0
    %3635 = vmatpush2.msra.mxu0 %v3122
    %3636 = vmatprep.subr.mxu0 0.0
    %3637 = vmatpush2.msra.mxu0 %v3121
    %3638 = vmatprep.subr.mxu0 0.0
    %3639 = vmatpush2.msra.mxu0 %v3120
    %3640 = vmatprep.subr.mxu0 0.0
    %3641 = vmatpush2.msra.mxu0 %v3119
    %3642 = vmatprep.subr.mxu0 0.0
    %3643 = vmatpush2.msra.mxu0 %v3118
    %3644 = vmatprep.subr.mxu0 0.0
    %3645 = vmatpush2.msra.mxu0 %v3117
    %3646 = vmatprep.subr.mxu0 0.0
    %3647 = vmatpush2.msra.mxu0 %v3116
    %3648 = vmatprep.mubr.f32.mxu0 %v3021
    %3649 = vmatmul.mubr.f32.gmra.mxu0 %v3014
    %v3650 = vpop.f32.mrf.mxu0
    %v3651 = vadd.f32 %v3581, %v3650
    %v3652 = vpop.f32.mrf.mxu0
    %3653 = vdwg.mxu0
    %3654 = vmatprep.subr.mxu0 0.0
    %3655 = vmatpush1.msra.mxu0 %v3147
    %3656 = vmatprep.subr.mxu0 0.0
    %3657 = vmatpush1.msra.mxu0 %v3146
    %3658 = vmatprep.subr.mxu0 0.0
    %3659 = vmatpush1.msra.mxu0 %v3145
    %3660 = vmatprep.subr.mxu0 0.0
    %3661 = vmatpush1.msra.mxu0 %v3144
    %3662 = vmatprep.subr.mxu0 0.0
    %3663 = vmatpush1.msra.mxu0 %v3143
    %3664 = vmatprep.subr.mxu0 0.0
    %3665 = vmatpush1.msra.mxu0 %v3142
    %3666 = vmatprep.subr.mxu0 0.0
    %3667 = vmatpush1.msra.mxu0 %v3141
    %3668 = vmatprep.subr.mxu0 0.0
    %3669 = vmatpush1.msra.mxu0 %v3140
    %3670 = vmatprep.subr.mxu0 0.0
    %3671 = vmatpush1.msra.mxu0 %v3139
    %3672 = vmatprep.subr.mxu0 0.0
    %3673 = vmatpush1.msra.mxu0 %v3138
    %3674 = vmatprep.subr.mxu0 0.0
    %3675 = vmatpush1.msra.mxu0 %v3137
    %3676 = vmatprep.subr.mxu0 0.0
    %3677 = vmatpush1.msra.mxu0 %v3136
    %3678 = vmatprep.subr.mxu0 0.0
    %3679 = vmatpush1.msra.mxu0 %v3135
    %3680 = vmatprep.subr.mxu0 0.0
    %3681 = vmatpush1.msra.mxu0 %v3134
    %3682 = vmatprep.subr.mxu0 0.0
    %3683 = vmatpush1.msra.mxu0 %v3133
    %3684 = vmatprep.subr.mxu0 0.0
    %3685 = vmatpush1.msra.mxu0 %v3132
    %3686 = vmatprep.subr.mxu0 0.0
    %3687 = vmatpush2.msra.mxu0 %v3163
    %3688 = vmatprep.subr.mxu0 0.0
    %3689 = vmatpush2.msra.mxu0 %v3162
    %3690 = vmatprep.subr.mxu0 0.0
    %3691 = vmatpush2.msra.mxu0 %v3161
    %3692 = vmatprep.subr.mxu0 0.0
    %3693 = vmatpush2.msra.mxu0 %v3160
    %3694 = vmatprep.subr.mxu0 0.0
    %3695 = vmatpush2.msra.mxu0 %v3159
    %3696 = vmatprep.subr.mxu0 0.0
    %3697 = vmatpush2.msra.mxu0 %v3158
    %3698 = vmatprep.subr.mxu0 0.0
    %3699 = vmatpush2.msra.mxu0 %v3157
    %3700 = vmatprep.subr.mxu0 0.0
    %3701 = vmatpush2.msra.mxu0 %v3156
    %3702 = vmatprep.subr.mxu0 0.0
    %3703 = vmatpush2.msra.mxu0 %v3155
    %3704 = vmatprep.subr.mxu0 0.0
    %3705 = vmatpush2.msra.mxu0 %v3154
    %3706 = vmatprep.subr.mxu0 0.0
    %3707 = vmatpush2.msra.mxu0 %v3153
    %3708 = vmatprep.subr.mxu0 0.0
    %3709 = vmatpush2.msra.mxu0 %v3152
    %3710 = vmatprep.subr.mxu0 0.0
    %3711 = vmatpush2.msra.mxu0 %v3151
    %3712 = vmatprep.subr.mxu0 0.0
    %3713 = vmatpush2.msra.mxu0 %v3150
    %3714 = vmatprep.subr.mxu0 0.0
    %3715 = vmatpush2.msra.mxu0 %v3149
    %3716 = vmatprep.subr.mxu0 0.0
    %3717 = vmatpush2.msra.mxu0 %v3148
    %3718 = vmatprep.mubr.f32.mxu0 %v3035
    %3719 = vmatmul.mubr.f32.gmra.mxu0 %v3028
    %v3720 = vpop.f32.mrf.mxu0
    %v3721 = vadd.f32 %v3651, %v3720
    %v3722 = vpop.f32.mrf.mxu0
    %3723 = vdwg.mxu0
    %v3724 = vmul.f32 %v3441, 0.0078125
    %v3725 = vmul.f32 %v3721, 0.0078125
    %v3726 = vmul.f32 %v3724, %v3724
    %v3727 = vsub.f32 %v3725, %v3726
    %v3728 = vmax.f32 %v3727, 0.0
    %v3729 = vadd.f32 %v3728, 1e-05
    %v3730 = vrsqrt.pop %v3729
    %v3731 = vld [vmem:[#allocation14] sm:$0x1]
    %v3732 = vmul.f32 %v3730, %v3731
    %v3733 = vld [vmem:[#allocation16] sm:$0x1]
    %v3734 = vmul.f32 %v3724, %v3732
    %v3735 = vsub.f32 %v3733, %v3734
    %v3736 = vld [vmem:[#allocation13] sm:$0xff]
    %v3737 = vld [vmem:[#allocation13 + $0x8] sm:$0xff]
    %v3738 = vld [vmem:[#allocation13 + $0x10] sm:$0xff]
    %v3739 = vld [vmem:[#allocation13 + $0x18] sm:$0xff]
    %v3740 = vld [vmem:[#allocation13 + $0x20] sm:$0xff]
    %v3741 = vld [vmem:[#allocation13 + $0x28] sm:$0xff]
    %v3742 = vld [vmem:[#allocation13 + $0x30] sm:$0xff]
    %v3743 = vld [vmem:[#allocation13 + $0x38] sm:$0xff]
    %v3744 = vld [vmem:[#allocation13 + $0x40] sm:$0xff]
    %v3745 = vld [vmem:[#allocation13 + $0x48] sm:$0xff]
    %v3746 = vld [vmem:[#allocation13 + $0x50] sm:$0xff]
    %v3747 = vld [vmem:[#allocation13 + $0x58] sm:$0xff]
    %v3748 = vld [vmem:[#allocation13 + $0x60] sm:$0xff]
    %v3749 = vld [vmem:[#allocation13 + $0x68] sm:$0xff]
    %v3750 = vld [vmem:[#allocation13 + $0x70] sm:$0xff]
    %v3751 = vld [vmem:[#allocation13 + $0x78] sm:$0xff]
    %vm3752 = vcmask 130048
    %v3754 = vsel %vm3752, %v3732, 0
    %3756 = vmatprep.subr.mxu0 0.0
    %3757 = vmatpush1.msra.mxu0 0.0
    %3758 = vmatprep.subr.mxu0 0.0
    %3759 = vmatpush1.msra.mxu0 0.0
    %3760 = vmatprep.subr.mxu0 0.0
    %3761 = vmatpush1.msra.mxu0 0.0
    %3762 = vmatprep.subr.mxu0 0.0
    %3763 = vmatpush1.msra.mxu0 0.0
    %3764 = vmatprep.subr.mxu0 0.0
    %3765 = vmatpush1.msra.mxu0 0.0
    %3766 = vmatprep.subr.mxu0 0.0
    %3767 = vmatpush1.msra.mxu0 0.0
    %3768 = vmatprep.subr.mxu0 0.0
    %3769 = vmatpush1.msra.mxu0 0.0
    %3770 = vmatprep.subr.mxu0 0.0
    %3771 = vmatpush1.msra.mxu0 0.0
    %3772 = vmatprep.subr.mxu0 0.0
    %3773 = vmatpush1.msra.mxu0 0.0
    %3774 = vmatprep.subr.mxu0 0.0
    %3775 = vmatpush1.msra.mxu0 0.0
    %3776 = vmatprep.subr.mxu0 0.0
    %3777 = vmatpush1.msra.mxu0 0.0
    %3778 = vmatprep.subr.mxu0 0.0
    %3779 = vmatpush1.msra.mxu0 0.0
    %3780 = vmatprep.subr.mxu0 0.0
    %3781 = vmatpush1.msra.mxu0 0.0
    %3782 = vmatprep.subr.mxu0 0.0
    %3783 = vmatpush1.msra.mxu0 0.0
    %3784 = vmatprep.subr.mxu0 %v3745
    %3785 = vmatpush1.msra.mxu0 %v3744
    %3786 = vmatprep.subr.mxu0 %v3737
    %3787 = vmatpush1.msra.mxu0 %v3736
    %3788 = vmatprep.subr.mxu0 0.0
    %3789 = vmatpush2.msra.mxu0 0.0
    %3790 = vmatprep.subr.mxu0 0.0
    %3791 = vmatpush2.msra.mxu0 0.0
    %3792 = vmatprep.subr.mxu0 0.0
    %3793 = vmatpush2.msra.mxu0 0.0
    %3794 = vmatprep.subr.mxu0 0.0
    %3795 = vmatpush2.msra.mxu0 0.0
    %3796 = vmatprep.subr.mxu0 0.0
    %3797 = vmatpush2.msra.mxu0 0.0
    %3798 = vmatprep.subr.mxu0 0.0
    %3799 = vmatpush2.msra.mxu0 0.0
    %3800 = vmatprep.subr.mxu0 0.0
    %3801 = vmatpush2.msra.mxu0 0.0
    %3802 = vmatprep.subr.mxu0 0.0
    %3803 = vmatpush2.msra.mxu0 0.0
    %3804 = vmatprep.subr.mxu0 0.0
    %3805 = vmatpush2.msra.mxu0 0.0
    %3806 = vmatprep.subr.mxu0 0.0
    %3807 = vmatpush2.msra.mxu0 0.0
    %3808 = vmatprep.subr.mxu0 0.0
    %3809 = vmatpush2.msra.mxu0 0.0
    %3810 = vmatprep.subr.mxu0 0.0
    %3811 = vmatpush2.msra.mxu0 0.0
    %3812 = vmatprep.subr.mxu0 0.0
    %3813 = vmatpush2.msra.mxu0 0.0
    %3814 = vmatprep.subr.mxu0 0.0
    %3815 = vmatpush2.msra.mxu0 0.0
    %3816 = vmatprep.subr.mxu0 0.0
    %3817 = vmatpush2.msra.mxu0 0.0
    %3818 = vmatprep.subr.mxu0 0.0
    %3819 = vmatpush2.msra.mxu0 0.0
    %3820 = vmatprep.mubr.f32.mxu0 0.0
    %3821 = vmatmul.mubr.f32.gmra.mxu0 %v3754
    %v3822 = vpop.f32.mrf.mxu0
    %v3823 = vadd.f32 0.0, %v3822
    %v3824 = vpop.f32.mrf.mxu0
    %v3825 = vadd.f32 0.0, %v3824
    %3826 = vdwg.mxu0
    %3827 = vmatprep.subr.mxu0 0.0
    %3828 = vmatpush1.msra.mxu0 0.0
    %3829 = vmatprep.subr.mxu0 0.0
    %3830 = vmatpush1.msra.mxu0 0.0
    %3831 = vmatprep.subr.mxu0 0.0
    %3832 = vmatpush1.msra.mxu0 0.0
    %3833 = vmatprep.subr.mxu0 0.0
    %3834 = vmatpush1.msra.mxu0 0.0
    %3835 = vmatprep.subr.mxu0 0.0
    %3836 = vmatpush1.msra.mxu0 0.0
    %3837 = vmatprep.subr.mxu0 0.0
    %3838 = vmatpush1.msra.mxu0 0.0
    %3839 = vmatprep.subr.mxu0 0.0
    %3840 = vmatpush1.msra.mxu0 0.0
    %3841 = vmatprep.subr.mxu0 0.0
    %3842 = vmatpush1.msra.mxu0 0.0
    %3843 = vmatprep.subr.mxu0 0.0
    %3844 = vmatpush1.msra.mxu0 0.0
    %3845 = vmatprep.subr.mxu0 0.0
    %3846 = vmatpush1.msra.mxu0 0.0
    %3847 = vmatprep.subr.mxu0 0.0
    %3848 = vmatpush1.msra.mxu0 0.0
    %3849 = vmatprep.subr.mxu0 0.0
    %3850 = vmatpush1.msra.mxu0 0.0
    %3851 = vmatprep.subr.mxu0 0.0
    %3852 = vmatpush1.msra.mxu0 0.0
    %3853 = vmatprep.subr.mxu0 0.0
    %3854 = vmatpush1.msra.mxu0 0.0
    %3855 = vmatprep.subr.mxu0 %v3747
    %3856 = vmatpush1.msra.mxu0 %v3746
    %3857 = vmatprep.subr.mxu0 %v3739
    %3858 = vmatpush1.msra.mxu0 %v3738
    %3859 = vmatprep.subr.mxu0 0.0
    %3860 = vmatpush2.msra.mxu0 0.0
    %3861 = vmatprep.subr.mxu0 0.0
    %3862 = vmatpush2.msra.mxu0 0.0
    %3863 = vmatprep.subr.mxu0 0.0
    %3864 = vmatpush2.msra.mxu0 0.0
    %3865 = vmatprep.subr.mxu0 0.0
    %3866 = vmatpush2.msra.mxu0 0.0
    %3867 = vmatprep.subr.mxu0 0.0
    %3868 = vmatpush2.msra.mxu0 0.0
    %3869 = vmatprep.subr.mxu0 0.0
    %3870 = vmatpush2.msra.mxu0 0.0
    %3871 = vmatprep.subr.mxu0 0.0
    %3872 = vmatpush2.msra.mxu0 0.0
    %3873 = vmatprep.subr.mxu0 0.0
    %3874 = vmatpush2.msra.mxu0 0.0
    %3875 = vmatprep.subr.mxu0 0.0
    %3876 = vmatpush2.msra.mxu0 0.0
    %3877 = vmatprep.subr.mxu0 0.0
    %3878 = vmatpush2.msra.mxu0 0.0
    %3879 = vmatprep.subr.mxu0 0.0
    %3880 = vmatpush2.msra.mxu0 0.0
    %3881 = vmatprep.subr.mxu0 0.0
    %3882 = vmatpush2.msra.mxu0 0.0
    %3883 = vmatprep.subr.mxu0 0.0
    %3884 = vmatpush2.msra.mxu0 0.0
    %3885 = vmatprep.subr.mxu0 0.0
    %3886 = vmatpush2.msra.mxu0 0.0
    %3887 = vmatprep.subr.mxu0 0.0
    %3888 = vmatpush2.msra.mxu0 0.0
    %3889 = vmatprep.subr.mxu0 0.0
    %3890 = vmatpush2.msra.mxu0 0.0
    %3891 = vmatprep.mubr.f32.mxu0 0.0
    %3892 = vmatmul.mubr.f32.gmra.mxu0 %v3754
    %v3893 = vpop.f32.mrf.mxu0
    %v3894 = vadd.f32 0.0, %v3893
    %v3895 = vpop.f32.mrf.mxu0
    %v3896 = vadd.f32 0.0, %v3895
    %3897 = vdwg.mxu0
    %3898 = vmatprep.subr.mxu0 0.0
    %3899 = vmatpush1.msra.mxu0 0.0
    %3900 = vmatprep.subr.mxu0 0.0
    %3901 = vmatpush1.msra.mxu0 0.0
    %3902 = vmatprep.subr.mxu0 0.0
    %3903 = vmatpush1.msra.mxu0 0.0
    %3904 = vmatprep.subr.mxu0 0.0
    %3905 = vmatpush1.msra.mxu0 0.0
    %3906 = vmatprep.subr.mxu0 0.0
    %3907 = vmatpush1.msra.mxu0 0.0
    %3908 = vmatprep.subr.mxu0 0.0
    %3909 = vmatpush1.msra.mxu0 0.0
    %3910 = vmatprep.subr.mxu0 0.0
    %3911 = vmatpush1.msra.mxu0 0.0
    %3912 = vmatprep.subr.mxu0 0.0
    %3913 = vmatpush1.msra.mxu0 0.0
    %3914 = vmatprep.subr.mxu0 0.0
    %3915 = vmatpush1.msra.mxu0 0.0
    %3916 = vmatprep.subr.mxu0 0.0
    %3917 = vmatpush1.msra.mxu0 0.0
    %3918 = vmatprep.subr.mxu0 0.0
    %3919 = vmatpush1.msra.mxu0 0.0
    %3920 = vmatprep.subr.mxu0 0.0
    %3921 = vmatpush1.msra.mxu0 0.0
    %3922 = vmatprep.subr.mxu0 0.0
    %3923 = vmatpush1.msra.mxu0 0.0
    %3924 = vmatprep.subr.mxu0 0.0
    %3925 = vmatpush1.msra.mxu0 0.0
    %3926 = vmatprep.subr.mxu0 %v3749
    %3927 = vmatpush1.msra.mxu0 %v3748
    %3928 = vmatprep.subr.mxu0 %v3741
    %3929 = vmatpush1.msra.mxu0 %v3740
    %3930 = vmatprep.subr.mxu0 0.0
    %3931 = vmatpush2.msra.mxu0 0.0
    %3932 = vmatprep.subr.mxu0 0.0
    %3933 = vmatpush2.msra.mxu0 0.0
    %3934 = vmatprep.subr.mxu0 0.0
    %3935 = vmatpush2.msra.mxu0 0.0
    %3936 = vmatprep.subr.mxu0 0.0
    %3937 = vmatpush2.msra.mxu0 0.0
    %3938 = vmatprep.subr.mxu0 0.0
    %3939 = vmatpush2.msra.mxu0 0.0
    %3940 = vmatprep.subr.mxu0 0.0
    %3941 = vmatpush2.msra.mxu0 0.0
    %3942 = vmatprep.subr.mxu0 0.0
    %3943 = vmatpush2.msra.mxu0 0.0
    %3944 = vmatprep.subr.mxu0 0.0
    %3945 = vmatpush2.msra.mxu0 0.0
    %3946 = vmatprep.subr.mxu0 0.0
    %3947 = vmatpush2.msra.mxu0 0.0
    %3948 = vmatprep.subr.mxu0 0.0
    %3949 = vmatpush2.msra.mxu0 0.0
    %3950 = vmatprep.subr.mxu0 0.0
    %3951 = vmatpush2.msra.mxu0 0.0
    %3952 = vmatprep.subr.mxu0 0.0
    %3953 = vmatpush2.msra.mxu0 0.0
    %3954 = vmatprep.subr.mxu0 0.0
    %3955 = vmatpush2.msra.mxu0 0.0
    %3956 = vmatprep.subr.mxu0 0.0
    %3957 = vmatpush2.msra.mxu0 0.0
    %3958 = vmatprep.subr.mxu0 0.0
    %3959 = vmatpush2.msra.mxu0 0.0
    %3960 = vmatprep.subr.mxu0 0.0
    %3961 = vmatpush2.msra.mxu0 0.0
    %3962 = vmatprep.mubr.f32.mxu0 0.0
    %3963 = vmatmul.mubr.f32.gmra.mxu0 %v3754
    %v3964 = vpop.f32.mrf.mxu0
    %v3965 = vadd.f32 0.0, %v3964
    %v3966 = vpop.f32.mrf.mxu0
    %v3967 = vadd.f32 0.0, %v3966
    %3968 = vdwg.mxu0
    %3969 = vmatprep.subr.mxu0 0.0
    %3970 = vmatpush1.msra.mxu0 0.0
    %3971 = vmatprep.subr.mxu0 0.0
    %3972 = vmatpush1.msra.mxu0 0.0
    %3973 = vmatprep.subr.mxu0 0.0
    %3974 = vmatpush1.msra.mxu0 0.0
    %3975 = vmatprep.subr.mxu0 0.0
    %3976 = vmatpush1.msra.mxu0 0.0
    %3977 = vmatprep.subr.mxu0 0.0
    %3978 = vmatpush1.msra.mxu0 0.0
    %3979 = vmatprep.subr.mxu0 0.0
    %3980 = vmatpush1.msra.mxu0 0.0
    %3981 = vmatprep.subr.mxu0 0.0
    %3982 = vmatpush1.msra.mxu0 0.0
    %3983 = vmatprep.subr.mxu0 0.0
    %3984 = vmatpush1.msra.mxu0 0.0
    %3985 = vmatprep.subr.mxu0 0.0
    %3986 = vmatpush1.msra.mxu0 0.0
    %3987 = vmatprep.subr.mxu0 0.0
    %3988 = vmatpush1.msra.mxu0 0.0
    %3989 = vmatprep.subr.mxu0 0.0
    %3990 = vmatpush1.msra.mxu0 0.0
    %3991 = vmatprep.subr.mxu0 0.0
    %3992 = vmatpush1.msra.mxu0 0.0
    %3993 = vmatprep.subr.mxu0 0.0
    %3994 = vmatpush1.msra.mxu0 0.0
    %3995 = vmatprep.subr.mxu0 0.0
    %3996 = vmatpush1.msra.mxu0 0.0
    %3997 = vmatprep.subr.mxu0 %v3751
    %3998 = vmatpush1.msra.mxu0 %v3750
    %3999 = vmatprep.subr.mxu0 %v3743
    %4000 = vmatpush1.msra.mxu0 %v3742
    %4001 = vmatprep.subr.mxu0 0.0
    %4002 = vmatpush2.msra.mxu0 0.0
    %4003 = vmatprep.subr.mxu0 0.0
    %4004 = vmatpush2.msra.mxu0 0.0
    %4005 = vmatprep.subr.mxu0 0.0
    %4006 = vmatpush2.msra.mxu0 0.0
    %4007 = vmatprep.subr.mxu0 0.0
    %4008 = vmatpush2.msra.mxu0 0.0
    %4009 = vmatprep.subr.mxu0 0.0
    %4010 = vmatpush2.msra.mxu0 0.0
    %4011 = vmatprep.subr.mxu0 0.0
    %4012 = vmatpush2.msra.mxu0 0.0
    %4013 = vmatprep.subr.mxu0 0.0
    %4014 = vmatpush2.msra.mxu0 0.0
    %4015 = vmatprep.subr.mxu0 0.0
    %4016 = vmatpush2.msra.mxu0 0.0
    %4017 = vmatprep.subr.mxu0 0.0
    %4018 = vmatpush2.msra.mxu0 0.0
    %4019 = vmatprep.subr.mxu0 0.0
    %4020 = vmatpush2.msra.mxu0 0.0
    %4021 = vmatprep.subr.mxu0 0.0
    %4022 = vmatpush2.msra.mxu0 0.0
    %4023 = vmatprep.subr.mxu0 0.0
    %4024 = vmatpush2.msra.mxu0 0.0
    %4025 = vmatprep.subr.mxu0 0.0
    %4026 = vmatpush2.msra.mxu0 0.0
    %4027 = vmatprep.subr.mxu0 0.0
    %4028 = vmatpush2.msra.mxu0 0.0
    %4029 = vmatprep.subr.mxu0 0.0
    %4030 = vmatpush2.msra.mxu0 0.0
    %4031 = vmatprep.subr.mxu0 0.0
    %4032 = vmatpush2.msra.mxu0 0.0
    %4033 = vmatprep.mubr.f32.mxu0 0.0
    %4034 = vmatmul.mubr.f32.gmra.mxu0 %v3754
    %v4035 = vpop.f32.mrf.mxu0
    %v4036 = vadd.f32 0.0, %v4035
    %v4037 = vpop.f32.mrf.mxu0
    %v4038 = vadd.f32 0.0, %v4037
    %4039 = vdwg.mxu0
    %v4041 = vsel %vm3752, %v3735, 0
    %4043 = vmatprep.subr.mxu0 0.0
    %4044 = vmatpush1.msra.mxu0 0.0
    %4045 = vmatprep.subr.mxu0 0.0
    %4046 = vmatpush1.msra.mxu0 0.0
    %4047 = vmatprep.subr.mxu0 0.0
    %4048 = vmatpush1.msra.mxu0 0.0
    %4049 = vmatprep.subr.mxu0 0.0
    %4050 = vmatpush1.msra.mxu0 0.0
    %4051 = vmatprep.subr.mxu0 0.0
    %4052 = vmatpush1.msra.mxu0 0.0
    %4053 = vmatprep.subr.mxu0 0.0
    %4054 = vmatpush1.msra.mxu0 0.0
    %4055 = vmatprep.subr.mxu0 0.0
    %4056 = vmatpush1.msra.mxu0 0.0
    %4057 = vmatprep.subr.mxu0 0.0
    %4058 = vmatpush1.msra.mxu0 0.0
    %4059 = vmatprep.subr.mxu0 0.0
    %4060 = vmatpush1.msra.mxu0 0.0
    %4061 = vmatprep.subr.mxu0 0.0
    %4062 = vmatpush1.msra.mxu0 0.0
    %4063 = vmatprep.subr.mxu0 0.0
    %4064 = vmatpush1.msra.mxu0 0.0
    %4065 = vmatprep.subr.mxu0 0.0
    %4066 = vmatpush1.msra.mxu0 0.0
    %4067 = vmatprep.subr.mxu0 0.0
    %4068 = vmatpush1.msra.mxu0 0.0
    %4069 = vmatprep.subr.mxu0 0.0
    %4070 = vmatpush1.msra.mxu0 0.0
    %4071 = vmatprep.subr.mxu0 %v3745
    %4072 = vmatpush1.msra.mxu0 %v3744
    %4073 = vmatprep.subr.mxu0 %v3737
    %4074 = vmatpush1.msra.mxu0 %v3736
    %4075 = vmatprep.subr.mxu0 0.0
    %4076 = vmatpush2.msra.mxu0 0.0
    %4077 = vmatprep.subr.mxu0 0.0
    %4078 = vmatpush2.msra.mxu0 0.0
    %4079 = vmatprep.subr.mxu0 0.0
    %4080 = vmatpush2.msra.mxu0 0.0
    %4081 = vmatprep.subr.mxu0 0.0
    %4082 = vmatpush2.msra.mxu0 0.0
    %4083 = vmatprep.subr.mxu0 0.0
    %4084 = vmatpush2.msra.mxu0 0.0
    %4085 = vmatprep.subr.mxu0 0.0
    %4086 = vmatpush2.msra.mxu0 0.0
    %4087 = vmatprep.subr.mxu0 0.0
    %4088 = vmatpush2.msra.mxu0 0.0
    %4089 = vmatprep.subr.mxu0 0.0
    %4090 = vmatpush2.msra.mxu0 0.0
    %4091 = vmatprep.subr.mxu0 0.0
    %4092 = vmatpush2.msra.mxu0 0.0
    %4093 = vmatprep.subr.mxu0 0.0
    %4094 = vmatpush2.msra.mxu0 0.0
    %4095 = vmatprep.subr.mxu0 0.0
    %4096 = vmatpush2.msra.mxu0 0.0
    %4097 = vmatprep.subr.mxu0 0.0
    %4098 = vmatpush2.msra.mxu0 0.0
    %4099 = vmatprep.subr.mxu0 0.0
    %4100 = vmatpush2.msra.mxu0 0.0
    %4101 = vmatprep.subr.mxu0 0.0
    %4102 = vmatpush2.msra.mxu0 0.0
    %4103 = vmatprep.subr.mxu0 0.0
    %4104 = vmatpush2.msra.mxu0 0.0
    %4105 = vmatprep.subr.mxu0 0.0
    %4106 = vmatpush2.msra.mxu0 0.0
    %4107 = vmatprep.mubr.f32.mxu0 0.0
    %4108 = vmatmul.mubr.f32.gmra.mxu0 %v4041
    %v4109 = vpop.f32.mrf.mxu0
    %v4110 = vadd.f32 0.0, %v4109
    %v4111 = vpop.f32.mrf.mxu0
    %v4112 = vadd.f32 0.0, %v4111
    %4113 = vdwg.mxu0
    %4114 = vmatprep.subr.mxu0 0.0
    %4115 = vmatpush1.msra.mxu0 0.0
    %4116 = vmatprep.subr.mxu0 0.0
    %4117 = vmatpush1.msra.mxu0 0.0
    %4118 = vmatprep.subr.mxu0 0.0
    %4119 = vmatpush1.msra.mxu0 0.0
    %4120 = vmatprep.subr.mxu0 0.0
    %4121 = vmatpush1.msra.mxu0 0.0
    %4122 = vmatprep.subr.mxu0 0.0
    %4123 = vmatpush1.msra.mxu0 0.0
    %4124 = vmatprep.subr.mxu0 0.0
    %4125 = vmatpush1.msra.mxu0 0.0
    %4126 = vmatprep.subr.mxu0 0.0
    %4127 = vmatpush1.msra.mxu0 0.0
    %4128 = vmatprep.subr.mxu0 0.0
    %4129 = vmatpush1.msra.mxu0 0.0
    %4130 = vmatprep.subr.mxu0 0.0
    %4131 = vmatpush1.msra.mxu0 0.0
    %4132 = vmatprep.subr.mxu0 0.0
    %4133 = vmatpush1.msra.mxu0 0.0
    %4134 = vmatprep.subr.mxu0 0.0
    %4135 = vmatpush1.msra.mxu0 0.0
    %4136 = vmatprep.subr.mxu0 0.0
    %4137 = vmatpush1.msra.mxu0 0.0
    %4138 = vmatprep.subr.mxu0 0.0
    %4139 = vmatpush1.msra.mxu0 0.0
    %4140 = vmatprep.subr.mxu0 0.0
    %4141 = vmatpush1.msra.mxu0 0.0
    %4142 = vmatprep.subr.mxu0 %v3747
    %4143 = vmatpush1.msra.mxu0 %v3746
    %4144 = vmatprep.subr.mxu0 %v3739
    %4145 = vmatpush1.msra.mxu0 %v3738
    %4146 = vmatprep.subr.mxu0 0.0
    %4147 = vmatpush2.msra.mxu0 0.0
    %4148 = vmatprep.subr.mxu0 0.0
    %4149 = vmatpush2.msra.mxu0 0.0
    %4150 = vmatprep.subr.mxu0 0.0
    %4151 = vmatpush2.msra.mxu0 0.0
    %4152 = vmatprep.subr.mxu0 0.0
    %4153 = vmatpush2.msra.mxu0 0.0
    %4154 = vmatprep.subr.mxu0 0.0
    %4155 = vmatpush2.msra.mxu0 0.0
    %4156 = vmatprep.subr.mxu0 0.0
    %4157 = vmatpush2.msra.mxu0 0.0
    %4158 = vmatprep.subr.mxu0 0.0
    %4159 = vmatpush2.msra.mxu0 0.0
    %4160 = vmatprep.subr.mxu0 0.0
    %4161 = vmatpush2.msra.mxu0 0.0
    %4162 = vmatprep.subr.mxu0 0.0
    %4163 = vmatpush2.msra.mxu0 0.0
    %4164 = vmatprep.subr.mxu0 0.0
    %4165 = vmatpush2.msra.mxu0 0.0
    %4166 = vmatprep.subr.mxu0 0.0
    %4167 = vmatpush2.msra.mxu0 0.0
    %4168 = vmatprep.subr.mxu0 0.0
    %4169 = vmatpush2.msra.mxu0 0.0
    %4170 = vmatprep.subr.mxu0 0.0
    %4171 = vmatpush2.msra.mxu0 0.0
    %4172 = vmatprep.subr.mxu0 0.0
    %4173 = vmatpush2.msra.mxu0 0.0
    %4174 = vmatprep.subr.mxu0 0.0
    %4175 = vmatpush2.msra.mxu0 0.0
    %4176 = vmatprep.subr.mxu0 0.0
    %4177 = vmatpush2.msra.mxu0 0.0
    %4178 = vmatprep.mubr.f32.mxu0 0.0
    %4179 = vmatmul.mubr.f32.gmra.mxu0 %v4041
    %v4180 = vpop.f32.mrf.mxu0
    %v4181 = vadd.f32 0.0, %v4180
    %v4182 = vpop.f32.mrf.mxu0
    %v4183 = vadd.f32 0.0, %v4182
    %4184 = vdwg.mxu0
    %4185 = vmatprep.subr.mxu0 0.0
    %4186 = vmatpush1.msra.mxu0 0.0
    %4187 = vmatprep.subr.mxu0 0.0
    %4188 = vmatpush1.msra.mxu0 0.0
    %4189 = vmatprep.subr.mxu0 0.0
    %4190 = vmatpush1.msra.mxu0 0.0
    %4191 = vmatprep.subr.mxu0 0.0
    %4192 = vmatpush1.msra.mxu0 0.0
    %4193 = vmatprep.subr.mxu0 0.0
    %4194 = vmatpush1.msra.mxu0 0.0
    %4195 = vmatprep.subr.mxu0 0.0
    %4196 = vmatpush1.msra.mxu0 0.0
    %4197 = vmatprep.subr.mxu0 0.0
    %4198 = vmatpush1.msra.mxu0 0.0
    %4199 = vmatprep.subr.mxu0 0.0
    %4200 = vmatpush1.msra.mxu0 0.0
    %4201 = vmatprep.subr.mxu0 0.0
    %4202 = vmatpush1.msra.mxu0 0.0
    %4203 = vmatprep.subr.mxu0 0.0
    %4204 = vmatpush1.msra.mxu0 0.0
    %4205 = vmatprep.subr.mxu0 0.0
    %4206 = vmatpush1.msra.mxu0 0.0
    %4207 = vmatprep.subr.mxu0 0.0
    %4208 = vmatpush1.msra.mxu0 0.0
    %4209 = vmatprep.subr.mxu0 0.0
    %4210 = vmatpush1.msra.mxu0 0.0
    %4211 = vmatprep.subr.mxu0 0.0
    %4212 = vmatpush1.msra.mxu0 0.0
    %4213 = vmatprep.subr.mxu0 %v3749
    %4214 = vmatpush1.msra.mxu0 %v3748
    %4215 = vmatprep.subr.mxu0 %v3741
    %4216 = vmatpush1.msra.mxu0 %v3740
    %4217 = vmatprep.subr.mxu0 0.0
    %4218 = vmatpush2.msra.mxu0 0.0
    %4219 = vmatprep.subr.mxu0 0.0
    %4220 = vmatpush2.msra.mxu0 0.0
    %4221 = vmatprep.subr.mxu0 0.0
    %4222 = vmatpush2.msra.mxu0 0.0
    %4223 = vmatprep.subr.mxu0 0.0
    %4224 = vmatpush2.msra.mxu0 0.0
    %4225 = vmatprep.subr.mxu0 0.0
    %4226 = vmatpush2.msra.mxu0 0.0
    %4227 = vmatprep.subr.mxu0 0.0
    %4228 = vmatpush2.msra.mxu0 0.0
    %4229 = vmatprep.subr.mxu0 0.0
    %4230 = vmatpush2.msra.mxu0 0.0
    %4231 = vmatprep.subr.mxu0 0.0
    %4232 = vmatpush2.msra.mxu0 0.0
    %4233 = vmatprep.subr.mxu0 0.0
    %4234 = vmatpush2.msra.mxu0 0.0
    %4235 = vmatprep.subr.mxu0 0.0
    %4236 = vmatpush2.msra.mxu0 0.0
    %4237 = vmatprep.subr.mxu0 0.0
    %4238 = vmatpush2.msra.mxu0 0.0
    %4239 = vmatprep.subr.mxu0 0.0
    %4240 = vmatpush2.msra.mxu0 0.0
    %4241 = vmatprep.subr.mxu0 0.0
    %4242 = vmatpush2.msra.mxu0 0.0
    %4243 = vmatprep.subr.mxu0 0.0
    %4244 = vmatpush2.msra.mxu0 0.0
    %4245 = vmatprep.subr.mxu0 0.0
    %4246 = vmatpush2.msra.mxu0 0.0
    %4247 = vmatprep.subr.mxu0 0.0
    %4248 = vmatpush2.msra.mxu0 0.0
    %4249 = vmatprep.mubr.f32.mxu0 0.0
    %4250 = vmatmul.mubr.f32.gmra.mxu0 %v4041
    %v4251 = vpop.f32.mrf.mxu0
    %v4252 = vadd.f32 0.0, %v4251
    %v4253 = vpop.f32.mrf.mxu0
    %v4254 = vadd.f32 0.0, %v4253
    %4255 = vdwg.mxu0
    %4256 = vmatprep.subr.mxu0 0.0
    %4257 = vmatpush1.msra.mxu0 0.0
    %4258 = vmatprep.subr.mxu0 0.0
    %4259 = vmatpush1.msra.mxu0 0.0
    %4260 = vmatprep.subr.mxu0 0.0
    %4261 = vmatpush1.msra.mxu0 0.0
    %4262 = vmatprep.subr.mxu0 0.0
    %4263 = vmatpush1.msra.mxu0 0.0
    %4264 = vmatprep.subr.mxu0 0.0
    %4265 = vmatpush1.msra.mxu0 0.0
    %4266 = vmatprep.subr.mxu0 0.0
    %4267 = vmatpush1.msra.mxu0 0.0
    %4268 = vmatprep.subr.mxu0 0.0
    %4269 = vmatpush1.msra.mxu0 0.0
    %4270 = vmatprep.subr.mxu0 0.0
    %4271 = vmatpush1.msra.mxu0 0.0
    %4272 = vmatprep.subr.mxu0 0.0
    %4273 = vmatpush1.msra.mxu0 0.0
    %4274 = vmatprep.subr.mxu0 0.0
    %4275 = vmatpush1.msra.mxu0 0.0
    %4276 = vmatprep.subr.mxu0 0.0
    %4277 = vmatpush1.msra.mxu0 0.0
    %4278 = vmatprep.subr.mxu0 0.0
    %4279 = vmatpush1.msra.mxu0 0.0
    %4280 = vmatprep.subr.mxu0 0.0
    %4281 = vmatpush1.msra.mxu0 0.0
    %4282 = vmatprep.subr.mxu0 0.0
    %4283 = vmatpush1.msra.mxu0 0.0
    %4284 = vmatprep.subr.mxu0 %v3751
    %4285 = vmatpush1.msra.mxu0 %v3750
    %4286 = vmatprep.subr.mxu0 %v3743
    %4287 = vmatpush1.msra.mxu0 %v3742
    %4288 = vmatprep.subr.mxu0 0.0
    %4289 = vmatpush2.msra.mxu0 0.0
    %4290 = vmatprep.subr.mxu0 0.0
    %4291 = vmatpush2.msra.mxu0 0.0
    %4292 = vmatprep.subr.mxu0 0.0
    %4293 = vmatpush2.msra.mxu0 0.0
    %4294 = vmatprep.subr.mxu0 0.0
    %4295 = vmatpush2.msra.mxu0 0.0
    %4296 = vmatprep.subr.mxu0 0.0
    %4297 = vmatpush2.msra.mxu0 0.0
    %4298 = vmatprep.subr.mxu0 0.0
    %4299 = vmatpush2.msra.mxu0 0.0
    %4300 = vmatprep.subr.mxu0 0.0
    %4301 = vmatpush2.msra.mxu0 0.0
    %4302 = vmatprep.subr.mxu0 0.0
    %4303 = vmatpush2.msra.mxu0 0.0
    %4304 = vmatprep.subr.mxu0 0.0
    %4305 = vmatpush2.msra.mxu0 0.0
    %4306 = vmatprep.subr.mxu0 0.0
    %4307 = vmatpush2.msra.mxu0 0.0
    %4308 = vmatprep.subr.mxu0 0.0
    %4309 = vmatpush2.msra.mxu0 0.0
    %4310 = vmatprep.subr.mxu0 0.0
    %4311 = vmatpush2.msra.mxu0 0.0
    %4312 = vmatprep.subr.mxu0 0.0
    %4313 = vmatpush2.msra.mxu0 0.0
    %4314 = vmatprep.subr.mxu0 0.0
    %4315 = vmatpush2.msra.mxu0 0.0
    %4316 = vmatprep.subr.mxu0 0.0
    %4317 = vmatpush2.msra.mxu0 0.0
    %4318 = vmatprep.subr.mxu0 0.0
    %4319 = vmatpush2.msra.mxu0 0.0
    %4320 = vmatprep.mubr.f32.mxu0 0.0
    %4321 = vmatmul.mubr.f32.gmra.mxu0 %v4041
    %v4322 = vpop.f32.mrf.mxu0
    %v4323 = vadd.f32 0.0, %v4322
    %v4324 = vpop.f32.mrf.mxu0
    %v4325 = vadd.f32 0.0, %v4324
    %4326 = vdwg.mxu0
    %v4327 = vlaneseq
    %v4328 = vshrl.u32 %v4327, 7
    %v4329 = vsub.s32 0, %v4328
    %v4330 = vrot.slane %v3823, %v4329
    %v4331 = vlaneseq
    %v4332 = vshrl.u32 %v4331, 7
    %v4333 = vsub.s32 0, %v4332
    %v4334 = vrot.slane %v3825, %v4333
    %v4335 = vlaneseq
    %v4336 = vshrl.u32 %v4335, 7
    %v4337 = vsub.s32 0, %v4336
    %v4338 = vrot.slane %v3894, %v4337
    %v4339 = vlaneseq
    %v4340 = vshrl.u32 %v4339, 7
    %v4341 = vsub.s32 0, %v4340
    %v4342 = vrot.slane %v3896, %v4341
    %v4343 = vlaneseq
    %v4344 = vshrl.u32 %v4343, 7
    %v4345 = vsub.s32 0, %v4344
    %v4346 = vrot.slane %v3965, %v4345
    %v4347 = vlaneseq
    %v4348 = vshrl.u32 %v4347, 7
    %v4349 = vsub.s32 0, %v4348
    %v4350 = vrot.slane %v3967, %v4349
    %v4351 = vlaneseq
    %v4352 = vshrl.u32 %v4351, 7
    %v4353 = vsub.s32 0, %v4352
    %v4354 = vrot.slane %v4036, %v4353
    %v4355 = vlaneseq
    %v4356 = vshrl.u32 %v4355, 7
    %v4357 = vsub.s32 0, %v4356
    %v4358 = vrot.slane %v4038, %v4357
    %v4359 = vmul.f32 %v2664, %v4330
    %v4360 = vmul.f32 %v2666, %v4334
    %v4361 = vmul.f32 %v2746, %v4338
    %v4362 = vmul.f32 %v2748, %v4342
    %v4363 = vmul.f32 %v2828, %v4346
    %v4364 = vmul.f32 %v2830, %v4350
    %v4365 = vmul.f32 %v2910, %v4354
    %v4366 = vmul.f32 %v2912, %v4358
    %v4367 = vlaneseq
    %v4368 = vshrl.u32 %v4367, 7
    %v4369 = vsub.s32 0, %v4368
    %v4370 = vrot.slane %v4110, %v4369
    %v4371 = vlaneseq
    %v4372 = vshrl.u32 %v4371, 7
    %v4373 = vsub.s32 0, %v4372
    %v4374 = vrot.slane %v4112, %v4373
    %v4375 = vlaneseq
    %v4376 = vshrl.u32 %v4375, 7
    %v4377 = vsub.s32 0, %v4376
    %v4378 = vrot.slane %v4181, %v4377
    %v4379 = vlaneseq
    %v4380 = vshrl.u32 %v4379, 7
    %v4381 = vsub.s32 0, %v4380
    %v4382 = vrot.slane %v4183, %v4381
    %v4383 = vlaneseq
    %v4384 = vshrl.u32 %v4383, 7
    %v4385 = vsub.s32 0, %v4384
    %v4386 = vrot.slane %v4252, %v4385
    %v4387 = vlaneseq
    %v4388 = vshrl.u32 %v4387, 7
    %v4389 = vsub.s32 0, %v4388
    %v4390 = vrot.slane %v4254, %v4389
    %v4391 = vlaneseq
    %v4392 = vshrl.u32 %v4391, 7
    %v4393 = vsub.s32 0, %v4392
    %v4394 = vrot.slane %v4323, %v4393
    %v4395 = vlaneseq
    %v4396 = vshrl.u32 %v4395, 7
    %v4397 = vsub.s32 0, %v4396
    %v4398 = vrot.slane %v4325, %v4397
    %v4399 = vadd.f32 %v4359, %v4370
    %v4400 = vadd.f32 %v4360, %v4374
    %v4401 = vadd.f32 %v4361, %v4378
    %v4402 = vadd.f32 %v4362, %v4382
    %v4403 = vadd.f32 %v4363, %v4386
    %v4404 = vadd.f32 %v4364, %v4390
    %v4405 = vadd.f32 %v4365, %v4394
    %v4406 = vadd.f32 %v4366, %v4398
    %v4407 = vmax.f32 %v4399, 0.0
    %v4408 = vmax.f32 %v4400, 0.0
    %v4409 = vmax.f32 %v4401, 0.0
    %v4410 = vmax.f32 %v4402, 0.0
    %v4411 = vmax.f32 %v4403, 0.0
    %v4412 = vmax.f32 %v4404, 0.0
    %v4413 = vmax.f32 %v4405, 0.0
    %v4414 = vmax.f32 %v4406, 0.0
    %v4415 = vpack.c.bf16 %v4407, %v4407
    %v4416 = vpack.c.bf16 %v4408, %v4408
    %v4417 = vpack.c.bf16 %v4409, %v4409
    %v4418 = vpack.c.bf16 %v4410, %v4410
    %v4419 = vpack.c.bf16 %v4411, %v4411
    %v4420 = vpack.c.bf16 %v4412, %v4412
    %v4421 = vpack.c.bf16 %v4413, %v4413
    %v4422 = vpack.c.bf16 %v4414, %v4414
    %v4423 = vld [vmem:[#allocation17] sm:$0xff]
    %v4424 = vld [vmem:[#allocation17 + $0x8] sm:$0xff]
    %v4425 = vld [vmem:[#allocation17 + $0x10] sm:$0xff]
    %v4426 = vld [vmem:[#allocation17 + $0x18] sm:$0xff]
    %v4427 = vld [vmem:[#allocation17 + $0x20] sm:$0xff]
    %v4428 = vld [vmem:[#allocation17 + $0x28] sm:$0xff]
    %v4429 = vld [vmem:[#allocation17 + $0x30] sm:$0xff]
    %v4430 = vld [vmem:[#allocation17 + $0x38] sm:$0xff]
    %v4431 = vld [vmem:[#allocation17 + $0x40] sm:$0xff]
    %v4432 = vld [vmem:[#allocation17 + $0x48] sm:$0xff]
    %v4433 = vld [vmem:[#allocation17 + $0x50] sm:$0xff]
    %v4434 = vld [vmem:[#allocation17 + $0x58] sm:$0xff]
    %v4435 = vld [vmem:[#allocation17 + $0x60] sm:$0xff]
    %v4436 = vld [vmem:[#allocation17 + $0x68] sm:$0xff]
    %v4437 = vld [vmem:[#allocation17 + $0x70] sm:$0xff]
    %v4438 = vld [vmem:[#allocation17 + $0x78] sm:$0xff]
    %v4439 = vld [vmem:[#allocation17 + $0x80] sm:$0xff]
    %v4440 = vld [vmem:[#allocation17 + $0x88] sm:$0xff]
    %v4441 = vld [vmem:[#allocation17 + $0x90] sm:$0xff]
    %v4442 = vld [vmem:[#allocation17 + $0x98] sm:$0xff]
    %v4443 = vld [vmem:[#allocation17 + $0xa0] sm:$0xff]
    %v4444 = vld [vmem:[#allocation17 + $0xa8] sm:$0xff]
    %v4445 = vld [vmem:[#allocation17 + $0xb0] sm:$0xff]
    %v4446 = vld [vmem:[#allocation17 + $0xb8] sm:$0xff]
    %v4447 = vld [vmem:[#allocation17 + $0xc0] sm:$0xff]
    %v4448 = vld [vmem:[#allocation17 + $0xc8] sm:$0xff]
    %v4449 = vld [vmem:[#allocation17 + $0xd0] sm:$0xff]
    %v4450 = vld [vmem:[#allocation17 + $0xd8] sm:$0xff]
    %v4451 = vld [vmem:[#allocation17 + $0xe0] sm:$0xff]
    %v4452 = vld [vmem:[#allocation17 + $0xe8] sm:$0xff]
    %v4453 = vld [vmem:[#allocation17 + $0xf0] sm:$0xff]
    %v4454 = vld [vmem:[#allocation17 + $0xf8] sm:$0xff]
    %v4455 = vld [vmem:[#allocation17 + $0x100] sm:$0xff]
    %v4456 = vld [vmem:[#allocation17 + $0x108] sm:$0xff]
    %v4457 = vld [vmem:[#allocation17 + $0x110] sm:$0xff]
    %v4458 = vld [vmem:[#allocation17 + $0x118] sm:$0xff]
    %v4459 = vld [vmem:[#allocation17 + $0x120] sm:$0xff]
    %v4460 = vld [vmem:[#allocation17 + $0x128] sm:$0xff]
    %v4461 = vld [vmem:[#allocation17 + $0x130] sm:$0xff]
    %v4462 = vld [vmem:[#allocation17 + $0x138] sm:$0xff]
    %v4463 = vld [vmem:[#allocation17 + $0x140] sm:$0xff]
    %v4464 = vld [vmem:[#allocation17 + $0x148] sm:$0xff]
    %v4465 = vld [vmem:[#allocation17 + $0x150] sm:$0xff]
    %v4466 = vld [vmem:[#allocation17 + $0x158] sm:$0xff]
    %v4467 = vld [vmem:[#allocation17 + $0x160] sm:$0xff]
    %v4468 = vld [vmem:[#allocation17 + $0x168] sm:$0xff]
    %v4469 = vld [vmem:[#allocation17 + $0x170] sm:$0xff]
    %v4470 = vld [vmem:[#allocation17 + $0x178] sm:$0xff]
    %v4471 = vld [vmem:[#allocation17 + $0x180] sm:$0xff]
    %v4472 = vld [vmem:[#allocation17 + $0x188] sm:$0xff]
    %v4473 = vld [vmem:[#allocation17 + $0x190] sm:$0xff]
    %v4474 = vld [vmem:[#allocation17 + $0x198] sm:$0xff]
    %v4475 = vld [vmem:[#allocation17 + $0x1a0] sm:$0xff]
    %v4476 = vld [vmem:[#allocation17 + $0x1a8] sm:$0xff]
    %v4477 = vld [vmem:[#allocation17 + $0x1b0] sm:$0xff]
    %v4478 = vld [vmem:[#allocation17 + $0x1b8] sm:$0xff]
    %v4479 = vld [vmem:[#allocation17 + $0x1c0] sm:$0xff]
    %v4480 = vld [vmem:[#allocation17 + $0x1c8] sm:$0xff]
    %v4481 = vld [vmem:[#allocation17 + $0x1d0] sm:$0xff]
    %v4482 = vld [vmem:[#allocation17 + $0x1d8] sm:$0xff]
    %v4483 = vld [vmem:[#allocation17 + $0x1e0] sm:$0xff]
    %v4484 = vld [vmem:[#allocation17 + $0x1e8] sm:$0xff]
    %v4485 = vld [vmem:[#allocation17 + $0x1f0] sm:$0xff]
    %v4486 = vld [vmem:[#allocation17 + $0x1f8] sm:$0xff]
    %v4487 = vld [vmem:[#allocation17 + $0x200] sm:$0xff]
    %v4488 = vld [vmem:[#allocation17 + $0x208] sm:$0xff]
    %v4489 = vld [vmem:[#allocation17 + $0x210] sm:$0xff]
    %v4490 = vld [vmem:[#allocation17 + $0x218] sm:$0xff]
    %v4491 = vld [vmem:[#allocation17 + $0x220] sm:$0xff]
    %v4492 = vld [vmem:[#allocation17 + $0x228] sm:$0xff]
    %v4493 = vld [vmem:[#allocation17 + $0x230] sm:$0xff]
    %v4494 = vld [vmem:[#allocation17 + $0x238] sm:$0xff]
    %v4495 = vld [vmem:[#allocation17 + $0x240] sm:$0xff]
    %v4496 = vld [vmem:[#allocation17 + $0x248] sm:$0xff]
    %v4497 = vld [vmem:[#allocation17 + $0x250] sm:$0xff]
    %v4498 = vld [vmem:[#allocation17 + $0x258] sm:$0xff]
    %v4499 = vld [vmem:[#allocation17 + $0x260] sm:$0xff]
    %v4500 = vld [vmem:[#allocation17 + $0x268] sm:$0xff]
    %v4501 = vld [vmem:[#allocation17 + $0x270] sm:$0xff]
    %v4502 = vld [vmem:[#allocation17 + $0x278] sm:$0xff]
    %v4503 = vld [vmem:[#allocation17 + $0x280] sm:$0xff]
    %v4504 = vld [vmem:[#allocation17 + $0x288] sm:$0xff]
    %v4505 = vld [vmem:[#allocation17 + $0x290] sm:$0xff]
    %v4506 = vld [vmem:[#allocation17 + $0x298] sm:$0xff]
    %v4507 = vld [vmem:[#allocation17 + $0x2a0] sm:$0xff]
    %v4508 = vld [vmem:[#allocation17 + $0x2a8] sm:$0xff]
    %v4509 = vld [vmem:[#allocation17 + $0x2b0] sm:$0xff]
    %v4510 = vld [vmem:[#allocation17 + $0x2b8] sm:$0xff]
    %v4511 = vld [vmem:[#allocation17 + $0x2c0] sm:$0xff]
    %v4512 = vld [vmem:[#allocation17 + $0x2c8] sm:$0xff]
    %v4513 = vld [vmem:[#allocation17 + $0x2d0] sm:$0xff]
    %v4514 = vld [vmem:[#allocation17 + $0x2d8] sm:$0xff]
    %v4515 = vld [vmem:[#allocation17 + $0x2e0] sm:$0xff]
    %v4516 = vld [vmem:[#allocation17 + $0x2e8] sm:$0xff]
    %v4517 = vld [vmem:[#allocation17 + $0x2f0] sm:$0xff]
    %v4518 = vld [vmem:[#allocation17 + $0x2f8] sm:$0xff]
    %v4519 = vld [vmem:[#allocation17 + $0x300] sm:$0xff]
    %v4520 = vld [vmem:[#allocation17 + $0x308] sm:$0xff]
    %v4521 = vld [vmem:[#allocation17 + $0x310] sm:$0xff]
    %v4522 = vld [vmem:[#allocation17 + $0x318] sm:$0xff]
    %v4523 = vld [vmem:[#allocation17 + $0x320] sm:$0xff]
    %v4524 = vld [vmem:[#allocation17 + $0x328] sm:$0xff]
    %v4525 = vld [vmem:[#allocation17 + $0x330] sm:$0xff]
    %v4526 = vld [vmem:[#allocation17 + $0x338] sm:$0xff]
    %v4527 = vld [vmem:[#allocation17 + $0x340] sm:$0xff]
    %v4528 = vld [vmem:[#allocation17 + $0x348] sm:$0xff]
    %v4529 = vld [vmem:[#allocation17 + $0x350] sm:$0xff]
    %v4530 = vld [vmem:[#allocation17 + $0x358] sm:$0xff]
    %v4531 = vld [vmem:[#allocation17 + $0x360] sm:$0xff]
    %v4532 = vld [vmem:[#allocation17 + $0x368] sm:$0xff]
    %v4533 = vld [vmem:[#allocation17 + $0x370] sm:$0xff]
    %v4534 = vld [vmem:[#allocation17 + $0x378] sm:$0xff]
    %v4535 = vld [vmem:[#allocation17 + $0x380] sm:$0xff]
    %v4536 = vld [vmem:[#allocation17 + $0x388] sm:$0xff]
    %v4537 = vld [vmem:[#allocation17 + $0x390] sm:$0xff]
    %v4538 = vld [vmem:[#allocation17 + $0x398] sm:$0xff]
    %v4539 = vld [vmem:[#allocation17 + $0x3a0] sm:$0xff]
    %v4540 = vld [vmem:[#allocation17 + $0x3a8] sm:$0xff]
    %v4541 = vld [vmem:[#allocation17 + $0x3b0] sm:$0xff]
    %v4542 = vld [vmem:[#allocation17 + $0x3b8] sm:$0xff]
    %v4543 = vld [vmem:[#allocation17 + $0x3c0] sm:$0xff]
    %v4544 = vld [vmem:[#allocation17 + $0x3c8] sm:$0xff]
    %v4545 = vld [vmem:[#allocation17 + $0x3d0] sm:$0xff]
    %v4546 = vld [vmem:[#allocation17 + $0x3d8] sm:$0xff]
    %v4547 = vld [vmem:[#allocation17 + $0x3e0] sm:$0xff]
    %v4548 = vld [vmem:[#allocation17 + $0x3e8] sm:$0xff]
    %v4549 = vld [vmem:[#allocation17 + $0x3f0] sm:$0xff]
    %v4550 = vld [vmem:[#allocation17 + $0x3f8] sm:$0xff]
    %v4551 = vld [vmem:[#allocation17 + $0x400] sm:$0xff]
    %v4552 = vld [vmem:[#allocation17 + $0x408] sm:$0xff]
    %v4553 = vld [vmem:[#allocation17 + $0x410] sm:$0xff]
    %v4554 = vld [vmem:[#allocation17 + $0x418] sm:$0xff]
    %v4555 = vld [vmem:[#allocation17 + $0x420] sm:$0xff]
    %v4556 = vld [vmem:[#allocation17 + $0x428] sm:$0xff]
    %v4557 = vld [vmem:[#allocation17 + $0x430] sm:$0xff]
    %v4558 = vld [vmem:[#allocation17 + $0x438] sm:$0xff]
    %v4559 = vld [vmem:[#allocation17 + $0x440] sm:$0xff]
    %v4560 = vld [vmem:[#allocation17 + $0x448] sm:$0xff]
    %v4561 = vld [vmem:[#allocation17 + $0x450] sm:$0xff]
    %v4562 = vld [vmem:[#allocation17 + $0x458] sm:$0xff]
    %v4563 = vld [vmem:[#allocation17 + $0x460] sm:$0xff]
    %v4564 = vld [vmem:[#allocation17 + $0x468] sm:$0xff]
    %v4565 = vld [vmem:[#allocation17 + $0x470] sm:$0xff]
    %v4566 = vld [vmem:[#allocation17 + $0x478] sm:$0xff]
    %v4567 = vld [vmem:[#allocation17 + $0x480] sm:$0xff]
    %v4568 = vld [vmem:[#allocation17 + $0x488] sm:$0xff]
    %v4569 = vld [vmem:[#allocation17 + $0x490] sm:$0xff]
    %v4570 = vld [vmem:[#allocation17 + $0x498] sm:$0xff]
    %v4571 = vld [vmem:[#allocation17 + $0x4a0] sm:$0xff]
    %v4572 = vld [vmem:[#allocation17 + $0x4a8] sm:$0xff]
    %v4573 = vld [vmem:[#allocation17 + $0x4b0] sm:$0xff]
    %v4574 = vld [vmem:[#allocation17 + $0x4b8] sm:$0xff]
    %v4575 = vld [vmem:[#allocation17 + $0x4c0] sm:$0xff]
    %v4576 = vld [vmem:[#allocation17 + $0x4c8] sm:$0xff]
    %v4577 = vld [vmem:[#allocation17 + $0x4d0] sm:$0xff]
    %v4578 = vld [vmem:[#allocation17 + $0x4d8] sm:$0xff]
    %v4579 = vld [vmem:[#allocation17 + $0x4e0] sm:$0xff]
    %v4580 = vld [vmem:[#allocation17 + $0x4e8] sm:$0xff]
    %v4581 = vld [vmem:[#allocation17 + $0x4f0] sm:$0xff]
    %v4582 = vld [vmem:[#allocation17 + $0x4f8] sm:$0xff]
    %v4583 = vld [vmem:[#allocation17 + $0x500] sm:$0xff]
    %v4584 = vld [vmem:[#allocation17 + $0x508] sm:$0xff]
    %v4585 = vld [vmem:[#allocation17 + $0x510] sm:$0xff]
    %v4586 = vld [vmem:[#allocation17 + $0x518] sm:$0xff]
    %v4587 = vld [vmem:[#allocation17 + $0x520] sm:$0xff]
    %v4588 = vld [vmem:[#allocation17 + $0x528] sm:$0xff]
    %v4589 = vld [vmem:[#allocation17 + $0x530] sm:$0xff]
    %v4590 = vld [vmem:[#allocation17 + $0x538] sm:$0xff]
    %v4591 = vld [vmem:[#allocation17 + $0x540] sm:$0xff]
    %v4592 = vld [vmem:[#allocation17 + $0x548] sm:$0xff]
    %v4593 = vld [vmem:[#allocation17 + $0x550] sm:$0xff]
    %v4594 = vld [vmem:[#allocation17 + $0x558] sm:$0xff]
    %v4595 = vld [vmem:[#allocation17 + $0x560] sm:$0xff]
    %v4596 = vld [vmem:[#allocation17 + $0x568] sm:$0xff]
    %v4597 = vld [vmem:[#allocation17 + $0x570] sm:$0xff]
    %v4598 = vld [vmem:[#allocation17 + $0x578] sm:$0xff]
    %v4599 = vld [vmem:[#allocation17 + $0x580] sm:$0xff]
    %v4600 = vld [vmem:[#allocation17 + $0x588] sm:$0xff]
    %v4601 = vld [vmem:[#allocation17 + $0x590] sm:$0xff]
    %v4602 = vld [vmem:[#allocation17 + $0x598] sm:$0xff]
    %v4603 = vld [vmem:[#allocation17 + $0x5a0] sm:$0xff]
    %v4604 = vld [vmem:[#allocation17 + $0x5a8] sm:$0xff]
    %v4605 = vld [vmem:[#allocation17 + $0x5b0] sm:$0xff]
    %v4606 = vld [vmem:[#allocation17 + $0x5b8] sm:$0xff]
    %v4607 = vld [vmem:[#allocation17 + $0x5c0] sm:$0xff]
    %v4608 = vld [vmem:[#allocation17 + $0x5c8] sm:$0xff]
    %v4609 = vld [vmem:[#allocation17 + $0x5d0] sm:$0xff]
    %v4610 = vld [vmem:[#allocation17 + $0x5d8] sm:$0xff]
    %v4611 = vld [vmem:[#allocation17 + $0x5e0] sm:$0xff]
    %v4612 = vld [vmem:[#allocation17 + $0x5e8] sm:$0xff]
    %v4613 = vld [vmem:[#allocation17 + $0x5f0] sm:$0xff]
    %v4614 = vld [vmem:[#allocation17 + $0x5f8] sm:$0xff]
    %v4615 = vld [vmem:[#allocation17 + $0x600] sm:$0xff]
    %v4616 = vld [vmem:[#allocation17 + $0x608] sm:$0xff]
    %v4617 = vld [vmem:[#allocation17 + $0x610] sm:$0xff]
    %v4618 = vld [vmem:[#allocation17 + $0x618] sm:$0xff]
    %v4619 = vld [vmem:[#allocation17 + $0x620] sm:$0xff]
    %v4620 = vld [vmem:[#allocation17 + $0x628] sm:$0xff]
    %v4621 = vld [vmem:[#allocation17 + $0x630] sm:$0xff]
    %v4622 = vld [vmem:[#allocation17 + $0x638] sm:$0xff]
    %v4623 = vld [vmem:[#allocation17 + $0x640] sm:$0xff]
    %v4624 = vld [vmem:[#allocation17 + $0x648] sm:$0xff]
    %v4625 = vld [vmem:[#allocation17 + $0x650] sm:$0xff]
    %v4626 = vld [vmem:[#allocation17 + $0x658] sm:$0xff]
    %v4627 = vld [vmem:[#allocation17 + $0x660] sm:$0xff]
    %v4628 = vld [vmem:[#allocation17 + $0x668] sm:$0xff]
    %v4629 = vld [vmem:[#allocation17 + $0x670] sm:$0xff]
    %v4630 = vld [vmem:[#allocation17 + $0x678] sm:$0xff]
    %v4631 = vld [vmem:[#allocation17 + $0x680] sm:$0xff]
    %v4632 = vld [vmem:[#allocation17 + $0x688] sm:$0xff]
    %v4633 = vld [vmem:[#allocation17 + $0x690] sm:$0xff]
    %v4634 = vld [vmem:[#allocation17 + $0x698] sm:$0xff]
    %v4635 = vld [vmem:[#allocation17 + $0x6a0] sm:$0xff]
    %v4636 = vld [vmem:[#allocation17 + $0x6a8] sm:$0xff]
    %v4637 = vld [vmem:[#allocation17 + $0x6b0] sm:$0xff]
    %v4638 = vld [vmem:[#allocation17 + $0x6b8] sm:$0xff]
    %v4639 = vld [vmem:[#allocation17 + $0x6c0] sm:$0xff]
    %v4640 = vld [vmem:[#allocation17 + $0x6c8] sm:$0xff]
    %v4641 = vld [vmem:[#allocation17 + $0x6d0] sm:$0xff]
    %v4642 = vld [vmem:[#allocation17 + $0x6d8] sm:$0xff]
    %v4643 = vld [vmem:[#allocation17 + $0x6e0] sm:$0xff]
    %v4644 = vld [vmem:[#allocation17 + $0x6e8] sm:$0xff]
    %v4645 = vld [vmem:[#allocation17 + $0x6f0] sm:$0xff]
    %v4646 = vld [vmem:[#allocation17 + $0x6f8] sm:$0xff]
    %v4647 = vld [vmem:[#allocation17 + $0x700] sm:$0xff]
    %v4648 = vld [vmem:[#allocation17 + $0x708] sm:$0xff]
    %v4649 = vld [vmem:[#allocation17 + $0x710] sm:$0xff]
    %v4650 = vld [vmem:[#allocation17 + $0x718] sm:$0xff]
    %v4651 = vld [vmem:[#allocation17 + $0x720] sm:$0xff]
    %v4652 = vld [vmem:[#allocation17 + $0x728] sm:$0xff]
    %v4653 = vld [vmem:[#allocation17 + $0x730] sm:$0xff]
    %v4654 = vld [vmem:[#allocation17 + $0x738] sm:$0xff]
    %v4655 = vld [vmem:[#allocation17 + $0x740] sm:$0xff]
    %v4656 = vld [vmem:[#allocation17 + $0x748] sm:$0xff]
    %v4657 = vld [vmem:[#allocation17 + $0x750] sm:$0xff]
    %v4658 = vld [vmem:[#allocation17 + $0x758] sm:$0xff]
    %v4659 = vld [vmem:[#allocation17 + $0x760] sm:$0xff]
    %v4660 = vld [vmem:[#allocation17 + $0x768] sm:$0xff]
    %v4661 = vld [vmem:[#allocation17 + $0x770] sm:$0xff]
    %v4662 = vld [vmem:[#allocation17 + $0x778] sm:$0xff]
    %v4663 = vld [vmem:[#allocation17 + $0x780] sm:$0xff]
    %v4664 = vld [vmem:[#allocation17 + $0x788] sm:$0xff]
    %v4665 = vld [vmem:[#allocation17 + $0x790] sm:$0xff]
    %v4666 = vld [vmem:[#allocation17 + $0x798] sm:$0xff]
    %v4667 = vld [vmem:[#allocation17 + $0x7a0] sm:$0xff]
    %v4668 = vld [vmem:[#allocation17 + $0x7a8] sm:$0xff]
    %v4669 = vld [vmem:[#allocation17 + $0x7b0] sm:$0xff]
    %v4670 = vld [vmem:[#allocation17 + $0x7b8] sm:$0xff]
    %v4671 = vld [vmem:[#allocation17 + $0x7c0] sm:$0xff]
    %v4672 = vld [vmem:[#allocation17 + $0x7c8] sm:$0xff]
    %v4673 = vld [vmem:[#allocation17 + $0x7d0] sm:$0xff]
    %v4674 = vld [vmem:[#allocation17 + $0x7d8] sm:$0xff]
    %v4675 = vld [vmem:[#allocation17 + $0x7e0] sm:$0xff]
    %v4676 = vld [vmem:[#allocation17 + $0x7e8] sm:$0xff]
    %v4677 = vld [vmem:[#allocation17 + $0x7f0] sm:$0xff]
    %v4678 = vld [vmem:[#allocation17 + $0x7f8] sm:$0xff]
    %v4679 = vld [vmem:[#allocation17 + $0x800] sm:$0xff]
    %v4680 = vld [vmem:[#allocation17 + $0x808] sm:$0xff]
    %v4681 = vld [vmem:[#allocation17 + $0x810] sm:$0xff]
    %v4682 = vld [vmem:[#allocation17 + $0x818] sm:$0xff]
    %v4683 = vld [vmem:[#allocation17 + $0x820] sm:$0xff]
    %v4684 = vld [vmem:[#allocation17 + $0x828] sm:$0xff]
    %v4685 = vld [vmem:[#allocation17 + $0x830] sm:$0xff]
    %v4686 = vld [vmem:[#allocation17 + $0x838] sm:$0xff]
    %v4687 = vld [vmem:[#allocation17 + $0x840] sm:$0xff]
    %v4688 = vld [vmem:[#allocation17 + $0x848] sm:$0xff]
    %v4689 = vld [vmem:[#allocation17 + $0x850] sm:$0xff]
    %v4690 = vld [vmem:[#allocation17 + $0x858] sm:$0xff]
    %v4691 = vld [vmem:[#allocation17 + $0x860] sm:$0xff]
    %v4692 = vld [vmem:[#allocation17 + $0x868] sm:$0xff]
    %v4693 = vld [vmem:[#allocation17 + $0x870] sm:$0xff]
    %v4694 = vld [vmem:[#allocation17 + $0x878] sm:$0xff]
    %v4695 = vld [vmem:[#allocation17 + $0x880] sm:$0xff]
    %v4696 = vld [vmem:[#allocation17 + $0x888] sm:$0xff]
    %v4697 = vld [vmem:[#allocation17 + $0x890] sm:$0xff]
    %v4698 = vld [vmem:[#allocation17 + $0x898] sm:$0xff]
    %v4699 = vld [vmem:[#allocation17 + $0x8a0] sm:$0xff]
    %v4700 = vld [vmem:[#allocation17 + $0x8a8] sm:$0xff]
    %v4701 = vld [vmem:[#allocation17 + $0x8b0] sm:$0xff]
    %v4702 = vld [vmem:[#allocation17 + $0x8b8] sm:$0xff]
    %v4703 = vld [vmem:[#allocation17 + $0x8c0] sm:$0xff]
    %v4704 = vld [vmem:[#allocation17 + $0x8c8] sm:$0xff]
    %v4705 = vld [vmem:[#allocation17 + $0x8d0] sm:$0xff]
    %v4706 = vld [vmem:[#allocation17 + $0x8d8] sm:$0xff]
    %v4707 = vld [vmem:[#allocation17 + $0x8e0] sm:$0xff]
    %v4708 = vld [vmem:[#allocation17 + $0x8e8] sm:$0xff]
    %v4709 = vld [vmem:[#allocation17 + $0x8f0] sm:$0xff]
    %v4710 = vld [vmem:[#allocation17 + $0x8f8] sm:$0xff]
    %v4711 = vld [vmem:[#allocation17 + $0x900] sm:$0xff]
    %v4712 = vld [vmem:[#allocation17 + $0x908] sm:$0xff]
    %v4713 = vld [vmem:[#allocation17 + $0x910] sm:$0xff]
    %v4714 = vld [vmem:[#allocation17 + $0x918] sm:$0xff]
    %v4715 = vld [vmem:[#allocation17 + $0x920] sm:$0xff]
    %v4716 = vld [vmem:[#allocation17 + $0x928] sm:$0xff]
    %v4717 = vld [vmem:[#allocation17 + $0x930] sm:$0xff]
    %v4718 = vld [vmem:[#allocation17 + $0x938] sm:$0xff]
    %v4719 = vld [vmem:[#allocation17 + $0x940] sm:$0xff]
    %v4720 = vld [vmem:[#allocation17 + $0x948] sm:$0xff]
    %v4721 = vld [vmem:[#allocation17 + $0x950] sm:$0xff]
    %v4722 = vld [vmem:[#allocation17 + $0x958] sm:$0xff]
    %v4723 = vld [vmem:[#allocation17 + $0x960] sm:$0xff]
    %v4724 = vld [vmem:[#allocation17 + $0x968] sm:$0xff]
    %v4725 = vld [vmem:[#allocation17 + $0x970] sm:$0xff]
    %v4726 = vld [vmem:[#allocation17 + $0x978] sm:$0xff]
    %v4727 = vld [vmem:[#allocation17 + $0x980] sm:$0xff]
    %v4728 = vld [vmem:[#allocation17 + $0x988] sm:$0xff]
    %v4729 = vld [vmem:[#allocation17 + $0x990] sm:$0xff]
    %v4730 = vld [vmem:[#allocation17 + $0x998] sm:$0xff]
    %v4731 = vld [vmem:[#allocation17 + $0x9a0] sm:$0xff]
    %v4732 = vld [vmem:[#allocation17 + $0x9a8] sm:$0xff]
    %v4733 = vld [vmem:[#allocation17 + $0x9b0] sm:$0xff]
    %v4734 = vld [vmem:[#allocation17 + $0x9b8] sm:$0xff]
    %v4735 = vld [vmem:[#allocation17 + $0x9c0] sm:$0xff]
    %v4736 = vld [vmem:[#allocation17 + $0x9c8] sm:$0xff]
    %v4737 = vld [vmem:[#allocation17 + $0x9d0] sm:$0xff]
    %v4738 = vld [vmem:[#allocation17 + $0x9d8] sm:$0xff]
    %v4739 = vld [vmem:[#allocation17 + $0x9e0] sm:$0xff]
    %v4740 = vld [vmem:[#allocation17 + $0x9e8] sm:$0xff]
    %v4741 = vld [vmem:[#allocation17 + $0x9f0] sm:$0xff]
    %v4742 = vld [vmem:[#allocation17 + $0x9f8] sm:$0xff]
    %v4743 = vld [vmem:[#allocation17 + $0xa00] sm:$0xff]
    %v4744 = vld [vmem:[#allocation17 + $0xa08] sm:$0xff]
    %v4745 = vld [vmem:[#allocation17 + $0xa10] sm:$0xff]
    %v4746 = vld [vmem:[#allocation17 + $0xa18] sm:$0xff]
    %v4747 = vld [vmem:[#allocation17 + $0xa20] sm:$0xff]
    %v4748 = vld [vmem:[#allocation17 + $0xa28] sm:$0xff]
    %v4749 = vld [vmem:[#allocation17 + $0xa30] sm:$0xff]
    %v4750 = vld [vmem:[#allocation17 + $0xa38] sm:$0xff]
    %v4751 = vld [vmem:[#allocation17 + $0xa40] sm:$0xff]
    %v4752 = vld [vmem:[#allocation17 + $0xa48] sm:$0xff]
    %v4753 = vld [vmem:[#allocation17 + $0xa50] sm:$0xff]
    %v4754 = vld [vmem:[#allocation17 + $0xa58] sm:$0xff]
    %v4755 = vld [vmem:[#allocation17 + $0xa60] sm:$0xff]
    %v4756 = vld [vmem:[#allocation17 + $0xa68] sm:$0xff]
    %v4757 = vld [vmem:[#allocation17 + $0xa70] sm:$0xff]
    %v4758 = vld [vmem:[#allocation17 + $0xa78] sm:$0xff]
    %v4759 = vld [vmem:[#allocation17 + $0xa80] sm:$0xff]
    %v4760 = vld [vmem:[#allocation17 + $0xa88] sm:$0xff]
    %v4761 = vld [vmem:[#allocation17 + $0xa90] sm:$0xff]
    %v4762 = vld [vmem:[#allocation17 + $0xa98] sm:$0xff]
    %v4763 = vld [vmem:[#allocation17 + $0xaa0] sm:$0xff]
    %v4764 = vld [vmem:[#allocation17 + $0xaa8] sm:$0xff]
    %v4765 = vld [vmem:[#allocation17 + $0xab0] sm:$0xff]
    %v4766 = vld [vmem:[#allocation17 + $0xab8] sm:$0xff]
    %v4767 = vld [vmem:[#allocation17 + $0xac0] sm:$0xff]
    %v4768 = vld [vmem:[#allocation17 + $0xac8] sm:$0xff]
    %v4769 = vld [vmem:[#allocation17 + $0xad0] sm:$0xff]
    %v4770 = vld [vmem:[#allocation17 + $0xad8] sm:$0xff]
    %v4771 = vld [vmem:[#allocation17 + $0xae0] sm:$0xff]
    %v4772 = vld [vmem:[#allocation17 + $0xae8] sm:$0xff]
    %v4773 = vld [vmem:[#allocation17 + $0xaf0] sm:$0xff]
    %v4774 = vld [vmem:[#allocation17 + $0xaf8] sm:$0xff]
    %v4775 = vld [vmem:[#allocation17 + $0xb00] sm:$0xff]
    %v4776 = vld [vmem:[#allocation17 + $0xb08] sm:$0xff]
    %v4777 = vld [vmem:[#allocation17 + $0xb10] sm:$0xff]
    %v4778 = vld [vmem:[#allocation17 + $0xb18] sm:$0xff]
    %v4779 = vld [vmem:[#allocation17 + $0xb20] sm:$0xff]
    %v4780 = vld [vmem:[#allocation17 + $0xb28] sm:$0xff]
    %v4781 = vld [vmem:[#allocation17 + $0xb30] sm:$0xff]
    %v4782 = vld [vmem:[#allocation17 + $0xb38] sm:$0xff]
    %v4783 = vld [vmem:[#allocation17 + $0xb40] sm:$0xff]
    %v4784 = vld [vmem:[#allocation17 + $0xb48] sm:$0xff]
    %v4785 = vld [vmem:[#allocation17 + $0xb50] sm:$0xff]
    %v4786 = vld [vmem:[#allocation17 + $0xb58] sm:$0xff]
    %v4787 = vld [vmem:[#allocation17 + $0xb60] sm:$0xff]
    %v4788 = vld [vmem:[#allocation17 + $0xb68] sm:$0xff]
    %v4789 = vld [vmem:[#allocation17 + $0xb70] sm:$0xff]
    %v4790 = vld [vmem:[#allocation17 + $0xb78] sm:$0xff]
    %v4791 = vld [vmem:[#allocation17 + $0xb80] sm:$0xff]
    %v4792 = vld [vmem:[#allocation17 + $0xb88] sm:$0xff]
    %v4793 = vld [vmem:[#allocation17 + $0xb90] sm:$0xff]
    %v4794 = vld [vmem:[#allocation17 + $0xb98] sm:$0xff]
    %v4795 = vld [vmem:[#allocation17 + $0xba0] sm:$0xff]
    %v4796 = vld [vmem:[#allocation17 + $0xba8] sm:$0xff]
    %v4797 = vld [vmem:[#allocation17 + $0xbb0] sm:$0xff]
    %v4798 = vld [vmem:[#allocation17 + $0xbb8] sm:$0xff]
    %v4799 = vld [vmem:[#allocation17 + $0xbc0] sm:$0xff]
    %v4800 = vld [vmem:[#allocation17 + $0xbc8] sm:$0xff]
    %v4801 = vld [vmem:[#allocation17 + $0xbd0] sm:$0xff]
    %v4802 = vld [vmem:[#allocation17 + $0xbd8] sm:$0xff]
    %v4803 = vld [vmem:[#allocation17 + $0xbe0] sm:$0xff]
    %v4804 = vld [vmem:[#allocation17 + $0xbe8] sm:$0xff]
    %v4805 = vld [vmem:[#allocation17 + $0xbf0] sm:$0xff]
    %v4806 = vld [vmem:[#allocation17 + $0xbf8] sm:$0xff]
    %v5191 = vunpack.c.l.b16 %v4423
    %v5192 = vunpack.c.h.b16 %v4423
    %v5193 = vunpack.c.l.b16 %v4424
    %v5194 = vunpack.c.h.b16 %v4424
    %v5195 = vunpack.c.l.b16 %v4425
    %v5196 = vunpack.c.h.b16 %v4425
    %v5197 = vunpack.c.l.b16 %v4426
    %v5198 = vunpack.c.h.b16 %v4426
    %v5199 = vunpack.c.l.b16 %v4427
    %v5200 = vunpack.c.h.b16 %v4427
    %v5201 = vunpack.c.l.b16 %v4428
    %v5202 = vunpack.c.h.b16 %v4428
    %v5203 = vunpack.c.l.b16 %v4429
    %v5204 = vunpack.c.h.b16 %v4429
    %v5205 = vunpack.c.l.b16 %v4430
    %v5206 = vunpack.c.h.b16 %v4430
    %v5207 = vunpack.c.l.b16 %v4431
    %v5208 = vunpack.c.h.b16 %v4431
    %v5209 = vunpack.c.l.b16 %v4432
    %v5210 = vunpack.c.h.b16 %v4432
    %v5211 = vunpack.c.l.b16 %v4433
    %v5212 = vunpack.c.h.b16 %v4433
    %v5213 = vunpack.c.l.b16 %v4434
    %v5214 = vunpack.c.h.b16 %v4434
    %v5215 = vunpack.c.l.b16 %v4435
    %v5216 = vunpack.c.h.b16 %v4435
    %v5217 = vunpack.c.l.b16 %v4436
    %v5218 = vunpack.c.h.b16 %v4436
    %v5219 = vunpack.c.l.b16 %v4437
    %v5220 = vunpack.c.h.b16 %v4437
    %v5221 = vunpack.c.l.b16 %v4438
    %v5222 = vunpack.c.h.b16 %v4438
    %v5223 = vunpack.c.l.b16 %v4439
    %v5224 = vunpack.c.h.b16 %v4439
    %v5225 = vunpack.c.l.b16 %v4440
    %v5226 = vunpack.c.h.b16 %v4440
    %v5227 = vunpack.c.l.b16 %v4441
    %v5228 = vunpack.c.h.b16 %v4441
    %v5229 = vunpack.c.l.b16 %v4442
    %v5230 = vunpack.c.h.b16 %v4442
    %v5231 = vunpack.c.l.b16 %v4443
    %v5232 = vunpack.c.h.b16 %v4443
    %v5233 = vunpack.c.l.b16 %v4444
    %v5234 = vunpack.c.h.b16 %v4444
    %v5235 = vunpack.c.l.b16 %v4445
    %v5236 = vunpack.c.h.b16 %v4445
    %v5237 = vunpack.c.l.b16 %v4446
    %v5238 = vunpack.c.h.b16 %v4446
    %v5239 = vunpack.c.l.b16 %v4447
    %v5240 = vunpack.c.h.b16 %v4447
    %v5241 = vunpack.c.l.b16 %v4448
    %v5242 = vunpack.c.h.b16 %v4448
    %v5243 = vunpack.c.l.b16 %v4449
    %v5244 = vunpack.c.h.b16 %v4449
    %v5245 = vunpack.c.l.b16 %v4450
    %v5246 = vunpack.c.h.b16 %v4450
    %v5247 = vunpack.c.l.b16 %v4451
    %v5248 = vunpack.c.h.b16 %v4451
    %v5249 = vunpack.c.l.b16 %v4452
    %v5250 = vunpack.c.h.b16 %v4452
    %v5251 = vunpack.c.l.b16 %v4453
    %v5252 = vunpack.c.h.b16 %v4453
    %v5253 = vunpack.c.l.b16 %v4454
    %v5254 = vunpack.c.h.b16 %v4454
    %v5255 = vunpack.c.l.b16 %v4455
    %v5256 = vunpack.c.h.b16 %v4455
    %v5257 = vunpack.c.l.b16 %v4456
    %v5258 = vunpack.c.h.b16 %v4456
    %v5259 = vunpack.c.l.b16 %v4457
    %v5260 = vunpack.c.h.b16 %v4457
    %v5261 = vunpack.c.l.b16 %v4458
    %v5262 = vunpack.c.h.b16 %v4458
    %v5263 = vunpack.c.l.b16 %v4459
    %v5264 = vunpack.c.h.b16 %v4459
    %v5265 = vunpack.c.l.b16 %v4460
    %v5266 = vunpack.c.h.b16 %v4460
    %v5267 = vunpack.c.l.b16 %v4461
    %v5268 = vunpack.c.h.b16 %v4461
    %v5269 = vunpack.c.l.b16 %v4462
    %v5270 = vunpack.c.h.b16 %v4462
    %v5271 = vunpack.c.l.b16 %v4463
    %v5272 = vunpack.c.h.b16 %v4463
    %v5273 = vunpack.c.l.b16 %v4464
    %v5274 = vunpack.c.h.b16 %v4464
    %v5275 = vunpack.c.l.b16 %v4465
    %v5276 = vunpack.c.h.b16 %v4465
    %v5277 = vunpack.c.l.b16 %v4466
    %v5278 = vunpack.c.h.b16 %v4466
    %v5279 = vunpack.c.l.b16 %v4467
    %v5280 = vunpack.c.h.b16 %v4467
    %v5281 = vunpack.c.l.b16 %v4468
    %v5282 = vunpack.c.h.b16 %v4468
    %v5283 = vunpack.c.l.b16 %v4469
    %v5284 = vunpack.c.h.b16 %v4469
    %v5285 = vunpack.c.l.b16 %v4470
    %v5286 = vunpack.c.h.b16 %v4470
    %v5287 = vunpack.c.l.b16 %v4471
    %v5288 = vunpack.c.h.b16 %v4471
    %v5289 = vunpack.c.l.b16 %v4472
    %v5290 = vunpack.c.h.b16 %v4472
    %v5291 = vunpack.c.l.b16 %v4473
    %v5292 = vunpack.c.h.b16 %v4473
    %v5293 = vunpack.c.l.b16 %v4474
    %v5294 = vunpack.c.h.b16 %v4474
    %v5295 = vunpack.c.l.b16 %v4475
    %v5296 = vunpack.c.h.b16 %v4475
    %v5297 = vunpack.c.l.b16 %v4476
    %v5298 = vunpack.c.h.b16 %v4476
    %v5299 = vunpack.c.l.b16 %v4477
    %v5300 = vunpack.c.h.b16 %v4477
    %v5301 = vunpack.c.l.b16 %v4478
    %v5302 = vunpack.c.h.b16 %v4478
    %v5303 = vunpack.c.l.b16 %v4479
    %v5304 = vunpack.c.h.b16 %v4479
    %v5305 = vunpack.c.l.b16 %v4480
    %v5306 = vunpack.c.h.b16 %v4480
    %v5307 = vunpack.c.l.b16 %v4481
    %v5308 = vunpack.c.h.b16 %v4481
    %v5309 = vunpack.c.l.b16 %v4482
    %v5310 = vunpack.c.h.b16 %v4482
    %v5311 = vunpack.c.l.b16 %v4483
    %v5312 = vunpack.c.h.b16 %v4483
    %v5313 = vunpack.c.l.b16 %v4484
    %v5314 = vunpack.c.h.b16 %v4484
    %v5315 = vunpack.c.l.b16 %v4485
    %v5316 = vunpack.c.h.b16 %v4485
    %v5317 = vunpack.c.l.b16 %v4486
    %v5318 = vunpack.c.h.b16 %v4486
    %v5319 = vunpack.c.l.b16 %v4487
    %v5320 = vunpack.c.h.b16 %v4487
    %v5321 = vunpack.c.l.b16 %v4488
    %v5322 = vunpack.c.h.b16 %v4488
    %v5323 = vunpack.c.l.b16 %v4489
    %v5324 = vunpack.c.h.b16 %v4489
    %v5325 = vunpack.c.l.b16 %v4490
    %v5326 = vunpack.c.h.b16 %v4490
    %v5327 = vunpack.c.l.b16 %v4491
    %v5328 = vunpack.c.h.b16 %v4491
    %v5329 = vunpack.c.l.b16 %v4492
    %v5330 = vunpack.c.h.b16 %v4492
    %v5331 = vunpack.c.l.b16 %v4493
    %v5332 = vunpack.c.h.b16 %v4493
    %v5333 = vunpack.c.l.b16 %v4494
    %v5334 = vunpack.c.h.b16 %v4494
    %v5335 = vunpack.c.l.b16 %v4495
    %v5336 = vunpack.c.h.b16 %v4495
    %v5337 = vunpack.c.l.b16 %v4496
    %v5338 = vunpack.c.h.b16 %v4496
    %v5339 = vunpack.c.l.b16 %v4497
    %v5340 = vunpack.c.h.b16 %v4497
    %v5341 = vunpack.c.l.b16 %v4498
    %v5342 = vunpack.c.h.b16 %v4498
    %v5343 = vunpack.c.l.b16 %v4499
    %v5344 = vunpack.c.h.b16 %v4499
    %v5345 = vunpack.c.l.b16 %v4500
    %v5346 = vunpack.c.h.b16 %v4500
    %v5347 = vunpack.c.l.b16 %v4501
    %v5348 = vunpack.c.h.b16 %v4501
    %v5349 = vunpack.c.l.b16 %v4502
    %v5350 = vunpack.c.h.b16 %v4502
    %v5351 = vunpack.c.l.b16 %v4503
    %v5352 = vunpack.c.h.b16 %v4503
    %v5353 = vunpack.c.l.b16 %v4504
    %v5354 = vunpack.c.h.b16 %v4504
    %v5355 = vunpack.c.l.b16 %v4505
    %v5356 = vunpack.c.h.b16 %v4505
    %v5357 = vunpack.c.l.b16 %v4506
    %v5358 = vunpack.c.h.b16 %v4506
    %v5359 = vunpack.c.l.b16 %v4507
    %v5360 = vunpack.c.h.b16 %v4507
    %v5361 = vunpack.c.l.b16 %v4508
    %v5362 = vunpack.c.h.b16 %v4508
    %v5363 = vunpack.c.l.b16 %v4509
    %v5364 = vunpack.c.h.b16 %v4509
    %v5365 = vunpack.c.l.b16 %v4510
    %v5366 = vunpack.c.h.b16 %v4510
    %v5367 = vunpack.c.l.b16 %v4511
    %v5368 = vunpack.c.h.b16 %v4511
    %v5369 = vunpack.c.l.b16 %v4512
    %v5370 = vunpack.c.h.b16 %v4512
    %v5371 = vunpack.c.l.b16 %v4513
    %v5372 = vunpack.c.h.b16 %v4513
    %v5373 = vunpack.c.l.b16 %v4514
    %v5374 = vunpack.c.h.b16 %v4514
    %v5375 = vunpack.c.l.b16 %v4515
    %v5376 = vunpack.c.h.b16 %v4515
    %v5377 = vunpack.c.l.b16 %v4516
    %v5378 = vunpack.c.h.b16 %v4516
    %v5379 = vunpack.c.l.b16 %v4517
    %v5380 = vunpack.c.h.b16 %v4517
    %v5381 = vunpack.c.l.b16 %v4518
    %v5382 = vunpack.c.h.b16 %v4518
    %v5383 = vunpack.c.l.b16 %v4519
    %v5384 = vunpack.c.h.b16 %v4519
    %v5385 = vunpack.c.l.b16 %v4520
    %v5386 = vunpack.c.h.b16 %v4520
    %v5387 = vunpack.c.l.b16 %v4521
    %v5388 = vunpack.c.h.b16 %v4521
    %v5389 = vunpack.c.l.b16 %v4522
    %v5390 = vunpack.c.h.b16 %v4522
    %v5391 = vunpack.c.l.b16 %v4523
    %v5392 = vunpack.c.h.b16 %v4523
    %v5393 = vunpack.c.l.b16 %v4524
    %v5394 = vunpack.c.h.b16 %v4524
    %v5395 = vunpack.c.l.b16 %v4525
    %v5396 = vunpack.c.h.b16 %v4525
    %v5397 = vunpack.c.l.b16 %v4526
    %v5398 = vunpack.c.h.b16 %v4526
    %v5399 = vunpack.c.l.b16 %v4527
    %v5400 = vunpack.c.h.b16 %v4527
    %v5401 = vunpack.c.l.b16 %v4528
    %v5402 = vunpack.c.h.b16 %v4528
    %v5403 = vunpack.c.l.b16 %v4529
    %v5404 = vunpack.c.h.b16 %v4529
    %v5405 = vunpack.c.l.b16 %v4530
    %v5406 = vunpack.c.h.b16 %v4530
    %v5407 = vunpack.c.l.b16 %v4531
    %v5408 = vunpack.c.h.b16 %v4531
    %v5409 = vunpack.c.l.b16 %v4532
    %v5410 = vunpack.c.h.b16 %v4532
    %v5411 = vunpack.c.l.b16 %v4533
    %v5412 = vunpack.c.h.b16 %v4533
    %v5413 = vunpack.c.l.b16 %v4534
    %v5414 = vunpack.c.h.b16 %v4534
    %v5415 = vunpack.c.l.b16 %v4535
    %v5416 = vunpack.c.h.b16 %v4535
    %v5417 = vunpack.c.l.b16 %v4536
    %v5418 = vunpack.c.h.b16 %v4536
    %v5419 = vunpack.c.l.b16 %v4537
    %v5420 = vunpack.c.h.b16 %v4537
    %v5421 = vunpack.c.l.b16 %v4538
    %v5422 = vunpack.c.h.b16 %v4538
    %v5423 = vunpack.c.l.b16 %v4539
    %v5424 = vunpack.c.h.b16 %v4539
    %v5425 = vunpack.c.l.b16 %v4540
    %v5426 = vunpack.c.h.b16 %v4540
    %v5427 = vunpack.c.l.b16 %v4541
    %v5428 = vunpack.c.h.b16 %v4541
    %v5429 = vunpack.c.l.b16 %v4542
    %v5430 = vunpack.c.h.b16 %v4542
    %v5431 = vunpack.c.l.b16 %v4543
    %v5432 = vunpack.c.h.b16 %v4543
    %v5433 = vunpack.c.l.b16 %v4544
    %v5434 = vunpack.c.h.b16 %v4544
    %v5435 = vunpack.c.l.b16 %v4545
    %v5436 = vunpack.c.h.b16 %v4545
    %v5437 = vunpack.c.l.b16 %v4546
    %v5438 = vunpack.c.h.b16 %v4546
    %v5439 = vunpack.c.l.b16 %v4547
    %v5440 = vunpack.c.h.b16 %v4547
    %v5441 = vunpack.c.l.b16 %v4548
    %v5442 = vunpack.c.h.b16 %v4548
    %v5443 = vunpack.c.l.b16 %v4549
    %v5444 = vunpack.c.h.b16 %v4549
    %v5445 = vunpack.c.l.b16 %v4550
    %v5446 = vunpack.c.h.b16 %v4550
    %v5447 = vunpack.c.l.b16 %v4551
    %v5448 = vunpack.c.h.b16 %v4551
    %v5449 = vunpack.c.l.b16 %v4552
    %v5450 = vunpack.c.h.b16 %v4552
    %v5451 = vunpack.c.l.b16 %v4553
    %v5452 = vunpack.c.h.b16 %v4553
    %v5453 = vunpack.c.l.b16 %v4554
    %v5454 = vunpack.c.h.b16 %v4554
    %v5455 = vunpack.c.l.b16 %v4555
    %v5456 = vunpack.c.h.b16 %v4555
    %v5457 = vunpack.c.l.b16 %v4556
    %v5458 = vunpack.c.h.b16 %v4556
    %v5459 = vunpack.c.l.b16 %v4557
    %v5460 = vunpack.c.h.b16 %v4557
    %v5461 = vunpack.c.l.b16 %v4558
    %v5462 = vunpack.c.h.b16 %v4558
    %v5463 = vunpack.c.l.b16 %v4559
    %v5464 = vunpack.c.h.b16 %v4559
    %v5465 = vunpack.c.l.b16 %v4560
    %v5466 = vunpack.c.h.b16 %v4560
    %v5467 = vunpack.c.l.b16 %v4561
    %v5468 = vunpack.c.h.b16 %v4561
    %v5469 = vunpack.c.l.b16 %v4562
    %v5470 = vunpack.c.h.b16 %v4562
    %v5471 = vunpack.c.l.b16 %v4563
    %v5472 = vunpack.c.h.b16 %v4563
    %v5473 = vunpack.c.l.b16 %v4564
    %v5474 = vunpack.c.h.b16 %v4564
    %v5475 = vunpack.c.l.b16 %v4565
    %v5476 = vunpack.c.h.b16 %v4565
    %v5477 = vunpack.c.l.b16 %v4566
    %v5478 = vunpack.c.h.b16 %v4566
    %v5479 = vunpack.c.l.b16 %v4567
    %v5480 = vunpack.c.h.b16 %v4567
    %v5481 = vunpack.c.l.b16 %v4568
    %v5482 = vunpack.c.h.b16 %v4568
    %v5483 = vunpack.c.l.b16 %v4569
    %v5484 = vunpack.c.h.b16 %v4569
    %v5485 = vunpack.c.l.b16 %v4570
    %v5486 = vunpack.c.h.b16 %v4570
    %v5487 = vunpack.c.l.b16 %v4571
    %v5488 = vunpack.c.h.b16 %v4571
    %v5489 = vunpack.c.l.b16 %v4572
    %v5490 = vunpack.c.h.b16 %v4572
    %v5491 = vunpack.c.l.b16 %v4573
    %v5492 = vunpack.c.h.b16 %v4573
    %v5493 = vunpack.c.l.b16 %v4574
    %v5494 = vunpack.c.h.b16 %v4574
    %v5495 = vunpack.c.l.b16 %v4575
    %v5496 = vunpack.c.h.b16 %v4575
    %v5497 = vunpack.c.l.b16 %v4576
    %v5498 = vunpack.c.h.b16 %v4576
    %v5499 = vunpack.c.l.b16 %v4577
    %v5500 = vunpack.c.h.b16 %v4577
    %v5501 = vunpack.c.l.b16 %v4578
    %v5502 = vunpack.c.h.b16 %v4578
    %v5503 = vunpack.c.l.b16 %v4579
    %v5504 = vunpack.c.h.b16 %v4579
    %v5505 = vunpack.c.l.b16 %v4580
    %v5506 = vunpack.c.h.b16 %v4580
    %v5507 = vunpack.c.l.b16 %v4581
    %v5508 = vunpack.c.h.b16 %v4581
    %v5509 = vunpack.c.l.b16 %v4582
    %v5510 = vunpack.c.h.b16 %v4582
    %v5511 = vunpack.c.l.b16 %v4583
    %v5512 = vunpack.c.h.b16 %v4583
    %v5513 = vunpack.c.l.b16 %v4584
    %v5514 = vunpack.c.h.b16 %v4584
    %v5515 = vunpack.c.l.b16 %v4585
    %v5516 = vunpack.c.h.b16 %v4585
    %v5517 = vunpack.c.l.b16 %v4586
    %v5518 = vunpack.c.h.b16 %v4586
    %v5519 = vunpack.c.l.b16 %v4587
    %v5520 = vunpack.c.h.b16 %v4587
    %v5521 = vunpack.c.l.b16 %v4588
    %v5522 = vunpack.c.h.b16 %v4588
    %v5523 = vunpack.c.l.b16 %v4589
    %v5524 = vunpack.c.h.b16 %v4589
    %v5525 = vunpack.c.l.b16 %v4590
    %v5526 = vunpack.c.h.b16 %v4590
    %v5527 = vunpack.c.l.b16 %v4591
    %v5528 = vunpack.c.h.b16 %v4591
    %v5529 = vunpack.c.l.b16 %v4592
    %v5530 = vunpack.c.h.b16 %v4592
    %v5531 = vunpack.c.l.b16 %v4593
    %v5532 = vunpack.c.h.b16 %v4593
    %v5533 = vunpack.c.l.b16 %v4594
    %v5534 = vunpack.c.h.b16 %v4594
    %v5535 = vunpack.c.l.b16 %v4595
    %v5536 = vunpack.c.h.b16 %v4595
    %v5537 = vunpack.c.l.b16 %v4596
    %v5538 = vunpack.c.h.b16 %v4596
    %v5539 = vunpack.c.l.b16 %v4597
    %v5540 = vunpack.c.h.b16 %v4597
    %v5541 = vunpack.c.l.b16 %v4598
    %v5542 = vunpack.c.h.b16 %v4598
    %v5543 = vunpack.c.l.b16 %v4599
    %v5544 = vunpack.c.h.b16 %v4599
    %v5545 = vunpack.c.l.b16 %v4600
    %v5546 = vunpack.c.h.b16 %v4600
    %v5547 = vunpack.c.l.b16 %v4601
    %v5548 = vunpack.c.h.b16 %v4601
    %v5549 = vunpack.c.l.b16 %v4602
    %v5550 = vunpack.c.h.b16 %v4602
    %v5551 = vunpack.c.l.b16 %v4603
    %v5552 = vunpack.c.h.b16 %v4603
    %v5553 = vunpack.c.l.b16 %v4604
    %v5554 = vunpack.c.h.b16 %v4604
    %v5555 = vunpack.c.l.b16 %v4605
    %v5556 = vunpack.c.h.b16 %v4605
    %v5557 = vunpack.c.l.b16 %v4606
    %v5558 = vunpack.c.h.b16 %v4606
    %v5559 = vunpack.c.l.b16 %v4607
    %v5560 = vunpack.c.h.b16 %v4607
    %v5561 = vunpack.c.l.b16 %v4608
    %v5562 = vunpack.c.h.b16 %v4608
    %v5563 = vunpack.c.l.b16 %v4609
    %v5564 = vunpack.c.h.b16 %v4609
    %v5565 = vunpack.c.l.b16 %v4610
    %v5566 = vunpack.c.h.b16 %v4610
    %v5567 = vunpack.c.l.b16 %v4611
    %v5568 = vunpack.c.h.b16 %v4611
    %v5569 = vunpack.c.l.b16 %v4612
    %v5570 = vunpack.c.h.b16 %v4612
    %v5571 = vunpack.c.l.b16 %v4613
    %v5572 = vunpack.c.h.b16 %v4613
    %v5573 = vunpack.c.l.b16 %v4614
    %v5574 = vunpack.c.h.b16 %v4614
    %v5575 = vunpack.c.l.b16 %v4615
    %v5576 = vunpack.c.h.b16 %v4615
    %v5577 = vunpack.c.l.b16 %v4616
    %v5578 = vunpack.c.h.b16 %v4616
    %v5579 = vunpack.c.l.b16 %v4617
    %v5580 = vunpack.c.h.b16 %v4617
    %v5581 = vunpack.c.l.b16 %v4618
    %v5582 = vunpack.c.h.b16 %v4618
    %v5583 = vunpack.c.l.b16 %v4619
    %v5584 = vunpack.c.h.b16 %v4619
    %v5585 = vunpack.c.l.b16 %v4620
    %v5586 = vunpack.c.h.b16 %v4620
    %v5587 = vunpack.c.l.b16 %v4621
    %v5588 = vunpack.c.h.b16 %v4621
    %v5589 = vunpack.c.l.b16 %v4622
    %v5590 = vunpack.c.h.b16 %v4622
    %v5591 = vunpack.c.l.b16 %v4623
    %v5592 = vunpack.c.h.b16 %v4623
    %v5593 = vunpack.c.l.b16 %v4624
    %v5594 = vunpack.c.h.b16 %v4624
    %v5595 = vunpack.c.l.b16 %v4625
    %v5596 = vunpack.c.h.b16 %v4625
    %v5597 = vunpack.c.l.b16 %v4626
    %v5598 = vunpack.c.h.b16 %v4626
    %v5599 = vunpack.c.l.b16 %v4627
    %v5600 = vunpack.c.h.b16 %v4627
    %v5601 = vunpack.c.l.b16 %v4628
    %v5602 = vunpack.c.h.b16 %v4628
    %v5603 = vunpack.c.l.b16 %v4629
    %v5604 = vunpack.c.h.b16 %v4629
    %v5605 = vunpack.c.l.b16 %v4630
    %v5606 = vunpack.c.h.b16 %v4630
    %v5607 = vunpack.c.l.b16 %v4631
    %v5608 = vunpack.c.h.b16 %v4631
    %v5609 = vunpack.c.l.b16 %v4632
    %v5610 = vunpack.c.h.b16 %v4632
    %v5611 = vunpack.c.l.b16 %v4633
    %v5612 = vunpack.c.h.b16 %v4633
    %v5613 = vunpack.c.l.b16 %v4634
    %v5614 = vunpack.c.h.b16 %v4634
    %v5615 = vunpack.c.l.b16 %v4635
    %v5616 = vunpack.c.h.b16 %v4635
    %v5617 = vunpack.c.l.b16 %v4636
    %v5618 = vunpack.c.h.b16 %v4636
    %v5619 = vunpack.c.l.b16 %v4637
    %v5620 = vunpack.c.h.b16 %v4637
    %v5621 = vunpack.c.l.b16 %v4638
    %v5622 = vunpack.c.h.b16 %v4638
    %v5623 = vunpack.c.l.b16 %v4639
    %v5624 = vunpack.c.h.b16 %v4639
    %v5625 = vunpack.c.l.b16 %v4640
    %v5626 = vunpack.c.h.b16 %v4640
    %v5627 = vunpack.c.l.b16 %v4641
    %v5628 = vunpack.c.h.b16 %v4641
    %v5629 = vunpack.c.l.b16 %v4642
    %v5630 = vunpack.c.h.b16 %v4642
    %v5631 = vunpack.c.l.b16 %v4643
    %v5632 = vunpack.c.h.b16 %v4643
    %v5633 = vunpack.c.l.b16 %v4644
    %v5634 = vunpack.c.h.b16 %v4644
    %v5635 = vunpack.c.l.b16 %v4645
    %v5636 = vunpack.c.h.b16 %v4645
    %v5637 = vunpack.c.l.b16 %v4646
    %v5638 = vunpack.c.h.b16 %v4646
    %v5639 = vunpack.c.l.b16 %v4647
    %v5640 = vunpack.c.h.b16 %v4647
    %v5641 = vunpack.c.l.b16 %v4648
    %v5642 = vunpack.c.h.b16 %v4648
    %v5643 = vunpack.c.l.b16 %v4649
    %v5644 = vunpack.c.h.b16 %v4649
    %v5645 = vunpack.c.l.b16 %v4650
    %v5646 = vunpack.c.h.b16 %v4650
    %v5647 = vunpack.c.l.b16 %v4651
    %v5648 = vunpack.c.h.b16 %v4651
    %v5649 = vunpack.c.l.b16 %v4652
    %v5650 = vunpack.c.h.b16 %v4652
    %v5651 = vunpack.c.l.b16 %v4653
    %v5652 = vunpack.c.h.b16 %v4653
    %v5653 = vunpack.c.l.b16 %v4654
    %v5654 = vunpack.c.h.b16 %v4654
    %v5655 = vunpack.c.l.b16 %v4655
    %v5656 = vunpack.c.h.b16 %v4655
    %v5657 = vunpack.c.l.b16 %v4656
    %v5658 = vunpack.c.h.b16 %v4656
    %v5659 = vunpack.c.l.b16 %v4657
    %v5660 = vunpack.c.h.b16 %v4657
    %v5661 = vunpack.c.l.b16 %v4658
    %v5662 = vunpack.c.h.b16 %v4658
    %v5663 = vunpack.c.l.b16 %v4659
    %v5664 = vunpack.c.h.b16 %v4659
    %v5665 = vunpack.c.l.b16 %v4660
    %v5666 = vunpack.c.h.b16 %v4660
    %v5667 = vunpack.c.l.b16 %v4661
    %v5668 = vunpack.c.h.b16 %v4661
    %v5669 = vunpack.c.l.b16 %v4662
    %v5670 = vunpack.c.h.b16 %v4662
    %v5671 = vunpack.c.l.b16 %v4663
    %v5672 = vunpack.c.h.b16 %v4663
    %v5673 = vunpack.c.l.b16 %v4664
    %v5674 = vunpack.c.h.b16 %v4664
    %v5675 = vunpack.c.l.b16 %v4665
    %v5676 = vunpack.c.h.b16 %v4665
    %v5677 = vunpack.c.l.b16 %v4666
    %v5678 = vunpack.c.h.b16 %v4666
    %v5679 = vunpack.c.l.b16 %v4667
    %v5680 = vunpack.c.h.b16 %v4667
    %v5681 = vunpack.c.l.b16 %v4668
    %v5682 = vunpack.c.h.b16 %v4668
    %v5683 = vunpack.c.l.b16 %v4669
    %v5684 = vunpack.c.h.b16 %v4669
    %v5685 = vunpack.c.l.b16 %v4670
    %v5686 = vunpack.c.h.b16 %v4670
    %v5687 = vunpack.c.l.b16 %v4671
    %v5688 = vunpack.c.h.b16 %v4671
    %v5689 = vunpack.c.l.b16 %v4672
    %v5690 = vunpack.c.h.b16 %v4672
    %v5691 = vunpack.c.l.b16 %v4673
    %v5692 = vunpack.c.h.b16 %v4673
    %v5693 = vunpack.c.l.b16 %v4674
    %v5694 = vunpack.c.h.b16 %v4674
    %v5695 = vunpack.c.l.b16 %v4675
    %v5696 = vunpack.c.h.b16 %v4675
    %v5697 = vunpack.c.l.b16 %v4676
    %v5698 = vunpack.c.h.b16 %v4676
    %v5699 = vunpack.c.l.b16 %v4677
    %v5700 = vunpack.c.h.b16 %v4677
    %v5701 = vunpack.c.l.b16 %v4678
    %v5702 = vunpack.c.h.b16 %v4678
    %v5703 = vunpack.c.l.b16 %v4679
    %v5704 = vunpack.c.h.b16 %v4679
    %v5705 = vunpack.c.l.b16 %v4680
    %v5706 = vunpack.c.h.b16 %v4680
    %v5707 = vunpack.c.l.b16 %v4681
    %v5708 = vunpack.c.h.b16 %v4681
    %v5709 = vunpack.c.l.b16 %v4682
    %v5710 = vunpack.c.h.b16 %v4682
    %v5711 = vunpack.c.l.b16 %v4683
    %v5712 = vunpack.c.h.b16 %v4683
    %v5713 = vunpack.c.l.b16 %v4684
    %v5714 = vunpack.c.h.b16 %v4684
    %v5715 = vunpack.c.l.b16 %v4685
    %v5716 = vunpack.c.h.b16 %v4685
    %v5717 = vunpack.c.l.b16 %v4686
    %v5718 = vunpack.c.h.b16 %v4686
    %v5719 = vunpack.c.l.b16 %v4687
    %v5720 = vunpack.c.h.b16 %v4687
    %v5721 = vunpack.c.l.b16 %v4688
    %v5722 = vunpack.c.h.b16 %v4688
    %v5723 = vunpack.c.l.b16 %v4689
    %v5724 = vunpack.c.h.b16 %v4689
    %v5725 = vunpack.c.l.b16 %v4690
    %v5726 = vunpack.c.h.b16 %v4690
    %v5727 = vunpack.c.l.b16 %v4691
    %v5728 = vunpack.c.h.b16 %v4691
    %v5729 = vunpack.c.l.b16 %v4692
    %v5730 = vunpack.c.h.b16 %v4692
    %v5731 = vunpack.c.l.b16 %v4693
    %v5732 = vunpack.c.h.b16 %v4693
    %v5733 = vunpack.c.l.b16 %v4694
    %v5734 = vunpack.c.h.b16 %v4694
    %v5735 = vunpack.c.l.b16 %v4695
    %v5736 = vunpack.c.h.b16 %v4695
    %v5737 = vunpack.c.l.b16 %v4696
    %v5738 = vunpack.c.h.b16 %v4696
    %v5739 = vunpack.c.l.b16 %v4697
    %v5740 = vunpack.c.h.b16 %v4697
    %v5741 = vunpack.c.l.b16 %v4698
    %v5742 = vunpack.c.h.b16 %v4698
    %v5743 = vunpack.c.l.b16 %v4699
    %v5744 = vunpack.c.h.b16 %v4699
    %v5745 = vunpack.c.l.b16 %v4700
    %v5746 = vunpack.c.h.b16 %v4700
    %v5747 = vunpack.c.l.b16 %v4701
    %v5748 = vunpack.c.h.b16 %v4701
    %v5749 = vunpack.c.l.b16 %v4702
    %v5750 = vunpack.c.h.b16 %v4702
    %v5751 = vunpack.c.l.b16 %v4703
    %v5752 = vunpack.c.h.b16 %v4703
    %v5753 = vunpack.c.l.b16 %v4704
    %v5754 = vunpack.c.h.b16 %v4704
    %v5755 = vunpack.c.l.b16 %v4705
    %v5756 = vunpack.c.h.b16 %v4705
    %v5757 = vunpack.c.l.b16 %v4706
    %v5758 = vunpack.c.h.b16 %v4706
    %v5759 = vunpack.c.l.b16 %v4707
    %v5760 = vunpack.c.h.b16 %v4707
    %v5761 = vunpack.c.l.b16 %v4708
    %v5762 = vunpack.c.h.b16 %v4708
    %v5763 = vunpack.c.l.b16 %v4709
    %v5764 = vunpack.c.h.b16 %v4709
    %v5765 = vunpack.c.l.b16 %v4710
    %v5766 = vunpack.c.h.b16 %v4710
    %v5767 = vunpack.c.l.b16 %v4711
    %v5768 = vunpack.c.h.b16 %v4711
    %v5769 = vunpack.c.l.b16 %v4712
    %v5770 = vunpack.c.h.b16 %v4712
    %v5771 = vunpack.c.l.b16 %v4713
    %v5772 = vunpack.c.h.b16 %v4713
    %v5773 = vunpack.c.l.b16 %v4714
    %v5774 = vunpack.c.h.b16 %v4714
    %v5775 = vunpack.c.l.b16 %v4715
    %v5776 = vunpack.c.h.b16 %v4715
    %v5777 = vunpack.c.l.b16 %v4716
    %v5778 = vunpack.c.h.b16 %v4716
    %v5779 = vunpack.c.l.b16 %v4717
    %v5780 = vunpack.c.h.b16 %v4717
    %v5781 = vunpack.c.l.b16 %v4718
    %v5782 = vunpack.c.h.b16 %v4718
    %v5783 = vunpack.c.l.b16 %v4719
    %v5784 = vunpack.c.h.b16 %v4719
    %v5785 = vunpack.c.l.b16 %v4720
    %v5786 = vunpack.c.h.b16 %v4720
    %v5787 = vunpack.c.l.b16 %v4721
    %v5788 = vunpack.c.h.b16 %v4721
    %v5789 = vunpack.c.l.b16 %v4722
    %v5790 = vunpack.c.h.b16 %v4722
    %v5791 = vunpack.c.l.b16 %v4723
    %v5792 = vunpack.c.h.b16 %v4723
    %v5793 = vunpack.c.l.b16 %v4724
    %v5794 = vunpack.c.h.b16 %v4724
    %v5795 = vunpack.c.l.b16 %v4725
    %v5796 = vunpack.c.h.b16 %v4725
    %v5797 = vunpack.c.l.b16 %v4726
    %v5798 = vunpack.c.h.b16 %v4726
    %v5799 = vunpack.c.l.b16 %v4727
    %v5800 = vunpack.c.h.b16 %v4727
    %v5801 = vunpack.c.l.b16 %v4728
    %v5802 = vunpack.c.h.b16 %v4728
    %v5803 = vunpack.c.l.b16 %v4729
    %v5804 = vunpack.c.h.b16 %v4729
    %v5805 = vunpack.c.l.b16 %v4730
    %v5806 = vunpack.c.h.b16 %v4730
    %v5807 = vunpack.c.l.b16 %v4731
    %v5808 = vunpack.c.h.b16 %v4731
    %v5809 = vunpack.c.l.b16 %v4732
    %v5810 = vunpack.c.h.b16 %v4732
    %v5811 = vunpack.c.l.b16 %v4733
    %v5812 = vunpack.c.h.b16 %v4733
    %v5813 = vunpack.c.l.b16 %v4734
    %v5814 = vunpack.c.h.b16 %v4734
    %v5815 = vunpack.c.l.b16 %v4735
    %v5816 = vunpack.c.h.b16 %v4735
    %v5817 = vunpack.c.l.b16 %v4736
    %v5818 = vunpack.c.h.b16 %v4736
    %v5819 = vunpack.c.l.b16 %v4737
    %v5820 = vunpack.c.h.b16 %v4737
    %v5821 = vunpack.c.l.b16 %v4738
    %v5822 = vunpack.c.h.b16 %v4738
    %v5823 = vunpack.c.l.b16 %v4739
    %v5824 = vunpack.c.h.b16 %v4739
    %v5825 = vunpack.c.l.b16 %v4740
    %v5826 = vunpack.c.h.b16 %v4740
    %v5827 = vunpack.c.l.b16 %v4741
    %v5828 = vunpack.c.h.b16 %v4741
    %v5829 = vunpack.c.l.b16 %v4742
    %v5830 = vunpack.c.h.b16 %v4742
    %v5831 = vunpack.c.l.b16 %v4743
    %v5832 = vunpack.c.h.b16 %v4743
    %v5833 = vunpack.c.l.b16 %v4744
    %v5834 = vunpack.c.h.b16 %v4744
    %v5835 = vunpack.c.l.b16 %v4745
    %v5836 = vunpack.c.h.b16 %v4745
    %v5837 = vunpack.c.l.b16 %v4746
    %v5838 = vunpack.c.h.b16 %v4746
    %v5839 = vunpack.c.l.b16 %v4747
    %v5840 = vunpack.c.h.b16 %v4747
    %v5841 = vunpack.c.l.b16 %v4748
    %v5842 = vunpack.c.h.b16 %v4748
    %v5843 = vunpack.c.l.b16 %v4749
    %v5844 = vunpack.c.h.b16 %v4749
    %v5845 = vunpack.c.l.b16 %v4750
    %v5846 = vunpack.c.h.b16 %v4750
    %v5847 = vunpack.c.l.b16 %v4751
    %v5848 = vunpack.c.h.b16 %v4751
    %v5849 = vunpack.c.l.b16 %v4752
    %v5850 = vunpack.c.h.b16 %v4752
    %v5851 = vunpack.c.l.b16 %v4753
    %v5852 = vunpack.c.h.b16 %v4753
    %v5853 = vunpack.c.l.b16 %v4754
    %v5854 = vunpack.c.h.b16 %v4754
    %v5855 = vunpack.c.l.b16 %v4755
    %v5856 = vunpack.c.h.b16 %v4755
    %v5857 = vunpack.c.l.b16 %v4756
    %v5858 = vunpack.c.h.b16 %v4756
    %v5859 = vunpack.c.l.b16 %v4757
    %v5860 = vunpack.c.h.b16 %v4757
    %v5861 = vunpack.c.l.b16 %v4758
    %v5862 = vunpack.c.h.b16 %v4758
    %v5863 = vunpack.c.l.b16 %v4759
    %v5864 = vunpack.c.h.b16 %v4759
    %v5865 = vunpack.c.l.b16 %v4760
    %v5866 = vunpack.c.h.b16 %v4760
    %v5867 = vunpack.c.l.b16 %v4761
    %v5868 = vunpack.c.h.b16 %v4761
    %v5869 = vunpack.c.l.b16 %v4762
    %v5870 = vunpack.c.h.b16 %v4762
    %v5871 = vunpack.c.l.b16 %v4763
    %v5872 = vunpack.c.h.b16 %v4763
    %v5873 = vunpack.c.l.b16 %v4764
    %v5874 = vunpack.c.h.b16 %v4764
    %v5875 = vunpack.c.l.b16 %v4765
    %v5876 = vunpack.c.h.b16 %v4765
    %v5877 = vunpack.c.l.b16 %v4766
    %v5878 = vunpack.c.h.b16 %v4766
    %v5879 = vunpack.c.l.b16 %v4767
    %v5880 = vunpack.c.h.b16 %v4767
    %v5881 = vunpack.c.l.b16 %v4768
    %v5882 = vunpack.c.h.b16 %v4768
    %v5883 = vunpack.c.l.b16 %v4769
    %v5884 = vunpack.c.h.b16 %v4769
    %v5885 = vunpack.c.l.b16 %v4770
    %v5886 = vunpack.c.h.b16 %v4770
    %v5887 = vunpack.c.l.b16 %v4771
    %v5888 = vunpack.c.h.b16 %v4771
    %v5889 = vunpack.c.l.b16 %v4772
    %v5890 = vunpack.c.h.b16 %v4772
    %v5891 = vunpack.c.l.b16 %v4773
    %v5892 = vunpack.c.h.b16 %v4773
    %v5893 = vunpack.c.l.b16 %v4774
    %v5894 = vunpack.c.h.b16 %v4774
    %v5895 = vunpack.c.l.b16 %v4775
    %v5896 = vunpack.c.h.b16 %v4775
    %v5897 = vunpack.c.l.b16 %v4776
    %v5898 = vunpack.c.h.b16 %v4776
    %v5899 = vunpack.c.l.b16 %v4777
    %v5900 = vunpack.c.h.b16 %v4777
    %v5901 = vunpack.c.l.b16 %v4778
    %v5902 = vunpack.c.h.b16 %v4778
    %v5903 = vunpack.c.l.b16 %v4779
    %v5904 = vunpack.c.h.b16 %v4779
    %v5905 = vunpack.c.l.b16 %v4780
    %v5906 = vunpack.c.h.b16 %v4780
    %v5907 = vunpack.c.l.b16 %v4781
    %v5908 = vunpack.c.h.b16 %v4781
    %v5909 = vunpack.c.l.b16 %v4782
    %v5910 = vunpack.c.h.b16 %v4782
    %v5911 = vunpack.c.l.b16 %v4783
    %v5912 = vunpack.c.h.b16 %v4783
    %v5913 = vunpack.c.l.b16 %v4784
    %v5914 = vunpack.c.h.b16 %v4784
    %v5915 = vunpack.c.l.b16 %v4785
    %v5916 = vunpack.c.h.b16 %v4785
    %v5917 = vunpack.c.l.b16 %v4786
    %v5918 = vunpack.c.h.b16 %v4786
    %v5919 = vunpack.c.l.b16 %v4787
    %v5920 = vunpack.c.h.b16 %v4787
    %v5921 = vunpack.c.l.b16 %v4788
    %v5922 = vunpack.c.h.b16 %v4788
    %v5923 = vunpack.c.l.b16 %v4789
    %v5924 = vunpack.c.h.b16 %v4789
    %v5925 = vunpack.c.l.b16 %v4790
    %v5926 = vunpack.c.h.b16 %v4790
    %v5927 = vunpack.c.l.b16 %v4791
    %v5928 = vunpack.c.h.b16 %v4791
    %v5929 = vunpack.c.l.b16 %v4792
    %v5930 = vunpack.c.h.b16 %v4792
    %v5931 = vunpack.c.l.b16 %v4793
    %v5932 = vunpack.c.h.b16 %v4793
    %v5933 = vunpack.c.l.b16 %v4794
    %v5934 = vunpack.c.h.b16 %v4794
    %v5935 = vunpack.c.l.b16 %v4795
    %v5936 = vunpack.c.h.b16 %v4795
    %v5937 = vunpack.c.l.b16 %v4796
    %v5938 = vunpack.c.h.b16 %v4796
    %v5939 = vunpack.c.l.b16 %v4797
    %v5940 = vunpack.c.h.b16 %v4797
    %v5941 = vunpack.c.l.b16 %v4798
    %v5942 = vunpack.c.h.b16 %v4798
    %v5943 = vunpack.c.l.b16 %v4799
    %v5944 = vunpack.c.h.b16 %v4799
    %v5945 = vunpack.c.l.b16 %v4800
    %v5946 = vunpack.c.h.b16 %v4800
    %v5947 = vunpack.c.l.b16 %v4801
    %v5948 = vunpack.c.h.b16 %v4801
    %v5949 = vunpack.c.l.b16 %v4802
    %v5950 = vunpack.c.h.b16 %v4802
    %v5951 = vunpack.c.l.b16 %v4803
    %v5952 = vunpack.c.h.b16 %v4803
    %v5953 = vunpack.c.l.b16 %v4804
    %v5954 = vunpack.c.h.b16 %v4804
    %v5955 = vunpack.c.l.b16 %v4805
    %v5956 = vunpack.c.h.b16 %v4805
    %v5957 = vunpack.c.l.b16 %v4806
    %v5958 = vunpack.c.h.b16 %v4806
    %v5959 = vpack.c.b16 %v5197, %v5191
    %v5960 = vpack.c.b16 %v5198, %v5192
    %v5961 = vpack.c.b16 %v5199, %v5193
    %v5962 = vpack.c.b16 %v5200, %v5194
    %v5963 = vpack.c.b16 %v5201, %v5195
    %v5964 = vpack.c.b16 %v5202, %v5196
    %v5965 = vpack.c.b16 %v5209, %v5203
    %v5966 = vpack.c.b16 %v5210, %v5204
    %v5967 = vpack.c.b16 %v5211, %v5205
    %v5968 = vpack.c.b16 %v5212, %v5206
    %v5969 = vpack.c.b16 %v5213, %v5207
    %v5970 = vpack.c.b16 %v5214, %v5208
    %v5971 = vpack.c.b16 %v5221, %v5215
    %v5972 = vpack.c.b16 %v5222, %v5216
    %v5973 = vpack.c.b16 %v5223, %v5217
    %v5974 = vpack.c.b16 %v5224, %v5218
    %v5975 = vpack.c.b16 %v5225, %v5219
    %v5976 = vpack.c.b16 %v5226, %v5220
    %v5977 = vpack.c.b16 %v5233, %v5227
    %v5978 = vpack.c.b16 %v5234, %v5228
    %v5979 = vpack.c.b16 %v5235, %v5229
    %v5980 = vpack.c.b16 %v5236, %v5230
    %v5981 = vpack.c.b16 %v5237, %v5231
    %v5982 = vpack.c.b16 %v5238, %v5232
    %v5983 = vpack.c.b16 %v5245, %v5239
    %v5984 = vpack.c.b16 %v5246, %v5240
    %v5985 = vpack.c.b16 %v5247, %v5241
    %v5986 = vpack.c.b16 %v5248, %v5242
    %v5987 = vpack.c.b16 %v5249, %v5243
    %v5988 = vpack.c.b16 %v5250, %v5244
    %v5989 = vpack.c.b16 %v5257, %v5251
    %v5990 = vpack.c.b16 %v5258, %v5252
    %v5991 = vpack.c.b16 %v5259, %v5253
    %v5992 = vpack.c.b16 %v5260, %v5254
    %v5993 = vpack.c.b16 %v5261, %v5255
    %v5994 = vpack.c.b16 %v5262, %v5256
    %v5995 = vpack.c.b16 %v5269, %v5263
    %v5996 = vpack.c.b16 %v5270, %v5264
    %v5997 = vpack.c.b16 %v5271, %v5265
    %v5998 = vpack.c.b16 %v5272, %v5266
    %v5999 = vpack.c.b16 %v5273, %v5267
    %v6000 = vpack.c.b16 %v5274, %v5268
    %v6001 = vpack.c.b16 %v5281, %v5275
    %v6002 = vpack.c.b16 %v5282, %v5276
    %v6003 = vpack.c.b16 %v5283, %v5277
    %v6004 = vpack.c.b16 %v5284, %v5278
    %v6005 = vpack.c.b16 %v5285, %v5279
    %v6006 = vpack.c.b16 %v5286, %v5280
    %v6007 = vpack.c.b16 %v5293, %v5287
    %v6008 = vpack.c.b16 %v5294, %v5288
    %v6009 = vpack.c.b16 %v5295, %v5289
    %v6010 = vpack.c.b16 %v5296, %v5290
    %v6011 = vpack.c.b16 %v5297, %v5291
    %v6012 = vpack.c.b16 %v5298, %v5292
    %v6013 = vpack.c.b16 %v5305, %v5299
    %v6014 = vpack.c.b16 %v5306, %v5300
    %v6015 = vpack.c.b16 %v5307, %v5301
    %v6016 = vpack.c.b16 %v5308, %v5302
    %v6017 = vpack.c.b16 %v5309, %v5303
    %v6018 = vpack.c.b16 %v5310, %v5304
    %v6019 = vpack.c.b16 %v5317, %v5311
    %v6020 = vpack.c.b16 %v5318, %v5312
    %v6021 = vpack.c.b16 %v5319, %v5313
    %v6022 = vpack.c.b16 %v5320, %v5314
    %v6023 = vpack.c.b16 %v5321, %v5315
    %v6024 = vpack.c.b16 %v5322, %v5316
    %v6025 = vpack.c.b16 %v5329, %v5323
    %v6026 = vpack.c.b16 %v5330, %v5324
    %v6027 = vpack.c.b16 %v5331, %v5325
    %v6028 = vpack.c.b16 %v5332, %v5326
    %v6029 = vpack.c.b16 %v5333, %v5327
    %v6030 = vpack.c.b16 %v5334, %v5328
    %v6031 = vpack.c.b16 %v5341, %v5335
    %v6032 = vpack.c.b16 %v5342, %v5336
    %v6033 = vpack.c.b16 %v5343, %v5337
    %v6034 = vpack.c.b16 %v5344, %v5338
    %v6035 = vpack.c.b16 %v5345, %v5339
    %v6036 = vpack.c.b16 %v5346, %v5340
    %v6037 = vpack.c.b16 %v5353, %v5347
    %v6038 = vpack.c.b16 %v5354, %v5348
    %v6039 = vpack.c.b16 %v5355, %v5349
    %v6040 = vpack.c.b16 %v5356, %v5350
    %v6041 = vpack.c.b16 %v5357, %v5351
    %v6042 = vpack.c.b16 %v5358, %v5352
    %v6043 = vpack.c.b16 %v5365, %v5359
    %v6044 = vpack.c.b16 %v5366, %v5360
    %v6045 = vpack.c.b16 %v5367, %v5361
    %v6046 = vpack.c.b16 %v5368, %v5362
    %v6047 = vpack.c.b16 %v5369, %v5363
    %v6048 = vpack.c.b16 %v5370, %v5364
    %v6049 = vpack.c.b16 %v5377, %v5371
    %v6050 = vpack.c.b16 %v5378, %v5372
    %v6051 = vpack.c.b16 %v5379, %v5373
    %v6052 = vpack.c.b16 %v5380, %v5374
    %v6053 = vpack.c.b16 %v5381, %v5375
    %v6054 = vpack.c.b16 %v5382, %v5376
    %v6055 = vpack.c.b16 %v5389, %v5383
    %v6056 = vpack.c.b16 %v5390, %v5384
    %v6057 = vpack.c.b16 %v5391, %v5385
    %v6058 = vpack.c.b16 %v5392, %v5386
    %v6059 = vpack.c.b16 %v5393, %v5387
    %v6060 = vpack.c.b16 %v5394, %v5388
    %v6061 = vpack.c.b16 %v5401, %v5395
    %v6062 = vpack.c.b16 %v5402, %v5396
    %v6063 = vpack.c.b16 %v5403, %v5397
    %v6064 = vpack.c.b16 %v5404, %v5398
    %v6065 = vpack.c.b16 %v5405, %v5399
    %v6066 = vpack.c.b16 %v5406, %v5400
    %v6067 = vpack.c.b16 %v5413, %v5407
    %v6068 = vpack.c.b16 %v5414, %v5408
    %v6069 = vpack.c.b16 %v5415, %v5409
    %v6070 = vpack.c.b16 %v5416, %v5410
    %v6071 = vpack.c.b16 %v5417, %v5411
    %v6072 = vpack.c.b16 %v5418, %v5412
    %v6073 = vpack.c.b16 %v5425, %v5419
    %v6074 = vpack.c.b16 %v5426, %v5420
    %v6075 = vpack.c.b16 %v5427, %v5421
    %v6076 = vpack.c.b16 %v5428, %v5422
    %v6077 = vpack.c.b16 %v5429, %v5423
    %v6078 = vpack.c.b16 %v5430, %v5424
    %v6079 = vpack.c.b16 %v5437, %v5431
    %v6080 = vpack.c.b16 %v5438, %v5432
    %v6081 = vpack.c.b16 %v5439, %v5433
    %v6082 = vpack.c.b16 %v5440, %v5434
    %v6083 = vpack.c.b16 %v5441, %v5435
    %v6084 = vpack.c.b16 %v5442, %v5436
    %v6085 = vpack.c.b16 %v5449, %v5443
    %v6086 = vpack.c.b16 %v5450, %v5444
    %v6087 = vpack.c.b16 %v5451, %v5445
    %v6088 = vpack.c.b16 %v5452, %v5446
    %v6089 = vpack.c.b16 %v5453, %v5447
    %v6090 = vpack.c.b16 %v5454, %v5448
    %v6091 = vpack.c.b16 %v5461, %v5455
    %v6092 = vpack.c.b16 %v5462, %v5456
    %v6093 = vpack.c.b16 %v5463, %v5457
    %v6094 = vpack.c.b16 %v5464, %v5458
    %v6095 = vpack.c.b16 %v5465, %v5459
    %v6096 = vpack.c.b16 %v5466, %v5460
    %v6097 = vpack.c.b16 %v5473, %v5467
    %v6098 = vpack.c.b16 %v5474, %v5468
    %v6099 = vpack.c.b16 %v5475, %v5469
    %v6100 = vpack.c.b16 %v5476, %v5470
    %v6101 = vpack.c.b16 %v5477, %v5471
    %v6102 = vpack.c.b16 %v5478, %v5472
    %v6103 = vpack.c.b16 %v5485, %v5479
    %v6104 = vpack.c.b16 %v5486, %v5480
    %v6105 = vpack.c.b16 %v5487, %v5481
    %v6106 = vpack.c.b16 %v5488, %v5482
    %v6107 = vpack.c.b16 %v5489, %v5483
    %v6108 = vpack.c.b16 %v5490, %v5484
    %v6109 = vpack.c.b16 %v5497, %v5491
    %v6110 = vpack.c.b16 %v5498, %v5492
    %v6111 = vpack.c.b16 %v5499, %v5493
    %v6112 = vpack.c.b16 %v5500, %v5494
    %v6113 = vpack.c.b16 %v5501, %v5495
    %v6114 = vpack.c.b16 %v5502, %v5496
    %v6115 = vpack.c.b16 %v5509, %v5503
    %v6116 = vpack.c.b16 %v5510, %v5504
    %v6117 = vpack.c.b16 %v5511, %v5505
    %v6118 = vpack.c.b16 %v5512, %v5506
    %v6119 = vpack.c.b16 %v5513, %v5507
    %v6120 = vpack.c.b16 %v5514, %v5508
    %v6121 = vpack.c.b16 %v5521, %v5515
    %v6122 = vpack.c.b16 %v5522, %v5516
    %v6123 = vpack.c.b16 %v5523, %v5517
    %v6124 = vpack.c.b16 %v5524, %v5518
    %v6125 = vpack.c.b16 %v5525, %v5519
    %v6126 = vpack.c.b16 %v5526, %v5520
    %v6127 = vpack.c.b16 %v5533, %v5527
    %v6128 = vpack.c.b16 %v5534, %v5528
    %v6129 = vpack.c.b16 %v5535, %v5529
    %v6130 = vpack.c.b16 %v5536, %v5530
    %v6131 = vpack.c.b16 %v5537, %v5531
    %v6132 = vpack.c.b16 %v5538, %v5532
    %v6133 = vpack.c.b16 %v5545, %v5539
    %v6134 = vpack.c.b16 %v5546, %v5540
    %v6135 = vpack.c.b16 %v5547, %v5541
    %v6136 = vpack.c.b16 %v5548, %v5542
    %v6137 = vpack.c.b16 %v5549, %v5543
    %v6138 = vpack.c.b16 %v5550, %v5544
    %v6139 = vpack.c.b16 %v5557, %v5551
    %v6140 = vpack.c.b16 %v5558, %v5552
    %v6141 = vpack.c.b16 %v5559, %v5553
    %v6142 = vpack.c.b16 %v5560, %v5554
    %v6143 = vpack.c.b16 %v5561, %v5555
    %v6144 = vpack.c.b16 %v5562, %v5556
    %v6145 = vpack.c.b16 %v5569, %v5563
    %v6146 = vpack.c.b16 %v5570, %v5564
    %v6147 = vpack.c.b16 %v5571, %v5565
    %v6148 = vpack.c.b16 %v5572, %v5566
    %v6149 = vpack.c.b16 %v5573, %v5567
    %v6150 = vpack.c.b16 %v5574, %v5568
    %v6151 = vpack.c.b16 %v5581, %v5575
    %v6152 = vpack.c.b16 %v5582, %v5576
    %v6153 = vpack.c.b16 %v5583, %v5577
    %v6154 = vpack.c.b16 %v5584, %v5578
    %v6155 = vpack.c.b16 %v5585, %v5579
    %v6156 = vpack.c.b16 %v5586, %v5580
    %v6157 = vpack.c.b16 %v5593, %v5587
    %v6158 = vpack.c.b16 %v5594, %v5588
    %v6159 = vpack.c.b16 %v5595, %v5589
    %v6160 = vpack.c.b16 %v5596, %v5590
    %v6161 = vpack.c.b16 %v5597, %v5591
    %v6162 = vpack.c.b16 %v5598, %v5592
    %v6163 = vpack.c.b16 %v5605, %v5599
    %v6164 = vpack.c.b16 %v5606, %v5600
    %v6165 = vpack.c.b16 %v5607, %v5601
    %v6166 = vpack.c.b16 %v5608, %v5602
    %v6167 = vpack.c.b16 %v5609, %v5603
    %v6168 = vpack.c.b16 %v5610, %v5604
    %v6169 = vpack.c.b16 %v5617, %v5611
    %v6170 = vpack.c.b16 %v5618, %v5612
    %v6171 = vpack.c.b16 %v5619, %v5613
    %v6172 = vpack.c.b16 %v5620, %v5614
    %v6173 = vpack.c.b16 %v5621, %v5615
    %v6174 = vpack.c.b16 %v5622, %v5616
    %v6175 = vpack.c.b16 %v5629, %v5623
    %v6176 = vpack.c.b16 %v5630, %v5624
    %v6177 = vpack.c.b16 %v5631, %v5625
    %v6178 = vpack.c.b16 %v5632, %v5626
    %v6179 = vpack.c.b16 %v5633, %v5627
    %v6180 = vpack.c.b16 %v5634, %v5628
    %v6181 = vpack.c.b16 %v5641, %v5635
    %v6182 = vpack.c.b16 %v5642, %v5636
    %v6183 = vpack.c.b16 %v5643, %v5637
    %v6184 = vpack.c.b16 %v5644, %v5638
    %v6185 = vpack.c.b16 %v5645, %v5639
    %v6186 = vpack.c.b16 %v5646, %v5640
    %v6187 = vpack.c.b16 %v5653, %v5647
    %v6188 = vpack.c.b16 %v5654, %v5648
    %v6189 = vpack.c.b16 %v5655, %v5649
    %v6190 = vpack.c.b16 %v5656, %v5650
    %v6191 = vpack.c.b16 %v5657, %v5651
    %v6192 = vpack.c.b16 %v5658, %v5652
    %v6193 = vpack.c.b16 %v5665, %v5659
    %v6194 = vpack.c.b16 %v5666, %v5660
    %v6195 = vpack.c.b16 %v5667, %v5661
    %v6196 = vpack.c.b16 %v5668, %v5662
    %v6197 = vpack.c.b16 %v5669, %v5663
    %v6198 = vpack.c.b16 %v5670, %v5664
    %v6199 = vpack.c.b16 %v5677, %v5671
    %v6200 = vpack.c.b16 %v5678, %v5672
    %v6201 = vpack.c.b16 %v5679, %v5673
    %v6202 = vpack.c.b16 %v5680, %v5674
    %v6203 = vpack.c.b16 %v5681, %v5675
    %v6204 = vpack.c.b16 %v5682, %v5676
    %v6205 = vpack.c.b16 %v5689, %v5683
    %v6206 = vpack.c.b16 %v5690, %v5684
    %v6207 = vpack.c.b16 %v5691, %v5685
    %v6208 = vpack.c.b16 %v5692, %v5686
    %v6209 = vpack.c.b16 %v5693, %v5687
    %v6210 = vpack.c.b16 %v5694, %v5688
    %v6211 = vpack.c.b16 %v5701, %v5695
    %v6212 = vpack.c.b16 %v5702, %v5696
    %v6213 = vpack.c.b16 %v5703, %v5697
    %v6214 = vpack.c.b16 %v5704, %v5698
    %v6215 = vpack.c.b16 %v5705, %v5699
    %v6216 = vpack.c.b16 %v5706, %v5700
    %v6217 = vpack.c.b16 %v5713, %v5707
    %v6218 = vpack.c.b16 %v5714, %v5708
    %v6219 = vpack.c.b16 %v5715, %v5709
    %v6220 = vpack.c.b16 %v5716, %v5710
    %v6221 = vpack.c.b16 %v5717, %v5711
    %v6222 = vpack.c.b16 %v5718, %v5712
    %v6223 = vpack.c.b16 %v5725, %v5719
    %v6224 = vpack.c.b16 %v5726, %v5720
    %v6225 = vpack.c.b16 %v5727, %v5721
    %v6226 = vpack.c.b16 %v5728, %v5722
    %v6227 = vpack.c.b16 %v5729, %v5723
    %v6228 = vpack.c.b16 %v5730, %v5724
    %v6229 = vpack.c.b16 %v5737, %v5731
    %v6230 = vpack.c.b16 %v5738, %v5732
    %v6231 = vpack.c.b16 %v5739, %v5733
    %v6232 = vpack.c.b16 %v5740, %v5734
    %v6233 = vpack.c.b16 %v5741, %v5735
    %v6234 = vpack.c.b16 %v5742, %v5736
    %v6235 = vpack.c.b16 %v5749, %v5743
    %v6236 = vpack.c.b16 %v5750, %v5744
    %v6237 = vpack.c.b16 %v5751, %v5745
    %v6238 = vpack.c.b16 %v5752, %v5746
    %v6239 = vpack.c.b16 %v5753, %v5747
    %v6240 = vpack.c.b16 %v5754, %v5748
    %v6241 = vpack.c.b16 %v5761, %v5755
    %v6242 = vpack.c.b16 %v5762, %v5756
    %v6243 = vpack.c.b16 %v5763, %v5757
    %v6244 = vpack.c.b16 %v5764, %v5758
    %v6245 = vpack.c.b16 %v5765, %v5759
    %v6246 = vpack.c.b16 %v5766, %v5760
    %v6247 = vpack.c.b16 %v5773, %v5767
    %v6248 = vpack.c.b16 %v5774, %v5768
    %v6249 = vpack.c.b16 %v5775, %v5769
    %v6250 = vpack.c.b16 %v5776, %v5770
    %v6251 = vpack.c.b16 %v5777, %v5771
    %v6252 = vpack.c.b16 %v5778, %v5772
    %v6253 = vpack.c.b16 %v5785, %v5779
    %v6254 = vpack.c.b16 %v5786, %v5780
    %v6255 = vpack.c.b16 %v5787, %v5781
    %v6256 = vpack.c.b16 %v5788, %v5782
    %v6257 = vpack.c.b16 %v5789, %v5783
    %v6258 = vpack.c.b16 %v5790, %v5784
    %v6259 = vpack.c.b16 %v5797, %v5791
    %v6260 = vpack.c.b16 %v5798, %v5792
    %v6261 = vpack.c.b16 %v5799, %v5793
    %v6262 = vpack.c.b16 %v5800, %v5794
    %v6263 = vpack.c.b16 %v5801, %v5795
    %v6264 = vpack.c.b16 %v5802, %v5796
    %v6265 = vpack.c.b16 %v5809, %v5803
    %v6266 = vpack.c.b16 %v5810, %v5804
    %v6267 = vpack.c.b16 %v5811, %v5805
    %v6268 = vpack.c.b16 %v5812, %v5806
    %v6269 = vpack.c.b16 %v5813, %v5807
    %v6270 = vpack.c.b16 %v5814, %v5808
    %v6271 = vpack.c.b16 %v5821, %v5815
    %v6272 = vpack.c.b16 %v5822, %v5816
    %v6273 = vpack.c.b16 %v5823, %v5817
    %v6274 = vpack.c.b16 %v5824, %v5818
    %v6275 = vpack.c.b16 %v5825, %v5819
    %v6276 = vpack.c.b16 %v5826, %v5820
    %v6277 = vpack.c.b16 %v5833, %v5827
    %v6278 = vpack.c.b16 %v5834, %v5828
    %v6279 = vpack.c.b16 %v5835, %v5829
    %v6280 = vpack.c.b16 %v5836, %v5830
    %v6281 = vpack.c.b16 %v5837, %v5831
    %v6282 = vpack.c.b16 %v5838, %v5832
    %v6283 = vpack.c.b16 %v5845, %v5839
    %v6284 = vpack.c.b16 %v5846, %v5840
    %v6285 = vpack.c.b16 %v5847, %v5841
    %v6286 = vpack.c.b16 %v5848, %v5842
    %v6287 = vpack.c.b16 %v5849, %v5843
    %v6288 = vpack.c.b16 %v5850, %v5844
    %v6289 = vpack.c.b16 %v5857, %v5851
    %v6290 = vpack.c.b16 %v5858, %v5852
    %v6291 = vpack.c.b16 %v5859, %v5853
    %v6292 = vpack.c.b16 %v5860, %v5854
    %v6293 = vpack.c.b16 %v5861, %v5855
    %v6294 = vpack.c.b16 %v5862, %v5856
    %v6295 = vpack.c.b16 %v5869, %v5863
    %v6296 = vpack.c.b16 %v5870, %v5864
    %v6297 = vpack.c.b16 %v5871, %v5865
    %v6298 = vpack.c.b16 %v5872, %v5866
    %v6299 = vpack.c.b16 %v5873, %v5867
    %v6300 = vpack.c.b16 %v5874, %v5868
    %v6301 = vpack.c.b16 %v5881, %v5875
    %v6302 = vpack.c.b16 %v5882, %v5876
    %v6303 = vpack.c.b16 %v5883, %v5877
    %v6304 = vpack.c.b16 %v5884, %v5878
    %v6305 = vpack.c.b16 %v5885, %v5879
    %v6306 = vpack.c.b16 %v5886, %v5880
    %v6307 = vpack.c.b16 %v5893, %v5887
    %v6308 = vpack.c.b16 %v5894, %v5888
    %v6309 = vpack.c.b16 %v5895, %v5889
    %v6310 = vpack.c.b16 %v5896, %v5890
    %v6311 = vpack.c.b16 %v5897, %v5891
    %v6312 = vpack.c.b16 %v5898, %v5892
    %v6313 = vpack.c.b16 %v5905, %v5899
    %v6314 = vpack.c.b16 %v5906, %v5900
    %v6315 = vpack.c.b16 %v5907, %v5901
    %v6316 = vpack.c.b16 %v5908, %v5902
    %v6317 = vpack.c.b16 %v5909, %v5903
    %v6318 = vpack.c.b16 %v5910, %v5904
    %v6319 = vpack.c.b16 %v5917, %v5911
    %v6320 = vpack.c.b16 %v5918, %v5912
    %v6321 = vpack.c.b16 %v5919, %v5913
    %v6322 = vpack.c.b16 %v5920, %v5914
    %v6323 = vpack.c.b16 %v5921, %v5915
    %v6324 = vpack.c.b16 %v5922, %v5916
    %v6325 = vpack.c.b16 %v5929, %v5923
    %v6326 = vpack.c.b16 %v5930, %v5924
    %v6327 = vpack.c.b16 %v5931, %v5925
    %v6328 = vpack.c.b16 %v5932, %v5926
    %v6329 = vpack.c.b16 %v5933, %v5927
    %v6330 = vpack.c.b16 %v5934, %v5928
    %v6331 = vpack.c.b16 %v5941, %v5935
    %v6332 = vpack.c.b16 %v5942, %v5936
    %v6333 = vpack.c.b16 %v5943, %v5937
    %v6334 = vpack.c.b16 %v5944, %v5938
    %v6335 = vpack.c.b16 %v5945, %v5939
    %v6336 = vpack.c.b16 %v5946, %v5940
    %v6337 = vpack.c.b16 %v5953, %v5947
    %v6338 = vpack.c.b16 %v5954, %v5948
    %v6339 = vpack.c.b16 %v5955, %v5949
    %v6340 = vpack.c.b16 %v5956, %v5950
    %v6341 = vpack.c.b16 %v5957, %v5951
    %v6342 = vpack.c.b16 %v5958, %v5952
    %6727 = vmatprep.subr.bf16.mxu0 %v6002
    %6728 = vmatpush1.bf16.msra.mxu0 %v6001
    %6729 = vmatprep.subr.bf16.mxu0 %v5996
    %6730 = vmatpush1.bf16.msra.mxu0 %v5995
    %6731 = vmatprep.subr.bf16.mxu0 %v5990
    %6732 = vmatpush1.bf16.msra.mxu0 %v5989
    %6733 = vmatprep.subr.bf16.mxu0 %v5984
    %6734 = vmatpush1.bf16.msra.mxu0 %v5983
    %6735 = vmatprep.subr.bf16.mxu0 %v5978
    %6736 = vmatpush1.bf16.msra.mxu0 %v5977
    %6737 = vmatprep.subr.bf16.mxu0 %v5972
    %6738 = vmatpush1.bf16.msra.mxu0 %v5971
    %6739 = vmatprep.subr.bf16.mxu0 %v5966
    %6740 = vmatpush1.bf16.msra.mxu0 %v5965
    %6741 = vmatprep.subr.bf16.mxu0 %v5960
    %6742 = vmatpush1.bf16.msra.mxu0 %v5959
    %6743 = vmatprep.subr.bf16.mxu0 %v6050
    %6744 = vmatpush2.bf16.msra.mxu0 %v6049
    %6745 = vmatprep.subr.bf16.mxu0 %v6044
    %6746 = vmatpush2.bf16.msra.mxu0 %v6043
    %6747 = vmatprep.subr.bf16.mxu0 %v6038
    %6748 = vmatpush2.bf16.msra.mxu0 %v6037
    %6749 = vmatprep.subr.bf16.mxu0 %v6032
    %6750 = vmatpush2.bf16.msra.mxu0 %v6031
    %6751 = vmatprep.subr.bf16.mxu0 %v6026
    %6752 = vmatpush2.bf16.msra.mxu0 %v6025
    %6753 = vmatprep.subr.bf16.mxu0 %v6020
    %6754 = vmatpush2.bf16.msra.mxu0 %v6019
    %6755 = vmatprep.subr.bf16.mxu0 %v6014
    %6756 = vmatpush2.bf16.msra.mxu0 %v6013
    %6757 = vmatprep.subr.bf16.mxu0 %v6008
    %6758 = vmatpush2.bf16.msra.mxu0 %v6007
    %6759 = vmatprep.mubr.bf16.mxu0 %v4416
    %6760 = vmatmul.mubr.bf16.gmra.mxu0 %v4415
    %v6761 = vpop.f32.mrf.mxu0
    %v6762 = vadd.f32 0.0, %v6761
    %v6763 = vpop.f32.mrf.mxu0
    %v6764 = vadd.f32 0.0, %v6763
    %v6765 = vpop.f32.mrf.mxu0
    %v6766 = vpop.f32.mrf.mxu0
    %6767 = vdwg.mxu0
    %6768 = vmatprep.subr.bf16.mxu0 %v6098
    %6769 = vmatpush1.bf16.msra.mxu0 %v6097
    %6770 = vmatprep.subr.bf16.mxu0 %v6092
    %6771 = vmatpush1.bf16.msra.mxu0 %v6091
    %6772 = vmatprep.subr.bf16.mxu0 %v6086
    %6773 = vmatpush1.bf16.msra.mxu0 %v6085
    %6774 = vmatprep.subr.bf16.mxu0 %v6080
    %6775 = vmatpush1.bf16.msra.mxu0 %v6079
    %6776 = vmatprep.subr.bf16.mxu0 %v6074
    %6777 = vmatpush1.bf16.msra.mxu0 %v6073
    %6778 = vmatprep.subr.bf16.mxu0 %v6068
    %6779 = vmatpush1.bf16.msra.mxu0 %v6067
    %6780 = vmatprep.subr.bf16.mxu0 %v6062
    %6781 = vmatpush1.bf16.msra.mxu0 %v6061
    %6782 = vmatprep.subr.bf16.mxu0 %v6056
    %6783 = vmatpush1.bf16.msra.mxu0 %v6055
    %6784 = vmatprep.subr.bf16.mxu0 %v6146
    %6785 = vmatpush2.bf16.msra.mxu0 %v6145
    %6786 = vmatprep.subr.bf16.mxu0 %v6140
    %6787 = vmatpush2.bf16.msra.mxu0 %v6139
    %6788 = vmatprep.subr.bf16.mxu0 %v6134
    %6789 = vmatpush2.bf16.msra.mxu0 %v6133
    %6790 = vmatprep.subr.bf16.mxu0 %v6128
    %6791 = vmatpush2.bf16.msra.mxu0 %v6127
    %6792 = vmatprep.subr.bf16.mxu0 %v6122
    %6793 = vmatpush2.bf16.msra.mxu0 %v6121
    %6794 = vmatprep.subr.bf16.mxu0 %v6116
    %6795 = vmatpush2.bf16.msra.mxu0 %v6115
    %6796 = vmatprep.subr.bf16.mxu0 %v6110
    %6797 = vmatpush2.bf16.msra.mxu0 %v6109
    %6798 = vmatprep.subr.bf16.mxu0 %v6104
    %6799 = vmatpush2.bf16.msra.mxu0 %v6103
    %6800 = vmatprep.mubr.bf16.mxu0 %v4418
    %6801 = vmatmul.mubr.bf16.gmra.mxu0 %v4417
    %v6802 = vpop.f32.mrf.mxu0
    %v6803 = vadd.f32 %v6762, %v6802
    %v6804 = vpop.f32.mrf.mxu0
    %v6805 = vadd.f32 %v6764, %v6804
    %v6806 = vpop.f32.mrf.mxu0
    %v6807 = vpop.f32.mrf.mxu0
    %6808 = vdwg.mxu0
    %6809 = vmatprep.subr.bf16.mxu0 %v6194
    %6810 = vmatpush1.bf16.msra.mxu0 %v6193
    %6811 = vmatprep.subr.bf16.mxu0 %v6188
    %6812 = vmatpush1.bf16.msra.mxu0 %v6187
    %6813 = vmatprep.subr.bf16.mxu0 %v6182
    %6814 = vmatpush1.bf16.msra.mxu0 %v6181
    %6815 = vmatprep.subr.bf16.mxu0 %v6176
    %6816 = vmatpush1.bf16.msra.mxu0 %v6175
    %6817 = vmatprep.subr.bf16.mxu0 %v6170
    %6818 = vmatpush1.bf16.msra.mxu0 %v6169
    %6819 = vmatprep.subr.bf16.mxu0 %v6164
    %6820 = vmatpush1.bf16.msra.mxu0 %v6163
    %6821 = vmatprep.subr.bf16.mxu0 %v6158
    %6822 = vmatpush1.bf16.msra.mxu0 %v6157
    %6823 = vmatprep.subr.bf16.mxu0 %v6152
    %6824 = vmatpush1.bf16.msra.mxu0 %v6151
    %6825 = vmatprep.subr.bf16.mxu0 %v6242
    %6826 = vmatpush2.bf16.msra.mxu0 %v6241
    %6827 = vmatprep.subr.bf16.mxu0 %v6236
    %6828 = vmatpush2.bf16.msra.mxu0 %v6235
    %6829 = vmatprep.subr.bf16.mxu0 %v6230
    %6830 = vmatpush2.bf16.msra.mxu0 %v6229
    %6831 = vmatprep.subr.bf16.mxu0 %v6224
    %6832 = vmatpush2.bf16.msra.mxu0 %v6223
    %6833 = vmatprep.subr.bf16.mxu0 %v6218
    %6834 = vmatpush2.bf16.msra.mxu0 %v6217
    %6835 = vmatprep.subr.bf16.mxu0 %v6212
    %6836 = vmatpush2.bf16.msra.mxu0 %v6211
    %6837 = vmatprep.subr.bf16.mxu0 %v6206
    %6838 = vmatpush2.bf16.msra.mxu0 %v6205
    %6839 = vmatprep.subr.bf16.mxu0 %v6200
    %6840 = vmatpush2.bf16.msra.mxu0 %v6199
    %6841 = vmatprep.mubr.bf16.mxu0 %v4420
    %6842 = vmatmul.mubr.bf16.gmra.mxu0 %v4419
    %v6843 = vpop.f32.mrf.mxu0
    %v6844 = vadd.f32 %v6803, %v6843
    %v6845 = vpop.f32.mrf.mxu0
    %v6846 = vadd.f32 %v6805, %v6845
    %v6847 = vpop.f32.mrf.mxu0
    %v6848 = vpop.f32.mrf.mxu0
    %6849 = vdwg.mxu0
    %6850 = vmatprep.subr.bf16.mxu0 %v6290
    %6851 = vmatpush1.bf16.msra.mxu0 %v6289
    %6852 = vmatprep.subr.bf16.mxu0 %v6284
    %6853 = vmatpush1.bf16.msra.mxu0 %v6283
    %6854 = vmatprep.subr.bf16.mxu0 %v6278
    %6855 = vmatpush1.bf16.msra.mxu0 %v6277
    %6856 = vmatprep.subr.bf16.mxu0 %v6272
    %6857 = vmatpush1.bf16.msra.mxu0 %v6271
    %6858 = vmatprep.subr.bf16.mxu0 %v6266
    %6859 = vmatpush1.bf16.msra.mxu0 %v6265
    %6860 = vmatprep.subr.bf16.mxu0 %v6260
    %6861 = vmatpush1.bf16.msra.mxu0 %v6259
    %6862 = vmatprep.subr.bf16.mxu0 %v6254
    %6863 = vmatpush1.bf16.msra.mxu0 %v6253
    %6864 = vmatprep.subr.bf16.mxu0 %v6248
    %6865 = vmatpush1.bf16.msra.mxu0 %v6247
    %6866 = vmatprep.subr.bf16.mxu0 %v6338
    %6867 = vmatpush2.bf16.msra.mxu0 %v6337
    %6868 = vmatprep.subr.bf16.mxu0 %v6332
    %6869 = vmatpush2.bf16.msra.mxu0 %v6331
    %6870 = vmatprep.subr.bf16.mxu0 %v6326
    %6871 = vmatpush2.bf16.msra.mxu0 %v6325
    %6872 = vmatprep.subr.bf16.mxu0 %v6320
    %6873 = vmatpush2.bf16.msra.mxu0 %v6319
    %6874 = vmatprep.subr.bf16.mxu0 %v6314
    %6875 = vmatpush2.bf16.msra.mxu0 %v6313
    %6876 = vmatprep.subr.bf16.mxu0 %v6308
    %6877 = vmatpush2.bf16.msra.mxu0 %v6307
    %6878 = vmatprep.subr.bf16.mxu0 %v6302
    %6879 = vmatpush2.bf16.msra.mxu0 %v6301
    %6880 = vmatprep.subr.bf16.mxu0 %v6296
    %6881 = vmatpush2.bf16.msra.mxu0 %v6295
    %6882 = vmatprep.mubr.bf16.mxu0 %v4422
    %6883 = vmatmul.mubr.bf16.gmra.mxu0 %v4421
    %v6884 = vpop.f32.mrf.mxu0
    %v6885 = vadd.f32 %v6844, %v6884
    %v6886 = vpop.f32.mrf.mxu0
    %v6887 = vadd.f32 %v6846, %v6886
    %v6888 = vpop.f32.mrf.mxu0
    %v6889 = vpop.f32.mrf.mxu0
    %6890 = vdwg.mxu0
    %6891 = vmatprep.subr.bf16.mxu0 %v6004
    %6892 = vmatpush1.bf16.msra.mxu0 %v6003
    %6893 = vmatprep.subr.bf16.mxu0 %v5998
    %6894 = vmatpush1.bf16.msra.mxu0 %v5997
    %6895 = vmatprep.subr.bf16.mxu0 %v5992
    %6896 = vmatpush1.bf16.msra.mxu0 %v5991
    %6897 = vmatprep.subr.bf16.mxu0 %v5986
    %6898 = vmatpush1.bf16.msra.mxu0 %v5985
    %6899 = vmatprep.subr.bf16.mxu0 %v5980
    %6900 = vmatpush1.bf16.msra.mxu0 %v5979
    %6901 = vmatprep.subr.bf16.mxu0 %v5974
    %6902 = vmatpush1.bf16.msra.mxu0 %v5973
    %6903 = vmatprep.subr.bf16.mxu0 %v5968
    %6904 = vmatpush1.bf16.msra.mxu0 %v5967
    %6905 = vmatprep.subr.bf16.mxu0 %v5962
    %6906 = vmatpush1.bf16.msra.mxu0 %v5961
    %6907 = vmatprep.subr.bf16.mxu0 %v6052
    %6908 = vmatpush2.bf16.msra.mxu0 %v6051
    %6909 = vmatprep.subr.bf16.mxu0 %v6046
    %6910 = vmatpush2.bf16.msra.mxu0 %v6045
    %6911 = vmatprep.subr.bf16.mxu0 %v6040
    %6912 = vmatpush2.bf16.msra.mxu0 %v6039
    %6913 = vmatprep.subr.bf16.mxu0 %v6034
    %6914 = vmatpush2.bf16.msra.mxu0 %v6033
    %6915 = vmatprep.subr.bf16.mxu0 %v6028
    %6916 = vmatpush2.bf16.msra.mxu0 %v6027
    %6917 = vmatprep.subr.bf16.mxu0 %v6022
    %6918 = vmatpush2.bf16.msra.mxu0 %v6021
    %6919 = vmatprep.subr.bf16.mxu0 %v6016
    %6920 = vmatpush2.bf16.msra.mxu0 %v6015
    %6921 = vmatprep.subr.bf16.mxu0 %v6010
    %6922 = vmatpush2.bf16.msra.mxu0 %v6009
    %6923 = vmatprep.mubr.bf16.mxu0 %v4416
    %6924 = vmatmul.mubr.bf16.gmra.mxu0 %v4415
    %v6925 = vpop.f32.mrf.mxu0
    %v6926 = vadd.f32 0.0, %v6925
    %v6927 = vpop.f32.mrf.mxu0
    %v6928 = vadd.f32 0.0, %v6927
    %v6929 = vpop.f32.mrf.mxu0
    %v6930 = vpop.f32.mrf.mxu0
    %6931 = vdwg.mxu0
    %6932 = vmatprep.subr.bf16.mxu0 %v6100
    %6933 = vmatpush1.bf16.msra.mxu0 %v6099
    %6934 = vmatprep.subr.bf16.mxu0 %v6094
    %6935 = vmatpush1.bf16.msra.mxu0 %v6093
    %6936 = vmatprep.subr.bf16.mxu0 %v6088
    %6937 = vmatpush1.bf16.msra.mxu0 %v6087
    %6938 = vmatprep.subr.bf16.mxu0 %v6082
    %6939 = vmatpush1.bf16.msra.mxu0 %v6081
    %6940 = vmatprep.subr.bf16.mxu0 %v6076
    %6941 = vmatpush1.bf16.msra.mxu0 %v6075
    %6942 = vmatprep.subr.bf16.mxu0 %v6070
    %6943 = vmatpush1.bf16.msra.mxu0 %v6069
    %6944 = vmatprep.subr.bf16.mxu0 %v6064
    %6945 = vmatpush1.bf16.msra.mxu0 %v6063
    %6946 = vmatprep.subr.bf16.mxu0 %v6058
    %6947 = vmatpush1.bf16.msra.mxu0 %v6057
    %6948 = vmatprep.subr.bf16.mxu0 %v6148
    %6949 = vmatpush2.bf16.msra.mxu0 %v6147
    %6950 = vmatprep.subr.bf16.mxu0 %v6142
    %6951 = vmatpush2.bf16.msra.mxu0 %v6141
    %6952 = vmatprep.subr.bf16.mxu0 %v6136
    %6953 = vmatpush2.bf16.msra.mxu0 %v6135
    %6954 = vmatprep.subr.bf16.mxu0 %v6130
    %6955 = vmatpush2.bf16.msra.mxu0 %v6129
    %6956 = vmatprep.subr.bf16.mxu0 %v6124
    %6957 = vmatpush2.bf16.msra.mxu0 %v6123
    %6958 = vmatprep.subr.bf16.mxu0 %v6118
    %6959 = vmatpush2.bf16.msra.mxu0 %v6117
    %6960 = vmatprep.subr.bf16.mxu0 %v6112
    %6961 = vmatpush2.bf16.msra.mxu0 %v6111
    %6962 = vmatprep.subr.bf16.mxu0 %v6106
    %6963 = vmatpush2.bf16.msra.mxu0 %v6105
    %6964 = vmatprep.mubr.bf16.mxu0 %v4418
    %6965 = vmatmul.mubr.bf16.gmra.mxu0 %v4417
    %v6966 = vpop.f32.mrf.mxu0
    %v6967 = vadd.f32 %v6926, %v6966
    %v6968 = vpop.f32.mrf.mxu0
    %v6969 = vadd.f32 %v6928, %v6968
    %v6970 = vpop.f32.mrf.mxu0
    %v6971 = vpop.f32.mrf.mxu0
    %6972 = vdwg.mxu0
    %6973 = vmatprep.subr.bf16.mxu0 %v6196
    %6974 = vmatpush1.bf16.msra.mxu0 %v6195
    %6975 = vmatprep.subr.bf16.mxu0 %v6190
    %6976 = vmatpush1.bf16.msra.mxu0 %v6189
    %6977 = vmatprep.subr.bf16.mxu0 %v6184
    %6978 = vmatpush1.bf16.msra.mxu0 %v6183
    %6979 = vmatprep.subr.bf16.mxu0 %v6178
    %6980 = vmatpush1.bf16.msra.mxu0 %v6177
    %6981 = vmatprep.subr.bf16.mxu0 %v6172
    %6982 = vmatpush1.bf16.msra.mxu0 %v6171
    %6983 = vmatprep.subr.bf16.mxu0 %v6166
    %6984 = vmatpush1.bf16.msra.mxu0 %v6165
    %6985 = vmatprep.subr.bf16.mxu0 %v6160
    %6986 = vmatpush1.bf16.msra.mxu0 %v6159
    %6987 = vmatprep.subr.bf16.mxu0 %v6154
    %6988 = vmatpush1.bf16.msra.mxu0 %v6153
    %6989 = vmatprep.subr.bf16.mxu0 %v6244
    %6990 = vmatpush2.bf16.msra.mxu0 %v6243
    %6991 = vmatprep.subr.bf16.mxu0 %v6238
    %6992 = vmatpush2.bf16.msra.mxu0 %v6237
    %6993 = vmatprep.subr.bf16.mxu0 %v6232
    %6994 = vmatpush2.bf16.msra.mxu0 %v6231
    %6995 = vmatprep.subr.bf16.mxu0 %v6226
    %6996 = vmatpush2.bf16.msra.mxu0 %v6225
    %6997 = vmatprep.subr.bf16.mxu0 %v6220
    %6998 = vmatpush2.bf16.msra.mxu0 %v6219
    %6999 = vmatprep.subr.bf16.mxu0 %v6214
    %7000 = vmatpush2.bf16.msra.mxu0 %v6213
    %7001 = vmatprep.subr.bf16.mxu0 %v6208
    %7002 = vmatpush2.bf16.msra.mxu0 %v6207
    %7003 = vmatprep.subr.bf16.mxu0 %v6202
    %7004 = vmatpush2.bf16.msra.mxu0 %v6201
    %7005 = vmatprep.mubr.bf16.mxu0 %v4420
    %7006 = vmatmul.mubr.bf16.gmra.mxu0 %v4419
    %v7007 = vpop.f32.mrf.mxu0
    %v7008 = vadd.f32 %v6967, %v7007
    %v7009 = vpop.f32.mrf.mxu0
    %v7010 = vadd.f32 %v6969, %v7009
    %v7011 = vpop.f32.mrf.mxu0
    %v7012 = vpop.f32.mrf.mxu0
    %7013 = vdwg.mxu0
    %7014 = vmatprep.subr.bf16.mxu0 %v6292
    %7015 = vmatpush1.bf16.msra.mxu0 %v6291
    %7016 = vmatprep.subr.bf16.mxu0 %v6286
    %7017 = vmatpush1.bf16.msra.mxu0 %v6285
    %7018 = vmatprep.subr.bf16.mxu0 %v6280
    %7019 = vmatpush1.bf16.msra.mxu0 %v6279
    %7020 = vmatprep.subr.bf16.mxu0 %v6274
    %7021 = vmatpush1.bf16.msra.mxu0 %v6273
    %7022 = vmatprep.subr.bf16.mxu0 %v6268
    %7023 = vmatpush1.bf16.msra.mxu0 %v6267
    %7024 = vmatprep.subr.bf16.mxu0 %v6262
    %7025 = vmatpush1.bf16.msra.mxu0 %v6261
    %7026 = vmatprep.subr.bf16.mxu0 %v6256
    %7027 = vmatpush1.bf16.msra.mxu0 %v6255
    %7028 = vmatprep.subr.bf16.mxu0 %v6250
    %7029 = vmatpush1.bf16.msra.mxu0 %v6249
    %7030 = vmatprep.subr.bf16.mxu0 %v6340
    %7031 = vmatpush2.bf16.msra.mxu0 %v6339
    %7032 = vmatprep.subr.bf16.mxu0 %v6334
    %7033 = vmatpush2.bf16.msra.mxu0 %v6333
    %7034 = vmatprep.subr.bf16.mxu0 %v6328
    %7035 = vmatpush2.bf16.msra.mxu0 %v6327
    %7036 = vmatprep.subr.bf16.mxu0 %v6322
    %7037 = vmatpush2.bf16.msra.mxu0 %v6321
    %7038 = vmatprep.subr.bf16.mxu0 %v6316
    %7039 = vmatpush2.bf16.msra.mxu0 %v6315
    %7040 = vmatprep.subr.bf16.mxu0 %v6310
    %7041 = vmatpush2.bf16.msra.mxu0 %v6309
    %7042 = vmatprep.subr.bf16.mxu0 %v6304
    %7043 = vmatpush2.bf16.msra.mxu0 %v6303
    %7044 = vmatprep.subr.bf16.mxu0 %v6298
    %7045 = vmatpush2.bf16.msra.mxu0 %v6297
    %7046 = vmatprep.mubr.bf16.mxu0 %v4422
    %7047 = vmatmul.mubr.bf16.gmra.mxu0 %v4421
    %v7048 = vpop.f32.mrf.mxu0
    %v7049 = vadd.f32 %v7008, %v7048
    %v7050 = vpop.f32.mrf.mxu0
    %v7051 = vadd.f32 %v7010, %v7050
    %v7052 = vpop.f32.mrf.mxu0
    %v7053 = vpop.f32.mrf.mxu0
    %7054 = vdwg.mxu0
    %7055 = vmatprep.subr.bf16.mxu0 %v6006
    %7056 = vmatpush1.bf16.msra.mxu0 %v6005
    %7057 = vmatprep.subr.bf16.mxu0 %v6000
    %7058 = vmatpush1.bf16.msra.mxu0 %v5999
    %7059 = vmatprep.subr.bf16.mxu0 %v5994
    %7060 = vmatpush1.bf16.msra.mxu0 %v5993
    %7061 = vmatprep.subr.bf16.mxu0 %v5988
    %7062 = vmatpush1.bf16.msra.mxu0 %v5987
    %7063 = vmatprep.subr.bf16.mxu0 %v5982
    %7064 = vmatpush1.bf16.msra.mxu0 %v5981
    %7065 = vmatprep.subr.bf16.mxu0 %v5976
    %7066 = vmatpush1.bf16.msra.mxu0 %v5975
    %7067 = vmatprep.subr.bf16.mxu0 %v5970
    %7068 = vmatpush1.bf16.msra.mxu0 %v5969
    %7069 = vmatprep.subr.bf16.mxu0 %v5964
    %7070 = vmatpush1.bf16.msra.mxu0 %v5963
    %7071 = vmatprep.subr.bf16.mxu0 %v6054
    %7072 = vmatpush2.bf16.msra.mxu0 %v6053
    %7073 = vmatprep.subr.bf16.mxu0 %v6048
    %7074 = vmatpush2.bf16.msra.mxu0 %v6047
    %7075 = vmatprep.subr.bf16.mxu0 %v6042
    %7076 = vmatpush2.bf16.msra.mxu0 %v6041
    %7077 = vmatprep.subr.bf16.mxu0 %v6036
    %7078 = vmatpush2.bf16.msra.mxu0 %v6035
    %7079 = vmatprep.subr.bf16.mxu0 %v6030
    %7080 = vmatpush2.bf16.msra.mxu0 %v6029
    %7081 = vmatprep.subr.bf16.mxu0 %v6024
    %7082 = vmatpush2.bf16.msra.mxu0 %v6023
    %7083 = vmatprep.subr.bf16.mxu0 %v6018
    %7084 = vmatpush2.bf16.msra.mxu0 %v6017
    %7085 = vmatprep.subr.bf16.mxu0 %v6012
    %7086 = vmatpush2.bf16.msra.mxu0 %v6011
    %7087 = vmatprep.mubr.bf16.mxu0 %v4416
    %7088 = vmatmul.mubr.bf16.gmra.mxu0 %v4415
    %v7089 = vpop.f32.mrf.mxu0
    %v7090 = vadd.f32 0.0, %v7089
    %v7091 = vpop.f32.mrf.mxu0
    %v7092 = vadd.f32 0.0, %v7091
    %v7093 = vpop.f32.mrf.mxu0
    %v7094 = vpop.f32.mrf.mxu0
    %7095 = vdwg.mxu0
    %7096 = vmatprep.subr.bf16.mxu0 %v6102
    %7097 = vmatpush1.bf16.msra.mxu0 %v6101
    %7098 = vmatprep.subr.bf16.mxu0 %v6096
    %7099 = vmatpush1.bf16.msra.mxu0 %v6095
    %7100 = vmatprep.subr.bf16.mxu0 %v6090
    %7101 = vmatpush1.bf16.msra.mxu0 %v6089
    %7102 = vmatprep.subr.bf16.mxu0 %v6084
    %7103 = vmatpush1.bf16.msra.mxu0 %v6083
    %7104 = vmatprep.subr.bf16.mxu0 %v6078
    %7105 = vmatpush1.bf16.msra.mxu0 %v6077
    %7106 = vmatprep.subr.bf16.mxu0 %v6072
    %7107 = vmatpush1.bf16.msra.mxu0 %v6071
    %7108 = vmatprep.subr.bf16.mxu0 %v6066
    %7109 = vmatpush1.bf16.msra.mxu0 %v6065
    %7110 = vmatprep.subr.bf16.mxu0 %v6060
    %7111 = vmatpush1.bf16.msra.mxu0 %v6059
    %7112 = vmatprep.subr.bf16.mxu0 %v6150
    %7113 = vmatpush2.bf16.msra.mxu0 %v6149
    %7114 = vmatprep.subr.bf16.mxu0 %v6144
    %7115 = vmatpush2.bf16.msra.mxu0 %v6143
    %7116 = vmatprep.subr.bf16.mxu0 %v6138
    %7117 = vmatpush2.bf16.msra.mxu0 %v6137
    %7118 = vmatprep.subr.bf16.mxu0 %v6132
    %7119 = vmatpush2.bf16.msra.mxu0 %v6131
    %7120 = vmatprep.subr.bf16.mxu0 %v6126
    %7121 = vmatpush2.bf16.msra.mxu0 %v6125
    %7122 = vmatprep.subr.bf16.mxu0 %v6120
    %7123 = vmatpush2.bf16.msra.mxu0 %v6119
    %7124 = vmatprep.subr.bf16.mxu0 %v6114
    %7125 = vmatpush2.bf16.msra.mxu0 %v6113
    %7126 = vmatprep.subr.bf16.mxu0 %v6108
    %7127 = vmatpush2.bf16.msra.mxu0 %v6107
    %7128 = vmatprep.mubr.bf16.mxu0 %v4418
    %7129 = vmatmul.mubr.bf16.gmra.mxu0 %v4417
    %v7130 = vpop.f32.mrf.mxu0
    %v7131 = vadd.f32 %v7090, %v7130
    %v7132 = vpop.f32.mrf.mxu0
    %v7133 = vadd.f32 %v7092, %v7132
    %v7134 = vpop.f32.mrf.mxu0
    %v7135 = vpop.f32.mrf.mxu0
    %7136 = vdwg.mxu0
    %7137 = vmatprep.subr.bf16.mxu0 %v6198
    %7138 = vmatpush1.bf16.msra.mxu0 %v6197
    %7139 = vmatprep.subr.bf16.mxu0 %v6192
    %7140 = vmatpush1.bf16.msra.mxu0 %v6191
    %7141 = vmatprep.subr.bf16.mxu0 %v6186
    %7142 = vmatpush1.bf16.msra.mxu0 %v6185
    %7143 = vmatprep.subr.bf16.mxu0 %v6180
    %7144 = vmatpush1.bf16.msra.mxu0 %v6179
    %7145 = vmatprep.subr.bf16.mxu0 %v6174
    %7146 = vmatpush1.bf16.msra.mxu0 %v6173
    %7147 = vmatprep.subr.bf16.mxu0 %v6168
    %7148 = vmatpush1.bf16.msra.mxu0 %v6167
    %7149 = vmatprep.subr.bf16.mxu0 %v6162
    %7150 = vmatpush1.bf16.msra.mxu0 %v6161
    %7151 = vmatprep.subr.bf16.mxu0 %v6156
    %7152 = vmatpush1.bf16.msra.mxu0 %v6155
    %7153 = vmatprep.subr.bf16.mxu0 %v6246
    %7154 = vmatpush2.bf16.msra.mxu0 %v6245
    %7155 = vmatprep.subr.bf16.mxu0 %v6240
    %7156 = vmatpush2.bf16.msra.mxu0 %v6239
    %7157 = vmatprep.subr.bf16.mxu0 %v6234
    %7158 = vmatpush2.bf16.msra.mxu0 %v6233
    %7159 = vmatprep.subr.bf16.mxu0 %v6228
    %7160 = vmatpush2.bf16.msra.mxu0 %v6227
    %7161 = vmatprep.subr.bf16.mxu0 %v6222
    %7162 = vmatpush2.bf16.msra.mxu0 %v6221
    %7163 = vmatprep.subr.bf16.mxu0 %v6216
    %7164 = vmatpush2.bf16.msra.mxu0 %v6215
    %7165 = vmatprep.subr.bf16.mxu0 %v6210
    %7166 = vmatpush2.bf16.msra.mxu0 %v6209
    %7167 = vmatprep.subr.bf16.mxu0 %v6204
    %7168 = vmatpush2.bf16.msra.mxu0 %v6203
    %7169 = vmatprep.mubr.bf16.mxu0 %v4420
    %7170 = vmatmul.mubr.bf16.gmra.mxu0 %v4419
    %v7171 = vpop.f32.mrf.mxu0
    %v7172 = vadd.f32 %v7131, %v7171
    %v7173 = vpop.f32.mrf.mxu0
    %v7174 = vadd.f32 %v7133, %v7173
    %v7175 = vpop.f32.mrf.mxu0
    %v7176 = vpop.f32.mrf.mxu0
    %7177 = vdwg.mxu0
    %7178 = vmatprep.subr.bf16.mxu0 %v6294
    %7179 = vmatpush1.bf16.msra.mxu0 %v6293
    %7180 = vmatprep.subr.bf16.mxu0 %v6288
    %7181 = vmatpush1.bf16.msra.mxu0 %v6287
    %7182 = vmatprep.subr.bf16.mxu0 %v6282
    %7183 = vmatpush1.bf16.msra.mxu0 %v6281
    %7184 = vmatprep.subr.bf16.mxu0 %v6276
    %7185 = vmatpush1.bf16.msra.mxu0 %v6275
    %7186 = vmatprep.subr.bf16.mxu0 %v6270
    %7187 = vmatpush1.bf16.msra.mxu0 %v6269
    %7188 = vmatprep.subr.bf16.mxu0 %v6264
    %7189 = vmatpush1.bf16.msra.mxu0 %v6263
    %7190 = vmatprep.subr.bf16.mxu0 %v6258
    %7191 = vmatpush1.bf16.msra.mxu0 %v6257
    %7192 = vmatprep.subr.bf16.mxu0 %v6252
    %7193 = vmatpush1.bf16.msra.mxu0 %v6251
    %7194 = vmatprep.subr.bf16.mxu0 %v6342
    %7195 = vmatpush2.bf16.msra.mxu0 %v6341
    %7196 = vmatprep.subr.bf16.mxu0 %v6336
    %7197 = vmatpush2.bf16.msra.mxu0 %v6335
    %7198 = vmatprep.subr.bf16.mxu0 %v6330
    %7199 = vmatpush2.bf16.msra.mxu0 %v6329
    %7200 = vmatprep.subr.bf16.mxu0 %v6324
    %7201 = vmatpush2.bf16.msra.mxu0 %v6323
    %7202 = vmatprep.subr.bf16.mxu0 %v6318
    %7203 = vmatpush2.bf16.msra.mxu0 %v6317
    %7204 = vmatprep.subr.bf16.mxu0 %v6312
    %7205 = vmatpush2.bf16.msra.mxu0 %v6311
    %7206 = vmatprep.subr.bf16.mxu0 %v6306
    %7207 = vmatpush2.bf16.msra.mxu0 %v6305
    %7208 = vmatprep.subr.bf16.mxu0 %v6300
    %7209 = vmatpush2.bf16.msra.mxu0 %v6299
    %7210 = vmatprep.mubr.bf16.mxu0 %v4422
    %7211 = vmatmul.mubr.bf16.gmra.mxu0 %v4421
    %v7212 = vpop.f32.mrf.mxu0
    %v7213 = vadd.f32 %v7172, %v7212
    %v7214 = vpop.f32.mrf.mxu0
    %v7215 = vadd.f32 %v7174, %v7214
    %v7216 = vpop.f32.mrf.mxu0
    %v7217 = vpop.f32.mrf.mxu0
    %7218 = vdwg.mxu0
    %v7219 = vtanh.pop %v6885
    %v7220 = vtanh.pop %v6887
    %v7221 = vtanh.pop %v7049
    %v7222 = vtanh.pop %v7051
    %v7223 = vtanh.pop %v7213
    %v7224 = vtanh.pop %v7215
    %v7231 = vcombine.low %v7219, %v7220
    %v7232 = vcombine.low %v7221, %v7222
    %v7234 = vunpack.c.l.s4 1983009808
    %v7235 = vunpack.c.0.s8 %v7234
    %v7236 = vlaneseq
    %v7237 = vshrl.u32 %v7236, 7
    %v7238 = vsub.s32 %v7235, %v7237
    %v7239 = vrot.slane %v7231, %v7238
    %v7241 = vunpack.c.l.s4 1983009808
    %v7242 = vunpack.c.0.s8 %v7241
    %v7243 = vlaneseq
    %v7244 = vshrl.u32 %v7243, 7
    %v7245 = vsub.s32 %v7242, %v7244
    %v7246 = vrot.slane %v7232, %v7245
    %v7247 = vcombine.low %v7239, %v7246
    %v7248 = vcombine.low %v7223, %v7224
    %v7250 = vunpack.c.l.s4 1983009808
    %v7251 = vunpack.c.0.s8 %v7250
    %v7252 = vlaneseq
    %v7253 = vshrl.u32 %v7252, 7
    %v7254 = vsub.s32 %v7251, %v7253
    %v7255 = vrot.slane %v7248, %v7254
    %7258 = vst [vmem:[#allocation19] sm:$0xff] %v7247
    %7259 = vst [vmem:[#allocation19 + $0x8] sm:$0xf] %v7255
    // Predicated region
    $region90: #{tpu_custom_call.1} parent=1 // pred_check
      _
    $region91: #{tpu_custom_call.1} parent=1 // pred_check_branch
      %7261 = sbr.rel (0) target = $region93
    $region92: #{tpu_custom_call.1} parent=1 // pred_region
      %s7263 = ssub.s32 192, 192
      %7264 = vsyncadd [#allocation4], %s7263
      %s7266 = sshll.u32 [#allocation19], 4
      %s7267 = int_to_ptr.vmem [resolvable:$true] %s7266
      %7269 = dma.vmem_to_hbm [thread:$0]  %s7267, 192, %s12, [#allocation4]
    $region93: #{tpu_custom_call.1} parent=1 // pred_fallthru
      _
    // Predicated region
    $region94: #{tpu_custom_call.1} parent=1 // pred_check
      _
    $region95: #{tpu_custom_call.1} parent=1 // pred_check_branch
      %7271 = sbr.rel (0) target = $region97
    $region96: #{tpu_custom_call.1} parent=1 // pred_region
      %7272 = dma.done [#allocation4], 192
    $region97: #{tpu_custom_call.1} parent=1 // pred_fallthru
      _
    %7273 = vsyncpa [#allocation3], 1
    %7274 = vsyncpa [#allocation6], 1
    %7275 = vsyncpa [#allocation9], 1
    %7276 = vsyncpa [#allocation12], 1
    %7277 = vsyncpa [#allocation15], 1
    %7278 = vsyncpa [#allocation18], 1
    %7279 = vsyncpa [#allocation4], 1

</llo_original>
